<compile_context>
chip_gen: v7x
topology: tpu7x:2x2x1
jax: 0.10.0
libtpu: 0.0.40
codegen_flags: <defaults>
</compile_context>

<pallas_src>
import functools

import jax
import jax.numpy as jnp
from jax.experimental import pallas as pl
from jax.experimental.pallas import tpu as pltpu

CIN = 256
COUT = 256
KSIZE = 3          # conv kernel (3x3, padding=1, stride=1)
POOL = 3           # maxpool kernel
STRIDE = 2         # maxpool stride


def _c5_kernel(H, W, xsh_ref, w_ref, b_ref, o_ref, conv_ref):
    """Fused Conv3x3(pad=1) + bias + ReLU + MaxPool3x3/2 for one batch element.

    xsh_ref : (3, H*Wp + 2, CIN)  kh-shifted, zero-padded, (h,w)-flattened input
    w_ref   : (9, CIN, COUT)      conv weights, index = kh*3 + kw
    b_ref   : (1, COUT)
    o_ref   : (Ho, Wo, COUT)      pooled output (NHWC block for this batch elem)
    conv_ref: (H*Wp, COUT) f32    scratch: pre-activation conv result (flat rows)
    """
    Wp = W + 2
    HWp = H * Wp
    Ho = (H - POOL) // STRIDE + 1
    Wo = (W - POOL) // STRIDE + 1
    Wwin = W - POOL + 1  # number of valid sliding-window positions along W

    # ---- convolution: 9 shifted (H*Wp, CIN) @ (CIN, COUT) MXU matmuls ----
    for kh in range(KSIZE):
        for kw in range(KSIZE):
            contrib = jnp.dot(
                xsh_ref[kh, kw:kw + HWp, :],
                w_ref[kh * KSIZE + kw],
                preferred_element_type=jnp.float32,
            )
            if kh == 0 and kw == 0:
                conv_ref[...] = contrib
            else:
                conv_ref[...] += contrib

    bias = b_ref[...]                                          # (1, COUT)

    # stride-2 column subsample expressed as a 0/1 selection matmul:
    # sel[j, w] = 1 iff w == 2*j  (exact: picks element w=2j out of the window max)
    jj = jax.lax.broadcasted_iota(jnp.int32, (Wo, Wwin), 0)
    ww = jax.lax.broadcasted_iota(jnp.int32, (Wo, Wwin), 1)
    sel = (ww == STRIDE * jj).astype(jnp.float32)              # (Wo, Wwin)

    # ---- bias + ReLU + 3x3/2 max-pool, one output row at a time ----
    for r in range(Ho):
        m = None
        for ph in range(POOL):
            base = (STRIDE * r + ph) * Wp
            for pw in range(POOL):
                sl = conv_ref[base + pw: base + pw + Wwin, :]  # (Wwin, COUT)
                m = sl if m is None else jnp.maximum(m, sl)
        # bias add + ReLU commute exactly with the max (monotone per channel)
        m = jnp.maximum(m + bias, 0.0)                         # (Wwin, COUT)
        row = jnp.dot(sel, m, preferred_element_type=jnp.float32)  # (Wo, COUT)
        o_ref[r] = row.astype(o_ref.dtype)


@jax.jit
def c5_forward(x, weight, bias):
    """x: (N, 256, H, W) f32 NCHW; weight: (256, 256, 3, 3); bias: (256,).

    Returns (N, 256, Ho, Wo) with Ho = Wo = floor((H-3)/2) + 1, matching
    Conv2d(256,256,3,padding=1) -> ReLU -> MaxPool2d(3, stride=2).
    """
    N, Cin, H, W = x.shape
    assert Cin == CIN and weight.shape == (COUT, CIN, KSIZE, KSIZE)
    Wp = W + 2
    Ho = (H - POOL) // STRIDE + 1
    Wo = (W - POOL) // STRIDE + 1

    # One-time (jitted) layout plumbing: NCHW -> NHWC, zero-pad, build the 3
    # kh-shifted flattened copies the kernel consumes, rearrange the weights.
    x_nhwc = jnp.transpose(x, (0, 2, 3, 1))                        # (N, H, W, C)
    x_pad = jnp.pad(x_nhwc, ((0, 0), (1, 1), (1, 1), (0, 0)))      # (N, H+2, Wp, C)
    shifted = [x_pad[:, kh:kh + H, :, :].reshape(N, H * Wp, CIN)
               for kh in range(KSIZE)]
    xsh = jnp.stack(shifted, axis=1)                               # (N, 3, H*Wp, C)
    xsh = jnp.pad(xsh, ((0, 0), (0, 0), (0, KSIZE - 1), (0, 0)))   # (N, 3, H*Wp+2, C)

    wk = jnp.transpose(weight, (2, 3, 1, 0)).reshape(KSIZE * KSIZE, CIN, COUT)
    b2 = bias.reshape(1, COUT)

    kernel = functools.partial(_c5_kernel, H, W)
    out_nhwc = pl.pallas_call(
        kernel,
        out_shape=jax.ShapeDtypeStruct((N, Ho, Wo, COUT), x.dtype),
        grid_spec=pltpu.PrefetchScalarGridSpec(
            num_scalar_prefetch=0,
            grid=(N,),
            in_specs=[
                pl.BlockSpec((None, KSIZE, H * Wp + KSIZE - 1, CIN),
                             lambda n: (n, 0, 0, 0)),
                pl.BlockSpec((KSIZE * KSIZE, CIN, COUT), lambda n: (0, 0, 0)),
                pl.BlockSpec((1, COUT), lambda n: (0, 0)),
            ],
            out_specs=pl.BlockSpec((None, Ho, Wo, COUT), lambda n: (n, 0, 0, 0)),
            scratch_shapes=[pltpu.VMEM((H * Wp, COUT), jnp.float32)],
        ),
        compiler_params=pltpu.CompilerParams(
            dimension_semantics=("parallel",),
        ),
    )(xsh, wk, b2)

    return jnp.transpose(out_nhwc, (0, 3, 1, 2))                   # NHWC -> NCHW


if __name__ == "__main__":
    key = jax.random.PRNGKey(0)
    kx, kw_, kb = jax.random.split(key, 3)

    # AlexNet's c5 sees 13x13x256 feature maps; batch kept small.
    N, H, W = 2, 13, 13
    x = jax.random.normal(kx, (N, CIN, H, W), dtype=jnp.float32)

    fan_in = CIN * KSIZE * KSIZE
    bound = 1.0 / jnp.sqrt(jnp.float32(fan_in))
    weight = jax.random.uniform(kw_, (COUT, CIN, KSIZE, KSIZE), jnp.float32,
                                minval=-bound, maxval=bound)
    bias = jax.random.uniform(kb, (COUT,), jnp.float32,
                              minval=-bound, maxval=bound)

    out = jax.block_until_ready(c5_forward(x, weight, bias))

    # Plain-JAX reference: conv(pad=1) + bias -> ReLU -> maxpool 3x3 stride 2.
    conv = jax.lax.conv_general_dilated(
        x, weight, window_strides=(1, 1), padding=((1, 1), (1, 1)),
        dimension_numbers=("NCHW", "OIHW", "NCHW"),
        precision=jax.lax.Precision.HIGHEST)
    act = jnp.maximum(conv + bias[None, :, None, None], 0.0)
    Ho = (H - POOL) // STRIDE + 1
    Wo = (W - POOL) // STRIDE + 1
    windows = [act[:, :, ph:ph + STRIDE * Ho - 1:STRIDE,
                   pw:pw + STRIDE * Wo - 1:STRIDE]
               for ph in range(POOL) for pw in range(POOL)]
    ref = jnp.max(jnp.stack(windows, axis=0), axis=0)

    assert out.shape == ref.shape == (N, COUT, Ho, Wo), (out.shape, ref.shape)
    err = float(jnp.max(jnp.abs(out - ref)))
    assert jnp.allclose(out, ref, atol=1e-2, rtol=1e-2), err

    print("KERNEL_OK")
</pallas_src>

<mosaic_0001>
module attributes {stable_mosaic.version = 11 : i64} {
  func.func @_c5_kernel(%arg0: i32, %arg1: memref<1x3x197x256xf32, #tpu.memory_space<vmem>>, %arg2: memref<9x256x256xf32, #tpu.memory_space<vmem>>, %arg3: memref<1x256xf32, #tpu.memory_space<vmem>>, %arg4: memref<1x6x6x256xf32, #tpu.memory_space<vmem>>, %arg5: memref<195x256xf32, #tpu.memory_space<vmem>>) attributes {dimension_semantics = [#tpu.dimension_semantics<parallel>], iteration_bounds = array<i64: 2>, scalar_prefetch = 0 : i64, scratch_operands = 1 : i64, tpu.core_type = #tpu.core_type<tc>, window_params = [{transform_indices = @transform_0, window_bounds = array<i64: 1, 3, 197, 256>}, {pipeline_mode = #tpu.pipeline_mode<synchronous>, transform_indices = @transform_1, window_bounds = array<i64: 9, 256, 256>}, {pipeline_mode = #tpu.pipeline_mode<synchronous>, transform_indices = @transform_2, window_bounds = array<i64: 1, 256>}, {transform_indices = @transform_3, window_bounds = array<i64: 1, 6, 6, 256>}]} {
    %c0 = arith.constant 0 : index
    %c0_0 = arith.constant 0 : index
    %c0_1 = arith.constant 0 : index
    %c0_2 = arith.constant 0 : index
    %0 = vector.load %arg1[%c0, %c0_0, %c0_1, %c0_2] : memref<1x3x197x256xf32, #tpu.memory_space<vmem>>, vector<1x1x195x256xf32>
    %1 = vector.shape_cast %0 : vector<1x1x195x256xf32> to vector<195x256xf32>
    %c0_3 = arith.constant 0 : index
    %c0_4 = arith.constant 0 : index
    %c0_5 = arith.constant 0 : index
    %2 = vector.load %arg2[%c0_3, %c0_4, %c0_5] : memref<9x256x256xf32, #tpu.memory_space<vmem>>, vector<1x256x256xf32>
    %3 = vector.shape_cast %2 : vector<1x256x256xf32> to vector<256x256xf32>
    %cst = arith.constant dense<0.000000e+00> : vector<195x256xf32>
    %4 = tpu.matmul %1, %3, %cst {dimension_numbers = #tpu.dot_dimension_numbers<[1], [0], [0], [1], [0, 0, 1, 1], [], []>} : vector<195x256xf32>, vector<256x256xf32>, vector<195x256xf32> -> vector<195x256xf32>
    %c0_6 = arith.constant 0 : index
    %c0_7 = arith.constant 0 : index
    %5 = vector.load %arg5[%c0_6, %c0_7] : memref<195x256xf32, #tpu.memory_space<vmem>>, vector<195x256xf32>
    tpu.vector_store %arg5[%c0_6, %c0_7], %4 {strides = array<i32>} : memref<195x256xf32, #tpu.memory_space<vmem>>, vector<195x256xf32>,
    %c0_8 = arith.constant 0 : index
    %c0_9 = arith.constant 0 : index
    %c1 = arith.constant 1 : index
    %c0_10 = arith.constant 0 : index
    %6 = vector.load %arg1[%c0_8, %c0_9, %c1, %c0_10] : memref<1x3x197x256xf32, #tpu.memory_space<vmem>>, vector<1x1x195x256xf32>
    %7 = vector.shape_cast %6 : vector<1x1x195x256xf32> to vector<195x256xf32>
    %c1_11 = arith.constant 1 : index
    %c0_12 = arith.constant 0 : index
    %c0_13 = arith.constant 0 : index
    %8 = vector.load %arg2[%c1_11, %c0_12, %c0_13] : memref<9x256x256xf32, #tpu.memory_space<vmem>>, vector<1x256x256xf32>
    %9 = vector.shape_cast %8 : vector<1x256x256xf32> to vector<256x256xf32>
    %cst_14 = arith.constant dense<0.000000e+00> : vector<195x256xf32>
    %10 = tpu.matmul %7, %9, %cst_14 {dimension_numbers = #tpu.dot_dimension_numbers<[1], [0], [0], [1], [0, 0, 1, 1], [], []>} : vector<195x256xf32>, vector<256x256xf32>, vector<195x256xf32> -> vector<195x256xf32>
    %c0_15 = arith.constant 0 : index
    %c0_16 = arith.constant 0 : index
    %11 = vector.load %arg5[%c0_15, %c0_16] : memref<195x256xf32, #tpu.memory_space<vmem>>, vector<195x256xf32>
    %12 = arith.addf %11, %10 : vector<195x256xf32>
    %c0_17 = arith.constant 0 : index
    %c0_18 = arith.constant 0 : index
    %13 = vector.load %arg5[%c0_17, %c0_18] : memref<195x256xf32, #tpu.memory_space<vmem>>, vector<195x256xf32>
    tpu.vector_store %arg5[%c0_17, %c0_18], %12 {strides = array<i32>} : memref<195x256xf32, #tpu.memory_space<vmem>>, vector<195x256xf32>,
    %c0_19 = arith.constant 0 : index
    %c0_20 = arith.constant 0 : index
    %c2 = arith.constant 2 : index
    %c0_21 = arith.constant 0 : index
    %14 = vector.load %arg1[%c0_19, %c0_20, %c2, %c0_21] : memref<1x3x197x256xf32, #tpu.memory_space<vmem>>, vector<1x1x195x256xf32>
    %15 = vector.shape_cast %14 : vector<1x1x195x256xf32> to vector<195x256xf32>
    %c2_22 = arith.constant 2 : index
    %c0_23 = arith.constant 0 : index
    %c0_24 = arith.constant 0 : index
    %16 = vector.load %arg2[%c2_22, %c0_23, %c0_24] : memref<9x256x256xf32, #tpu.memory_space<vmem>>, vector<1x256x256xf32>
    %17 = vector.shape_cast %16 : vector<1x256x256xf32> to vector<256x256xf32>
    %cst_25 = arith.constant dense<0.000000e+00> : vector<195x256xf32>
    %18 = tpu.matmul %15, %17, %cst_25 {dimension_numbers = #tpu.dot_dimension_numbers<[1], [0], [0], [1], [0, 0, 1, 1], [], []>} : vector<195x256xf32>, vector<256x256xf32>, vector<195x256xf32> -> vector<195x256xf32>
    %c0_26 = arith.constant 0 : index
    %c0_27 = arith.constant 0 : index
    %19 = vector.load %arg5[%c0_26, %c0_27] : memref<195x256xf32, #tpu.memory_space<vmem>>, vector<195x256xf32>
    %20 = arith.addf %19, %18 : vector<195x256xf32>
    %c0_28 = arith.constant 0 : index
    %c0_29 = arith.constant 0 : index
    %21 = vector.load %arg5[%c0_28, %c0_29] : memref<195x256xf32, #tpu.memory_space<vmem>>, vector<195x256xf32>
    tpu.vector_store %arg5[%c0_28, %c0_29], %20 {strides = array<i32>} : memref<195x256xf32, #tpu.memory_space<vmem>>, vector<195x256xf32>,
    %c0_30 = arith.constant 0 : index
    %c1_31 = arith.constant 1 : index
    %c0_32 = arith.constant 0 : index
    %c0_33 = arith.constant 0 : index
    %22 = vector.load %arg1[%c0_30, %c1_31, %c0_32, %c0_33] : memref<1x3x197x256xf32, #tpu.memory_space<vmem>>, vector<1x1x195x256xf32>
    %23 = vector.shape_cast %22 : vector<1x1x195x256xf32> to vector<195x256xf32>
    %c3 = arith.constant 3 : index
    %c0_34 = arith.constant 0 : index
    %c0_35 = arith.constant 0 : index
    %24 = vector.load %arg2[%c3, %c0_34, %c0_35] : memref<9x256x256xf32, #tpu.memory_space<vmem>>, vector<1x256x256xf32>
    %25 = vector.shape_cast %24 : vector<1x256x256xf32> to vector<256x256xf32>
    %cst_36 = arith.constant dense<0.000000e+00> : vector<195x256xf32>
    %26 = tpu.matmul %23, %25, %cst_36 {dimension_numbers = #tpu.dot_dimension_numbers<[1], [0], [0], [1], [0, 0, 1, 1], [], []>} : vector<195x256xf32>, vector<256x256xf32>, vector<195x256xf32> -> vector<195x256xf32>
    %c0_37 = arith.constant 0 : index
    %c0_38 = arith.constant 0 : index
    %27 = vector.load %arg5[%c0_37, %c0_38] : memref<195x256xf32, #tpu.memory_space<vmem>>, vector<195x256xf32>
    %28 = arith.addf %27, %26 : vector<195x256xf32>
    %c0_39 = arith.constant 0 : index
    %c0_40 = arith.constant 0 : index
    %29 = vector.load %arg5[%c0_39, %c0_40] : memref<195x256xf32, #tpu.memory_space<vmem>>, vector<195x256xf32>
    tpu.vector_store %arg5[%c0_39, %c0_40], %28 {strides = array<i32>} : memref<195x256xf32, #tpu.memory_space<vmem>>, vector<195x256xf32>,
    %c0_41 = arith.constant 0 : index
    %c1_42 = arith.constant 1 : index
    %c1_43 = arith.constant 1 : index
    %c0_44 = arith.constant 0 : index
    %30 = vector.load %arg1[%c0_41, %c1_42, %c1_43, %c0_44] : memref<1x3x197x256xf32, #tpu.memory_space<vmem>>, vector<1x1x195x256xf32>
    %31 = vector.shape_cast %30 : vector<1x1x195x256xf32> to vector<195x256xf32>
    %c4 = arith.constant 4 : index
    %c0_45 = arith.constant 0 : index
    %c0_46 = arith.constant 0 : index
    %32 = vector.load %arg2[%c4, %c0_45, %c0_46] : memref<9x256x256xf32, #tpu.memory_space<vmem>>, vector<1x256x256xf32>
    %33 = vector.shape_cast %32 : vector<1x256x256xf32> to vector<256x256xf32>
    %cst_47 = arith.constant dense<0.000000e+00> : vector<195x256xf32>
    %34 = tpu.matmul %31, %33, %cst_47 {dimension_numbers = #tpu.dot_dimension_numbers<[1], [0], [0], [1], [0, 0, 1, 1], [], []>} : vector<195x256xf32>, vector<256x256xf32>, vector<195x256xf32> -> vector<195x256xf32>
    %c0_48 = arith.constant 0 : index
    %c0_49 = arith.constant 0 : index
    %35 = vector.load %arg5[%c0_48, %c0_49] : memref<195x256xf32, #tpu.memory_space<vmem>>, vector<195x256xf32>
    %36 = arith.addf %35, %34 : vector<195x256xf32>
    %c0_50 = arith.constant 0 : index
    %c0_51 = arith.constant 0 : index
    %37 = vector.load %arg5[%c0_50, %c0_51] : memref<195x256xf32, #tpu.memory_space<vmem>>, vector<195x256xf32>
    tpu.vector_store %arg5[%c0_50, %c0_51], %36 {strides = array<i32>} : memref<195x256xf32, #tpu.memory_space<vmem>>, vector<195x256xf32>,
    %c0_52 = arith.constant 0 : index
    %c1_53 = arith.constant 1 : index
    %c2_54 = arith.constant 2 : index
    %c0_55 = arith.constant 0 : index
    %38 = vector.load %arg1[%c0_52, %c1_53, %c2_54, %c0_55] : memref<1x3x197x256xf32, #tpu.memory_space<vmem>>, vector<1x1x195x256xf32>
    %39 = vector.shape_cast %38 : vector<1x1x195x256xf32> to vector<195x256xf32>
    %c5 = arith.constant 5 : index
    %c0_56 = arith.constant 0 : index
    %c0_57 = arith.constant 0 : index
    %40 = vector.load %arg2[%c5, %c0_56, %c0_57] : memref<9x256x256xf32, #tpu.memory_space<vmem>>, vector<1x256x256xf32>
    %41 = vector.shape_cast %40 : vector<1x256x256xf32> to vector<256x256xf32>
    %cst_58 = arith.constant dense<0.000000e+00> : vector<195x256xf32>
    %42 = tpu.matmul %39, %41, %cst_58 {dimension_numbers = #tpu.dot_dimension_numbers<[1], [0], [0], [1], [0, 0, 1, 1], [], []>} : vector<195x256xf32>, vector<256x256xf32>, vector<195x256xf32> -> vector<195x256xf32>
    %c0_59 = arith.constant 0 : index
    %c0_60 = arith.constant 0 : index
    %43 = vector.load %arg5[%c0_59, %c0_60] : memref<195x256xf32, #tpu.memory_space<vmem>>, vector<195x256xf32>
    %44 = arith.addf %43, %42 : vector<195x256xf32>
    %c0_61 = arith.constant 0 : index
    %c0_62 = arith.constant 0 : index
    %45 = vector.load %arg5[%c0_61, %c0_62] : memref<195x256xf32, #tpu.memory_space<vmem>>, vector<195x256xf32>
    tpu.vector_store %arg5[%c0_61, %c0_62], %44 {strides = array<i32>} : memref<195x256xf32, #tpu.memory_space<vmem>>, vector<195x256xf32>,
    %c0_63 = arith.constant 0 : index
    %c2_64 = arith.constant 2 : index
    %c0_65 = arith.constant 0 : index
    %c0_66 = arith.constant 0 : index
    %46 = vector.load %arg1[%c0_63, %c2_64, %c0_65, %c0_66] : memref<1x3x197x256xf32, #tpu.memory_space<vmem>>, vector<1x1x195x256xf32>
    %47 = vector.shape_cast %46 : vector<1x1x195x256xf32> to vector<195x256xf32>
    %c6 = arith.constant 6 : index
    %c0_67 = arith.constant 0 : index
    %c0_68 = arith.constant 0 : index
    %48 = vector.load %arg2[%c6, %c0_67, %c0_68] : memref<9x256x256xf32, #tpu.memory_space<vmem>>, vector<1x256x256xf32>
    %49 = vector.shape_cast %48 : vector<1x256x256xf32> to vector<256x256xf32>
    %cst_69 = arith.constant dense<0.000000e+00> : vector<195x256xf32>
    %50 = tpu.matmul %47, %49, %cst_69 {dimension_numbers = #tpu.dot_dimension_numbers<[1], [0], [0], [1], [0, 0, 1, 1], [], []>} : vector<195x256xf32>, vector<256x256xf32>, vector<195x256xf32> -> vector<195x256xf32>
    %c0_70 = arith.constant 0 : index
    %c0_71 = arith.constant 0 : index
    %51 = vector.load %arg5[%c0_70, %c0_71] : memref<195x256xf32, #tpu.memory_space<vmem>>, vector<195x256xf32>
    %52 = arith.addf %51, %50 : vector<195x256xf32>
    %c0_72 = arith.constant 0 : index
    %c0_73 = arith.constant 0 : index
    %53 = vector.load %arg5[%c0_72, %c0_73] : memref<195x256xf32, #tpu.memory_space<vmem>>, vector<195x256xf32>
    tpu.vector_store %arg5[%c0_72, %c0_73], %52 {strides = array<i32>} : memref<195x256xf32, #tpu.memory_space<vmem>>, vector<195x256xf32>,
    %c0_74 = arith.constant 0 : index
    %c2_75 = arith.constant 2 : index
    %c1_76 = arith.constant 1 : index
    %c0_77 = arith.constant 0 : index
    %54 = vector.load %arg1[%c0_74, %c2_75, %c1_76, %c0_77] : memref<1x3x197x256xf32, #tpu.memory_space<vmem>>, vector<1x1x195x256xf32>
    %55 = vector.shape_cast %54 : vector<1x1x195x256xf32> to vector<195x256xf32>
    %c7 = arith.constant 7 : index
    %c0_78 = arith.constant 0 : index
    %c0_79 = arith.constant 0 : index
    %56 = vector.load %arg2[%c7, %c0_78, %c0_79] : memref<9x256x256xf32, #tpu.memory_space<vmem>>, vector<1x256x256xf32>
    %57 = vector.shape_cast %56 : vector<1x256x256xf32> to vector<256x256xf32>
    %cst_80 = arith.constant dense<0.000000e+00> : vector<195x256xf32>
    %58 = tpu.matmul %55, %57, %cst_80 {dimension_numbers = #tpu.dot_dimension_numbers<[1], [0], [0], [1], [0, 0, 1, 1], [], []>} : vector<195x256xf32>, vector<256x256xf32>, vector<195x256xf32> -> vector<195x256xf32>
    %c0_81 = arith.constant 0 : index
    %c0_82 = arith.constant 0 : index
    %59 = vector.load %arg5[%c0_81, %c0_82] : memref<195x256xf32, #tpu.memory_space<vmem>>, vector<195x256xf32>
    %60 = arith.addf %59, %58 : vector<195x256xf32>
    %c0_83 = arith.constant 0 : index
    %c0_84 = arith.constant 0 : index
    %61 = vector.load %arg5[%c0_83, %c0_84] : memref<195x256xf32, #tpu.memory_space<vmem>>, vector<195x256xf32>
    tpu.vector_store %arg5[%c0_83, %c0_84], %60 {strides = array<i32>} : memref<195x256xf32, #tpu.memory_space<vmem>>, vector<195x256xf32>,
    %c0_85 = arith.constant 0 : index
    %c2_86 = arith.constant 2 : index
    %c2_87 = arith.constant 2 : index
    %c0_88 = arith.constant 0 : index
    %62 = vector.load %arg1[%c0_85, %c2_86, %c2_87, %c0_88] : memref<1x3x197x256xf32, #tpu.memory_space<vmem>>, vector<1x1x195x256xf32>
    %63 = vector.shape_cast %62 : vector<1x1x195x256xf32> to vector<195x256xf32>
    %c8 = arith.constant 8 : index
    %c0_89 = arith.constant 0 : index
    %c0_90 = arith.constant 0 : index
    %64 = vector.load %arg2[%c8, %c0_89, %c0_90] : memref<9x256x256xf32, #tpu.memory_space<vmem>>, vector<1x256x256xf32>
    %65 = vector.shape_cast %64 : vector<1x256x256xf32> to vector<256x256xf32>
    %cst_91 = arith.constant dense<0.000000e+00> : vector<195x256xf32>
    %66 = tpu.matmul %63, %65, %cst_91 {dimension_numbers = #tpu.dot_dimension_numbers<[1], [0], [0], [1], [0, 0, 1, 1], [], []>} : vector<195x256xf32>, vector<256x256xf32>, vector<195x256xf32> -> vector<195x256xf32>
    %c0_92 = arith.constant 0 : index
    %c0_93 = arith.constant 0 : index
    %67 = vector.load %arg5[%c0_92, %c0_93] : memref<195x256xf32, #tpu.memory_space<vmem>>, vector<195x256xf32>
    %68 = arith.addf %67, %66 : vector<195x256xf32>
    %c0_94 = arith.constant 0 : index
    %c0_95 = arith.constant 0 : index
    %69 = vector.load %arg5[%c0_94, %c0_95] : memref<195x256xf32, #tpu.memory_space<vmem>>, vector<195x256xf32>
    tpu.vector_store %arg5[%c0_94, %c0_95], %68 {strides = array<i32>} : memref<195x256xf32, #tpu.memory_space<vmem>>, vector<195x256xf32>,
    %c0_96 = arith.constant 0 : index
    %c0_97 = arith.constant 0 : index
    %70 = vector.load %arg3[%c0_96, %c0_97] : memref<1x256xf32, #tpu.memory_space<vmem>>, vector<1x256xf32>
    %71 = tpu.iota {dimensions = array<i32: 0>} : vector<6x11xi32>
    %72 = tpu.iota {dimensions = array<i32: 1>} : vector<6x11xi32>
    %c2_i32 = arith.constant 2 : i32
    %73 = vector.broadcast %c2_i32 : i32 to vector<6x11xi32>
    %74 = arith.muli %73, %71 : vector<6x11xi32>
    %75 = arith.cmpi eq, %72, %74 : vector<6x11xi32>
    %76 = arith.extui %75 : vector<6x11xi1> to vector<6x11xi32>
    %77 = arith.sitofp %76 : vector<6x11xi32> to vector<6x11xf32>
    %c0_98 = arith.constant 0 : index
    %c0_99 = arith.constant 0 : index
    %78 = vector.load %arg5[%c0_98, %c0_99] : memref<195x256xf32, #tpu.memory_space<vmem>>, vector<11x256xf32>
    %c1_100 = arith.constant 1 : index
    %c0_101 = arith.constant 0 : index
    %79 = vector.load %arg5[%c1_100, %c0_101] : memref<195x256xf32, #tpu.memory_space<vmem>>, vector<11x256xf32>
    %80 = arith.maximumf %78, %79 : vector<11x256xf32>
    %c2_102 = arith.constant 2 : index
    %c0_103 = arith.constant 0 : index
    %81 = vector.load %arg5[%c2_102, %c0_103] : memref<195x256xf32, #tpu.memory_space<vmem>>, vector<11x256xf32>
    %82 = arith.maximumf %80, %81 : vector<11x256xf32>
    %c15 = arith.constant 15 : index
    %c0_104 = arith.constant 0 : index
    %83 = vector.load %arg5[%c15, %c0_104] : memref<195x256xf32, #tpu.memory_space<vmem>>, vector<11x256xf32>
    %84 = arith.maximumf %82, %83 : vector<11x256xf32>
    %c16 = arith.constant 16 : index
    %c0_105 = arith.constant 0 : index
    %85 = vector.load %arg5[%c16, %c0_105] : memref<195x256xf32, #tpu.memory_space<vmem>>, vector<11x256xf32>
    %86 = arith.maximumf %84, %85 : vector<11x256xf32>
    %c17 = arith.constant 17 : index
    %c0_106 = arith.constant 0 : index
    %87 = vector.load %arg5[%c17, %c0_106] : memref<195x256xf32, #tpu.memory_space<vmem>>, vector<11x256xf32>
    %88 = arith.maximumf %86, %87 : vector<11x256xf32>
    %c30 = arith.constant 30 : index
    %c0_107 = arith.constant 0 : index
    %89 = vector.load %arg5[%c30, %c0_107] : memref<195x256xf32, #tpu.memory_space<vmem>>, vector<11x256xf32>
    %90 = arith.maximumf %88, %89 : vector<11x256xf32>
    %c31 = arith.constant 31 : index
    %c0_108 = arith.constant 0 : index
    %91 = vector.load %arg5[%c31, %c0_108] : memref<195x256xf32, #tpu.memory_space<vmem>>, vector<11x256xf32>
    %92 = arith.maximumf %90, %91 : vector<11x256xf32>
    %c32 = arith.constant 32 : index
    %c0_109 = arith.constant 0 : index
    %93 = vector.load %arg5[%c32, %c0_109] : memref<195x256xf32, #tpu.memory_space<vmem>>, vector<11x256xf32>
    %94 = arith.maximumf %92, %93 : vector<11x256xf32>
    %95 = vector.broadcast %70 : vector<1x256xf32> to vector<11x256xf32>
    %96 = arith.addf %94, %95 : vector<11x256xf32>
    %cst_110 = arith.constant 0.000000e+00 : f32
    %97 = vector.broadcast %cst_110 : f32 to vector<11x256xf32>
    %98 = arith.maximumf %96, %97 : vector<11x256xf32>
    %cst_111 = arith.constant dense<0.000000e+00> : vector<6x256xf32>
    %99 = tpu.matmul %77, %98, %cst_111 {dimension_numbers = #tpu.dot_dimension_numbers<[1], [0], [0], [1], [0, 0, 1, 1], [], []>} : vector<6x11xf32>, vector<11x256xf32>, vector<6x256xf32> -> vector<6x256xf32>
    %c0_112 = arith.constant 0 : index
    %c0_113 = arith.constant 0 : index
    %c0_114 = arith.constant 0 : index
    %c0_115 = arith.constant 0 : index
    %100 = vector.load %arg4[%c0_112, %c0_113, %c0_114, %c0_115] : memref<1x6x6x256xf32, #tpu.memory_space<vmem>>, vector<1x1x6x256xf32>
    %101 = vector.shape_cast %100 : vector<1x1x6x256xf32> to vector<6x256xf32>
    %102 = vector.shape_cast %99 : vector<6x256xf32> to vector<1x1x6x256xf32>
    tpu.vector_store %arg4[%c0_112, %c0_113, %c0_114, %c0_115], %102 {strides = array<i32>} : memref<1x6x6x256xf32, #tpu.memory_space<vmem>>, vector<1x1x6x256xf32>,
    %c30_116 = arith.constant 30 : index
    %c0_117 = arith.constant 0 : index
    %103 = vector.load %arg5[%c30_116, %c0_117] : memref<195x256xf32, #tpu.memory_space<vmem>>, vector<11x256xf32>
    %c31_118 = arith.constant 31 : index
    %c0_119 = arith.constant 0 : index
    %104 = vector.load %arg5[%c31_118, %c0_119] : memref<195x256xf32, #tpu.memory_space<vmem>>, vector<11x256xf32>
    %105 = arith.maximumf %103, %104 : vector<11x256xf32>
    %c32_120 = arith.constant 32 : index
    %c0_121 = arith.constant 0 : index
    %106 = vector.load %arg5[%c32_120, %c0_121] : memref<195x256xf32, #tpu.memory_space<vmem>>, vector<11x256xf32>
    %107 = arith.maximumf %105, %106 : vector<11x256xf32>
    %c45 = arith.constant 45 : index
    %c0_122 = arith.constant 0 : index
    %108 = vector.load %arg5[%c45, %c0_122] : memref<195x256xf32, #tpu.memory_space<vmem>>, vector<11x256xf32>
    %109 = arith.maximumf %107, %108 : vector<11x256xf32>
    %c46 = arith.constant 46 : index
    %c0_123 = arith.constant 0 : index
    %110 = vector.load %arg5[%c46, %c0_123] : memref<195x256xf32, #tpu.memory_space<vmem>>, vector<11x256xf32>
    %111 = arith.maximumf %109, %110 : vector<11x256xf32>
    %c47 = arith.constant 47 : index
    %c0_124 = arith.constant 0 : index
    %112 = vector.load %arg5[%c47, %c0_124] : memref<195x256xf32, #tpu.memory_space<vmem>>, vector<11x256xf32>
    %113 = arith.maximumf %111, %112 : vector<11x256xf32>
    %c60 = arith.constant 60 : index
    %c0_125 = arith.constant 0 : index
    %114 = vector.load %arg5[%c60, %c0_125] : memref<195x256xf32, #tpu.memory_space<vmem>>, vector<11x256xf32>
    %115 = arith.maximumf %113, %114 : vector<11x256xf32>
    %c61 = arith.constant 61 : index
    %c0_126 = arith.constant 0 : index
    %116 = vector.load %arg5[%c61, %c0_126] : memref<195x256xf32, #tpu.memory_space<vmem>>, vector<11x256xf32>
    %117 = arith.maximumf %115, %116 : vector<11x256xf32>
    %c62 = arith.constant 62 : index
    %c0_127 = arith.constant 0 : index
    %118 = vector.load %arg5[%c62, %c0_127] : memref<195x256xf32, #tpu.memory_space<vmem>>, vector<11x256xf32>
    %119 = arith.maximumf %117, %118 : vector<11x256xf32>
    %120 = vector.broadcast %70 : vector<1x256xf32> to vector<11x256xf32>
    %121 = arith.addf %119, %120 : vector<11x256xf32>
    %cst_128 = arith.constant 0.000000e+00 : f32
    %122 = vector.broadcast %cst_128 : f32 to vector<11x256xf32>
    %123 = arith.maximumf %121, %122 : vector<11x256xf32>
    %cst_129 = arith.constant dense<0.000000e+00> : vector<6x256xf32>
    %124 = tpu.matmul %77, %123, %cst_129 {dimension_numbers = #tpu.dot_dimension_numbers<[1], [0], [0], [1], [0, 0, 1, 1], [], []>} : vector<6x11xf32>, vector<11x256xf32>, vector<6x256xf32> -> vector<6x256xf32>
    %c0_130 = arith.constant 0 : index
    %c1_131 = arith.constant 1 : index
    %c0_132 = arith.constant 0 : index
    %c0_133 = arith.constant 0 : index
    %125 = vector.load %arg4[%c0_130, %c1_131, %c0_132, %c0_133] : memref<1x6x6x256xf32, #tpu.memory_space<vmem>>, vector<1x1x6x256xf32>
    %126 = vector.shape_cast %125 : vector<1x1x6x256xf32> to vector<6x256xf32>
    %127 = vector.shape_cast %124 : vector<6x256xf32> to vector<1x1x6x256xf32>
    tpu.vector_store %arg4[%c0_130, %c1_131, %c0_132, %c0_133], %127 {strides = array<i32>} : memref<1x6x6x256xf32, #tpu.memory_space<vmem>>, vector<1x1x6x256xf32>,
    %c60_134 = arith.constant 60 : index
    %c0_135 = arith.constant 0 : index
    %128 = vector.load %arg5[%c60_134, %c0_135] : memref<195x256xf32, #tpu.memory_space<vmem>>, vector<11x256xf32>
    %c61_136 = arith.constant 61 : index
    %c0_137 = arith.constant 0 : index
    %129 = vector.load %arg5[%c61_136, %c0_137] : memref<195x256xf32, #tpu.memory_space<vmem>>, vector<11x256xf32>
    %130 = arith.maximumf %128, %129 : vector<11x256xf32>
    %c62_138 = arith.constant 62 : index
    %c0_139 = arith.constant 0 : index
    %131 = vector.load %arg5[%c62_138, %c0_139] : memref<195x256xf32, #tpu.memory_space<vmem>>, vector<11x256xf32>
    %132 = arith.maximumf %130, %131 : vector<11x256xf32>
    %c75 = arith.constant 75 : index
    %c0_140 = arith.constant 0 : index
    %133 = vector.load %arg5[%c75, %c0_140] : memref<195x256xf32, #tpu.memory_space<vmem>>, vector<11x256xf32>
    %134 = arith.maximumf %132, %133 : vector<11x256xf32>
    %c76 = arith.constant 76 : index
    %c0_141 = arith.constant 0 : index
    %135 = vector.load %arg5[%c76, %c0_141] : memref<195x256xf32, #tpu.memory_space<vmem>>, vector<11x256xf32>
    %136 = arith.maximumf %134, %135 : vector<11x256xf32>
    %c77 = arith.constant 77 : index
    %c0_142 = arith.constant 0 : index
    %137 = vector.load %arg5[%c77, %c0_142] : memref<195x256xf32, #tpu.memory_space<vmem>>, vector<11x256xf32>
    %138 = arith.maximumf %136, %137 : vector<11x256xf32>
    %c90 = arith.constant 90 : index
    %c0_143 = arith.constant 0 : index
    %139 = vector.load %arg5[%c90, %c0_143] : memref<195x256xf32, #tpu.memory_space<vmem>>, vector<11x256xf32>
    %140 = arith.maximumf %138, %139 : vector<11x256xf32>
    %c91 = arith.constant 91 : index
    %c0_144 = arith.constant 0 : index
    %141 = vector.load %arg5[%c91, %c0_144] : memref<195x256xf32, #tpu.memory_space<vmem>>, vector<11x256xf32>
    %142 = arith.maximumf %140, %141 : vector<11x256xf32>
    %c92 = arith.constant 92 : index
    %c0_145 = arith.constant 0 : index
    %143 = vector.load %arg5[%c92, %c0_145] : memref<195x256xf32, #tpu.memory_space<vmem>>, vector<11x256xf32>
    %144 = arith.maximumf %142, %143 : vector<11x256xf32>
    %145 = vector.broadcast %70 : vector<1x256xf32> to vector<11x256xf32>
    %146 = arith.addf %144, %145 : vector<11x256xf32>
    %cst_146 = arith.constant 0.000000e+00 : f32
    %147 = vector.broadcast %cst_146 : f32 to vector<11x256xf32>
    %148 = arith.maximumf %146, %147 : vector<11x256xf32>
    %cst_147 = arith.constant dense<0.000000e+00> : vector<6x256xf32>
    %149 = tpu.matmul %77, %148, %cst_147 {dimension_numbers = #tpu.dot_dimension_numbers<[1], [0], [0], [1], [0, 0, 1, 1], [], []>} : vector<6x11xf32>, vector<11x256xf32>, vector<6x256xf32> -> vector<6x256xf32>
    %c0_148 = arith.constant 0 : index
    %c2_149 = arith.constant 2 : index
    %c0_150 = arith.constant 0 : index
    %c0_151 = arith.constant 0 : index
    %150 = vector.load %arg4[%c0_148, %c2_149, %c0_150, %c0_151] : memref<1x6x6x256xf32, #tpu.memory_space<vmem>>, vector<1x1x6x256xf32>
    %151 = vector.shape_cast %150 : vector<1x1x6x256xf32> to vector<6x256xf32>
    %152 = vector.shape_cast %149 : vector<6x256xf32> to vector<1x1x6x256xf32>
    tpu.vector_store %arg4[%c0_148, %c2_149, %c0_150, %c0_151], %152 {strides = array<i32>} : memref<1x6x6x256xf32, #tpu.memory_space<vmem>>, vector<1x1x6x256xf32>,
    %c90_152 = arith.constant 90 : index
    %c0_153 = arith.constant 0 : index
    %153 = vector.load %arg5[%c90_152, %c0_153] : memref<195x256xf32, #tpu.memory_space<vmem>>, vector<11x256xf32>
    %c91_154 = arith.constant 91 : index
    %c0_155 = arith.constant 0 : index
    %154 = vector.load %arg5[%c91_154, %c0_155] : memref<195x256xf32, #tpu.memory_space<vmem>>, vector<11x256xf32>
    %155 = arith.maximumf %153, %154 : vector<11x256xf32>
    %c92_156 = arith.constant 92 : index
    %c0_157 = arith.constant 0 : index
    %156 = vector.load %arg5[%c92_156, %c0_157] : memref<195x256xf32, #tpu.memory_space<vmem>>, vector<11x256xf32>
    %157 = arith.maximumf %155, %156 : vector<11x256xf32>
    %c105 = arith.constant 105 : index
    %c0_158 = arith.constant 0 : index
    %158 = vector.load %arg5[%c105, %c0_158] : memref<195x256xf32, #tpu.memory_space<vmem>>, vector<11x256xf32>
    %159 = arith.maximumf %157, %158 : vector<11x256xf32>
    %c106 = arith.constant 106 : index
    %c0_159 = arith.constant 0 : index
    %160 = vector.load %arg5[%c106, %c0_159] : memref<195x256xf32, #tpu.memory_space<vmem>>, vector<11x256xf32>
    %161 = arith.maximumf %159, %160 : vector<11x256xf32>
    %c107 = arith.constant 107 : index
    %c0_160 = arith.constant 0 : index
    %162 = vector.load %arg5[%c107, %c0_160] : memref<195x256xf32, #tpu.memory_space<vmem>>, vector<11x256xf32>
    %163 = arith.maximumf %161, %162 : vector<11x256xf32>
    %c120 = arith.constant 120 : index
    %c0_161 = arith.constant 0 : index
    %164 = vector.load %arg5[%c120, %c0_161] : memref<195x256xf32, #tpu.memory_space<vmem>>, vector<11x256xf32>
    %165 = arith.maximumf %163, %164 : vector<11x256xf32>
    %c121 = arith.constant 121 : index
    %c0_162 = arith.constant 0 : index
    %166 = vector.load %arg5[%c121, %c0_162] : memref<195x256xf32, #tpu.memory_space<vmem>>, vector<11x256xf32>
    %167 = arith.maximumf %165, %166 : vector<11x256xf32>
    %c122 = arith.constant 122 : index
    %c0_163 = arith.constant 0 : index
    %168 = vector.load %arg5[%c122, %c0_163] : memref<195x256xf32, #tpu.memory_space<vmem>>, vector<11x256xf32>
    %169 = arith.maximumf %167, %168 : vector<11x256xf32>
    %170 = vector.broadcast %70 : vector<1x256xf32> to vector<11x256xf32>
    %171 = arith.addf %169, %170 : vector<11x256xf32>
    %cst_164 = arith.constant 0.000000e+00 : f32
    %172 = vector.broadcast %cst_164 : f32 to vector<11x256xf32>
    %173 = arith.maximumf %171, %172 : vector<11x256xf32>
    %cst_165 = arith.constant dense<0.000000e+00> : vector<6x256xf32>
    %174 = tpu.matmul %77, %173, %cst_165 {dimension_numbers = #tpu.dot_dimension_numbers<[1], [0], [0], [1], [0, 0, 1, 1], [], []>} : vector<6x11xf32>, vector<11x256xf32>, vector<6x256xf32> -> vector<6x256xf32>
    %c0_166 = arith.constant 0 : index
    %c3_167 = arith.constant 3 : index
    %c0_168 = arith.constant 0 : index
    %c0_169 = arith.constant 0 : index
    %175 = vector.load %arg4[%c0_166, %c3_167, %c0_168, %c0_169] : memref<1x6x6x256xf32, #tpu.memory_space<vmem>>, vector<1x1x6x256xf32>
    %176 = vector.shape_cast %175 : vector<1x1x6x256xf32> to vector<6x256xf32>
    %177 = vector.shape_cast %174 : vector<6x256xf32> to vector<1x1x6x256xf32>
    tpu.vector_store %arg4[%c0_166, %c3_167, %c0_168, %c0_169], %177 {strides = array<i32>} : memref<1x6x6x256xf32, #tpu.memory_space<vmem>>, vector<1x1x6x256xf32>,
    %c120_170 = arith.constant 120 : index
    %c0_171 = arith.constant 0 : index
    %178 = vector.load %arg5[%c120_170, %c0_171] : memref<195x256xf32, #tpu.memory_space<vmem>>, vector<11x256xf32>
    %c121_172 = arith.constant 121 : index
    %c0_173 = arith.constant 0 : index
    %179 = vector.load %arg5[%c121_172, %c0_173] : memref<195x256xf32, #tpu.memory_space<vmem>>, vector<11x256xf32>
    %180 = arith.maximumf %178, %179 : vector<11x256xf32>
    %c122_174 = arith.constant 122 : index
    %c0_175 = arith.constant 0 : index
    %181 = vector.load %arg5[%c122_174, %c0_175] : memref<195x256xf32, #tpu.memory_space<vmem>>, vector<11x256xf32>
    %182 = arith.maximumf %180, %181 : vector<11x256xf32>
    %c135 = arith.constant 135 : index
    %c0_176 = arith.constant 0 : index
    %183 = vector.load %arg5[%c135, %c0_176] : memref<195x256xf32, #tpu.memory_space<vmem>>, vector<11x256xf32>
    %184 = arith.maximumf %182, %183 : vector<11x256xf32>
    %c136 = arith.constant 136 : index
    %c0_177 = arith.constant 0 : index
    %185 = vector.load %arg5[%c136, %c0_177] : memref<195x256xf32, #tpu.memory_space<vmem>>, vector<11x256xf32>
    %186 = arith.maximumf %184, %185 : vector<11x256xf32>
    %c137 = arith.constant 137 : index
    %c0_178 = arith.constant 0 : index
    %187 = vector.load %arg5[%c137, %c0_178] : memref<195x256xf32, #tpu.memory_space<vmem>>, vector<11x256xf32>
    %188 = arith.maximumf %186, %187 : vector<11x256xf32>
    %c150 = arith.constant 150 : index
    %c0_179 = arith.constant 0 : index
    %189 = vector.load %arg5[%c150, %c0_179] : memref<195x256xf32, #tpu.memory_space<vmem>>, vector<11x256xf32>
    %190 = arith.maximumf %188, %189 : vector<11x256xf32>
    %c151 = arith.constant 151 : index
    %c0_180 = arith.constant 0 : index
    %191 = vector.load %arg5[%c151, %c0_180] : memref<195x256xf32, #tpu.memory_space<vmem>>, vector<11x256xf32>
    %192 = arith.maximumf %190, %191 : vector<11x256xf32>
    %c152 = arith.constant 152 : index
    %c0_181 = arith.constant 0 : index
    %193 = vector.load %arg5[%c152, %c0_181] : memref<195x256xf32, #tpu.memory_space<vmem>>, vector<11x256xf32>
    %194 = arith.maximumf %192, %193 : vector<11x256xf32>
    %195 = vector.broadcast %70 : vector<1x256xf32> to vector<11x256xf32>
    %196 = arith.addf %194, %195 : vector<11x256xf32>
    %cst_182 = arith.constant 0.000000e+00 : f32
    %197 = vector.broadcast %cst_182 : f32 to vector<11x256xf32>
    %198 = arith.maximumf %196, %197 : vector<11x256xf32>
    %cst_183 = arith.constant dense<0.000000e+00> : vector<6x256xf32>
    %199 = tpu.matmul %77, %198, %cst_183 {dimension_numbers = #tpu.dot_dimension_numbers<[1], [0], [0], [1], [0, 0, 1, 1], [], []>} : vector<6x11xf32>, vector<11x256xf32>, vector<6x256xf32> -> vector<6x256xf32>
    %c0_184 = arith.constant 0 : index
    %c4_185 = arith.constant 4 : index
    %c0_186 = arith.constant 0 : index
    %c0_187 = arith.constant 0 : index
    %200 = vector.load %arg4[%c0_184, %c4_185, %c0_186, %c0_187] : memref<1x6x6x256xf32, #tpu.memory_space<vmem>>, vector<1x1x6x256xf32>
    %201 = vector.shape_cast %200 : vector<1x1x6x256xf32> to vector<6x256xf32>
    %202 = vector.shape_cast %199 : vector<6x256xf32> to vector<1x1x6x256xf32>
    tpu.vector_store %arg4[%c0_184, %c4_185, %c0_186, %c0_187], %202 {strides = array<i32>} : memref<1x6x6x256xf32, #tpu.memory_space<vmem>>, vector<1x1x6x256xf32>,
    %c150_188 = arith.constant 150 : index
    %c0_189 = arith.constant 0 : index
    %203 = vector.load %arg5[%c150_188, %c0_189] : memref<195x256xf32, #tpu.memory_space<vmem>>, vector<11x256xf32>
    %c151_190 = arith.constant 151 : index
    %c0_191 = arith.constant 0 : index
    %204 = vector.load %arg5[%c151_190, %c0_191] : memref<195x256xf32, #tpu.memory_space<vmem>>, vector<11x256xf32>
    %205 = arith.maximumf %203, %204 : vector<11x256xf32>
    %c152_192 = arith.constant 152 : index
    %c0_193 = arith.constant 0 : index
    %206 = vector.load %arg5[%c152_192, %c0_193] : memref<195x256xf32, #tpu.memory_space<vmem>>, vector<11x256xf32>
    %207 = arith.maximumf %205, %206 : vector<11x256xf32>
    %c165 = arith.constant 165 : index
    %c0_194 = arith.constant 0 : index
    %208 = vector.load %arg5[%c165, %c0_194] : memref<195x256xf32, #tpu.memory_space<vmem>>, vector<11x256xf32>
    %209 = arith.maximumf %207, %208 : vector<11x256xf32>
    %c166 = arith.constant 166 : index
    %c0_195 = arith.constant 0 : index
    %210 = vector.load %arg5[%c166, %c0_195] : memref<195x256xf32, #tpu.memory_space<vmem>>, vector<11x256xf32>
    %211 = arith.maximumf %209, %210 : vector<11x256xf32>
    %c167 = arith.constant 167 : index
    %c0_196 = arith.constant 0 : index
    %212 = vector.load %arg5[%c167, %c0_196] : memref<195x256xf32, #tpu.memory_space<vmem>>, vector<11x256xf32>
    %213 = arith.maximumf %211, %212 : vector<11x256xf32>
    %c180 = arith.constant 180 : index
    %c0_197 = arith.constant 0 : index
    %214 = vector.load %arg5[%c180, %c0_197] : memref<195x256xf32, #tpu.memory_space<vmem>>, vector<11x256xf32>
    %215 = arith.maximumf %213, %214 : vector<11x256xf32>
    %c181 = arith.constant 181 : index
    %c0_198 = arith.constant 0 : index
    %216 = vector.load %arg5[%c181, %c0_198] : memref<195x256xf32, #tpu.memory_space<vmem>>, vector<11x256xf32>
    %217 = arith.maximumf %215, %216 : vector<11x256xf32>
    %c182 = arith.constant 182 : index
    %c0_199 = arith.constant 0 : index
    %218 = vector.load %arg5[%c182, %c0_199] : memref<195x256xf32, #tpu.memory_space<vmem>>, vector<11x256xf32>
    %219 = arith.maximumf %217, %218 : vector<11x256xf32>
    %220 = vector.broadcast %70 : vector<1x256xf32> to vector<11x256xf32>
    %221 = arith.addf %219, %220 : vector<11x256xf32>
    %cst_200 = arith.constant 0.000000e+00 : f32
    %222 = vector.broadcast %cst_200 : f32 to vector<11x256xf32>
    %223 = arith.maximumf %221, %222 : vector<11x256xf32>
    %cst_201 = arith.constant dense<0.000000e+00> : vector<6x256xf32>
    %224 = tpu.matmul %77, %223, %cst_201 {dimension_numbers = #tpu.dot_dimension_numbers<[1], [0], [0], [1], [0, 0, 1, 1], [], []>} : vector<6x11xf32>, vector<11x256xf32>, vector<6x256xf32> -> vector<6x256xf32>
    %c0_202 = arith.constant 0 : index
    %c5_203 = arith.constant 5 : index
    %c0_204 = arith.constant 0 : index
    %c0_205 = arith.constant 0 : index
    %225 = vector.load %arg4[%c0_202, %c5_203, %c0_204, %c0_205] : memref<1x6x6x256xf32, #tpu.memory_space<vmem>>, vector<1x1x6x256xf32>
    %226 = vector.shape_cast %225 : vector<1x1x6x256xf32> to vector<6x256xf32>
    %227 = vector.shape_cast %224 : vector<6x256xf32> to vector<1x1x6x256xf32>
    tpu.vector_store %arg4[%c0_202, %c5_203, %c0_204, %c0_205], %227 {strides = array<i32>} : memref<1x6x6x256xf32, #tpu.memory_space<vmem>>, vector<1x1x6x256xf32>,
    return
  }
  func.func @transform_0(%arg0: i32) -> (i32, i32, i32, i32) {
    %c0_i32 = arith.constant 0 : i32
    %c0_i32_0 = arith.constant 0 : i32
    %c0_i32_1 = arith.constant 0 : i32
    %c0_i32_2 = arith.constant 0 : i32
    return %arg0, %c0_i32, %c0_i32_0, %c0_i32_1 : i32, i32, i32, i32
  }
  func.func @transform_1(%arg0: i32) -> (i32, i32, i32) {
    %c0_i32 = arith.constant 0 : i32
    %c0_i32_0 = arith.constant 0 : i32
    %c0_i32_1 = arith.constant 0 : i32
    %c0_i32_2 = arith.constant 0 : i32
    return %c0_i32, %c0_i32_0, %c0_i32_1 : i32, i32, i32
  }
  func.func @transform_2(%arg0: i32) -> (i32, i32) {
    %c0_i32 = arith.constant 0 : i32
    %c0_i32_0 = arith.constant 0 : i32
    %c0_i32_1 = arith.constant 0 : i32
    return %c0_i32, %c0_i32_0 : i32, i32
  }
  func.func @transform_3(%arg0: i32) -> (i32, i32, i32, i32) {
    %c0_i32 = arith.constant 0 : i32
    %c0_i32_0 = arith.constant 0 : i32
    %c0_i32_1 = arith.constant 0 : i32
    %c0_i32_2 = arith.constant 0 : i32
    return %arg0, %c0_i32, %c0_i32_0, %c0_i32_1 : i32, i32, i32, i32
  }
}

</mosaic_0001>

<llo_original>
// kernel: c5_forward.1
$region0: #{c5_forward.1}
  #allocation0 [shape = 'u32[]', space=smem, size = 0x4, offset = 0x4, fixed_abs, tag = 'smem constant byte address 0x4 - core index']
  #allocation1 [shape = 'u32[144,128]{1,0:T(1,128)}', space=vmem, size = 0x12000, scoped, tag = 'internal scratch']
  #allocation2 [shape = 'f32[195,256]{1,0:T(8,128)}', space=vmem, size = 0x32000, scoped, tag = 'scratch operand']
  %s0 = inlined_call_operand.vmem [shape: f32[2,3,197,256], index: 0, kind: input, shape index: {}]
  %s1 = inlined_call_operand.vmem [shape: f32[9,256,256], index: 1, kind: input, shape index: {}]
  %s2 = inlined_call_operand.vmem [shape: f32[1,256], index: 2, kind: input, shape index: {}]
  %s3 = inlined_call_operand.vmem [shape: f32[2,6,6,256], index: 3, kind: output, shape index: {}]
  %s4 = sld [smem:[#allocation0]]
  $region45: #{c5_forward.1} parent=0
    _
  %s6 = ssub.s32 1, %s4
  %s7 = scalar_select 0, %s6, %s4
  loop: start=0, step=1, limit=4
  $region2: #{c5_forward.1} parent=0 // loop_pre_header
    _
  $region3: #{c5_forward.1} parent=0 // loop_header
    %s9 = sphi 0, %s13
    %p10 = scmp.ge.s32.totalorder %s9, 4
    %s19 = sphi 0, %s21
    %s22 = sphi 0, %s19
    %s23 = sphi 0, %s22
    %s39 = sphi 0, %s23
    %s43 = sphi 0, %s43
    %s45 = sphi 0, %s43
    %s46 = sphi 0, %s45
    %s60 = sphi 0, %s46
    %s64 = sphi 0, %s64
    %s66 = sphi 0, %s64
    %s67 = sphi 0, %s66
    %s81 = sphi 0, %s67
    %s87 = sphi 0, %s89
    %s90 = sphi 0, %s87
    %s91 = sphi 0, %s90
    %s107 = sphi 0, %s91
  $region4: #{c5_forward.1} parent=0 // loop_header_branch
    %12 = sbr.rel (%p10) target = $region8
  $region5: #{c5_forward.1} parent=0 // loop_body
    %s14 = ssub.s32 %s9, 1
    %s15 = ssub.s32 %s9, 2
    %s16 = sadd.s32 %s9, 1
    %s17 = ssub.s32 %s9, %s16
    %p18 = scmp.eq.s32.totalorder %s17, 0
    %s20 = sadd.s32 %s19, 1
    %s21 = scalar_select %p18, %s19, %s20
    %p24 = pneg %p18
    %p25 = scmp.eq.s32.totalorder %s9, 1
    %p26 = por %p24, %p25
    %p27 = scmp.ne.s32.totalorder %s19, %s22
    %p28 = scmp.eq.s32.totalorder %s9, 0
    %p29 = por %p27, %p28
    %p30 = scmp.ne.s32.totalorder %s19, %s22
    %p31 = scmp.eq.s32.totalorder %s14, 1
    %p32 = por %p30, %p31
    %p33 = scmp.ne.s32.totalorder %s22, %s23
    %p34 = scmp.eq.s32.totalorder %s14, 0
    %p35 = por %p33, %p34
    %p36 = scmp.ne.s32.totalorder %s22, %s23
    %p37 = scmp.eq.s32.totalorder %s15, 1
    %p38 = por %p36, %p37
    %p40 = scmp.ne.s32.totalorder %s23, %s39
    %p41 = scmp.eq.s32.totalorder %s15, 0
    %p42 = por %p40, %p41
    %s44 = sadd.s32 %s43, 1
    %p47 = scmp.eq.s32.totalorder %s9, 1
    %p48 = scmp.ne.s32.totalorder %s43, %s45
    %p49 = scmp.eq.s32.totalorder %s9, 0
    %p50 = por %p48, %p49
    %p51 = scmp.ne.s32.totalorder %s43, %s45
    %p52 = scmp.eq.s32.totalorder %s14, 1
    %p53 = por %p51, %p52
    %p54 = scmp.ne.s32.totalorder %s45, %s46
    %p55 = scmp.eq.s32.totalorder %s14, 0
    %p56 = por %p54, %p55
    %p57 = scmp.ne.s32.totalorder %s45, %s46
    %p58 = scmp.eq.s32.totalorder %s15, 1
    %p59 = por %p57, %p58
    %p61 = scmp.ne.s32.totalorder %s46, %s60
    %p62 = scmp.eq.s32.totalorder %s15, 0
    %p63 = por %p61, %p62
    %s65 = sadd.s32 %s64, 1
    %p68 = scmp.eq.s32.totalorder %s9, 1
    %p69 = scmp.ne.s32.totalorder %s64, %s66
    %p70 = scmp.eq.s32.totalorder %s9, 0
    %p71 = por %p69, %p70
    %p72 = scmp.ne.s32.totalorder %s64, %s66
    %p73 = scmp.eq.s32.totalorder %s14, 1
    %p74 = por %p72, %p73
    %p75 = scmp.ne.s32.totalorder %s66, %s67
    %p76 = scmp.eq.s32.totalorder %s14, 0
    %p77 = por %p75, %p76
    %p78 = scmp.ne.s32.totalorder %s66, %s67
    %p79 = scmp.eq.s32.totalorder %s15, 1
    %p80 = por %p78, %p79
    %p82 = scmp.ne.s32.totalorder %s67, %s81
    %p83 = scmp.eq.s32.totalorder %s15, 0
    %p84 = por %p82, %p83
    %s85 = ssub.s32 %s9, %s16
    %p86 = scmp.eq.s32.totalorder %s85, 0
    %s88 = sadd.s32 %s87, 1
    %s89 = scalar_select %p86, %s87, %s88
    %p92 = pneg %p86
    %p93 = scmp.eq.s32.totalorder %s9, 1
    %p94 = por %p92, %p93
    %p95 = scmp.ne.s32.totalorder %s87, %s90
    %p96 = scmp.eq.s32.totalorder %s9, 0
    %p97 = por %p95, %p96
    %p98 = scmp.ne.s32.totalorder %s87, %s90
    %p99 = scmp.eq.s32.totalorder %s14, 1
    %p100 = por %p98, %p99
    %p101 = scmp.ne.s32.totalorder %s90, %s91
    %p102 = scmp.eq.s32.totalorder %s14, 0
    %p103 = por %p101, %p102
    %p104 = scmp.ne.s32.totalorder %s90, %s91
    %p105 = scmp.eq.s32.totalorder %s15, 1
    %p106 = por %p104, %p105
    %p108 = scmp.ne.s32.totalorder %s91, %s107
    %p109 = scmp.eq.s32.totalorder %s15, 0
    %p110 = por %p108, %p109
    %p111 = scmp.le.s32.totalorder 1, %s9
    %p112 = scmp.lt.s32.totalorder %s9, 3
    %p113 = pnand %p111, %p112
    %p114 = pneg %p113
    // Predicated region
    $region9: #{c5_forward.1} parent=5 // pred_check
      _
    $region10: #{c5_forward.1} parent=5 // pred_check_branch
      %116 = sbr.rel (%p113) target = $region12
    $region11: #{c5_forward.1} parent=5 // pred_region
      %s117 = ssub.s32 %s9, 1
      // Predicated region
      $region13: #{c5_forward.1} parent=11 // pred_check
        %p118 = pneg %p56
      $region14: #{c5_forward.1} parent=11 // pred_check_branch
        %120 = sbr.rel (%p118) target = $region16
      $region15: #{c5_forward.1} parent=11 // pred_region
        _
      $region16: #{c5_forward.1} parent=11 // pred_fallthru
        _
      // Predicated region
      $region17: #{c5_forward.1} parent=11 // pred_check
        %p121 = pneg %p77
      $region18: #{c5_forward.1} parent=11 // pred_check_branch
        %123 = sbr.rel (%p121) target = $region20
      $region19: #{c5_forward.1} parent=11 // pred_region
        _
      $region20: #{c5_forward.1} parent=11 // pred_fallthru
        _
    $region12: #{c5_forward.1} parent=5 // pred_fallthru
      _
    %p124 = scmp.lt.s32.totalorder %s9, 2
    // Predicated region
    $region21: #{c5_forward.1} parent=5 // pred_check
      %p125 = pneg %p124
    $region22: #{c5_forward.1} parent=5 // pred_check_branch
      %127 = sbr.rel (%p125) target = $region24
    $region23: #{c5_forward.1} parent=5 // pred_region
      // Predicated region
      $region25: #{c5_forward.1} parent=23 // pred_check
        %p128 = pneg %p29
      $region26: #{c5_forward.1} parent=23 // pred_check_branch
        %130 = sbr.rel (%p128) target = $region28
      $region27: #{c5_forward.1} parent=23 // pred_region
        %p131 = scmp.lt.s32.totalorder %s9, 1
        %s132 = scalar_select %p131, %s9, 1
        %s133 = smul.addr %s132, 150
        %s134 = smul.addr %s133, 8
        %s135 = scalar_lea.vmem %s0, %s134
      $region28: #{c5_forward.1} parent=23 // pred_fallthru
        _
    $region24: #{c5_forward.1} parent=5 // pred_fallthru
      _
    %p136 = scmp.le.s32.totalorder 1, %s9
    %p137 = scmp.lt.s32.totalorder %s9, 3
    %p138 = pnand %p136, %p137
    %p139 = pneg %p138
    // Predicated region
    $region29: #{c5_forward.1} parent=5 // pred_check
      _
    $region30: #{c5_forward.1} parent=5 // pred_check_branch
      %141 = sbr.rel (%p138) target = $region32
    $region31: #{c5_forward.1} parent=5 // pred_region
      %s142 = ssub.s32 %s9, 1
      %p143 = scmp.lt.s32.totalorder %s14, 1
      %s144 = scalar_select %p143, %s14, 1
      %s145 = smul.addr %s144, 150
      %s146 = smul.addr %s145, 8
      %s147 = scalar_lea.vmem %s0, %s146
      %p148 = pneg %p35
      %p149 = pneg %p32
      %p150 = pneg %p56
      %p151 = pneg %p53
      %p152 = pneg %p77
      %p153 = pneg %p74
      %p154 = pneg %p103
      %p155 = pneg %p100
      %p156 = scmp.lt.s32.totalorder %s14, 1
      %s157 = scalar_select %p156, %s14, 1
      %s158 = smul.addr %s157, 12
      %s159 = smul.addr %s158, 8
      %s160 = scalar_lea.vmem %s3, %s159
      %p161 = scmp.lt.s32.totalorder %s14, 1
      %s162 = scalar_select %p161, %s14, 1
      %s163 = smul.addr %s162, 150
      %s164 = smul.addr %s163, 8
      %s165 = scalar_lea.vmem %s0, %s164
      %p166 = scmp.lt.s32.totalorder %s14, 1
      %s167 = scalar_select %p166, %s14, 1
      %s168 = smul.addr %s167, 12
      %s169 = smul.addr %s168, 8
      %s170 = scalar_lea.vmem %s3, %s169
      %v171 = vld [vmem:[%s165] sm:$0xff]
      %v172 = vld [vmem:[%s165 + $0x8] sm:$0xff]
      %v173 = vld [vmem:[%s165 + $0x10] sm:$0xff]
      %v174 = vld [vmem:[%s165 + $0x18] sm:$0xff]
      %v175 = vld [vmem:[%s165 + $0x20] sm:$0xff]
      %v176 = vld [vmem:[%s165 + $0x28] sm:$0xff]
      %v177 = vld [vmem:[%s165 + $0x30] sm:$0xff]
      %v178 = vld [vmem:[%s165 + $0x38] sm:$0xff]
      %v179 = vld [vmem:[%s165 + $0x40] sm:$0xff]
      %v180 = vld [vmem:[%s165 + $0x48] sm:$0xff]
      %v181 = vld [vmem:[%s165 + $0x50] sm:$0xff]
      %v182 = vld [vmem:[%s165 + $0x58] sm:$0xff]
      %v183 = vld [vmem:[%s165 + $0x60] sm:$0xff]
      %v184 = vld [vmem:[%s165 + $0x68] sm:$0xff]
      %v185 = vld [vmem:[%s165 + $0x70] sm:$0xff]
      %v186 = vld [vmem:[%s165 + $0x78] sm:$0xff]
      %v187 = vld [vmem:[%s165 + $0x80] sm:$0xff]
      %v188 = vld [vmem:[%s165 + $0x88] sm:$0xff]
      %v189 = vld [vmem:[%s165 + $0x90] sm:$0xff]
      %v190 = vld [vmem:[%s165 + $0x98] sm:$0xff]
      %v191 = vld [vmem:[%s165 + $0xa0] sm:$0xff]
      %v192 = vld [vmem:[%s165 + $0xa8] sm:$0xff]
      %v193 = vld [vmem:[%s165 + $0xb0] sm:$0xff]
      %v194 = vld [vmem:[%s165 + $0xb8] sm:$0xff]
      %v195 = vld [vmem:[%s165 + $0xc0] sm:$0xff]
      %v196 = vld [vmem:[%s165 + $0xc8] sm:$0xff]
      %v197 = vld [vmem:[%s165 + $0xd0] sm:$0xff]
      %v198 = vld [vmem:[%s165 + $0xd8] sm:$0xff]
      %v199 = vld [vmem:[%s165 + $0xe0] sm:$0xff]
      %v200 = vld [vmem:[%s165 + $0xe8] sm:$0xff]
      %v201 = vld [vmem:[%s165 + $0xf0] sm:$0xff]
      %v202 = vld [vmem:[%s165 + $0xf8] sm:$0xff]
      %v203 = vld [vmem:[%s165 + $0x100] sm:$0xff]
      %v204 = vld [vmem:[%s165 + $0x108] sm:$0xff]
      %v205 = vld [vmem:[%s165 + $0x110] sm:$0xff]
      %v206 = vld [vmem:[%s165 + $0x118] sm:$0xff]
      %v207 = vld [vmem:[%s165 + $0x120] sm:$0xff]
      %v208 = vld [vmem:[%s165 + $0x128] sm:$0xff]
      %v209 = vld [vmem:[%s165 + $0x130] sm:$0xff]
      %v210 = vld [vmem:[%s165 + $0x138] sm:$0xff]
      %v211 = vld [vmem:[%s165 + $0x140] sm:$0xff]
      %v212 = vld [vmem:[%s165 + $0x148] sm:$0xff]
      %v213 = vld [vmem:[%s165 + $0x150] sm:$0xff]
      %v214 = vld [vmem:[%s165 + $0x158] sm:$0xff]
      %v215 = vld [vmem:[%s165 + $0x160] sm:$0xff]
      %v216 = vld [vmem:[%s165 + $0x168] sm:$0xff]
      %v217 = vld [vmem:[%s165 + $0x170] sm:$0xff]
      %v218 = vld [vmem:[%s165 + $0x178] sm:$0xff]
      %v219 = vld [vmem:[%s165 + $0x180] sm:$0x7]
      %v220 = vld [vmem:[%s165 + $0x188] sm:$0x7]
      %v221 = vld [vmem:[%s1] sm:$0xff]
      %v222 = vld [vmem:[%s1 + $0x8] sm:$0xff]
      %v223 = vld [vmem:[%s1 + $0x10] sm:$0xff]
      %v224 = vld [vmem:[%s1 + $0x18] sm:$0xff]
      %v225 = vld [vmem:[%s1 + $0x20] sm:$0xff]
      %v226 = vld [vmem:[%s1 + $0x28] sm:$0xff]
      %v227 = vld [vmem:[%s1 + $0x30] sm:$0xff]
      %v228 = vld [vmem:[%s1 + $0x38] sm:$0xff]
      %v229 = vld [vmem:[%s1 + $0x40] sm:$0xff]
      %v230 = vld [vmem:[%s1 + $0x48] sm:$0xff]
      %v231 = vld [vmem:[%s1 + $0x50] sm:$0xff]
      %v232 = vld [vmem:[%s1 + $0x58] sm:$0xff]
      %v233 = vld [vmem:[%s1 + $0x60] sm:$0xff]
      %v234 = vld [vmem:[%s1 + $0x68] sm:$0xff]
      %v235 = vld [vmem:[%s1 + $0x70] sm:$0xff]
      %v236 = vld [vmem:[%s1 + $0x78] sm:$0xff]
      %v237 = vld [vmem:[%s1 + $0x80] sm:$0xff]
      %v238 = vld [vmem:[%s1 + $0x88] sm:$0xff]
      %v239 = vld [vmem:[%s1 + $0x90] sm:$0xff]
      %v240 = vld [vmem:[%s1 + $0x98] sm:$0xff]
      %v241 = vld [vmem:[%s1 + $0xa0] sm:$0xff]
      %v242 = vld [vmem:[%s1 + $0xa8] sm:$0xff]
      %v243 = vld [vmem:[%s1 + $0xb0] sm:$0xff]
      %v244 = vld [vmem:[%s1 + $0xb8] sm:$0xff]
      %v245 = vld [vmem:[%s1 + $0xc0] sm:$0xff]
      %v246 = vld [vmem:[%s1 + $0xc8] sm:$0xff]
      %v247 = vld [vmem:[%s1 + $0xd0] sm:$0xff]
      %v248 = vld [vmem:[%s1 + $0xd8] sm:$0xff]
      %v249 = vld [vmem:[%s1 + $0xe0] sm:$0xff]
      %v250 = vld [vmem:[%s1 + $0xe8] sm:$0xff]
      %v251 = vld [vmem:[%s1 + $0xf0] sm:$0xff]
      %v252 = vld [vmem:[%s1 + $0xf8] sm:$0xff]
      %v253 = vld [vmem:[%s1 + $0x100] sm:$0xff]
      %v254 = vld [vmem:[%s1 + $0x108] sm:$0xff]
      %v255 = vld [vmem:[%s1 + $0x110] sm:$0xff]
      %v256 = vld [vmem:[%s1 + $0x118] sm:$0xff]
      %v257 = vld [vmem:[%s1 + $0x120] sm:$0xff]
      %v258 = vld [vmem:[%s1 + $0x128] sm:$0xff]
      %v259 = vld [vmem:[%s1 + $0x130] sm:$0xff]
      %v260 = vld [vmem:[%s1 + $0x138] sm:$0xff]
      %v261 = vld [vmem:[%s1 + $0x140] sm:$0xff]
      %v262 = vld [vmem:[%s1 + $0x148] sm:$0xff]
      %v263 = vld [vmem:[%s1 + $0x150] sm:$0xff]
      %v264 = vld [vmem:[%s1 + $0x158] sm:$0xff]
      %v265 = vld [vmem:[%s1 + $0x160] sm:$0xff]
      %v266 = vld [vmem:[%s1 + $0x168] sm:$0xff]
      %v267 = vld [vmem:[%s1 + $0x170] sm:$0xff]
      %v268 = vld [vmem:[%s1 + $0x178] sm:$0xff]
      %v269 = vld [vmem:[%s1 + $0x180] sm:$0xff]
      %v270 = vld [vmem:[%s1 + $0x188] sm:$0xff]
      %v271 = vld [vmem:[%s1 + $0x190] sm:$0xff]
      %v272 = vld [vmem:[%s1 + $0x198] sm:$0xff]
      %v273 = vld [vmem:[%s1 + $0x1a0] sm:$0xff]
      %v274 = vld [vmem:[%s1 + $0x1a8] sm:$0xff]
      %v275 = vld [vmem:[%s1 + $0x1b0] sm:$0xff]
      %v276 = vld [vmem:[%s1 + $0x1b8] sm:$0xff]
      %v277 = vld [vmem:[%s1 + $0x1c0] sm:$0xff]
      %v278 = vld [vmem:[%s1 + $0x1c8] sm:$0xff]
      %v279 = vld [vmem:[%s1 + $0x1d0] sm:$0xff]
      %v280 = vld [vmem:[%s1 + $0x1d8] sm:$0xff]
      %v281 = vld [vmem:[%s1 + $0x1e0] sm:$0xff]
      %v282 = vld [vmem:[%s1 + $0x1e8] sm:$0xff]
      %v283 = vld [vmem:[%s1 + $0x1f0] sm:$0xff]
      %v284 = vld [vmem:[%s1 + $0x1f8] sm:$0xff]
      %285 = vmatprep.subr.mxu0 %v222
      %286 = vmatpush1.msra.mxu0 %v221
      %287 = vmatprep.subr.mxu0 %v224
      %288 = vmatpush1.msra.mxu0 %v223
      %289 = vmatprep.subr.mxu0 %v226
      %290 = vmatpush1.msra.mxu0 %v225
      %291 = vmatprep.subr.mxu0 %v228
      %292 = vmatpush1.msra.mxu0 %v227
      %293 = vmatprep.subr.mxu0 %v230
      %294 = vmatpush1.msra.mxu0 %v229
      %295 = vmatprep.subr.mxu0 %v232
      %296 = vmatpush1.msra.mxu0 %v231
      %297 = vmatprep.subr.mxu0 %v234
      %298 = vmatpush1.msra.mxu0 %v233
      %299 = vmatprep.subr.mxu0 %v236
      %300 = vmatpush1.msra.mxu0 %v235
      %301 = vmatprep.subr.mxu0 %v238
      %302 = vmatpush1.msra.mxu0 %v237
      %303 = vmatprep.subr.mxu0 %v240
      %304 = vmatpush1.msra.mxu0 %v239
      %305 = vmatprep.subr.mxu0 %v242
      %306 = vmatpush1.msra.mxu0 %v241
      %307 = vmatprep.subr.mxu0 %v244
      %308 = vmatpush1.msra.mxu0 %v243
      %309 = vmatprep.subr.mxu0 %v246
      %310 = vmatpush1.msra.mxu0 %v245
      %311 = vmatprep.subr.mxu0 %v248
      %312 = vmatpush1.msra.mxu0 %v247
      %313 = vmatprep.subr.mxu0 %v250
      %314 = vmatpush1.msra.mxu0 %v249
      %315 = vmatprep.subr.mxu0 %v252
      %316 = vmatpush1.msra.mxu0 %v251
      %317 = vmatprep.subr.mxu0 %v254
      %318 = vmatpush1.msra.mxu0 %v253
      %319 = vmatprep.subr.mxu0 %v256
      %320 = vmatpush1.msra.mxu0 %v255
      %321 = vmatprep.subr.mxu0 %v258
      %322 = vmatpush1.msra.mxu0 %v257
      %323 = vmatprep.subr.mxu0 %v260
      %324 = vmatpush1.msra.mxu0 %v259
      %325 = vmatprep.subr.mxu0 %v262
      %326 = vmatpush1.msra.mxu0 %v261
      %327 = vmatprep.subr.mxu0 %v264
      %328 = vmatpush1.msra.mxu0 %v263
      %329 = vmatprep.subr.mxu0 %v266
      %330 = vmatpush1.msra.mxu0 %v265
      %331 = vmatprep.subr.mxu0 %v268
      %332 = vmatpush1.msra.mxu0 %v267
      %333 = vmatprep.subr.mxu0 %v270
      %334 = vmatpush1.msra.mxu0 %v269
      %335 = vmatprep.subr.mxu0 %v272
      %336 = vmatpush1.msra.mxu0 %v271
      %337 = vmatprep.subr.mxu0 %v274
      %338 = vmatpush1.msra.mxu0 %v273
      %339 = vmatprep.subr.mxu0 %v276
      %340 = vmatpush1.msra.mxu0 %v275
      %341 = vmatprep.subr.mxu0 %v278
      %342 = vmatpush1.msra.mxu0 %v277
      %343 = vmatprep.subr.mxu0 %v280
      %344 = vmatpush1.msra.mxu0 %v279
      %345 = vmatprep.subr.mxu0 %v282
      %346 = vmatpush1.msra.mxu0 %v281
      %347 = vmatprep.subr.mxu0 %v284
      %348 = vmatpush1.msra.mxu0 %v283
      %349 = vmatprep.mubr.f32.mxu0 %v172
      %350 = vmatmul.mubr.f32.gmra.mrb[0].mxu0 %v171
      %v351 = vpop.f32.mrb[0].mxu0
      %v352 = vadd.f32 0.0, %v351
      %v353 = vpop.f32.mrb[0].mxu0
      %v354 = vadd.f32 0.0, %v353
      %355 = vmatprep.mubr.f32.mxu0 %v174
      %356 = vmatmul.mubr.f32.gmra.mrb[0].mxu0 %v173
      %v357 = vpop.f32.mrb[0].mxu0
      %v358 = vadd.f32 0.0, %v357
      %v359 = vpop.f32.mrb[0].mxu0
      %v360 = vadd.f32 0.0, %v359
      %361 = vmatprep.mubr.f32.mxu0 %v176
      %362 = vmatmul.mubr.f32.gmra.mrb[0].mxu0 %v175
      %v363 = vpop.f32.mrb[0].mxu0
      %v364 = vadd.f32 0.0, %v363
      %v365 = vpop.f32.mrb[0].mxu0
      %v366 = vadd.f32 0.0, %v365
      %367 = vmatprep.mubr.f32.mxu0 %v178
      %368 = vmatmul.mubr.f32.gmra.mrb[0].mxu0 %v177
      %v369 = vpop.f32.mrb[0].mxu0
      %v370 = vadd.f32 0.0, %v369
      %v371 = vpop.f32.mrb[0].mxu0
      %v372 = vadd.f32 0.0, %v371
      %373 = vmatprep.mubr.f32.mxu0 %v180
      %374 = vmatmul.mubr.f32.gmra.mrb[0].mxu0 %v179
      %v375 = vpop.f32.mrb[0].mxu0
      %v376 = vadd.f32 0.0, %v375
      %v377 = vpop.f32.mrb[0].mxu0
      %v378 = vadd.f32 0.0, %v377
      %379 = vmatprep.mubr.f32.mxu0 %v182
      %380 = vmatmul.mubr.f32.gmra.mrb[0].mxu0 %v181
      %v381 = vpop.f32.mrb[0].mxu0
      %v382 = vadd.f32 0.0, %v381
      %v383 = vpop.f32.mrb[0].mxu0
      %v384 = vadd.f32 0.0, %v383
      %385 = vmatprep.mubr.f32.mxu0 %v184
      %386 = vmatmul.mubr.f32.gmra.mrb[0].mxu0 %v183
      %v387 = vpop.f32.mrb[0].mxu0
      %v388 = vadd.f32 0.0, %v387
      %v389 = vpop.f32.mrb[0].mxu0
      %v390 = vadd.f32 0.0, %v389
      %391 = vmatprep.mubr.f32.mxu0 %v186
      %392 = vmatmul.mubr.f32.gmra.mrb[0].mxu0 %v185
      %v393 = vpop.f32.mrb[0].mxu0
      %v394 = vadd.f32 0.0, %v393
      %v395 = vpop.f32.mrb[0].mxu0
      %v396 = vadd.f32 0.0, %v395
      %397 = vmatprep.mubr.f32.mxu0 %v188
      %398 = vmatmul.mubr.f32.gmra.mrb[0].mxu0 %v187
      %v399 = vpop.f32.mrb[0].mxu0
      %v400 = vadd.f32 0.0, %v399
      %v401 = vpop.f32.mrb[0].mxu0
      %v402 = vadd.f32 0.0, %v401
      %403 = vmatprep.mubr.f32.mxu0 %v190
      %404 = vmatmul.mubr.f32.gmra.mrb[0].mxu0 %v189
      %v405 = vpop.f32.mrb[0].mxu0
      %v406 = vadd.f32 0.0, %v405
      %v407 = vpop.f32.mrb[0].mxu0
      %v408 = vadd.f32 0.0, %v407
      %409 = vmatprep.mubr.f32.mxu0 %v192
      %410 = vmatmul.mubr.f32.gmra.mrb[0].mxu0 %v191
      %v411 = vpop.f32.mrb[0].mxu0
      %v412 = vadd.f32 0.0, %v411
      %v413 = vpop.f32.mrb[0].mxu0
      %v414 = vadd.f32 0.0, %v413
      %415 = vmatprep.mubr.f32.mxu0 %v194
      %416 = vmatmul.mubr.f32.gmra.mrb[0].mxu0 %v193
      %v417 = vpop.f32.mrb[0].mxu0
      %v418 = vadd.f32 0.0, %v417
      %v419 = vpop.f32.mrb[0].mxu0
      %v420 = vadd.f32 0.0, %v419
      %421 = vmatprep.mubr.f32.mxu0 %v196
      %422 = vmatmul.mubr.f32.gmra.mrb[0].mxu0 %v195
      %v423 = vpop.f32.mrb[0].mxu0
      %v424 = vadd.f32 0.0, %v423
      %v425 = vpop.f32.mrb[0].mxu0
      %v426 = vadd.f32 0.0, %v425
      %427 = vmatprep.mubr.f32.mxu0 %v198
      %428 = vmatmul.mubr.f32.gmra.mrb[0].mxu0 %v197
      %v429 = vpop.f32.mrb[0].mxu0
      %v430 = vadd.f32 0.0, %v429
      %v431 = vpop.f32.mrb[0].mxu0
      %v432 = vadd.f32 0.0, %v431
      %433 = vmatprep.mubr.f32.mxu0 %v200
      %434 = vmatmul.mubr.f32.gmra.mrb[0].mxu0 %v199
      %v435 = vpop.f32.mrb[0].mxu0
      %v436 = vadd.f32 0.0, %v435
      %v437 = vpop.f32.mrb[0].mxu0
      %v438 = vadd.f32 0.0, %v437
      %439 = vmatprep.mubr.f32.mxu0 %v202
      %440 = vmatmul.mubr.f32.gmra.mrb[0].mxu0 %v201
      %v441 = vpop.f32.mrb[0].mxu0
      %v442 = vadd.f32 0.0, %v441
      %v443 = vpop.f32.mrb[0].mxu0
      %v444 = vadd.f32 0.0, %v443
      %445 = vmatprep.mubr.f32.mxu0 %v204
      %446 = vmatmul.mubr.f32.gmra.mrb[0].mxu0 %v203
      %v447 = vpop.f32.mrb[0].mxu0
      %v448 = vadd.f32 0.0, %v447
      %v449 = vpop.f32.mrb[0].mxu0
      %v450 = vadd.f32 0.0, %v449
      %451 = vmatprep.mubr.f32.mxu0 %v206
      %452 = vmatmul.mubr.f32.gmra.mrb[0].mxu0 %v205
      %v453 = vpop.f32.mrb[0].mxu0
      %v454 = vadd.f32 0.0, %v453
      %v455 = vpop.f32.mrb[0].mxu0
      %v456 = vadd.f32 0.0, %v455
      %457 = vmatprep.mubr.f32.mxu0 %v208
      %458 = vmatmul.mubr.f32.gmra.mrb[0].mxu0 %v207
      %v459 = vpop.f32.mrb[0].mxu0
      %v460 = vadd.f32 0.0, %v459
      %v461 = vpop.f32.mrb[0].mxu0
      %v462 = vadd.f32 0.0, %v461
      %463 = vmatprep.mubr.f32.mxu0 %v210
      %464 = vmatmul.mubr.f32.gmra.mrb[0].mxu0 %v209
      %v465 = vpop.f32.mrb[0].mxu0
      %v466 = vadd.f32 0.0, %v465
      %v467 = vpop.f32.mrb[0].mxu0
      %v468 = vadd.f32 0.0, %v467
      %469 = vmatprep.mubr.f32.mxu0 %v212
      %470 = vmatmul.mubr.f32.gmra.mrb[0].mxu0 %v211
      %v471 = vpop.f32.mrb[0].mxu0
      %v472 = vadd.f32 0.0, %v471
      %v473 = vpop.f32.mrb[0].mxu0
      %v474 = vadd.f32 0.0, %v473
      %475 = vmatprep.mubr.f32.mxu0 %v214
      %476 = vmatmul.mubr.f32.gmra.mrb[0].mxu0 %v213
      %v477 = vpop.f32.mrb[0].mxu0
      %v478 = vadd.f32 0.0, %v477
      %v479 = vpop.f32.mrb[0].mxu0
      %v480 = vadd.f32 0.0, %v479
      %481 = vmatprep.mubr.f32.mxu0 %v216
      %482 = vmatmul.mubr.f32.gmra.mrb[0].mxu0 %v215
      %v483 = vpop.f32.mrb[0].mxu0
      %v484 = vadd.f32 0.0, %v483
      %v485 = vpop.f32.mrb[0].mxu0
      %v486 = vadd.f32 0.0, %v485
      %487 = vmatprep.mubr.f32.mxu0 %v218
      %488 = vmatmul.mubr.f32.gmra.mrb[0].mxu0 %v217
      %v489 = vpop.f32.mrb[0].mxu0
      %v490 = vadd.f32 0.0, %v489
      %v491 = vpop.f32.mrb[0].mxu0
      %v492 = vadd.f32 0.0, %v491
      %493 = vmatprep.mubr.f32.mxu0 %v220
      %494 = vmatmul.mubr.f32.gmra.mrb[0].mxu0 %v219
      %v495 = vpop.f32.mrb[0].mxu0
      %v496 = vadd.f32 0.0, %v495
      %v497 = vpop.f32.mrb[0].mxu0
      %v498 = vadd.f32 0.0, %v497
      %499 = vdwg.mxu0
      %500 = vst [vmem:[#allocation2] sm:$0xff] %v352
      %501 = vst [vmem:[#allocation2 + $0x8] sm:$0xff] %v354
      %502 = vst [vmem:[#allocation2 + $0x10] sm:$0xff] %v358
      %503 = vst [vmem:[#allocation2 + $0x18] sm:$0xff] %v360
      %504 = vst [vmem:[#allocation2 + $0x20] sm:$0xff] %v364
      %505 = vst [vmem:[#allocation2 + $0x28] sm:$0xff] %v366
      %506 = vst [vmem:[#allocation2 + $0x30] sm:$0xff] %v370
      %507 = vst [vmem:[#allocation2 + $0x38] sm:$0xff] %v372
      %508 = vst [vmem:[#allocation2 + $0x40] sm:$0xff] %v376
      %509 = vst [vmem:[#allocation2 + $0x48] sm:$0xff] %v378
      %510 = vst [vmem:[#allocation2 + $0x50] sm:$0xff] %v382
      %511 = vst [vmem:[#allocation2 + $0x58] sm:$0xff] %v384
      %512 = vst [vmem:[#allocation2 + $0x60] sm:$0xff] %v388
      %513 = vst [vmem:[#allocation2 + $0x68] sm:$0xff] %v390
      %514 = vst [vmem:[#allocation2 + $0x70] sm:$0xff] %v394
      %515 = vst [vmem:[#allocation2 + $0x78] sm:$0xff] %v396
      %516 = vst [vmem:[#allocation2 + $0x80] sm:$0xff] %v400
      %517 = vst [vmem:[#allocation2 + $0x88] sm:$0xff] %v402
      %518 = vst [vmem:[#allocation2 + $0x90] sm:$0xff] %v406
      %519 = vst [vmem:[#allocation2 + $0x98] sm:$0xff] %v408
      %520 = vst [vmem:[#allocation2 + $0xa0] sm:$0xff] %v412
      %521 = vst [vmem:[#allocation2 + $0xa8] sm:$0xff] %v414
      %522 = vst [vmem:[#allocation2 + $0xb0] sm:$0xff] %v418
      %523 = vst [vmem:[#allocation2 + $0xb8] sm:$0xff] %v420
      %524 = vst [vmem:[#allocation2 + $0xc0] sm:$0xff] %v424
      %525 = vst [vmem:[#allocation2 + $0xc8] sm:$0xff] %v426
      %526 = vst [vmem:[#allocation2 + $0xd0] sm:$0xff] %v430
      %527 = vst [vmem:[#allocation2 + $0xd8] sm:$0xff] %v432
      %528 = vst [vmem:[#allocation2 + $0xe0] sm:$0xff] %v436
      %529 = vst [vmem:[#allocation2 + $0xe8] sm:$0xff] %v438
      %530 = vst [vmem:[#allocation2 + $0xf0] sm:$0xff] %v442
      %531 = vst [vmem:[#allocation2 + $0xf8] sm:$0xff] %v444
      %532 = vst [vmem:[#allocation2 + $0x100] sm:$0xff] %v448
      %533 = vst [vmem:[#allocation2 + $0x108] sm:$0xff] %v450
      %534 = vst [vmem:[#allocation2 + $0x110] sm:$0xff] %v454
      %535 = vst [vmem:[#allocation2 + $0x118] sm:$0xff] %v456
      %536 = vst [vmem:[#allocation2 + $0x120] sm:$0xff] %v460
      %537 = vst [vmem:[#allocation2 + $0x128] sm:$0xff] %v462
      %538 = vst [vmem:[#allocation2 + $0x130] sm:$0xff] %v466
      %539 = vst [vmem:[#allocation2 + $0x138] sm:$0xff] %v468
      %540 = vst [vmem:[#allocation2 + $0x140] sm:$0xff] %v472
      %541 = vst [vmem:[#allocation2 + $0x148] sm:$0xff] %v474
      %542 = vst [vmem:[#allocation2 + $0x150] sm:$0xff] %v478
      %543 = vst [vmem:[#allocation2 + $0x158] sm:$0xff] %v480
      %544 = vst [vmem:[#allocation2 + $0x160] sm:$0xff] %v484
      %545 = vst [vmem:[#allocation2 + $0x168] sm:$0xff] %v486
      %546 = vst [vmem:[#allocation2 + $0x170] sm:$0xff] %v490
      %547 = vst [vmem:[#allocation2 + $0x178] sm:$0xff] %v492
      %548 = vst [vmem:[#allocation2 + $0x180] sm:$0x7] %v496
      %549 = vst [vmem:[#allocation2 + $0x188] sm:$0x7] %v498
      %v550 = vld [vmem:[%s165] sm:$0xfe]
      %v551 = vld [vmem:[%s165 + $0x8] sm:$0xfe]
      %v552 = vld [vmem:[%s165 + $0x10] sm:$0xff]
      %v553 = vld [vmem:[%s165 + $0x18] sm:$0xff]
      %v554 = vld [vmem:[%s165 + $0x20] sm:$0xff]
      %v555 = vld [vmem:[%s165 + $0x28] sm:$0xff]
      %v556 = vld [vmem:[%s165 + $0x30] sm:$0xff]
      %v557 = vld [vmem:[%s165 + $0x38] sm:$0xff]
      %v558 = vld [vmem:[%s165 + $0x40] sm:$0xff]
      %v559 = vld [vmem:[%s165 + $0x48] sm:$0xff]
      %v560 = vld [vmem:[%s165 + $0x50] sm:$0xff]
      %v561 = vld [vmem:[%s165 + $0x58] sm:$0xff]
      %v562 = vld [vmem:[%s165 + $0x60] sm:$0xff]
      %v563 = vld [vmem:[%s165 + $0x68] sm:$0xff]
      %v564 = vld [vmem:[%s165 + $0x70] sm:$0xff]
      %v565 = vld [vmem:[%s165 + $0x78] sm:$0xff]
      %v566 = vld [vmem:[%s165 + $0x80] sm:$0xff]
      %v567 = vld [vmem:[%s165 + $0x88] sm:$0xff]
      %v568 = vld [vmem:[%s165 + $0x90] sm:$0xff]
      %v569 = vld [vmem:[%s165 + $0x98] sm:$0xff]
      %v570 = vld [vmem:[%s165 + $0xa0] sm:$0xff]
      %v571 = vld [vmem:[%s165 + $0xa8] sm:$0xff]
      %v572 = vld [vmem:[%s165 + $0xb0] sm:$0xff]
      %v573 = vld [vmem:[%s165 + $0xb8] sm:$0xff]
      %v574 = vld [vmem:[%s165 + $0xc0] sm:$0xff]
      %v575 = vld [vmem:[%s165 + $0xc8] sm:$0xff]
      %v576 = vld [vmem:[%s165 + $0xd0] sm:$0xff]
      %v577 = vld [vmem:[%s165 + $0xd8] sm:$0xff]
      %v578 = vld [vmem:[%s165 + $0xe0] sm:$0xff]
      %v579 = vld [vmem:[%s165 + $0xe8] sm:$0xff]
      %v580 = vld [vmem:[%s165 + $0xf0] sm:$0xff]
      %v581 = vld [vmem:[%s165 + $0xf8] sm:$0xff]
      %v582 = vld [vmem:[%s165 + $0x100] sm:$0xff]
      %v583 = vld [vmem:[%s165 + $0x108] sm:$0xff]
      %v584 = vld [vmem:[%s165 + $0x110] sm:$0xff]
      %v585 = vld [vmem:[%s165 + $0x118] sm:$0xff]
      %v586 = vld [vmem:[%s165 + $0x120] sm:$0xff]
      %v587 = vld [vmem:[%s165 + $0x128] sm:$0xff]
      %v588 = vld [vmem:[%s165 + $0x130] sm:$0xff]
      %v589 = vld [vmem:[%s165 + $0x138] sm:$0xff]
      %v590 = vld [vmem:[%s165 + $0x140] sm:$0xff]
      %v591 = vld [vmem:[%s165 + $0x148] sm:$0xff]
      %v592 = vld [vmem:[%s165 + $0x150] sm:$0xff]
      %v593 = vld [vmem:[%s165 + $0x158] sm:$0xff]
      %v594 = vld [vmem:[%s165 + $0x160] sm:$0xff]
      %v595 = vld [vmem:[%s165 + $0x168] sm:$0xff]
      %v596 = vld [vmem:[%s165 + $0x170] sm:$0xff]
      %v597 = vld [vmem:[%s165 + $0x178] sm:$0xff]
      %v598 = vld [vmem:[%s165 + $0x180] sm:$0xf]
      %v599 = vld [vmem:[%s165 + $0x188] sm:$0xf]
      %s600 = scalar_lea.vmem %s1, 512
      %v601 = vld [vmem:[%s600] sm:$0xff]
      %v602 = vld [vmem:[%s600 + $0x8] sm:$0xff]
      %v603 = vld [vmem:[%s600 + $0x10] sm:$0xff]
      %v604 = vld [vmem:[%s600 + $0x18] sm:$0xff]
      %v605 = vld [vmem:[%s600 + $0x20] sm:$0xff]
      %v606 = vld [vmem:[%s600 + $0x28] sm:$0xff]
      %v607 = vld [vmem:[%s600 + $0x30] sm:$0xff]
      %v608 = vld [vmem:[%s600 + $0x38] sm:$0xff]
      %v609 = vld [vmem:[%s600 + $0x40] sm:$0xff]
      %v610 = vld [vmem:[%s600 + $0x48] sm:$0xff]
      %v611 = vld [vmem:[%s600 + $0x50] sm:$0xff]
      %v612 = vld [vmem:[%s600 + $0x58] sm:$0xff]
      %v613 = vld [vmem:[%s600 + $0x60] sm:$0xff]
      %v614 = vld [vmem:[%s600 + $0x68] sm:$0xff]
      %v615 = vld [vmem:[%s600 + $0x70] sm:$0xff]
      %v616 = vld [vmem:[%s600 + $0x78] sm:$0xff]
      %v617 = vld [vmem:[%s600 + $0x80] sm:$0xff]
      %v618 = vld [vmem:[%s600 + $0x88] sm:$0xff]
      %v619 = vld [vmem:[%s600 + $0x90] sm:$0xff]
      %v620 = vld [vmem:[%s600 + $0x98] sm:$0xff]
      %v621 = vld [vmem:[%s600 + $0xa0] sm:$0xff]
      %v622 = vld [vmem:[%s600 + $0xa8] sm:$0xff]
      %v623 = vld [vmem:[%s600 + $0xb0] sm:$0xff]
      %v624 = vld [vmem:[%s600 + $0xb8] sm:$0xff]
      %v625 = vld [vmem:[%s600 + $0xc0] sm:$0xff]
      %v626 = vld [vmem:[%s600 + $0xc8] sm:$0xff]
      %v627 = vld [vmem:[%s600 + $0xd0] sm:$0xff]
      %v628 = vld [vmem:[%s600 + $0xd8] sm:$0xff]
      %v629 = vld [vmem:[%s600 + $0xe0] sm:$0xff]
      %v630 = vld [vmem:[%s600 + $0xe8] sm:$0xff]
      %v631 = vld [vmem:[%s600 + $0xf0] sm:$0xff]
      %v632 = vld [vmem:[%s600 + $0xf8] sm:$0xff]
      %v633 = vld [vmem:[%s600 + $0x100] sm:$0xff]
      %v634 = vld [vmem:[%s600 + $0x108] sm:$0xff]
      %v635 = vld [vmem:[%s600 + $0x110] sm:$0xff]
      %v636 = vld [vmem:[%s600 + $0x118] sm:$0xff]
      %v637 = vld [vmem:[%s600 + $0x120] sm:$0xff]
      %v638 = vld [vmem:[%s600 + $0x128] sm:$0xff]
      %v639 = vld [vmem:[%s600 + $0x130] sm:$0xff]
      %v640 = vld [vmem:[%s600 + $0x138] sm:$0xff]
      %v641 = vld [vmem:[%s600 + $0x140] sm:$0xff]
      %v642 = vld [vmem:[%s600 + $0x148] sm:$0xff]
      %v643 = vld [vmem:[%s600 + $0x150] sm:$0xff]
      %v644 = vld [vmem:[%s600 + $0x158] sm:$0xff]
      %v645 = vld [vmem:[%s600 + $0x160] sm:$0xff]
      %v646 = vld [vmem:[%s600 + $0x168] sm:$0xff]
      %v647 = vld [vmem:[%s600 + $0x170] sm:$0xff]
      %v648 = vld [vmem:[%s600 + $0x178] sm:$0xff]
      %v649 = vld [vmem:[%s600 + $0x180] sm:$0xff]
      %v650 = vld [vmem:[%s600 + $0x188] sm:$0xff]
      %v651 = vld [vmem:[%s600 + $0x190] sm:$0xff]
      %v652 = vld [vmem:[%s600 + $0x198] sm:$0xff]
      %v653 = vld [vmem:[%s600 + $0x1a0] sm:$0xff]
      %v654 = vld [vmem:[%s600 + $0x1a8] sm:$0xff]
      %v655 = vld [vmem:[%s600 + $0x1b0] sm:$0xff]
      %v656 = vld [vmem:[%s600 + $0x1b8] sm:$0xff]
      %v657 = vld [vmem:[%s600 + $0x1c0] sm:$0xff]
      %v658 = vld [vmem:[%s600 + $0x1c8] sm:$0xff]
      %v659 = vld [vmem:[%s600 + $0x1d0] sm:$0xff]
      %v660 = vld [vmem:[%s600 + $0x1d8] sm:$0xff]
      %v661 = vld [vmem:[%s600 + $0x1e0] sm:$0xff]
      %v662 = vld [vmem:[%s600 + $0x1e8] sm:$0xff]
      %v663 = vld [vmem:[%s600 + $0x1f0] sm:$0xff]
      %v664 = vld [vmem:[%s600 + $0x1f8] sm:$0xff]
      %vm715 = vcmask 1046528
      %v716 = vrot.slane %v550, 1
      %v717 = vrot.slane %v552, 1
      %v718 = vsel %vm715, %v716, %v717
      %v719 = vrot.slane %v551, 1
      %v720 = vrot.slane %v553, 1
      %v721 = vsel %vm715, %v719, %v720
      %v722 = vrot.slane %v554, 1
      %v723 = vsel %vm715, %v717, %v722
      %v724 = vrot.slane %v555, 1
      %v725 = vsel %vm715, %v720, %v724
      %v726 = vrot.slane %v556, 1
      %v727 = vsel %vm715, %v722, %v726
      %v728 = vrot.slane %v557, 1
      %v729 = vsel %vm715, %v724, %v728
      %v730 = vrot.slane %v558, 1
      %v731 = vsel %vm715, %v726, %v730
      %v732 = vrot.slane %v559, 1
      %v733 = vsel %vm715, %v728, %v732
      %v734 = vrot.slane %v560, 1
      %v735 = vsel %vm715, %v730, %v734
      %v736 = vrot.slane %v561, 1
      %v737 = vsel %vm715, %v732, %v736
      %v738 = vrot.slane %v562, 1
      %v739 = vsel %vm715, %v734, %v738
      %v740 = vrot.slane %v563, 1
      %v741 = vsel %vm715, %v736, %v740
      %v742 = vrot.slane %v564, 1
      %v743 = vsel %vm715, %v738, %v742
      %v744 = vrot.slane %v565, 1
      %v745 = vsel %vm715, %v740, %v744
      %v746 = vrot.slane %v566, 1
      %v747 = vsel %vm715, %v742, %v746
      %v748 = vrot.slane %v567, 1
      %v749 = vsel %vm715, %v744, %v748
      %v750 = vrot.slane %v568, 1
      %v751 = vsel %vm715, %v746, %v750
      %v752 = vrot.slane %v569, 1
      %v753 = vsel %vm715, %v748, %v752
      %v754 = vrot.slane %v570, 1
      %v755 = vsel %vm715, %v750, %v754
      %v756 = vrot.slane %v571, 1
      %v757 = vsel %vm715, %v752, %v756
      %v758 = vrot.slane %v572, 1
      %v759 = vsel %vm715, %v754, %v758
      %v760 = vrot.slane %v573, 1
      %v761 = vsel %vm715, %v756, %v760
      %v762 = vrot.slane %v574, 1
      %v763 = vsel %vm715, %v758, %v762
      %v764 = vrot.slane %v575, 1
      %v765 = vsel %vm715, %v760, %v764
      %v766 = vrot.slane %v576, 1
      %v767 = vsel %vm715, %v762, %v766
      %v768 = vrot.slane %v577, 1
      %v769 = vsel %vm715, %v764, %v768
      %v770 = vrot.slane %v578, 1
      %v771 = vsel %vm715, %v766, %v770
      %v772 = vrot.slane %v579, 1
      %v773 = vsel %vm715, %v768, %v772
      %v774 = vrot.slane %v580, 1
      %v775 = vsel %vm715, %v770, %v774
      %v776 = vrot.slane %v581, 1
      %v777 = vsel %vm715, %v772, %v776
      %v778 = vrot.slane %v582, 1
      %v779 = vsel %vm715, %v774, %v778
      %v780 = vrot.slane %v583, 1
      %v781 = vsel %vm715, %v776, %v780
      %v782 = vrot.slane %v584, 1
      %v783 = vsel %vm715, %v778, %v782
      %v784 = vrot.slane %v585, 1
      %v785 = vsel %vm715, %v780, %v784
      %v786 = vrot.slane %v586, 1
      %v787 = vsel %vm715, %v782, %v786
      %v788 = vrot.slane %v587, 1
      %v789 = vsel %vm715, %v784, %v788
      %v790 = vrot.slane %v588, 1
      %v791 = vsel %vm715, %v786, %v790
      %v792 = vrot.slane %v589, 1
      %v793 = vsel %vm715, %v788, %v792
      %v794 = vrot.slane %v590, 1
      %v795 = vsel %vm715, %v790, %v794
      %v796 = vrot.slane %v591, 1
      %v797 = vsel %vm715, %v792, %v796
      %v798 = vrot.slane %v592, 1
      %v799 = vsel %vm715, %v794, %v798
      %v800 = vrot.slane %v593, 1
      %v801 = vsel %vm715, %v796, %v800
      %v802 = vrot.slane %v594, 1
      %v803 = vsel %vm715, %v798, %v802
      %v804 = vrot.slane %v595, 1
      %v805 = vsel %vm715, %v800, %v804
      %v806 = vrot.slane %v596, 1
      %v807 = vsel %vm715, %v802, %v806
      %v808 = vrot.slane %v597, 1
      %v809 = vsel %vm715, %v804, %v808
      %v810 = vrot.slane %v598, 1
      %v811 = vsel %vm715, %v806, %v810
      %v812 = vrot.slane %v599, 1
      %v813 = vsel %vm715, %v808, %v812
      %864 = vmatprep.subr.mxu0 %v602
      %865 = vmatpush1.msra.mxu0 %v601
      %866 = vmatprep.subr.mxu0 %v604
      %867 = vmatpush1.msra.mxu0 %v603
      %868 = vmatprep.subr.mxu0 %v606
      %869 = vmatpush1.msra.mxu0 %v605
      %870 = vmatprep.subr.mxu0 %v608
      %871 = vmatpush1.msra.mxu0 %v607
      %872 = vmatprep.subr.mxu0 %v610
      %873 = vmatpush1.msra.mxu0 %v609
      %874 = vmatprep.subr.mxu0 %v612
      %875 = vmatpush1.msra.mxu0 %v611
      %876 = vmatprep.subr.mxu0 %v614
      %877 = vmatpush1.msra.mxu0 %v613
      %878 = vmatprep.subr.mxu0 %v616
      %879 = vmatpush1.msra.mxu0 %v615
      %880 = vmatprep.subr.mxu0 %v618
      %881 = vmatpush1.msra.mxu0 %v617
      %882 = vmatprep.subr.mxu0 %v620
      %883 = vmatpush1.msra.mxu0 %v619
      %884 = vmatprep.subr.mxu0 %v622
      %885 = vmatpush1.msra.mxu0 %v621
      %886 = vmatprep.subr.mxu0 %v624
      %887 = vmatpush1.msra.mxu0 %v623
      %888 = vmatprep.subr.mxu0 %v626
      %889 = vmatpush1.msra.mxu0 %v625
      %890 = vmatprep.subr.mxu0 %v628
      %891 = vmatpush1.msra.mxu0 %v627
      %892 = vmatprep.subr.mxu0 %v630
      %893 = vmatpush1.msra.mxu0 %v629
      %894 = vmatprep.subr.mxu0 %v632
      %895 = vmatpush1.msra.mxu0 %v631
      %896 = vmatprep.subr.mxu0 %v634
      %897 = vmatpush1.msra.mxu0 %v633
      %898 = vmatprep.subr.mxu0 %v636
      %899 = vmatpush1.msra.mxu0 %v635
      %900 = vmatprep.subr.mxu0 %v638
      %901 = vmatpush1.msra.mxu0 %v637
      %902 = vmatprep.subr.mxu0 %v640
      %903 = vmatpush1.msra.mxu0 %v639
      %904 = vmatprep.subr.mxu0 %v642
      %905 = vmatpush1.msra.mxu0 %v641
      %906 = vmatprep.subr.mxu0 %v644
      %907 = vmatpush1.msra.mxu0 %v643
      %908 = vmatprep.subr.mxu0 %v646
      %909 = vmatpush1.msra.mxu0 %v645
      %910 = vmatprep.subr.mxu0 %v648
      %911 = vmatpush1.msra.mxu0 %v647
      %912 = vmatprep.subr.mxu0 %v650
      %913 = vmatpush1.msra.mxu0 %v649
      %914 = vmatprep.subr.mxu0 %v652
      %915 = vmatpush1.msra.mxu0 %v651
      %916 = vmatprep.subr.mxu0 %v654
      %917 = vmatpush1.msra.mxu0 %v653
      %918 = vmatprep.subr.mxu0 %v656
      %919 = vmatpush1.msra.mxu0 %v655
      %920 = vmatprep.subr.mxu0 %v658
      %921 = vmatpush1.msra.mxu0 %v657
      %922 = vmatprep.subr.mxu0 %v660
      %923 = vmatpush1.msra.mxu0 %v659
      %924 = vmatprep.subr.mxu0 %v662
      %925 = vmatpush1.msra.mxu0 %v661
      %926 = vmatprep.subr.mxu0 %v664
      %927 = vmatpush1.msra.mxu0 %v663
      %928 = vmatprep.mubr.f32.mxu0 %v721
      %929 = vmatmul.mubr.f32.gmra.mrb[0].mxu0 %v718
      %v930 = vpop.f32.mrb[0].mxu0
      %v931 = vadd.f32 0.0, %v930
      %v932 = vpop.f32.mrb[0].mxu0
      %v933 = vadd.f32 0.0, %v932
      %934 = vmatprep.mubr.f32.mxu0 %v725
      %935 = vmatmul.mubr.f32.gmra.mrb[0].mxu0 %v723
      %v936 = vpop.f32.mrb[0].mxu0
      %v937 = vadd.f32 0.0, %v936
      %v938 = vpop.f32.mrb[0].mxu0
      %v939 = vadd.f32 0.0, %v938
      %940 = vmatprep.mubr.f32.mxu0 %v729
      %941 = vmatmul.mubr.f32.gmra.mrb[0].mxu0 %v727
      %v942 = vpop.f32.mrb[0].mxu0
      %v943 = vadd.f32 0.0, %v942
      %v944 = vpop.f32.mrb[0].mxu0
      %v945 = vadd.f32 0.0, %v944
      %946 = vmatprep.mubr.f32.mxu0 %v733
      %947 = vmatmul.mubr.f32.gmra.mrb[0].mxu0 %v731
      %v948 = vpop.f32.mrb[0].mxu0
      %v949 = vadd.f32 0.0, %v948
      %v950 = vpop.f32.mrb[0].mxu0
      %v951 = vadd.f32 0.0, %v950
      %952 = vmatprep.mubr.f32.mxu0 %v737
      %953 = vmatmul.mubr.f32.gmra.mrb[0].mxu0 %v735
      %v954 = vpop.f32.mrb[0].mxu0
      %v955 = vadd.f32 0.0, %v954
      %v956 = vpop.f32.mrb[0].mxu0
      %v957 = vadd.f32 0.0, %v956
      %958 = vmatprep.mubr.f32.mxu0 %v741
      %959 = vmatmul.mubr.f32.gmra.mrb[0].mxu0 %v739
      %v960 = vpop.f32.mrb[0].mxu0
      %v961 = vadd.f32 0.0, %v960
      %v962 = vpop.f32.mrb[0].mxu0
      %v963 = vadd.f32 0.0, %v962
      %964 = vmatprep.mubr.f32.mxu0 %v745
      %965 = vmatmul.mubr.f32.gmra.mrb[0].mxu0 %v743
      %v966 = vpop.f32.mrb[0].mxu0
      %v967 = vadd.f32 0.0, %v966
      %v968 = vpop.f32.mrb[0].mxu0
      %v969 = vadd.f32 0.0, %v968
      %970 = vmatprep.mubr.f32.mxu0 %v749
      %971 = vmatmul.mubr.f32.gmra.mrb[0].mxu0 %v747
      %v972 = vpop.f32.mrb[0].mxu0
      %v973 = vadd.f32 0.0, %v972
      %v974 = vpop.f32.mrb[0].mxu0
      %v975 = vadd.f32 0.0, %v974
      %976 = vmatprep.mubr.f32.mxu0 %v753
      %977 = vmatmul.mubr.f32.gmra.mrb[0].mxu0 %v751
      %v978 = vpop.f32.mrb[0].mxu0
      %v979 = vadd.f32 0.0, %v978
      %v980 = vpop.f32.mrb[0].mxu0
      %v981 = vadd.f32 0.0, %v980
      %982 = vmatprep.mubr.f32.mxu0 %v757
      %983 = vmatmul.mubr.f32.gmra.mrb[0].mxu0 %v755
      %v984 = vpop.f32.mrb[0].mxu0
      %v985 = vadd.f32 0.0, %v984
      %v986 = vpop.f32.mrb[0].mxu0
      %v987 = vadd.f32 0.0, %v986
      %988 = vmatprep.mubr.f32.mxu0 %v761
      %989 = vmatmul.mubr.f32.gmra.mrb[0].mxu0 %v759
      %v990 = vpop.f32.mrb[0].mxu0
      %v991 = vadd.f32 0.0, %v990
      %v992 = vpop.f32.mrb[0].mxu0
      %v993 = vadd.f32 0.0, %v992
      %994 = vmatprep.mubr.f32.mxu0 %v765
      %995 = vmatmul.mubr.f32.gmra.mrb[0].mxu0 %v763
      %v996 = vpop.f32.mrb[0].mxu0
      %v997 = vadd.f32 0.0, %v996
      %v998 = vpop.f32.mrb[0].mxu0
      %v999 = vadd.f32 0.0, %v998
      %1000 = vmatprep.mubr.f32.mxu0 %v769
      %1001 = vmatmul.mubr.f32.gmra.mrb[0].mxu0 %v767
      %v1002 = vpop.f32.mrb[0].mxu0
      %v1003 = vadd.f32 0.0, %v1002
      %v1004 = vpop.f32.mrb[0].mxu0
      %v1005 = vadd.f32 0.0, %v1004
      %1006 = vmatprep.mubr.f32.mxu0 %v773
      %1007 = vmatmul.mubr.f32.gmra.mrb[0].mxu0 %v771
      %v1008 = vpop.f32.mrb[0].mxu0
      %v1009 = vadd.f32 0.0, %v1008
      %v1010 = vpop.f32.mrb[0].mxu0
      %v1011 = vadd.f32 0.0, %v1010
      %1012 = vmatprep.mubr.f32.mxu0 %v777
      %1013 = vmatmul.mubr.f32.gmra.mrb[0].mxu0 %v775
      %v1014 = vpop.f32.mrb[0].mxu0
      %v1015 = vadd.f32 0.0, %v1014
      %v1016 = vpop.f32.mrb[0].mxu0
      %v1017 = vadd.f32 0.0, %v1016
      %1018 = vmatprep.mubr.f32.mxu0 %v781
      %1019 = vmatmul.mubr.f32.gmra.mrb[0].mxu0 %v779
      %v1020 = vpop.f32.mrb[0].mxu0
      %v1021 = vadd.f32 0.0, %v1020
      %v1022 = vpop.f32.mrb[0].mxu0
      %v1023 = vadd.f32 0.0, %v1022
      %1024 = vmatprep.mubr.f32.mxu0 %v785
      %1025 = vmatmul.mubr.f32.gmra.mrb[0].mxu0 %v783
      %v1026 = vpop.f32.mrb[0].mxu0
      %v1027 = vadd.f32 0.0, %v1026
      %v1028 = vpop.f32.mrb[0].mxu0
      %v1029 = vadd.f32 0.0, %v1028
      %1030 = vmatprep.mubr.f32.mxu0 %v789
      %1031 = vmatmul.mubr.f32.gmra.mrb[0].mxu0 %v787
      %v1032 = vpop.f32.mrb[0].mxu0
      %v1033 = vadd.f32 0.0, %v1032
      %v1034 = vpop.f32.mrb[0].mxu0
      %v1035 = vadd.f32 0.0, %v1034
      %1036 = vmatprep.mubr.f32.mxu0 %v793
      %1037 = vmatmul.mubr.f32.gmra.mrb[0].mxu0 %v791
      %v1038 = vpop.f32.mrb[0].mxu0
      %v1039 = vadd.f32 0.0, %v1038
      %v1040 = vpop.f32.mrb[0].mxu0
      %v1041 = vadd.f32 0.0, %v1040
      %1042 = vmatprep.mubr.f32.mxu0 %v797
      %1043 = vmatmul.mubr.f32.gmra.mrb[0].mxu0 %v795
      %v1044 = vpop.f32.mrb[0].mxu0
      %v1045 = vadd.f32 0.0, %v1044
      %v1046 = vpop.f32.mrb[0].mxu0
      %v1047 = vadd.f32 0.0, %v1046
      %1048 = vmatprep.mubr.f32.mxu0 %v801
      %1049 = vmatmul.mubr.f32.gmra.mrb[0].mxu0 %v799
      %v1050 = vpop.f32.mrb[0].mxu0
      %v1051 = vadd.f32 0.0, %v1050
      %v1052 = vpop.f32.mrb[0].mxu0
      %v1053 = vadd.f32 0.0, %v1052
      %1054 = vmatprep.mubr.f32.mxu0 %v805
      %1055 = vmatmul.mubr.f32.gmra.mrb[0].mxu0 %v803
      %v1056 = vpop.f32.mrb[0].mxu0
      %v1057 = vadd.f32 0.0, %v1056
      %v1058 = vpop.f32.mrb[0].mxu0
      %v1059 = vadd.f32 0.0, %v1058
      %1060 = vmatprep.mubr.f32.mxu0 %v809
      %1061 = vmatmul.mubr.f32.gmra.mrb[0].mxu0 %v807
      %v1062 = vpop.f32.mrb[0].mxu0
      %v1063 = vadd.f32 0.0, %v1062
      %v1064 = vpop.f32.mrb[0].mxu0
      %v1065 = vadd.f32 0.0, %v1064
      %1066 = vmatprep.mubr.f32.mxu0 %v813
      %1067 = vmatmul.mubr.f32.gmra.mrb[0].mxu0 %v811
      %v1068 = vpop.f32.mrb[0].mxu0
      %v1069 = vadd.f32 0.0, %v1068
      %v1070 = vpop.f32.mrb[0].mxu0
      %v1071 = vadd.f32 0.0, %v1070
      %1072 = vmatprep.mubr.f32.mxu0 %v812
      %1073 = vmatmul.mubr.f32.gmra.mrb[0].mxu0 %v810
      %v1074 = vpop.f32.mrb[0].mxu0
      %v1075 = vadd.f32 0.0, %v1074
      %v1076 = vpop.f32.mrb[0].mxu0
      %v1077 = vadd.f32 0.0, %v1076
      %1078 = vdwg.mxu0
      %v1079 = vld [vmem:[#allocation2] sm:$0xff]
      %v1080 = vld [vmem:[#allocation2 + $0x8] sm:$0xff]
      %v1081 = vld [vmem:[#allocation2 + $0x10] sm:$0xff]
      %v1082 = vld [vmem:[#allocation2 + $0x18] sm:$0xff]
      %v1083 = vld [vmem:[#allocation2 + $0x20] sm:$0xff]
      %v1084 = vld [vmem:[#allocation2 + $0x28] sm:$0xff]
      %v1085 = vld [vmem:[#allocation2 + $0x30] sm:$0xff]
      %v1086 = vld [vmem:[#allocation2 + $0x38] sm:$0xff]
      %v1087 = vld [vmem:[#allocation2 + $0x40] sm:$0xff]
      %v1088 = vld [vmem:[#allocation2 + $0x48] sm:$0xff]
      %v1089 = vld [vmem:[#allocation2 + $0x50] sm:$0xff]
      %v1090 = vld [vmem:[#allocation2 + $0x58] sm:$0xff]
      %v1091 = vld [vmem:[#allocation2 + $0x60] sm:$0xff]
      %v1092 = vld [vmem:[#allocation2 + $0x68] sm:$0xff]
      %v1093 = vld [vmem:[#allocation2 + $0x70] sm:$0xff]
      %v1094 = vld [vmem:[#allocation2 + $0x78] sm:$0xff]
      %v1095 = vld [vmem:[#allocation2 + $0x80] sm:$0xff]
      %v1096 = vld [vmem:[#allocation2 + $0x88] sm:$0xff]
      %v1097 = vld [vmem:[#allocation2 + $0x90] sm:$0xff]
      %v1098 = vld [vmem:[#allocation2 + $0x98] sm:$0xff]
      %v1099 = vld [vmem:[#allocation2 + $0xa0] sm:$0xff]
      %v1100 = vld [vmem:[#allocation2 + $0xa8] sm:$0xff]
      %v1101 = vld [vmem:[#allocation2 + $0xb0] sm:$0xff]
      %v1102 = vld [vmem:[#allocation2 + $0xb8] sm:$0xff]
      %v1103 = vld [vmem:[#allocation2 + $0xc0] sm:$0xff]
      %v1104 = vld [vmem:[#allocation2 + $0xc8] sm:$0xff]
      %v1105 = vld [vmem:[#allocation2 + $0xd0] sm:$0xff]
      %v1106 = vld [vmem:[#allocation2 + $0xd8] sm:$0xff]
      %v1107 = vld [vmem:[#allocation2 + $0xe0] sm:$0xff]
      %v1108 = vld [vmem:[#allocation2 + $0xe8] sm:$0xff]
      %v1109 = vld [vmem:[#allocation2 + $0xf0] sm:$0xff]
      %v1110 = vld [vmem:[#allocation2 + $0xf8] sm:$0xff]
      %v1111 = vld [vmem:[#allocation2 + $0x100] sm:$0xff]
      %v1112 = vld [vmem:[#allocation2 + $0x108] sm:$0xff]
      %v1113 = vld [vmem:[#allocation2 + $0x110] sm:$0xff]
      %v1114 = vld [vmem:[#allocation2 + $0x118] sm:$0xff]
      %v1115 = vld [vmem:[#allocation2 + $0x120] sm:$0xff]
      %v1116 = vld [vmem:[#allocation2 + $0x128] sm:$0xff]
      %v1117 = vld [vmem:[#allocation2 + $0x130] sm:$0xff]
      %v1118 = vld [vmem:[#allocation2 + $0x138] sm:$0xff]
      %v1119 = vld [vmem:[#allocation2 + $0x140] sm:$0xff]
      %v1120 = vld [vmem:[#allocation2 + $0x148] sm:$0xff]
      %v1121 = vld [vmem:[#allocation2 + $0x150] sm:$0xff]
      %v1122 = vld [vmem:[#allocation2 + $0x158] sm:$0xff]
      %v1123 = vld [vmem:[#allocation2 + $0x160] sm:$0xff]
      %v1124 = vld [vmem:[#allocation2 + $0x168] sm:$0xff]
      %v1125 = vld [vmem:[#allocation2 + $0x170] sm:$0xff]
      %v1126 = vld [vmem:[#allocation2 + $0x178] sm:$0xff]
      %v1127 = vld [vmem:[#allocation2 + $0x180] sm:$0x7]
      %v1128 = vld [vmem:[#allocation2 + $0x188] sm:$0x7]
      %v1129 = vadd.f32 %v1079, %v931
      %v1130 = vadd.f32 %v1080, %v933
      %v1131 = vadd.f32 %v1081, %v937
      %v1132 = vadd.f32 %v1082, %v939
      %v1133 = vadd.f32 %v1083, %v943
      %v1134 = vadd.f32 %v1084, %v945
      %v1135 = vadd.f32 %v1085, %v949
      %v1136 = vadd.f32 %v1086, %v951
      %v1137 = vadd.f32 %v1087, %v955
      %v1138 = vadd.f32 %v1088, %v957
      %v1139 = vadd.f32 %v1089, %v961
      %v1140 = vadd.f32 %v1090, %v963
      %v1141 = vadd.f32 %v1091, %v967
      %v1142 = vadd.f32 %v1092, %v969
      %v1143 = vadd.f32 %v1093, %v973
      %v1144 = vadd.f32 %v1094, %v975
      %v1145 = vadd.f32 %v1095, %v979
      %v1146 = vadd.f32 %v1096, %v981
      %v1147 = vadd.f32 %v1097, %v985
      %v1148 = vadd.f32 %v1098, %v987
      %v1149 = vadd.f32 %v1099, %v991
      %v1150 = vadd.f32 %v1100, %v993
      %v1151 = vadd.f32 %v1101, %v997
      %v1152 = vadd.f32 %v1102, %v999
      %v1153 = vadd.f32 %v1103, %v1003
      %v1154 = vadd.f32 %v1104, %v1005
      %v1155 = vadd.f32 %v1105, %v1009
      %v1156 = vadd.f32 %v1106, %v1011
      %v1157 = vadd.f32 %v1107, %v1015
      %v1158 = vadd.f32 %v1108, %v1017
      %v1159 = vadd.f32 %v1109, %v1021
      %v1160 = vadd.f32 %v1110, %v1023
      %v1161 = vadd.f32 %v1111, %v1027
      %v1162 = vadd.f32 %v1112, %v1029
      %v1163 = vadd.f32 %v1113, %v1033
      %v1164 = vadd.f32 %v1114, %v1035
      %v1165 = vadd.f32 %v1115, %v1039
      %v1166 = vadd.f32 %v1116, %v1041
      %v1167 = vadd.f32 %v1117, %v1045
      %v1168 = vadd.f32 %v1118, %v1047
      %v1169 = vadd.f32 %v1119, %v1051
      %v1170 = vadd.f32 %v1120, %v1053
      %v1171 = vadd.f32 %v1121, %v1057
      %v1172 = vadd.f32 %v1122, %v1059
      %v1173 = vadd.f32 %v1123, %v1063
      %v1174 = vadd.f32 %v1124, %v1065
      %v1175 = vadd.f32 %v1125, %v1069
      %v1176 = vadd.f32 %v1126, %v1071
      %v1177 = vadd.f32 %v1127, %v1075
      %v1178 = vadd.f32 %v1128, %v1077
      %1179 = vst [vmem:[#allocation2] sm:$0xff] %v1129
      %1180 = vst [vmem:[#allocation2 + $0x8] sm:$0xff] %v1130
      %1181 = vst [vmem:[#allocation2 + $0x10] sm:$0xff] %v1131
      %1182 = vst [vmem:[#allocation2 + $0x18] sm:$0xff] %v1132
      %1183 = vst [vmem:[#allocation2 + $0x20] sm:$0xff] %v1133
      %1184 = vst [vmem:[#allocation2 + $0x28] sm:$0xff] %v1134
      %1185 = vst [vmem:[#allocation2 + $0x30] sm:$0xff] %v1135
      %1186 = vst [vmem:[#allocation2 + $0x38] sm:$0xff] %v1136
      %1187 = vst [vmem:[#allocation2 + $0x40] sm:$0xff] %v1137
      %1188 = vst [vmem:[#allocation2 + $0x48] sm:$0xff] %v1138
      %1189 = vst [vmem:[#allocation2 + $0x50] sm:$0xff] %v1139
      %1190 = vst [vmem:[#allocation2 + $0x58] sm:$0xff] %v1140
      %1191 = vst [vmem:[#allocation2 + $0x60] sm:$0xff] %v1141
      %1192 = vst [vmem:[#allocation2 + $0x68] sm:$0xff] %v1142
      %1193 = vst [vmem:[#allocation2 + $0x70] sm:$0xff] %v1143
      %1194 = vst [vmem:[#allocation2 + $0x78] sm:$0xff] %v1144
      %1195 = vst [vmem:[#allocation2 + $0x80] sm:$0xff] %v1145
      %1196 = vst [vmem:[#allocation2 + $0x88] sm:$0xff] %v1146
      %1197 = vst [vmem:[#allocation2 + $0x90] sm:$0xff] %v1147
      %1198 = vst [vmem:[#allocation2 + $0x98] sm:$0xff] %v1148
      %1199 = vst [vmem:[#allocation2 + $0xa0] sm:$0xff] %v1149
      %1200 = vst [vmem:[#allocation2 + $0xa8] sm:$0xff] %v1150
      %1201 = vst [vmem:[#allocation2 + $0xb0] sm:$0xff] %v1151
      %1202 = vst [vmem:[#allocation2 + $0xb8] sm:$0xff] %v1152
      %1203 = vst [vmem:[#allocation2 + $0xc0] sm:$0xff] %v1153
      %1204 = vst [vmem:[#allocation2 + $0xc8] sm:$0xff] %v1154
      %1205 = vst [vmem:[#allocation2 + $0xd0] sm:$0xff] %v1155
      %1206 = vst [vmem:[#allocation2 + $0xd8] sm:$0xff] %v1156
      %1207 = vst [vmem:[#allocation2 + $0xe0] sm:$0xff] %v1157
      %1208 = vst [vmem:[#allocation2 + $0xe8] sm:$0xff] %v1158
      %1209 = vst [vmem:[#allocation2 + $0xf0] sm:$0xff] %v1159
      %1210 = vst [vmem:[#allocation2 + $0xf8] sm:$0xff] %v1160
      %1211 = vst [vmem:[#allocation2 + $0x100] sm:$0xff] %v1161
      %1212 = vst [vmem:[#allocation2 + $0x108] sm:$0xff] %v1162
      %1213 = vst [vmem:[#allocation2 + $0x110] sm:$0xff] %v1163
      %1214 = vst [vmem:[#allocation2 + $0x118] sm:$0xff] %v1164
      %1215 = vst [vmem:[#allocation2 + $0x120] sm:$0xff] %v1165
      %1216 = vst [vmem:[#allocation2 + $0x128] sm:$0xff] %v1166
      %1217 = vst [vmem:[#allocation2 + $0x130] sm:$0xff] %v1167
      %1218 = vst [vmem:[#allocation2 + $0x138] sm:$0xff] %v1168
      %1219 = vst [vmem:[#allocation2 + $0x140] sm:$0xff] %v1169
      %1220 = vst [vmem:[#allocation2 + $0x148] sm:$0xff] %v1170
      %1221 = vst [vmem:[#allocation2 + $0x150] sm:$0xff] %v1171
      %1222 = vst [vmem:[#allocation2 + $0x158] sm:$0xff] %v1172
      %1223 = vst [vmem:[#allocation2 + $0x160] sm:$0xff] %v1173
      %1224 = vst [vmem:[#allocation2 + $0x168] sm:$0xff] %v1174
      %1225 = vst [vmem:[#allocation2 + $0x170] sm:$0xff] %v1175
      %1226 = vst [vmem:[#allocation2 + $0x178] sm:$0xff] %v1176
      %1227 = vst [vmem:[#allocation2 + $0x180] sm:$0x7] %v1177
      %1228 = vst [vmem:[#allocation2 + $0x188] sm:$0x7] %v1178
      %v1229 = vld [vmem:[%s165] sm:$0xfc]
      %v1230 = vld [vmem:[%s165 + $0x8] sm:$0xfc]
      %v1231 = vld [vmem:[%s165 + $0x10] sm:$0xff]
      %v1232 = vld [vmem:[%s165 + $0x18] sm:$0xff]
      %v1233 = vld [vmem:[%s165 + $0x20] sm:$0xff]
      %v1234 = vld [vmem:[%s165 + $0x28] sm:$0xff]
      %v1235 = vld [vmem:[%s165 + $0x30] sm:$0xff]
      %v1236 = vld [vmem:[%s165 + $0x38] sm:$0xff]
      %v1237 = vld [vmem:[%s165 + $0x40] sm:$0xff]
      %v1238 = vld [vmem:[%s165 + $0x48] sm:$0xff]
      %v1239 = vld [vmem:[%s165 + $0x50] sm:$0xff]
      %v1240 = vld [vmem:[%s165 + $0x58] sm:$0xff]
      %v1241 = vld [vmem:[%s165 + $0x60] sm:$0xff]
      %v1242 = vld [vmem:[%s165 + $0x68] sm:$0xff]
      %v1243 = vld [vmem:[%s165 + $0x70] sm:$0xff]
      %v1244 = vld [vmem:[%s165 + $0x78] sm:$0xff]
      %v1245 = vld [vmem:[%s165 + $0x80] sm:$0xff]
      %v1246 = vld [vmem:[%s165 + $0x88] sm:$0xff]
      %v1247 = vld [vmem:[%s165 + $0x90] sm:$0xff]
      %v1248 = vld [vmem:[%s165 + $0x98] sm:$0xff]
      %v1249 = vld [vmem:[%s165 + $0xa0] sm:$0xff]
      %v1250 = vld [vmem:[%s165 + $0xa8] sm:$0xff]
      %v1251 = vld [vmem:[%s165 + $0xb0] sm:$0xff]
      %v1252 = vld [vmem:[%s165 + $0xb8] sm:$0xff]
      %v1253 = vld [vmem:[%s165 + $0xc0] sm:$0xff]
      %v1254 = vld [vmem:[%s165 + $0xc8] sm:$0xff]
      %v1255 = vld [vmem:[%s165 + $0xd0] sm:$0xff]
      %v1256 = vld [vmem:[%s165 + $0xd8] sm:$0xff]
      %v1257 = vld [vmem:[%s165 + $0xe0] sm:$0xff]
      %v1258 = vld [vmem:[%s165 + $0xe8] sm:$0xff]
      %v1259 = vld [vmem:[%s165 + $0xf0] sm:$0xff]
      %v1260 = vld [vmem:[%s165 + $0xf8] sm:$0xff]
      %v1261 = vld [vmem:[%s165 + $0x100] sm:$0xff]
      %v1262 = vld [vmem:[%s165 + $0x108] sm:$0xff]
      %v1263 = vld [vmem:[%s165 + $0x110] sm:$0xff]
      %v1264 = vld [vmem:[%s165 + $0x118] sm:$0xff]
      %v1265 = vld [vmem:[%s165 + $0x120] sm:$0xff]
      %v1266 = vld [vmem:[%s165 + $0x128] sm:$0xff]
      %v1267 = vld [vmem:[%s165 + $0x130] sm:$0xff]
      %v1268 = vld [vmem:[%s165 + $0x138] sm:$0xff]
      %v1269 = vld [vmem:[%s165 + $0x140] sm:$0xff]
      %v1270 = vld [vmem:[%s165 + $0x148] sm:$0xff]
      %v1271 = vld [vmem:[%s165 + $0x150] sm:$0xff]
      %v1272 = vld [vmem:[%s165 + $0x158] sm:$0xff]
      %v1273 = vld [vmem:[%s165 + $0x160] sm:$0xff]
      %v1274 = vld [vmem:[%s165 + $0x168] sm:$0xff]
      %v1275 = vld [vmem:[%s165 + $0x170] sm:$0xff]
      %v1276 = vld [vmem:[%s165 + $0x178] sm:$0xff]
      %v1277 = vld [vmem:[%s165 + $0x180] sm:$0x1f]
      %v1278 = vld [vmem:[%s165 + $0x188] sm:$0x1f]
      %s1279 = scalar_lea.vmem %s1, 1024
      %v1280 = vld [vmem:[%s1279] sm:$0xff]
      %v1281 = vld [vmem:[%s1279 + $0x8] sm:$0xff]
      %v1282 = vld [vmem:[%s1279 + $0x10] sm:$0xff]
      %v1283 = vld [vmem:[%s1279 + $0x18] sm:$0xff]
      %v1284 = vld [vmem:[%s1279 + $0x20] sm:$0xff]
      %v1285 = vld [vmem:[%s1279 + $0x28] sm:$0xff]
      %v1286 = vld [vmem:[%s1279 + $0x30] sm:$0xff]
      %v1287 = vld [vmem:[%s1279 + $0x38] sm:$0xff]
      %v1288 = vld [vmem:[%s1279 + $0x40] sm:$0xff]
      %v1289 = vld [vmem:[%s1279 + $0x48] sm:$0xff]
      %v1290 = vld [vmem:[%s1279 + $0x50] sm:$0xff]
      %v1291 = vld [vmem:[%s1279 + $0x58] sm:$0xff]
      %v1292 = vld [vmem:[%s1279 + $0x60] sm:$0xff]
      %v1293 = vld [vmem:[%s1279 + $0x68] sm:$0xff]
      %v1294 = vld [vmem:[%s1279 + $0x70] sm:$0xff]
      %v1295 = vld [vmem:[%s1279 + $0x78] sm:$0xff]
      %v1296 = vld [vmem:[%s1279 + $0x80] sm:$0xff]
      %v1297 = vld [vmem:[%s1279 + $0x88] sm:$0xff]
      %v1298 = vld [vmem:[%s1279 + $0x90] sm:$0xff]
      %v1299 = vld [vmem:[%s1279 + $0x98] sm:$0xff]
      %v1300 = vld [vmem:[%s1279 + $0xa0] sm:$0xff]
      %v1301 = vld [vmem:[%s1279 + $0xa8] sm:$0xff]
      %v1302 = vld [vmem:[%s1279 + $0xb0] sm:$0xff]
      %v1303 = vld [vmem:[%s1279 + $0xb8] sm:$0xff]
      %v1304 = vld [vmem:[%s1279 + $0xc0] sm:$0xff]
      %v1305 = vld [vmem:[%s1279 + $0xc8] sm:$0xff]
      %v1306 = vld [vmem:[%s1279 + $0xd0] sm:$0xff]
      %v1307 = vld [vmem:[%s1279 + $0xd8] sm:$0xff]
      %v1308 = vld [vmem:[%s1279 + $0xe0] sm:$0xff]
      %v1309 = vld [vmem:[%s1279 + $0xe8] sm:$0xff]
      %v1310 = vld [vmem:[%s1279 + $0xf0] sm:$0xff]
      %v1311 = vld [vmem:[%s1279 + $0xf8] sm:$0xff]
      %v1312 = vld [vmem:[%s1279 + $0x100] sm:$0xff]
      %v1313 = vld [vmem:[%s1279 + $0x108] sm:$0xff]
      %v1314 = vld [vmem:[%s1279 + $0x110] sm:$0xff]
      %v1315 = vld [vmem:[%s1279 + $0x118] sm:$0xff]
      %v1316 = vld [vmem:[%s1279 + $0x120] sm:$0xff]
      %v1317 = vld [vmem:[%s1279 + $0x128] sm:$0xff]
      %v1318 = vld [vmem:[%s1279 + $0x130] sm:$0xff]
      %v1319 = vld [vmem:[%s1279 + $0x138] sm:$0xff]
      %v1320 = vld [vmem:[%s1279 + $0x140] sm:$0xff]
      %v1321 = vld [vmem:[%s1279 + $0x148] sm:$0xff]
      %v1322 = vld [vmem:[%s1279 + $0x150] sm:$0xff]
      %v1323 = vld [vmem:[%s1279 + $0x158] sm:$0xff]
      %v1324 = vld [vmem:[%s1279 + $0x160] sm:$0xff]
      %v1325 = vld [vmem:[%s1279 + $0x168] sm:$0xff]
      %v1326 = vld [vmem:[%s1279 + $0x170] sm:$0xff]
      %v1327 = vld [vmem:[%s1279 + $0x178] sm:$0xff]
      %v1328 = vld [vmem:[%s1279 + $0x180] sm:$0xff]
      %v1329 = vld [vmem:[%s1279 + $0x188] sm:$0xff]
      %v1330 = vld [vmem:[%s1279 + $0x190] sm:$0xff]
      %v1331 = vld [vmem:[%s1279 + $0x198] sm:$0xff]
      %v1332 = vld [vmem:[%s1279 + $0x1a0] sm:$0xff]
      %v1333 = vld [vmem:[%s1279 + $0x1a8] sm:$0xff]
      %v1334 = vld [vmem:[%s1279 + $0x1b0] sm:$0xff]
      %v1335 = vld [vmem:[%s1279 + $0x1b8] sm:$0xff]
      %v1336 = vld [vmem:[%s1279 + $0x1c0] sm:$0xff]
      %v1337 = vld [vmem:[%s1279 + $0x1c8] sm:$0xff]
      %v1338 = vld [vmem:[%s1279 + $0x1d0] sm:$0xff]
      %v1339 = vld [vmem:[%s1279 + $0x1d8] sm:$0xff]
      %v1340 = vld [vmem:[%s1279 + $0x1e0] sm:$0xff]
      %v1341 = vld [vmem:[%s1279 + $0x1e8] sm:$0xff]
      %v1342 = vld [vmem:[%s1279 + $0x1f0] sm:$0xff]
      %v1343 = vld [vmem:[%s1279 + $0x1f8] sm:$0xff]
      %vm1394 = vcmask 1045504
      %v1395 = vrot.slane %v1229, 2
      %v1396 = vrot.slane %v1231, 2
      %v1397 = vsel %vm1394, %v1395, %v1396
      %v1398 = vrot.slane %v1230, 2
      %v1399 = vrot.slane %v1232, 2
      %v1400 = vsel %vm1394, %v1398, %v1399
      %v1401 = vrot.slane %v1233, 2
      %v1402 = vsel %vm1394, %v1396, %v1401
      %v1403 = vrot.slane %v1234, 2
      %v1404 = vsel %vm1394, %v1399, %v1403
      %v1405 = vrot.slane %v1235, 2
      %v1406 = vsel %vm1394, %v1401, %v1405
      %v1407 = vrot.slane %v1236, 2
      %v1408 = vsel %vm1394, %v1403, %v1407
      %v1409 = vrot.slane %v1237, 2
      %v1410 = vsel %vm1394, %v1405, %v1409
      %v1411 = vrot.slane %v1238, 2
      %v1412 = vsel %vm1394, %v1407, %v1411
      %v1413 = vrot.slane %v1239, 2
      %v1414 = vsel %vm1394, %v1409, %v1413
      %v1415 = vrot.slane %v1240, 2
      %v1416 = vsel %vm1394, %v1411, %v1415
      %v1417 = vrot.slane %v1241, 2
      %v1418 = vsel %vm1394, %v1413, %v1417
      %v1419 = vrot.slane %v1242, 2
      %v1420 = vsel %vm1394, %v1415, %v1419
      %v1421 = vrot.slane %v1243, 2
      %v1422 = vsel %vm1394, %v1417, %v1421
      %v1423 = vrot.slane %v1244, 2
      %v1424 = vsel %vm1394, %v1419, %v1423
      %v1425 = vrot.slane %v1245, 2
      %v1426 = vsel %vm1394, %v1421, %v1425
      %v1427 = vrot.slane %v1246, 2
      %v1428 = vsel %vm1394, %v1423, %v1427
      %v1429 = vrot.slane %v1247, 2
      %v1430 = vsel %vm1394, %v1425, %v1429
      %v1431 = vrot.slane %v1248, 2
      %v1432 = vsel %vm1394, %v1427, %v1431
      %v1433 = vrot.slane %v1249, 2
      %v1434 = vsel %vm1394, %v1429, %v1433
      %v1435 = vrot.slane %v1250, 2
      %v1436 = vsel %vm1394, %v1431, %v1435
      %v1437 = vrot.slane %v1251, 2
      %v1438 = vsel %vm1394, %v1433, %v1437
      %v1439 = vrot.slane %v1252, 2
      %v1440 = vsel %vm1394, %v1435, %v1439
      %v1441 = vrot.slane %v1253, 2
      %v1442 = vsel %vm1394, %v1437, %v1441
      %v1443 = vrot.slane %v1254, 2
      %v1444 = vsel %vm1394, %v1439, %v1443
      %v1445 = vrot.slane %v1255, 2
      %v1446 = vsel %vm1394, %v1441, %v1445
      %v1447 = vrot.slane %v1256, 2
      %v1448 = vsel %vm1394, %v1443, %v1447
      %v1449 = vrot.slane %v1257, 2
      %v1450 = vsel %vm1394, %v1445, %v1449
      %v1451 = vrot.slane %v1258, 2
      %v1452 = vsel %vm1394, %v1447, %v1451
      %v1453 = vrot.slane %v1259, 2
      %v1454 = vsel %vm1394, %v1449, %v1453
      %v1455 = vrot.slane %v1260, 2
      %v1456 = vsel %vm1394, %v1451, %v1455
      %v1457 = vrot.slane %v1261, 2
      %v1458 = vsel %vm1394, %v1453, %v1457
      %v1459 = vrot.slane %v1262, 2
      %v1460 = vsel %vm1394, %v1455, %v1459
      %v1461 = vrot.slane %v1263, 2
      %v1462 = vsel %vm1394, %v1457, %v1461
      %v1463 = vrot.slane %v1264, 2
      %v1464 = vsel %vm1394, %v1459, %v1463
      %v1465 = vrot.slane %v1265, 2
      %v1466 = vsel %vm1394, %v1461, %v1465
      %v1467 = vrot.slane %v1266, 2
      %v1468 = vsel %vm1394, %v1463, %v1467
      %v1469 = vrot.slane %v1267, 2
      %v1470 = vsel %vm1394, %v1465, %v1469
      %v1471 = vrot.slane %v1268, 2
      %v1472 = vsel %vm1394, %v1467, %v1471
      %v1473 = vrot.slane %v1269, 2
      %v1474 = vsel %vm1394, %v1469, %v1473
      %v1475 = vrot.slane %v1270, 2
      %v1476 = vsel %vm1394, %v1471, %v1475
      %v1477 = vrot.slane %v1271, 2
      %v1478 = vsel %vm1394, %v1473, %v1477
      %v1479 = vrot.slane %v1272, 2
      %v1480 = vsel %vm1394, %v1475, %v1479
      %v1481 = vrot.slane %v1273, 2
      %v1482 = vsel %vm1394, %v1477, %v1481
      %v1483 = vrot.slane %v1274, 2
      %v1484 = vsel %vm1394, %v1479, %v1483
      %v1485 = vrot.slane %v1275, 2
      %v1486 = vsel %vm1394, %v1481, %v1485
      %v1487 = vrot.slane %v1276, 2
      %v1488 = vsel %vm1394, %v1483, %v1487
      %v1489 = vrot.slane %v1277, 2
      %v1490 = vsel %vm1394, %v1485, %v1489
      %v1491 = vrot.slane %v1278, 2
      %v1492 = vsel %vm1394, %v1487, %v1491
      %1543 = vmatprep.subr.mxu0 %v1281
      %1544 = vmatpush1.msra.mxu0 %v1280
      %1545 = vmatprep.subr.mxu0 %v1283
      %1546 = vmatpush1.msra.mxu0 %v1282
      %1547 = vmatprep.subr.mxu0 %v1285
      %1548 = vmatpush1.msra.mxu0 %v1284
      %1549 = vmatprep.subr.mxu0 %v1287
      %1550 = vmatpush1.msra.mxu0 %v1286
      %1551 = vmatprep.subr.mxu0 %v1289
      %1552 = vmatpush1.msra.mxu0 %v1288
      %1553 = vmatprep.subr.mxu0 %v1291
      %1554 = vmatpush1.msra.mxu0 %v1290
      %1555 = vmatprep.subr.mxu0 %v1293
      %1556 = vmatpush1.msra.mxu0 %v1292
      %1557 = vmatprep.subr.mxu0 %v1295
      %1558 = vmatpush1.msra.mxu0 %v1294
      %1559 = vmatprep.subr.mxu0 %v1297
      %1560 = vmatpush1.msra.mxu0 %v1296
      %1561 = vmatprep.subr.mxu0 %v1299
      %1562 = vmatpush1.msra.mxu0 %v1298
      %1563 = vmatprep.subr.mxu0 %v1301
      %1564 = vmatpush1.msra.mxu0 %v1300
      %1565 = vmatprep.subr.mxu0 %v1303
      %1566 = vmatpush1.msra.mxu0 %v1302
      %1567 = vmatprep.subr.mxu0 %v1305
      %1568 = vmatpush1.msra.mxu0 %v1304
      %1569 = vmatprep.subr.mxu0 %v1307
      %1570 = vmatpush1.msra.mxu0 %v1306
      %1571 = vmatprep.subr.mxu0 %v1309
      %1572 = vmatpush1.msra.mxu0 %v1308
      %1573 = vmatprep.subr.mxu0 %v1311
      %1574 = vmatpush1.msra.mxu0 %v1310
      %1575 = vmatprep.subr.mxu0 %v1313
      %1576 = vmatpush1.msra.mxu0 %v1312
      %1577 = vmatprep.subr.mxu0 %v1315
      %1578 = vmatpush1.msra.mxu0 %v1314
      %1579 = vmatprep.subr.mxu0 %v1317
      %1580 = vmatpush1.msra.mxu0 %v1316
      %1581 = vmatprep.subr.mxu0 %v1319
      %1582 = vmatpush1.msra.mxu0 %v1318
      %1583 = vmatprep.subr.mxu0 %v1321
      %1584 = vmatpush1.msra.mxu0 %v1320
      %1585 = vmatprep.subr.mxu0 %v1323
      %1586 = vmatpush1.msra.mxu0 %v1322
      %1587 = vmatprep.subr.mxu0 %v1325
      %1588 = vmatpush1.msra.mxu0 %v1324
      %1589 = vmatprep.subr.mxu0 %v1327
      %1590 = vmatpush1.msra.mxu0 %v1326
      %1591 = vmatprep.subr.mxu0 %v1329
      %1592 = vmatpush1.msra.mxu0 %v1328
      %1593 = vmatprep.subr.mxu0 %v1331
      %1594 = vmatpush1.msra.mxu0 %v1330
      %1595 = vmatprep.subr.mxu0 %v1333
      %1596 = vmatpush1.msra.mxu0 %v1332
      %1597 = vmatprep.subr.mxu0 %v1335
      %1598 = vmatpush1.msra.mxu0 %v1334
      %1599 = vmatprep.subr.mxu0 %v1337
      %1600 = vmatpush1.msra.mxu0 %v1336
      %1601 = vmatprep.subr.mxu0 %v1339
      %1602 = vmatpush1.msra.mxu0 %v1338
      %1603 = vmatprep.subr.mxu0 %v1341
      %1604 = vmatpush1.msra.mxu0 %v1340
      %1605 = vmatprep.subr.mxu0 %v1343
      %1606 = vmatpush1.msra.mxu0 %v1342
      %1607 = vmatprep.mubr.f32.mxu0 %v1400
      %1608 = vmatmul.mubr.f32.gmra.mrb[0].mxu0 %v1397
      %v1609 = vpop.f32.mrb[0].mxu0
      %v1610 = vadd.f32 0.0, %v1609
      %v1611 = vpop.f32.mrb[0].mxu0
      %v1612 = vadd.f32 0.0, %v1611
      %1613 = vmatprep.mubr.f32.mxu0 %v1404
      %1614 = vmatmul.mubr.f32.gmra.mrb[0].mxu0 %v1402
      %v1615 = vpop.f32.mrb[0].mxu0
      %v1616 = vadd.f32 0.0, %v1615
      %v1617 = vpop.f32.mrb[0].mxu0
      %v1618 = vadd.f32 0.0, %v1617
      %1619 = vmatprep.mubr.f32.mxu0 %v1408
      %1620 = vmatmul.mubr.f32.gmra.mrb[0].mxu0 %v1406
      %v1621 = vpop.f32.mrb[0].mxu0
      %v1622 = vadd.f32 0.0, %v1621
      %v1623 = vpop.f32.mrb[0].mxu0
      %v1624 = vadd.f32 0.0, %v1623
      %1625 = vmatprep.mubr.f32.mxu0 %v1412
      %1626 = vmatmul.mubr.f32.gmra.mrb[0].mxu0 %v1410
      %v1627 = vpop.f32.mrb[0].mxu0
      %v1628 = vadd.f32 0.0, %v1627
      %v1629 = vpop.f32.mrb[0].mxu0
      %v1630 = vadd.f32 0.0, %v1629
      %1631 = vmatprep.mubr.f32.mxu0 %v1416
      %1632 = vmatmul.mubr.f32.gmra.mrb[0].mxu0 %v1414
      %v1633 = vpop.f32.mrb[0].mxu0
      %v1634 = vadd.f32 0.0, %v1633
      %v1635 = vpop.f32.mrb[0].mxu0
      %v1636 = vadd.f32 0.0, %v1635
      %1637 = vmatprep.mubr.f32.mxu0 %v1420
      %1638 = vmatmul.mubr.f32.gmra.mrb[0].mxu0 %v1418
      %v1639 = vpop.f32.mrb[0].mxu0
      %v1640 = vadd.f32 0.0, %v1639
      %v1641 = vpop.f32.mrb[0].mxu0
      %v1642 = vadd.f32 0.0, %v1641
      %1643 = vmatprep.mubr.f32.mxu0 %v1424
      %1644 = vmatmul.mubr.f32.gmra.mrb[0].mxu0 %v1422
      %v1645 = vpop.f32.mrb[0].mxu0
      %v1646 = vadd.f32 0.0, %v1645
      %v1647 = vpop.f32.mrb[0].mxu0
      %v1648 = vadd.f32 0.0, %v1647
      %1649 = vmatprep.mubr.f32.mxu0 %v1428
      %1650 = vmatmul.mubr.f32.gmra.mrb[0].mxu0 %v1426
      %v1651 = vpop.f32.mrb[0].mxu0
      %v1652 = vadd.f32 0.0, %v1651
      %v1653 = vpop.f32.mrb[0].mxu0
      %v1654 = vadd.f32 0.0, %v1653
      %1655 = vmatprep.mubr.f32.mxu0 %v1432
      %1656 = vmatmul.mubr.f32.gmra.mrb[0].mxu0 %v1430
      %v1657 = vpop.f32.mrb[0].mxu0
      %v1658 = vadd.f32 0.0, %v1657
      %v1659 = vpop.f32.mrb[0].mxu0
      %v1660 = vadd.f32 0.0, %v1659
      %1661 = vmatprep.mubr.f32.mxu0 %v1436
      %1662 = vmatmul.mubr.f32.gmra.mrb[0].mxu0 %v1434
      %v1663 = vpop.f32.mrb[0].mxu0
      %v1664 = vadd.f32 0.0, %v1663
      %v1665 = vpop.f32.mrb[0].mxu0
      %v1666 = vadd.f32 0.0, %v1665
      %1667 = vmatprep.mubr.f32.mxu0 %v1440
      %1668 = vmatmul.mubr.f32.gmra.mrb[0].mxu0 %v1438
      %v1669 = vpop.f32.mrb[0].mxu0
      %v1670 = vadd.f32 0.0, %v1669
      %v1671 = vpop.f32.mrb[0].mxu0
      %v1672 = vadd.f32 0.0, %v1671
      %1673 = vmatprep.mubr.f32.mxu0 %v1444
      %1674 = vmatmul.mubr.f32.gmra.mrb[0].mxu0 %v1442
      %v1675 = vpop.f32.mrb[0].mxu0
      %v1676 = vadd.f32 0.0, %v1675
      %v1677 = vpop.f32.mrb[0].mxu0
      %v1678 = vadd.f32 0.0, %v1677
      %1679 = vmatprep.mubr.f32.mxu0 %v1448
      %1680 = vmatmul.mubr.f32.gmra.mrb[0].mxu0 %v1446
      %v1681 = vpop.f32.mrb[0].mxu0
      %v1682 = vadd.f32 0.0, %v1681
      %v1683 = vpop.f32.mrb[0].mxu0
      %v1684 = vadd.f32 0.0, %v1683
      %1685 = vmatprep.mubr.f32.mxu0 %v1452
      %1686 = vmatmul.mubr.f32.gmra.mrb[0].mxu0 %v1450
      %v1687 = vpop.f32.mrb[0].mxu0
      %v1688 = vadd.f32 0.0, %v1687
      %v1689 = vpop.f32.mrb[0].mxu0
      %v1690 = vadd.f32 0.0, %v1689
      %1691 = vmatprep.mubr.f32.mxu0 %v1456
      %1692 = vmatmul.mubr.f32.gmra.mrb[0].mxu0 %v1454
      %v1693 = vpop.f32.mrb[0].mxu0
      %v1694 = vadd.f32 0.0, %v1693
      %v1695 = vpop.f32.mrb[0].mxu0
      %v1696 = vadd.f32 0.0, %v1695
      %1697 = vmatprep.mubr.f32.mxu0 %v1460
      %1698 = vmatmul.mubr.f32.gmra.mrb[0].mxu0 %v1458
      %v1699 = vpop.f32.mrb[0].mxu0
      %v1700 = vadd.f32 0.0, %v1699
      %v1701 = vpop.f32.mrb[0].mxu0
      %v1702 = vadd.f32 0.0, %v1701
      %1703 = vmatprep.mubr.f32.mxu0 %v1464
      %1704 = vmatmul.mubr.f32.gmra.mrb[0].mxu0 %v1462
      %v1705 = vpop.f32.mrb[0].mxu0
      %v1706 = vadd.f32 0.0, %v1705
      %v1707 = vpop.f32.mrb[0].mxu0
      %v1708 = vadd.f32 0.0, %v1707
      %1709 = vmatprep.mubr.f32.mxu0 %v1468
      %1710 = vmatmul.mubr.f32.gmra.mrb[0].mxu0 %v1466
      %v1711 = vpop.f32.mrb[0].mxu0
      %v1712 = vadd.f32 0.0, %v1711
      %v1713 = vpop.f32.mrb[0].mxu0
      %v1714 = vadd.f32 0.0, %v1713
      %1715 = vmatprep.mubr.f32.mxu0 %v1472
      %1716 = vmatmul.mubr.f32.gmra.mrb[0].mxu0 %v1470
      %v1717 = vpop.f32.mrb[0].mxu0
      %v1718 = vadd.f32 0.0, %v1717
      %v1719 = vpop.f32.mrb[0].mxu0
      %v1720 = vadd.f32 0.0, %v1719
      %1721 = vmatprep.mubr.f32.mxu0 %v1476
      %1722 = vmatmul.mubr.f32.gmra.mrb[0].mxu0 %v1474
      %v1723 = vpop.f32.mrb[0].mxu0
      %v1724 = vadd.f32 0.0, %v1723
      %v1725 = vpop.f32.mrb[0].mxu0
      %v1726 = vadd.f32 0.0, %v1725
      %1727 = vmatprep.mubr.f32.mxu0 %v1480
      %1728 = vmatmul.mubr.f32.gmra.mrb[0].mxu0 %v1478
      %v1729 = vpop.f32.mrb[0].mxu0
      %v1730 = vadd.f32 0.0, %v1729
      %v1731 = vpop.f32.mrb[0].mxu0
      %v1732 = vadd.f32 0.0, %v1731
      %1733 = vmatprep.mubr.f32.mxu0 %v1484
      %1734 = vmatmul.mubr.f32.gmra.mrb[0].mxu0 %v1482
      %v1735 = vpop.f32.mrb[0].mxu0
      %v1736 = vadd.f32 0.0, %v1735
      %v1737 = vpop.f32.mrb[0].mxu0
      %v1738 = vadd.f32 0.0, %v1737
      %1739 = vmatprep.mubr.f32.mxu0 %v1488
      %1740 = vmatmul.mubr.f32.gmra.mrb[0].mxu0 %v1486
      %v1741 = vpop.f32.mrb[0].mxu0
      %v1742 = vadd.f32 0.0, %v1741
      %v1743 = vpop.f32.mrb[0].mxu0
      %v1744 = vadd.f32 0.0, %v1743
      %1745 = vmatprep.mubr.f32.mxu0 %v1492
      %1746 = vmatmul.mubr.f32.gmra.mrb[0].mxu0 %v1490
      %v1747 = vpop.f32.mrb[0].mxu0
      %v1748 = vadd.f32 0.0, %v1747
      %v1749 = vpop.f32.mrb[0].mxu0
      %v1750 = vadd.f32 0.0, %v1749
      %1751 = vmatprep.mubr.f32.mxu0 %v1491
      %1752 = vmatmul.mubr.f32.gmra.mrb[0].mxu0 %v1489
      %v1753 = vpop.f32.mrb[0].mxu0
      %v1754 = vadd.f32 0.0, %v1753
      %v1755 = vpop.f32.mrb[0].mxu0
      %v1756 = vadd.f32 0.0, %v1755
      %1757 = vdwg.mxu0
      %v1758 = vld [vmem:[#allocation2] sm:$0xff]
      %v1759 = vld [vmem:[#allocation2 + $0x8] sm:$0xff]
      %v1760 = vld [vmem:[#allocation2 + $0x10] sm:$0xff]
      %v1761 = vld [vmem:[#allocation2 + $0x18] sm:$0xff]
      %v1762 = vld [vmem:[#allocation2 + $0x20] sm:$0xff]
      %v1763 = vld [vmem:[#allocation2 + $0x28] sm:$0xff]
      %v1764 = vld [vmem:[#allocation2 + $0x30] sm:$0xff]
      %v1765 = vld [vmem:[#allocation2 + $0x38] sm:$0xff]
      %v1766 = vld [vmem:[#allocation2 + $0x40] sm:$0xff]
      %v1767 = vld [vmem:[#allocation2 + $0x48] sm:$0xff]
      %v1768 = vld [vmem:[#allocation2 + $0x50] sm:$0xff]
      %v1769 = vld [vmem:[#allocation2 + $0x58] sm:$0xff]
      %v1770 = vld [vmem:[#allocation2 + $0x60] sm:$0xff]
      %v1771 = vld [vmem:[#allocation2 + $0x68] sm:$0xff]
      %v1772 = vld [vmem:[#allocation2 + $0x70] sm:$0xff]
      %v1773 = vld [vmem:[#allocation2 + $0x78] sm:$0xff]
      %v1774 = vld [vmem:[#allocation2 + $0x80] sm:$0xff]
      %v1775 = vld [vmem:[#allocation2 + $0x88] sm:$0xff]
      %v1776 = vld [vmem:[#allocation2 + $0x90] sm:$0xff]
      %v1777 = vld [vmem:[#allocation2 + $0x98] sm:$0xff]
      %v1778 = vld [vmem:[#allocation2 + $0xa0] sm:$0xff]
      %v1779 = vld [vmem:[#allocation2 + $0xa8] sm:$0xff]
      %v1780 = vld [vmem:[#allocation2 + $0xb0] sm:$0xff]
      %v1781 = vld [vmem:[#allocation2 + $0xb8] sm:$0xff]
      %v1782 = vld [vmem:[#allocation2 + $0xc0] sm:$0xff]
      %v1783 = vld [vmem:[#allocation2 + $0xc8] sm:$0xff]
      %v1784 = vld [vmem:[#allocation2 + $0xd0] sm:$0xff]
      %v1785 = vld [vmem:[#allocation2 + $0xd8] sm:$0xff]
      %v1786 = vld [vmem:[#allocation2 + $0xe0] sm:$0xff]
      %v1787 = vld [vmem:[#allocation2 + $0xe8] sm:$0xff]
      %v1788 = vld [vmem:[#allocation2 + $0xf0] sm:$0xff]
      %v1789 = vld [vmem:[#allocation2 + $0xf8] sm:$0xff]
      %v1790 = vld [vmem:[#allocation2 + $0x100] sm:$0xff]
      %v1791 = vld [vmem:[#allocation2 + $0x108] sm:$0xff]
      %v1792 = vld [vmem:[#allocation2 + $0x110] sm:$0xff]
      %v1793 = vld [vmem:[#allocation2 + $0x118] sm:$0xff]
      %v1794 = vld [vmem:[#allocation2 + $0x120] sm:$0xff]
      %v1795 = vld [vmem:[#allocation2 + $0x128] sm:$0xff]
      %v1796 = vld [vmem:[#allocation2 + $0x130] sm:$0xff]
      %v1797 = vld [vmem:[#allocation2 + $0x138] sm:$0xff]
      %v1798 = vld [vmem:[#allocation2 + $0x140] sm:$0xff]
      %v1799 = vld [vmem:[#allocation2 + $0x148] sm:$0xff]
      %v1800 = vld [vmem:[#allocation2 + $0x150] sm:$0xff]
      %v1801 = vld [vmem:[#allocation2 + $0x158] sm:$0xff]
      %v1802 = vld [vmem:[#allocation2 + $0x160] sm:$0xff]
      %v1803 = vld [vmem:[#allocation2 + $0x168] sm:$0xff]
      %v1804 = vld [vmem:[#allocation2 + $0x170] sm:$0xff]
      %v1805 = vld [vmem:[#allocation2 + $0x178] sm:$0xff]
      %v1806 = vld [vmem:[#allocation2 + $0x180] sm:$0x7]
      %v1807 = vld [vmem:[#allocation2 + $0x188] sm:$0x7]
      %v1808 = vadd.f32 %v1758, %v1610
      %v1809 = vadd.f32 %v1759, %v1612
      %v1810 = vadd.f32 %v1760, %v1616
      %v1811 = vadd.f32 %v1761, %v1618
      %v1812 = vadd.f32 %v1762, %v1622
      %v1813 = vadd.f32 %v1763, %v1624
      %v1814 = vadd.f32 %v1764, %v1628
      %v1815 = vadd.f32 %v1765, %v1630
      %v1816 = vadd.f32 %v1766, %v1634
      %v1817 = vadd.f32 %v1767, %v1636
      %v1818 = vadd.f32 %v1768, %v1640
      %v1819 = vadd.f32 %v1769, %v1642
      %v1820 = vadd.f32 %v1770, %v1646
      %v1821 = vadd.f32 %v1771, %v1648
      %v1822 = vadd.f32 %v1772, %v1652
      %v1823 = vadd.f32 %v1773, %v1654
      %v1824 = vadd.f32 %v1774, %v1658
      %v1825 = vadd.f32 %v1775, %v1660
      %v1826 = vadd.f32 %v1776, %v1664
      %v1827 = vadd.f32 %v1777, %v1666
      %v1828 = vadd.f32 %v1778, %v1670
      %v1829 = vadd.f32 %v1779, %v1672
      %v1830 = vadd.f32 %v1780, %v1676
      %v1831 = vadd.f32 %v1781, %v1678
      %v1832 = vadd.f32 %v1782, %v1682
      %v1833 = vadd.f32 %v1783, %v1684
      %v1834 = vadd.f32 %v1784, %v1688
      %v1835 = vadd.f32 %v1785, %v1690
      %v1836 = vadd.f32 %v1786, %v1694
      %v1837 = vadd.f32 %v1787, %v1696
      %v1838 = vadd.f32 %v1788, %v1700
      %v1839 = vadd.f32 %v1789, %v1702
      %v1840 = vadd.f32 %v1790, %v1706
      %v1841 = vadd.f32 %v1791, %v1708
      %v1842 = vadd.f32 %v1792, %v1712
      %v1843 = vadd.f32 %v1793, %v1714
      %v1844 = vadd.f32 %v1794, %v1718
      %v1845 = vadd.f32 %v1795, %v1720
      %v1846 = vadd.f32 %v1796, %v1724
      %v1847 = vadd.f32 %v1797, %v1726
      %v1848 = vadd.f32 %v1798, %v1730
      %v1849 = vadd.f32 %v1799, %v1732
      %v1850 = vadd.f32 %v1800, %v1736
      %v1851 = vadd.f32 %v1801, %v1738
      %v1852 = vadd.f32 %v1802, %v1742
      %v1853 = vadd.f32 %v1803, %v1744
      %v1854 = vadd.f32 %v1804, %v1748
      %v1855 = vadd.f32 %v1805, %v1750
      %v1856 = vadd.f32 %v1806, %v1754
      %v1857 = vadd.f32 %v1807, %v1756
      %1858 = vst [vmem:[#allocation2] sm:$0xff] %v1808
      %1859 = vst [vmem:[#allocation2 + $0x8] sm:$0xff] %v1809
      %1860 = vst [vmem:[#allocation2 + $0x10] sm:$0xff] %v1810
      %1861 = vst [vmem:[#allocation2 + $0x18] sm:$0xff] %v1811
      %1862 = vst [vmem:[#allocation2 + $0x20] sm:$0xff] %v1812
      %1863 = vst [vmem:[#allocation2 + $0x28] sm:$0xff] %v1813
      %1864 = vst [vmem:[#allocation2 + $0x30] sm:$0xff] %v1814
      %1865 = vst [vmem:[#allocation2 + $0x38] sm:$0xff] %v1815
      %1866 = vst [vmem:[#allocation2 + $0x40] sm:$0xff] %v1816
      %1867 = vst [vmem:[#allocation2 + $0x48] sm:$0xff] %v1817
      %1868 = vst [vmem:[#allocation2 + $0x50] sm:$0xff] %v1818
      %1869 = vst [vmem:[#allocation2 + $0x58] sm:$0xff] %v1819
      %1870 = vst [vmem:[#allocation2 + $0x60] sm:$0xff] %v1820
      %1871 = vst [vmem:[#allocation2 + $0x68] sm:$0xff] %v1821
      %1872 = vst [vmem:[#allocation2 + $0x70] sm:$0xff] %v1822
      %1873 = vst [vmem:[#allocation2 + $0x78] sm:$0xff] %v1823
      %1874 = vst [vmem:[#allocation2 + $0x80] sm:$0xff] %v1824
      %1875 = vst [vmem:[#allocation2 + $0x88] sm:$0xff] %v1825
      %1876 = vst [vmem:[#allocation2 + $0x90] sm:$0xff] %v1826
      %1877 = vst [vmem:[#allocation2 + $0x98] sm:$0xff] %v1827
      %1878 = vst [vmem:[#allocation2 + $0xa0] sm:$0xff] %v1828
      %1879 = vst [vmem:[#allocation2 + $0xa8] sm:$0xff] %v1829
      %1880 = vst [vmem:[#allocation2 + $0xb0] sm:$0xff] %v1830
      %1881 = vst [vmem:[#allocation2 + $0xb8] sm:$0xff] %v1831
      %1882 = vst [vmem:[#allocation2 + $0xc0] sm:$0xff] %v1832
      %1883 = vst [vmem:[#allocation2 + $0xc8] sm:$0xff] %v1833
      %1884 = vst [vmem:[#allocation2 + $0xd0] sm:$0xff] %v1834
      %1885 = vst [vmem:[#allocation2 + $0xd8] sm:$0xff] %v1835
      %1886 = vst [vmem:[#allocation2 + $0xe0] sm:$0xff] %v1836
      %1887 = vst [vmem:[#allocation2 + $0xe8] sm:$0xff] %v1837
      %1888 = vst [vmem:[#allocation2 + $0xf0] sm:$0xff] %v1838
      %1889 = vst [vmem:[#allocation2 + $0xf8] sm:$0xff] %v1839
      %1890 = vst [vmem:[#allocation2 + $0x100] sm:$0xff] %v1840
      %1891 = vst [vmem:[#allocation2 + $0x108] sm:$0xff] %v1841
      %1892 = vst [vmem:[#allocation2 + $0x110] sm:$0xff] %v1842
      %1893 = vst [vmem:[#allocation2 + $0x118] sm:$0xff] %v1843
      %1894 = vst [vmem:[#allocation2 + $0x120] sm:$0xff] %v1844
      %1895 = vst [vmem:[#allocation2 + $0x128] sm:$0xff] %v1845
      %1896 = vst [vmem:[#allocation2 + $0x130] sm:$0xff] %v1846
      %1897 = vst [vmem:[#allocation2 + $0x138] sm:$0xff] %v1847
      %1898 = vst [vmem:[#allocation2 + $0x140] sm:$0xff] %v1848
      %1899 = vst [vmem:[#allocation2 + $0x148] sm:$0xff] %v1849
      %1900 = vst [vmem:[#allocation2 + $0x150] sm:$0xff] %v1850
      %1901 = vst [vmem:[#allocation2 + $0x158] sm:$0xff] %v1851
      %1902 = vst [vmem:[#allocation2 + $0x160] sm:$0xff] %v1852
      %1903 = vst [vmem:[#allocation2 + $0x168] sm:$0xff] %v1853
      %1904 = vst [vmem:[#allocation2 + $0x170] sm:$0xff] %v1854
      %1905 = vst [vmem:[#allocation2 + $0x178] sm:$0xff] %v1855
      %1906 = vst [vmem:[#allocation2 + $0x180] sm:$0x7] %v1856
      %1907 = vst [vmem:[#allocation2 + $0x188] sm:$0x7] %v1857
      %s1908 = scalar_lea.vmem %s165, 400
      %v1909 = vld [vmem:[%s1908] sm:$0xff]
      %v1910 = vld [vmem:[%s1908 + $0x8] sm:$0xff]
      %v1911 = vld [vmem:[%s1908 + $0x10] sm:$0xff]
      %v1912 = vld [vmem:[%s1908 + $0x18] sm:$0xff]
      %v1913 = vld [vmem:[%s1908 + $0x20] sm:$0xff]
      %v1914 = vld [vmem:[%s1908 + $0x28] sm:$0xff]
      %v1915 = vld [vmem:[%s1908 + $0x30] sm:$0xff]
      %v1916 = vld [vmem:[%s1908 + $0x38] sm:$0xff]
      %v1917 = vld [vmem:[%s1908 + $0x40] sm:$0xff]
      %v1918 = vld [vmem:[%s1908 + $0x48] sm:$0xff]
      %v1919 = vld [vmem:[%s1908 + $0x50] sm:$0xff]
      %v1920 = vld [vmem:[%s1908 + $0x58] sm:$0xff]
      %v1921 = vld [vmem:[%s1908 + $0x60] sm:$0xff]
      %v1922 = vld [vmem:[%s1908 + $0x68] sm:$0xff]
      %v1923 = vld [vmem:[%s1908 + $0x70] sm:$0xff]
      %v1924 = vld [vmem:[%s1908 + $0x78] sm:$0xff]
      %v1925 = vld [vmem:[%s1908 + $0x80] sm:$0xff]
      %v1926 = vld [vmem:[%s1908 + $0x88] sm:$0xff]
      %v1927 = vld [vmem:[%s1908 + $0x90] sm:$0xff]
      %v1928 = vld [vmem:[%s1908 + $0x98] sm:$0xff]
      %v1929 = vld [vmem:[%s1908 + $0xa0] sm:$0xff]
      %v1930 = vld [vmem:[%s1908 + $0xa8] sm:$0xff]
      %v1931 = vld [vmem:[%s1908 + $0xb0] sm:$0xff]
      %v1932 = vld [vmem:[%s1908 + $0xb8] sm:$0xff]
      %v1933 = vld [vmem:[%s1908 + $0xc0] sm:$0xff]
      %v1934 = vld [vmem:[%s1908 + $0xc8] sm:$0xff]
      %v1935 = vld [vmem:[%s1908 + $0xd0] sm:$0xff]
      %v1936 = vld [vmem:[%s1908 + $0xd8] sm:$0xff]
      %v1937 = vld [vmem:[%s1908 + $0xe0] sm:$0xff]
      %v1938 = vld [vmem:[%s1908 + $0xe8] sm:$0xff]
      %v1939 = vld [vmem:[%s1908 + $0xf0] sm:$0xff]
      %v1940 = vld [vmem:[%s1908 + $0xf8] sm:$0xff]
      %v1941 = vld [vmem:[%s1908 + $0x100] sm:$0xff]
      %v1942 = vld [vmem:[%s1908 + $0x108] sm:$0xff]
      %v1943 = vld [vmem:[%s1908 + $0x110] sm:$0xff]
      %v1944 = vld [vmem:[%s1908 + $0x118] sm:$0xff]
      %v1945 = vld [vmem:[%s1908 + $0x120] sm:$0xff]
      %v1946 = vld [vmem:[%s1908 + $0x128] sm:$0xff]
      %v1947 = vld [vmem:[%s1908 + $0x130] sm:$0xff]
      %v1948 = vld [vmem:[%s1908 + $0x138] sm:$0xff]
      %v1949 = vld [vmem:[%s1908 + $0x140] sm:$0xff]
      %v1950 = vld [vmem:[%s1908 + $0x148] sm:$0xff]
      %v1951 = vld [vmem:[%s1908 + $0x150] sm:$0xff]
      %v1952 = vld [vmem:[%s1908 + $0x158] sm:$0xff]
      %v1953 = vld [vmem:[%s1908 + $0x160] sm:$0xff]
      %v1954 = vld [vmem:[%s1908 + $0x168] sm:$0xff]
      %v1955 = vld [vmem:[%s1908 + $0x170] sm:$0xff]
      %v1956 = vld [vmem:[%s1908 + $0x178] sm:$0xff]
      %v1957 = vld [vmem:[%s1908 + $0x180] sm:$0x7]
      %v1958 = vld [vmem:[%s1908 + $0x188] sm:$0x7]
      %s1959 = scalar_lea.vmem %s1, 1536
      %v1960 = vld [vmem:[%s1959] sm:$0xff]
      %v1961 = vld [vmem:[%s1959 + $0x8] sm:$0xff]
      %v1962 = vld [vmem:[%s1959 + $0x10] sm:$0xff]
      %v1963 = vld [vmem:[%s1959 + $0x18] sm:$0xff]
      %v1964 = vld [vmem:[%s1959 + $0x20] sm:$0xff]
      %v1965 = vld [vmem:[%s1959 + $0x28] sm:$0xff]
      %v1966 = vld [vmem:[%s1959 + $0x30] sm:$0xff]
      %v1967 = vld [vmem:[%s1959 + $0x38] sm:$0xff]
      %v1968 = vld [vmem:[%s1959 + $0x40] sm:$0xff]
      %v1969 = vld [vmem:[%s1959 + $0x48] sm:$0xff]
      %v1970 = vld [vmem:[%s1959 + $0x50] sm:$0xff]
      %v1971 = vld [vmem:[%s1959 + $0x58] sm:$0xff]
      %v1972 = vld [vmem:[%s1959 + $0x60] sm:$0xff]
      %v1973 = vld [vmem:[%s1959 + $0x68] sm:$0xff]
      %v1974 = vld [vmem:[%s1959 + $0x70] sm:$0xff]
      %v1975 = vld [vmem:[%s1959 + $0x78] sm:$0xff]
      %v1976 = vld [vmem:[%s1959 + $0x80] sm:$0xff]
      %v1977 = vld [vmem:[%s1959 + $0x88] sm:$0xff]
      %v1978 = vld [vmem:[%s1959 + $0x90] sm:$0xff]
      %v1979 = vld [vmem:[%s1959 + $0x98] sm:$0xff]
      %v1980 = vld [vmem:[%s1959 + $0xa0] sm:$0xff]
      %v1981 = vld [vmem:[%s1959 + $0xa8] sm:$0xff]
      %v1982 = vld [vmem:[%s1959 + $0xb0] sm:$0xff]
      %v1983 = vld [vmem:[%s1959 + $0xb8] sm:$0xff]
      %v1984 = vld [vmem:[%s1959 + $0xc0] sm:$0xff]
      %v1985 = vld [vmem:[%s1959 + $0xc8] sm:$0xff]
      %v1986 = vld [vmem:[%s1959 + $0xd0] sm:$0xff]
      %v1987 = vld [vmem:[%s1959 + $0xd8] sm:$0xff]
      %v1988 = vld [vmem:[%s1959 + $0xe0] sm:$0xff]
      %v1989 = vld [vmem:[%s1959 + $0xe8] sm:$0xff]
      %v1990 = vld [vmem:[%s1959 + $0xf0] sm:$0xff]
      %v1991 = vld [vmem:[%s1959 + $0xf8] sm:$0xff]
      %v1992 = vld [vmem:[%s1959 + $0x100] sm:$0xff]
      %v1993 = vld [vmem:[%s1959 + $0x108] sm:$0xff]
      %v1994 = vld [vmem:[%s1959 + $0x110] sm:$0xff]
      %v1995 = vld [vmem:[%s1959 + $0x118] sm:$0xff]
      %v1996 = vld [vmem:[%s1959 + $0x120] sm:$0xff]
      %v1997 = vld [vmem:[%s1959 + $0x128] sm:$0xff]
      %v1998 = vld [vmem:[%s1959 + $0x130] sm:$0xff]
      %v1999 = vld [vmem:[%s1959 + $0x138] sm:$0xff]
      %v2000 = vld [vmem:[%s1959 + $0x140] sm:$0xff]
      %v2001 = vld [vmem:[%s1959 + $0x148] sm:$0xff]
      %v2002 = vld [vmem:[%s1959 + $0x150] sm:$0xff]
      %v2003 = vld [vmem:[%s1959 + $0x158] sm:$0xff]
      %v2004 = vld [vmem:[%s1959 + $0x160] sm:$0xff]
      %v2005 = vld [vmem:[%s1959 + $0x168] sm:$0xff]
      %v2006 = vld [vmem:[%s1959 + $0x170] sm:$0xff]
      %v2007 = vld [vmem:[%s1959 + $0x178] sm:$0xff]
      %v2008 = vld [vmem:[%s1959 + $0x180] sm:$0xff]
      %v2009 = vld [vmem:[%s1959 + $0x188] sm:$0xff]
      %v2010 = vld [vmem:[%s1959 + $0x190] sm:$0xff]
      %v2011 = vld [vmem:[%s1959 + $0x198] sm:$0xff]
      %v2012 = vld [vmem:[%s1959 + $0x1a0] sm:$0xff]
      %v2013 = vld [vmem:[%s1959 + $0x1a8] sm:$0xff]
      %v2014 = vld [vmem:[%s1959 + $0x1b0] sm:$0xff]
      %v2015 = vld [vmem:[%s1959 + $0x1b8] sm:$0xff]
      %v2016 = vld [vmem:[%s1959 + $0x1c0] sm:$0xff]
      %v2017 = vld [vmem:[%s1959 + $0x1c8] sm:$0xff]
      %v2018 = vld [vmem:[%s1959 + $0x1d0] sm:$0xff]
      %v2019 = vld [vmem:[%s1959 + $0x1d8] sm:$0xff]
      %v2020 = vld [vmem:[%s1959 + $0x1e0] sm:$0xff]
      %v2021 = vld [vmem:[%s1959 + $0x1e8] sm:$0xff]
      %v2022 = vld [vmem:[%s1959 + $0x1f0] sm:$0xff]
      %v2023 = vld [vmem:[%s1959 + $0x1f8] sm:$0xff]
      %2024 = vmatprep.subr.mxu0 %v1961
      %2025 = vmatpush1.msra.mxu0 %v1960
      %2026 = vmatprep.subr.mxu0 %v1963
      %2027 = vmatpush1.msra.mxu0 %v1962
      %2028 = vmatprep.subr.mxu0 %v1965
      %2029 = vmatpush1.msra.mxu0 %v1964
      %2030 = vmatprep.subr.mxu0 %v1967
      %2031 = vmatpush1.msra.mxu0 %v1966
      %2032 = vmatprep.subr.mxu0 %v1969
      %2033 = vmatpush1.msra.mxu0 %v1968
      %2034 = vmatprep.subr.mxu0 %v1971
      %2035 = vmatpush1.msra.mxu0 %v1970
      %2036 = vmatprep.subr.mxu0 %v1973
      %2037 = vmatpush1.msra.mxu0 %v1972
      %2038 = vmatprep.subr.mxu0 %v1975
      %2039 = vmatpush1.msra.mxu0 %v1974
      %2040 = vmatprep.subr.mxu0 %v1977
      %2041 = vmatpush1.msra.mxu0 %v1976
      %2042 = vmatprep.subr.mxu0 %v1979
      %2043 = vmatpush1.msra.mxu0 %v1978
      %2044 = vmatprep.subr.mxu0 %v1981
      %2045 = vmatpush1.msra.mxu0 %v1980
      %2046 = vmatprep.subr.mxu0 %v1983
      %2047 = vmatpush1.msra.mxu0 %v1982
      %2048 = vmatprep.subr.mxu0 %v1985
      %2049 = vmatpush1.msra.mxu0 %v1984
      %2050 = vmatprep.subr.mxu0 %v1987
      %2051 = vmatpush1.msra.mxu0 %v1986
      %2052 = vmatprep.subr.mxu0 %v1989
      %2053 = vmatpush1.msra.mxu0 %v1988
      %2054 = vmatprep.subr.mxu0 %v1991
      %2055 = vmatpush1.msra.mxu0 %v1990
      %2056 = vmatprep.subr.mxu0 %v1993
      %2057 = vmatpush1.msra.mxu0 %v1992
      %2058 = vmatprep.subr.mxu0 %v1995
      %2059 = vmatpush1.msra.mxu0 %v1994
      %2060 = vmatprep.subr.mxu0 %v1997
      %2061 = vmatpush1.msra.mxu0 %v1996
      %2062 = vmatprep.subr.mxu0 %v1999
      %2063 = vmatpush1.msra.mxu0 %v1998
      %2064 = vmatprep.subr.mxu0 %v2001
      %2065 = vmatpush1.msra.mxu0 %v2000
      %2066 = vmatprep.subr.mxu0 %v2003
      %2067 = vmatpush1.msra.mxu0 %v2002
      %2068 = vmatprep.subr.mxu0 %v2005
      %2069 = vmatpush1.msra.mxu0 %v2004
      %2070 = vmatprep.subr.mxu0 %v2007
      %2071 = vmatpush1.msra.mxu0 %v2006
      %2072 = vmatprep.subr.mxu0 %v2009
      %2073 = vmatpush1.msra.mxu0 %v2008
      %2074 = vmatprep.subr.mxu0 %v2011
      %2075 = vmatpush1.msra.mxu0 %v2010
      %2076 = vmatprep.subr.mxu0 %v2013
      %2077 = vmatpush1.msra.mxu0 %v2012
      %2078 = vmatprep.subr.mxu0 %v2015
      %2079 = vmatpush1.msra.mxu0 %v2014
      %2080 = vmatprep.subr.mxu0 %v2017
      %2081 = vmatpush1.msra.mxu0 %v2016
      %2082 = vmatprep.subr.mxu0 %v2019
      %2083 = vmatpush1.msra.mxu0 %v2018
      %2084 = vmatprep.subr.mxu0 %v2021
      %2085 = vmatpush1.msra.mxu0 %v2020
      %2086 = vmatprep.subr.mxu0 %v2023
      %2087 = vmatpush1.msra.mxu0 %v2022
      %2088 = vmatprep.mubr.f32.mxu0 %v1910
      %2089 = vmatmul.mubr.f32.gmra.mrb[0].mxu0 %v1909
      %v2090 = vpop.f32.mrb[0].mxu0
      %v2091 = vadd.f32 0.0, %v2090
      %v2092 = vpop.f32.mrb[0].mxu0
      %v2093 = vadd.f32 0.0, %v2092
      %2094 = vmatprep.mubr.f32.mxu0 %v1912
      %2095 = vmatmul.mubr.f32.gmra.mrb[0].mxu0 %v1911
      %v2096 = vpop.f32.mrb[0].mxu0
      %v2097 = vadd.f32 0.0, %v2096
      %v2098 = vpop.f32.mrb[0].mxu0
      %v2099 = vadd.f32 0.0, %v2098
      %2100 = vmatprep.mubr.f32.mxu0 %v1914
      %2101 = vmatmul.mubr.f32.gmra.mrb[0].mxu0 %v1913
      %v2102 = vpop.f32.mrb[0].mxu0
      %v2103 = vadd.f32 0.0, %v2102
      %v2104 = vpop.f32.mrb[0].mxu0
      %v2105 = vadd.f32 0.0, %v2104
      %2106 = vmatprep.mubr.f32.mxu0 %v1916
      %2107 = vmatmul.mubr.f32.gmra.mrb[0].mxu0 %v1915
      %v2108 = vpop.f32.mrb[0].mxu0
      %v2109 = vadd.f32 0.0, %v2108
      %v2110 = vpop.f32.mrb[0].mxu0
      %v2111 = vadd.f32 0.0, %v2110
      %2112 = vmatprep.mubr.f32.mxu0 %v1918
      %2113 = vmatmul.mubr.f32.gmra.mrb[0].mxu0 %v1917
      %v2114 = vpop.f32.mrb[0].mxu0
      %v2115 = vadd.f32 0.0, %v2114
      %v2116 = vpop.f32.mrb[0].mxu0
      %v2117 = vadd.f32 0.0, %v2116
      %2118 = vmatprep.mubr.f32.mxu0 %v1920
      %2119 = vmatmul.mubr.f32.gmra.mrb[0].mxu0 %v1919
      %v2120 = vpop.f32.mrb[0].mxu0
      %v2121 = vadd.f32 0.0, %v2120
      %v2122 = vpop.f32.mrb[0].mxu0
      %v2123 = vadd.f32 0.0, %v2122
      %2124 = vmatprep.mubr.f32.mxu0 %v1922
      %2125 = vmatmul.mubr.f32.gmra.mrb[0].mxu0 %v1921
      %v2126 = vpop.f32.mrb[0].mxu0
      %v2127 = vadd.f32 0.0, %v2126
      %v2128 = vpop.f32.mrb[0].mxu0
      %v2129 = vadd.f32 0.0, %v2128
      %2130 = vmatprep.mubr.f32.mxu0 %v1924
      %2131 = vmatmul.mubr.f32.gmra.mrb[0].mxu0 %v1923
      %v2132 = vpop.f32.mrb[0].mxu0
      %v2133 = vadd.f32 0.0, %v2132
      %v2134 = vpop.f32.mrb[0].mxu0
      %v2135 = vadd.f32 0.0, %v2134
      %2136 = vmatprep.mubr.f32.mxu0 %v1926
      %2137 = vmatmul.mubr.f32.gmra.mrb[0].mxu0 %v1925
      %v2138 = vpop.f32.mrb[0].mxu0
      %v2139 = vadd.f32 0.0, %v2138
      %v2140 = vpop.f32.mrb[0].mxu0
      %v2141 = vadd.f32 0.0, %v2140
      %2142 = vmatprep.mubr.f32.mxu0 %v1928
      %2143 = vmatmul.mubr.f32.gmra.mrb[0].mxu0 %v1927
      %v2144 = vpop.f32.mrb[0].mxu0
      %v2145 = vadd.f32 0.0, %v2144
      %v2146 = vpop.f32.mrb[0].mxu0
      %v2147 = vadd.f32 0.0, %v2146
      %2148 = vmatprep.mubr.f32.mxu0 %v1930
      %2149 = vmatmul.mubr.f32.gmra.mrb[0].mxu0 %v1929
      %v2150 = vpop.f32.mrb[0].mxu0
      %v2151 = vadd.f32 0.0, %v2150
      %v2152 = vpop.f32.mrb[0].mxu0
      %v2153 = vadd.f32 0.0, %v2152
      %2154 = vmatprep.mubr.f32.mxu0 %v1932
      %2155 = vmatmul.mubr.f32.gmra.mrb[0].mxu0 %v1931
      %v2156 = vpop.f32.mrb[0].mxu0
      %v2157 = vadd.f32 0.0, %v2156
      %v2158 = vpop.f32.mrb[0].mxu0
      %v2159 = vadd.f32 0.0, %v2158
      %2160 = vmatprep.mubr.f32.mxu0 %v1934
      %2161 = vmatmul.mubr.f32.gmra.mrb[0].mxu0 %v1933
      %v2162 = vpop.f32.mrb[0].mxu0
      %v2163 = vadd.f32 0.0, %v2162
      %v2164 = vpop.f32.mrb[0].mxu0
      %v2165 = vadd.f32 0.0, %v2164
      %2166 = vmatprep.mubr.f32.mxu0 %v1936
      %2167 = vmatmul.mubr.f32.gmra.mrb[0].mxu0 %v1935
      %v2168 = vpop.f32.mrb[0].mxu0
      %v2169 = vadd.f32 0.0, %v2168
      %v2170 = vpop.f32.mrb[0].mxu0
      %v2171 = vadd.f32 0.0, %v2170
      %2172 = vmatprep.mubr.f32.mxu0 %v1938
      %2173 = vmatmul.mubr.f32.gmra.mrb[0].mxu0 %v1937
      %v2174 = vpop.f32.mrb[0].mxu0
      %v2175 = vadd.f32 0.0, %v2174
      %v2176 = vpop.f32.mrb[0].mxu0
      %v2177 = vadd.f32 0.0, %v2176
      %2178 = vmatprep.mubr.f32.mxu0 %v1940
      %2179 = vmatmul.mubr.f32.gmra.mrb[0].mxu0 %v1939
      %v2180 = vpop.f32.mrb[0].mxu0
      %v2181 = vadd.f32 0.0, %v2180
      %v2182 = vpop.f32.mrb[0].mxu0
      %v2183 = vadd.f32 0.0, %v2182
      %2184 = vmatprep.mubr.f32.mxu0 %v1942
      %2185 = vmatmul.mubr.f32.gmra.mrb[0].mxu0 %v1941
      %v2186 = vpop.f32.mrb[0].mxu0
      %v2187 = vadd.f32 0.0, %v2186
      %v2188 = vpop.f32.mrb[0].mxu0
      %v2189 = vadd.f32 0.0, %v2188
      %2190 = vmatprep.mubr.f32.mxu0 %v1944
      %2191 = vmatmul.mubr.f32.gmra.mrb[0].mxu0 %v1943
      %v2192 = vpop.f32.mrb[0].mxu0
      %v2193 = vadd.f32 0.0, %v2192
      %v2194 = vpop.f32.mrb[0].mxu0
      %v2195 = vadd.f32 0.0, %v2194
      %2196 = vmatprep.mubr.f32.mxu0 %v1946
      %2197 = vmatmul.mubr.f32.gmra.mrb[0].mxu0 %v1945
      %v2198 = vpop.f32.mrb[0].mxu0
      %v2199 = vadd.f32 0.0, %v2198
      %v2200 = vpop.f32.mrb[0].mxu0
      %v2201 = vadd.f32 0.0, %v2200
      %2202 = vmatprep.mubr.f32.mxu0 %v1948
      %2203 = vmatmul.mubr.f32.gmra.mrb[0].mxu0 %v1947
      %v2204 = vpop.f32.mrb[0].mxu0
      %v2205 = vadd.f32 0.0, %v2204
      %v2206 = vpop.f32.mrb[0].mxu0
      %v2207 = vadd.f32 0.0, %v2206
      %2208 = vmatprep.mubr.f32.mxu0 %v1950
      %2209 = vmatmul.mubr.f32.gmra.mrb[0].mxu0 %v1949
      %v2210 = vpop.f32.mrb[0].mxu0
      %v2211 = vadd.f32 0.0, %v2210
      %v2212 = vpop.f32.mrb[0].mxu0
      %v2213 = vadd.f32 0.0, %v2212
      %2214 = vmatprep.mubr.f32.mxu0 %v1952
      %2215 = vmatmul.mubr.f32.gmra.mrb[0].mxu0 %v1951
      %v2216 = vpop.f32.mrb[0].mxu0
      %v2217 = vadd.f32 0.0, %v2216
      %v2218 = vpop.f32.mrb[0].mxu0
      %v2219 = vadd.f32 0.0, %v2218
      %2220 = vmatprep.mubr.f32.mxu0 %v1954
      %2221 = vmatmul.mubr.f32.gmra.mrb[0].mxu0 %v1953
      %v2222 = vpop.f32.mrb[0].mxu0
      %v2223 = vadd.f32 0.0, %v2222
      %v2224 = vpop.f32.mrb[0].mxu0
      %v2225 = vadd.f32 0.0, %v2224
      %2226 = vmatprep.mubr.f32.mxu0 %v1956
      %2227 = vmatmul.mubr.f32.gmra.mrb[0].mxu0 %v1955
      %v2228 = vpop.f32.mrb[0].mxu0
      %v2229 = vadd.f32 0.0, %v2228
      %v2230 = vpop.f32.mrb[0].mxu0
      %v2231 = vadd.f32 0.0, %v2230
      %2232 = vmatprep.mubr.f32.mxu0 %v1958
      %2233 = vmatmul.mubr.f32.gmra.mrb[0].mxu0 %v1957
      %v2234 = vpop.f32.mrb[0].mxu0
      %v2235 = vadd.f32 0.0, %v2234
      %v2236 = vpop.f32.mrb[0].mxu0
      %v2237 = vadd.f32 0.0, %v2236
      %2238 = vdwg.mxu0
      %v2239 = vld [vmem:[#allocation2] sm:$0xff]
      %v2240 = vld [vmem:[#allocation2 + $0x8] sm:$0xff]
      %v2241 = vld [vmem:[#allocation2 + $0x10] sm:$0xff]
      %v2242 = vld [vmem:[#allocation2 + $0x18] sm:$0xff]
      %v2243 = vld [vmem:[#allocation2 + $0x20] sm:$0xff]
      %v2244 = vld [vmem:[#allocation2 + $0x28] sm:$0xff]
      %v2245 = vld [vmem:[#allocation2 + $0x30] sm:$0xff]
      %v2246 = vld [vmem:[#allocation2 + $0x38] sm:$0xff]
      %v2247 = vld [vmem:[#allocation2 + $0x40] sm:$0xff]
      %v2248 = vld [vmem:[#allocation2 + $0x48] sm:$0xff]
      %v2249 = vld [vmem:[#allocation2 + $0x50] sm:$0xff]
      %v2250 = vld [vmem:[#allocation2 + $0x58] sm:$0xff]
      %v2251 = vld [vmem:[#allocation2 + $0x60] sm:$0xff]
      %v2252 = vld [vmem:[#allocation2 + $0x68] sm:$0xff]
      %v2253 = vld [vmem:[#allocation2 + $0x70] sm:$0xff]
      %v2254 = vld [vmem:[#allocation2 + $0x78] sm:$0xff]
      %v2255 = vld [vmem:[#allocation2 + $0x80] sm:$0xff]
      %v2256 = vld [vmem:[#allocation2 + $0x88] sm:$0xff]
      %v2257 = vld [vmem:[#allocation2 + $0x90] sm:$0xff]
      %v2258 = vld [vmem:[#allocation2 + $0x98] sm:$0xff]
      %v2259 = vld [vmem:[#allocation2 + $0xa0] sm:$0xff]
      %v2260 = vld [vmem:[#allocation2 + $0xa8] sm:$0xff]
      %v2261 = vld [vmem:[#allocation2 + $0xb0] sm:$0xff]
      %v2262 = vld [vmem:[#allocation2 + $0xb8] sm:$0xff]
      %v2263 = vld [vmem:[#allocation2 + $0xc0] sm:$0xff]
      %v2264 = vld [vmem:[#allocation2 + $0xc8] sm:$0xff]
      %v2265 = vld [vmem:[#allocation2 + $0xd0] sm:$0xff]
      %v2266 = vld [vmem:[#allocation2 + $0xd8] sm:$0xff]
      %v2267 = vld [vmem:[#allocation2 + $0xe0] sm:$0xff]
      %v2268 = vld [vmem:[#allocation2 + $0xe8] sm:$0xff]
      %v2269 = vld [vmem:[#allocation2 + $0xf0] sm:$0xff]
      %v2270 = vld [vmem:[#allocation2 + $0xf8] sm:$0xff]
      %v2271 = vld [vmem:[#allocation2 + $0x100] sm:$0xff]
      %v2272 = vld [vmem:[#allocation2 + $0x108] sm:$0xff]
      %v2273 = vld [vmem:[#allocation2 + $0x110] sm:$0xff]
      %v2274 = vld [vmem:[#allocation2 + $0x118] sm:$0xff]
      %v2275 = vld [vmem:[#allocation2 + $0x120] sm:$0xff]
      %v2276 = vld [vmem:[#allocation2 + $0x128] sm:$0xff]
      %v2277 = vld [vmem:[#allocation2 + $0x130] sm:$0xff]
      %v2278 = vld [vmem:[#allocation2 + $0x138] sm:$0xff]
      %v2279 = vld [vmem:[#allocation2 + $0x140] sm:$0xff]
      %v2280 = vld [vmem:[#allocation2 + $0x148] sm:$0xff]
      %v2281 = vld [vmem:[#allocation2 + $0x150] sm:$0xff]
      %v2282 = vld [vmem:[#allocation2 + $0x158] sm:$0xff]
      %v2283 = vld [vmem:[#allocation2 + $0x160] sm:$0xff]
      %v2284 = vld [vmem:[#allocation2 + $0x168] sm:$0xff]
      %v2285 = vld [vmem:[#allocation2 + $0x170] sm:$0xff]
      %v2286 = vld [vmem:[#allocation2 + $0x178] sm:$0xff]
      %v2287 = vld [vmem:[#allocation2 + $0x180] sm:$0x7]
      %v2288 = vld [vmem:[#allocation2 + $0x188] sm:$0x7]
      %v2289 = vadd.f32 %v2239, %v2091
      %v2290 = vadd.f32 %v2240, %v2093
      %v2291 = vadd.f32 %v2241, %v2097
      %v2292 = vadd.f32 %v2242, %v2099
      %v2293 = vadd.f32 %v2243, %v2103
      %v2294 = vadd.f32 %v2244, %v2105
      %v2295 = vadd.f32 %v2245, %v2109
      %v2296 = vadd.f32 %v2246, %v2111
      %v2297 = vadd.f32 %v2247, %v2115
      %v2298 = vadd.f32 %v2248, %v2117
      %v2299 = vadd.f32 %v2249, %v2121
      %v2300 = vadd.f32 %v2250, %v2123
      %v2301 = vadd.f32 %v2251, %v2127
      %v2302 = vadd.f32 %v2252, %v2129
      %v2303 = vadd.f32 %v2253, %v2133
      %v2304 = vadd.f32 %v2254, %v2135
      %v2305 = vadd.f32 %v2255, %v2139
      %v2306 = vadd.f32 %v2256, %v2141
      %v2307 = vadd.f32 %v2257, %v2145
      %v2308 = vadd.f32 %v2258, %v2147
      %v2309 = vadd.f32 %v2259, %v2151
      %v2310 = vadd.f32 %v2260, %v2153
      %v2311 = vadd.f32 %v2261, %v2157
      %v2312 = vadd.f32 %v2262, %v2159
      %v2313 = vadd.f32 %v2263, %v2163
      %v2314 = vadd.f32 %v2264, %v2165
      %v2315 = vadd.f32 %v2265, %v2169
      %v2316 = vadd.f32 %v2266, %v2171
      %v2317 = vadd.f32 %v2267, %v2175
      %v2318 = vadd.f32 %v2268, %v2177
      %v2319 = vadd.f32 %v2269, %v2181
      %v2320 = vadd.f32 %v2270, %v2183
      %v2321 = vadd.f32 %v2271, %v2187
      %v2322 = vadd.f32 %v2272, %v2189
      %v2323 = vadd.f32 %v2273, %v2193
      %v2324 = vadd.f32 %v2274, %v2195
      %v2325 = vadd.f32 %v2275, %v2199
      %v2326 = vadd.f32 %v2276, %v2201
      %v2327 = vadd.f32 %v2277, %v2205
      %v2328 = vadd.f32 %v2278, %v2207
      %v2329 = vadd.f32 %v2279, %v2211
      %v2330 = vadd.f32 %v2280, %v2213
      %v2331 = vadd.f32 %v2281, %v2217
      %v2332 = vadd.f32 %v2282, %v2219
      %v2333 = vadd.f32 %v2283, %v2223
      %v2334 = vadd.f32 %v2284, %v2225
      %v2335 = vadd.f32 %v2285, %v2229
      %v2336 = vadd.f32 %v2286, %v2231
      %v2337 = vadd.f32 %v2287, %v2235
      %v2338 = vadd.f32 %v2288, %v2237
      %2339 = vst [vmem:[#allocation2] sm:$0xff] %v2289
      %2340 = vst [vmem:[#allocation2 + $0x8] sm:$0xff] %v2290
      %2341 = vst [vmem:[#allocation2 + $0x10] sm:$0xff] %v2291
      %2342 = vst [vmem:[#allocation2 + $0x18] sm:$0xff] %v2292
      %2343 = vst [vmem:[#allocation2 + $0x20] sm:$0xff] %v2293
      %2344 = vst [vmem:[#allocation2 + $0x28] sm:$0xff] %v2294
      %2345 = vst [vmem:[#allocation2 + $0x30] sm:$0xff] %v2295
      %2346 = vst [vmem:[#allocation2 + $0x38] sm:$0xff] %v2296
      %2347 = vst [vmem:[#allocation2 + $0x40] sm:$0xff] %v2297
      %2348 = vst [vmem:[#allocation2 + $0x48] sm:$0xff] %v2298
      %2349 = vst [vmem:[#allocation2 + $0x50] sm:$0xff] %v2299
      %2350 = vst [vmem:[#allocation2 + $0x58] sm:$0xff] %v2300
      %2351 = vst [vmem:[#allocation2 + $0x60] sm:$0xff] %v2301
      %2352 = vst [vmem:[#allocation2 + $0x68] sm:$0xff] %v2302
      %2353 = vst [vmem:[#allocation2 + $0x70] sm:$0xff] %v2303
      %2354 = vst [vmem:[#allocation2 + $0x78] sm:$0xff] %v2304
      %2355 = vst [vmem:[#allocation2 + $0x80] sm:$0xff] %v2305
      %2356 = vst [vmem:[#allocation2 + $0x88] sm:$0xff] %v2306
      %2357 = vst [vmem:[#allocation2 + $0x90] sm:$0xff] %v2307
      %2358 = vst [vmem:[#allocation2 + $0x98] sm:$0xff] %v2308
      %2359 = vst [vmem:[#allocation2 + $0xa0] sm:$0xff] %v2309
      %2360 = vst [vmem:[#allocation2 + $0xa8] sm:$0xff] %v2310
      %2361 = vst [vmem:[#allocation2 + $0xb0] sm:$0xff] %v2311
      %2362 = vst [vmem:[#allocation2 + $0xb8] sm:$0xff] %v2312
      %2363 = vst [vmem:[#allocation2 + $0xc0] sm:$0xff] %v2313
      %2364 = vst [vmem:[#allocation2 + $0xc8] sm:$0xff] %v2314
      %2365 = vst [vmem:[#allocation2 + $0xd0] sm:$0xff] %v2315
      %2366 = vst [vmem:[#allocation2 + $0xd8] sm:$0xff] %v2316
      %2367 = vst [vmem:[#allocation2 + $0xe0] sm:$0xff] %v2317
      %2368 = vst [vmem:[#allocation2 + $0xe8] sm:$0xff] %v2318
      %2369 = vst [vmem:[#allocation2 + $0xf0] sm:$0xff] %v2319
      %2370 = vst [vmem:[#allocation2 + $0xf8] sm:$0xff] %v2320
      %2371 = vst [vmem:[#allocation2 + $0x100] sm:$0xff] %v2321
      %2372 = vst [vmem:[#allocation2 + $0x108] sm:$0xff] %v2322
      %2373 = vst [vmem:[#allocation2 + $0x110] sm:$0xff] %v2323
      %2374 = vst [vmem:[#allocation2 + $0x118] sm:$0xff] %v2324
      %2375 = vst [vmem:[#allocation2 + $0x120] sm:$0xff] %v2325
      %2376 = vst [vmem:[#allocation2 + $0x128] sm:$0xff] %v2326
      %2377 = vst [vmem:[#allocation2 + $0x130] sm:$0xff] %v2327
      %2378 = vst [vmem:[#allocation2 + $0x138] sm:$0xff] %v2328
      %2379 = vst [vmem:[#allocation2 + $0x140] sm:$0xff] %v2329
      %2380 = vst [vmem:[#allocation2 + $0x148] sm:$0xff] %v2330
      %2381 = vst [vmem:[#allocation2 + $0x150] sm:$0xff] %v2331
      %2382 = vst [vmem:[#allocation2 + $0x158] sm:$0xff] %v2332
      %2383 = vst [vmem:[#allocation2 + $0x160] sm:$0xff] %v2333
      %2384 = vst [vmem:[#allocation2 + $0x168] sm:$0xff] %v2334
      %2385 = vst [vmem:[#allocation2 + $0x170] sm:$0xff] %v2335
      %2386 = vst [vmem:[#allocation2 + $0x178] sm:$0xff] %v2336
      %2387 = vst [vmem:[#allocation2 + $0x180] sm:$0x7] %v2337
      %2388 = vst [vmem:[#allocation2 + $0x188] sm:$0x7] %v2338
      %v2389 = vld [vmem:[%s1908] sm:$0xfe]
      %v2390 = vld [vmem:[%s1908 + $0x8] sm:$0xfe]
      %v2391 = vld [vmem:[%s1908 + $0x10] sm:$0xff]
      %v2392 = vld [vmem:[%s1908 + $0x18] sm:$0xff]
      %v2393 = vld [vmem:[%s1908 + $0x20] sm:$0xff]
      %v2394 = vld [vmem:[%s1908 + $0x28] sm:$0xff]
      %v2395 = vld [vmem:[%s1908 + $0x30] sm:$0xff]
      %v2396 = vld [vmem:[%s1908 + $0x38] sm:$0xff]
      %v2397 = vld [vmem:[%s1908 + $0x40] sm:$0xff]
      %v2398 = vld [vmem:[%s1908 + $0x48] sm:$0xff]
      %v2399 = vld [vmem:[%s1908 + $0x50] sm:$0xff]
      %v2400 = vld [vmem:[%s1908 + $0x58] sm:$0xff]
      %v2401 = vld [vmem:[%s1908 + $0x60] sm:$0xff]
      %v2402 = vld [vmem:[%s1908 + $0x68] sm:$0xff]
      %v2403 = vld [vmem:[%s1908 + $0x70] sm:$0xff]
      %v2404 = vld [vmem:[%s1908 + $0x78] sm:$0xff]
      %v2405 = vld [vmem:[%s1908 + $0x80] sm:$0xff]
      %v2406 = vld [vmem:[%s1908 + $0x88] sm:$0xff]
      %v2407 = vld [vmem:[%s1908 + $0x90] sm:$0xff]
      %v2408 = vld [vmem:[%s1908 + $0x98] sm:$0xff]
      %v2409 = vld [vmem:[%s1908 + $0xa0] sm:$0xff]
      %v2410 = vld [vmem:[%s1908 + $0xa8] sm:$0xff]
      %v2411 = vld [vmem:[%s1908 + $0xb0] sm:$0xff]
      %v2412 = vld [vmem:[%s1908 + $0xb8] sm:$0xff]
      %v2413 = vld [vmem:[%s1908 + $0xc0] sm:$0xff]
      %v2414 = vld [vmem:[%s1908 + $0xc8] sm:$0xff]
      %v2415 = vld [vmem:[%s1908 + $0xd0] sm:$0xff]
      %v2416 = vld [vmem:[%s1908 + $0xd8] sm:$0xff]
      %v2417 = vld [vmem:[%s1908 + $0xe0] sm:$0xff]
      %v2418 = vld [vmem:[%s1908 + $0xe8] sm:$0xff]
      %v2419 = vld [vmem:[%s1908 + $0xf0] sm:$0xff]
      %v2420 = vld [vmem:[%s1908 + $0xf8] sm:$0xff]
      %v2421 = vld [vmem:[%s1908 + $0x100] sm:$0xff]
      %v2422 = vld [vmem:[%s1908 + $0x108] sm:$0xff]
      %v2423 = vld [vmem:[%s1908 + $0x110] sm:$0xff]
      %v2424 = vld [vmem:[%s1908 + $0x118] sm:$0xff]
      %v2425 = vld [vmem:[%s1908 + $0x120] sm:$0xff]
      %v2426 = vld [vmem:[%s1908 + $0x128] sm:$0xff]
      %v2427 = vld [vmem:[%s1908 + $0x130] sm:$0xff]
      %v2428 = vld [vmem:[%s1908 + $0x138] sm:$0xff]
      %v2429 = vld [vmem:[%s1908 + $0x140] sm:$0xff]
      %v2430 = vld [vmem:[%s1908 + $0x148] sm:$0xff]
      %v2431 = vld [vmem:[%s1908 + $0x150] sm:$0xff]
      %v2432 = vld [vmem:[%s1908 + $0x158] sm:$0xff]
      %v2433 = vld [vmem:[%s1908 + $0x160] sm:$0xff]
      %v2434 = vld [vmem:[%s1908 + $0x168] sm:$0xff]
      %v2435 = vld [vmem:[%s1908 + $0x170] sm:$0xff]
      %v2436 = vld [vmem:[%s1908 + $0x178] sm:$0xff]
      %v2437 = vld [vmem:[%s1908 + $0x180] sm:$0xf]
      %v2438 = vld [vmem:[%s1908 + $0x188] sm:$0xf]
      %s2439 = scalar_lea.vmem %s1, 2048
      %v2440 = vld [vmem:[%s2439] sm:$0xff]
      %v2441 = vld [vmem:[%s2439 + $0x8] sm:$0xff]
      %v2442 = vld [vmem:[%s2439 + $0x10] sm:$0xff]
      %v2443 = vld [vmem:[%s2439 + $0x18] sm:$0xff]
      %v2444 = vld [vmem:[%s2439 + $0x20] sm:$0xff]
      %v2445 = vld [vmem:[%s2439 + $0x28] sm:$0xff]
      %v2446 = vld [vmem:[%s2439 + $0x30] sm:$0xff]
      %v2447 = vld [vmem:[%s2439 + $0x38] sm:$0xff]
      %v2448 = vld [vmem:[%s2439 + $0x40] sm:$0xff]
      %v2449 = vld [vmem:[%s2439 + $0x48] sm:$0xff]
      %v2450 = vld [vmem:[%s2439 + $0x50] sm:$0xff]
      %v2451 = vld [vmem:[%s2439 + $0x58] sm:$0xff]
      %v2452 = vld [vmem:[%s2439 + $0x60] sm:$0xff]
      %v2453 = vld [vmem:[%s2439 + $0x68] sm:$0xff]
      %v2454 = vld [vmem:[%s2439 + $0x70] sm:$0xff]
      %v2455 = vld [vmem:[%s2439 + $0x78] sm:$0xff]
      %v2456 = vld [vmem:[%s2439 + $0x80] sm:$0xff]
      %v2457 = vld [vmem:[%s2439 + $0x88] sm:$0xff]
      %v2458 = vld [vmem:[%s2439 + $0x90] sm:$0xff]
      %v2459 = vld [vmem:[%s2439 + $0x98] sm:$0xff]
      %v2460 = vld [vmem:[%s2439 + $0xa0] sm:$0xff]
      %v2461 = vld [vmem:[%s2439 + $0xa8] sm:$0xff]
      %v2462 = vld [vmem:[%s2439 + $0xb0] sm:$0xff]
      %v2463 = vld [vmem:[%s2439 + $0xb8] sm:$0xff]
      %v2464 = vld [vmem:[%s2439 + $0xc0] sm:$0xff]
      %v2465 = vld [vmem:[%s2439 + $0xc8] sm:$0xff]
      %v2466 = vld [vmem:[%s2439 + $0xd0] sm:$0xff]
      %v2467 = vld [vmem:[%s2439 + $0xd8] sm:$0xff]
      %v2468 = vld [vmem:[%s2439 + $0xe0] sm:$0xff]
      %v2469 = vld [vmem:[%s2439 + $0xe8] sm:$0xff]
      %v2470 = vld [vmem:[%s2439 + $0xf0] sm:$0xff]
      %v2471 = vld [vmem:[%s2439 + $0xf8] sm:$0xff]
      %v2472 = vld [vmem:[%s2439 + $0x100] sm:$0xff]
      %v2473 = vld [vmem:[%s2439 + $0x108] sm:$0xff]
      %v2474 = vld [vmem:[%s2439 + $0x110] sm:$0xff]
      %v2475 = vld [vmem:[%s2439 + $0x118] sm:$0xff]
      %v2476 = vld [vmem:[%s2439 + $0x120] sm:$0xff]
      %v2477 = vld [vmem:[%s2439 + $0x128] sm:$0xff]
      %v2478 = vld [vmem:[%s2439 + $0x130] sm:$0xff]
      %v2479 = vld [vmem:[%s2439 + $0x138] sm:$0xff]
      %v2480 = vld [vmem:[%s2439 + $0x140] sm:$0xff]
      %v2481 = vld [vmem:[%s2439 + $0x148] sm:$0xff]
      %v2482 = vld [vmem:[%s2439 + $0x150] sm:$0xff]
      %v2483 = vld [vmem:[%s2439 + $0x158] sm:$0xff]
      %v2484 = vld [vmem:[%s2439 + $0x160] sm:$0xff]
      %v2485 = vld [vmem:[%s2439 + $0x168] sm:$0xff]
      %v2486 = vld [vmem:[%s2439 + $0x170] sm:$0xff]
      %v2487 = vld [vmem:[%s2439 + $0x178] sm:$0xff]
      %v2488 = vld [vmem:[%s2439 + $0x180] sm:$0xff]
      %v2489 = vld [vmem:[%s2439 + $0x188] sm:$0xff]
      %v2490 = vld [vmem:[%s2439 + $0x190] sm:$0xff]
      %v2491 = vld [vmem:[%s2439 + $0x198] sm:$0xff]
      %v2492 = vld [vmem:[%s2439 + $0x1a0] sm:$0xff]
      %v2493 = vld [vmem:[%s2439 + $0x1a8] sm:$0xff]
      %v2494 = vld [vmem:[%s2439 + $0x1b0] sm:$0xff]
      %v2495 = vld [vmem:[%s2439 + $0x1b8] sm:$0xff]
      %v2496 = vld [vmem:[%s2439 + $0x1c0] sm:$0xff]
      %v2497 = vld [vmem:[%s2439 + $0x1c8] sm:$0xff]
      %v2498 = vld [vmem:[%s2439 + $0x1d0] sm:$0xff]
      %v2499 = vld [vmem:[%s2439 + $0x1d8] sm:$0xff]
      %v2500 = vld [vmem:[%s2439 + $0x1e0] sm:$0xff]
      %v2501 = vld [vmem:[%s2439 + $0x1e8] sm:$0xff]
      %v2502 = vld [vmem:[%s2439 + $0x1f0] sm:$0xff]
      %v2503 = vld [vmem:[%s2439 + $0x1f8] sm:$0xff]
      %v2554 = vrot.slane %v2389, 1
      %v2555 = vrot.slane %v2391, 1
      %v2556 = vsel %vm715, %v2554, %v2555
      %v2557 = vrot.slane %v2390, 1
      %v2558 = vrot.slane %v2392, 1
      %v2559 = vsel %vm715, %v2557, %v2558
      %v2560 = vrot.slane %v2393, 1
      %v2561 = vsel %vm715, %v2555, %v2560
      %v2562 = vrot.slane %v2394, 1
      %v2563 = vsel %vm715, %v2558, %v2562
      %v2564 = vrot.slane %v2395, 1
      %v2565 = vsel %vm715, %v2560, %v2564
      %v2566 = vrot.slane %v2396, 1
      %v2567 = vsel %vm715, %v2562, %v2566
      %v2568 = vrot.slane %v2397, 1
      %v2569 = vsel %vm715, %v2564, %v2568
      %v2570 = vrot.slane %v2398, 1
      %v2571 = vsel %vm715, %v2566, %v2570
      %v2572 = vrot.slane %v2399, 1
      %v2573 = vsel %vm715, %v2568, %v2572
      %v2574 = vrot.slane %v2400, 1
      %v2575 = vsel %vm715, %v2570, %v2574
      %v2576 = vrot.slane %v2401, 1
      %v2577 = vsel %vm715, %v2572, %v2576
      %v2578 = vrot.slane %v2402, 1
      %v2579 = vsel %vm715, %v2574, %v2578
      %v2580 = vrot.slane %v2403, 1
      %v2581 = vsel %vm715, %v2576, %v2580
      %v2582 = vrot.slane %v2404, 1
      %v2583 = vsel %vm715, %v2578, %v2582
      %v2584 = vrot.slane %v2405, 1
      %v2585 = vsel %vm715, %v2580, %v2584
      %v2586 = vrot.slane %v2406, 1
      %v2587 = vsel %vm715, %v2582, %v2586
      %v2588 = vrot.slane %v2407, 1
      %v2589 = vsel %vm715, %v2584, %v2588
      %v2590 = vrot.slane %v2408, 1
      %v2591 = vsel %vm715, %v2586, %v2590
      %v2592 = vrot.slane %v2409, 1
      %v2593 = vsel %vm715, %v2588, %v2592
      %v2594 = vrot.slane %v2410, 1
      %v2595 = vsel %vm715, %v2590, %v2594
      %v2596 = vrot.slane %v2411, 1
      %v2597 = vsel %vm715, %v2592, %v2596
      %v2598 = vrot.slane %v2412, 1
      %v2599 = vsel %vm715, %v2594, %v2598
      %v2600 = vrot.slane %v2413, 1
      %v2601 = vsel %vm715, %v2596, %v2600
      %v2602 = vrot.slane %v2414, 1
      %v2603 = vsel %vm715, %v2598, %v2602
      %v2604 = vrot.slane %v2415, 1
      %v2605 = vsel %vm715, %v2600, %v2604
      %v2606 = vrot.slane %v2416, 1
      %v2607 = vsel %vm715, %v2602, %v2606
      %v2608 = vrot.slane %v2417, 1
      %v2609 = vsel %vm715, %v2604, %v2608
      %v2610 = vrot.slane %v2418, 1
      %v2611 = vsel %vm715, %v2606, %v2610
      %v2612 = vrot.slane %v2419, 1
      %v2613 = vsel %vm715, %v2608, %v2612
      %v2614 = vrot.slane %v2420, 1
      %v2615 = vsel %vm715, %v2610, %v2614
      %v2616 = vrot.slane %v2421, 1
      %v2617 = vsel %vm715, %v2612, %v2616
      %v2618 = vrot.slane %v2422, 1
      %v2619 = vsel %vm715, %v2614, %v2618
      %v2620 = vrot.slane %v2423, 1
      %v2621 = vsel %vm715, %v2616, %v2620
      %v2622 = vrot.slane %v2424, 1
      %v2623 = vsel %vm715, %v2618, %v2622
      %v2624 = vrot.slane %v2425, 1
      %v2625 = vsel %vm715, %v2620, %v2624
      %v2626 = vrot.slane %v2426, 1
      %v2627 = vsel %vm715, %v2622, %v2626
      %v2628 = vrot.slane %v2427, 1
      %v2629 = vsel %vm715, %v2624, %v2628
      %v2630 = vrot.slane %v2428, 1
      %v2631 = vsel %vm715, %v2626, %v2630
      %v2632 = vrot.slane %v2429, 1
      %v2633 = vsel %vm715, %v2628, %v2632
      %v2634 = vrot.slane %v2430, 1
      %v2635 = vsel %vm715, %v2630, %v2634
      %v2636 = vrot.slane %v2431, 1
      %v2637 = vsel %vm715, %v2632, %v2636
      %v2638 = vrot.slane %v2432, 1
      %v2639 = vsel %vm715, %v2634, %v2638
      %v2640 = vrot.slane %v2433, 1
      %v2641 = vsel %vm715, %v2636, %v2640
      %v2642 = vrot.slane %v2434, 1
      %v2643 = vsel %vm715, %v2638, %v2642
      %v2644 = vrot.slane %v2435, 1
      %v2645 = vsel %vm715, %v2640, %v2644
      %v2646 = vrot.slane %v2436, 1
      %v2647 = vsel %vm715, %v2642, %v2646
      %v2648 = vrot.slane %v2437, 1
      %v2649 = vsel %vm715, %v2644, %v2648
      %v2650 = vrot.slane %v2438, 1
      %v2651 = vsel %vm715, %v2646, %v2650
      %2702 = vmatprep.subr.mxu0 %v2441
      %2703 = vmatpush1.msra.mxu0 %v2440
      %2704 = vmatprep.subr.mxu0 %v2443
      %2705 = vmatpush1.msra.mxu0 %v2442
      %2706 = vmatprep.subr.mxu0 %v2445
      %2707 = vmatpush1.msra.mxu0 %v2444
      %2708 = vmatprep.subr.mxu0 %v2447
      %2709 = vmatpush1.msra.mxu0 %v2446
      %2710 = vmatprep.subr.mxu0 %v2449
      %2711 = vmatpush1.msra.mxu0 %v2448
      %2712 = vmatprep.subr.mxu0 %v2451
      %2713 = vmatpush1.msra.mxu0 %v2450
      %2714 = vmatprep.subr.mxu0 %v2453
      %2715 = vmatpush1.msra.mxu0 %v2452
      %2716 = vmatprep.subr.mxu0 %v2455
      %2717 = vmatpush1.msra.mxu0 %v2454
      %2718 = vmatprep.subr.mxu0 %v2457
      %2719 = vmatpush1.msra.mxu0 %v2456
      %2720 = vmatprep.subr.mxu0 %v2459
      %2721 = vmatpush1.msra.mxu0 %v2458
      %2722 = vmatprep.subr.mxu0 %v2461
      %2723 = vmatpush1.msra.mxu0 %v2460
      %2724 = vmatprep.subr.mxu0 %v2463
      %2725 = vmatpush1.msra.mxu0 %v2462
      %2726 = vmatprep.subr.mxu0 %v2465
      %2727 = vmatpush1.msra.mxu0 %v2464
      %2728 = vmatprep.subr.mxu0 %v2467
      %2729 = vmatpush1.msra.mxu0 %v2466
      %2730 = vmatprep.subr.mxu0 %v2469
      %2731 = vmatpush1.msra.mxu0 %v2468
      %2732 = vmatprep.subr.mxu0 %v2471
      %2733 = vmatpush1.msra.mxu0 %v2470
      %2734 = vmatprep.subr.mxu0 %v2473
      %2735 = vmatpush1.msra.mxu0 %v2472
      %2736 = vmatprep.subr.mxu0 %v2475
      %2737 = vmatpush1.msra.mxu0 %v2474
      %2738 = vmatprep.subr.mxu0 %v2477
      %2739 = vmatpush1.msra.mxu0 %v2476
      %2740 = vmatprep.subr.mxu0 %v2479
      %2741 = vmatpush1.msra.mxu0 %v2478
      %2742 = vmatprep.subr.mxu0 %v2481
      %2743 = vmatpush1.msra.mxu0 %v2480
      %2744 = vmatprep.subr.mxu0 %v2483
      %2745 = vmatpush1.msra.mxu0 %v2482
      %2746 = vmatprep.subr.mxu0 %v2485
      %2747 = vmatpush1.msra.mxu0 %v2484
      %2748 = vmatprep.subr.mxu0 %v2487
      %2749 = vmatpush1.msra.mxu0 %v2486
      %2750 = vmatprep.subr.mxu0 %v2489
      %2751 = vmatpush1.msra.mxu0 %v2488
      %2752 = vmatprep.subr.mxu0 %v2491
      %2753 = vmatpush1.msra.mxu0 %v2490
      %2754 = vmatprep.subr.mxu0 %v2493
      %2755 = vmatpush1.msra.mxu0 %v2492
      %2756 = vmatprep.subr.mxu0 %v2495
      %2757 = vmatpush1.msra.mxu0 %v2494
      %2758 = vmatprep.subr.mxu0 %v2497
      %2759 = vmatpush1.msra.mxu0 %v2496
      %2760 = vmatprep.subr.mxu0 %v2499
      %2761 = vmatpush1.msra.mxu0 %v2498
      %2762 = vmatprep.subr.mxu0 %v2501
      %2763 = vmatpush1.msra.mxu0 %v2500
      %2764 = vmatprep.subr.mxu0 %v2503
      %2765 = vmatpush1.msra.mxu0 %v2502
      %2766 = vmatprep.mubr.f32.mxu0 %v2559
      %2767 = vmatmul.mubr.f32.gmra.mrb[0].mxu0 %v2556
      %v2768 = vpop.f32.mrb[0].mxu0
      %v2769 = vadd.f32 0.0, %v2768
      %v2770 = vpop.f32.mrb[0].mxu0
      %v2771 = vadd.f32 0.0, %v2770
      %2772 = vmatprep.mubr.f32.mxu0 %v2563
      %2773 = vmatmul.mubr.f32.gmra.mrb[0].mxu0 %v2561
      %v2774 = vpop.f32.mrb[0].mxu0
      %v2775 = vadd.f32 0.0, %v2774
      %v2776 = vpop.f32.mrb[0].mxu0
      %v2777 = vadd.f32 0.0, %v2776
      %2778 = vmatprep.mubr.f32.mxu0 %v2567
      %2779 = vmatmul.mubr.f32.gmra.mrb[0].mxu0 %v2565
      %v2780 = vpop.f32.mrb[0].mxu0
      %v2781 = vadd.f32 0.0, %v2780
      %v2782 = vpop.f32.mrb[0].mxu0
      %v2783 = vadd.f32 0.0, %v2782
      %2784 = vmatprep.mubr.f32.mxu0 %v2571
      %2785 = vmatmul.mubr.f32.gmra.mrb[0].mxu0 %v2569
      %v2786 = vpop.f32.mrb[0].mxu0
      %v2787 = vadd.f32 0.0, %v2786
      %v2788 = vpop.f32.mrb[0].mxu0
      %v2789 = vadd.f32 0.0, %v2788
      %2790 = vmatprep.mubr.f32.mxu0 %v2575
      %2791 = vmatmul.mubr.f32.gmra.mrb[0].mxu0 %v2573
      %v2792 = vpop.f32.mrb[0].mxu0
      %v2793 = vadd.f32 0.0, %v2792
      %v2794 = vpop.f32.mrb[0].mxu0
      %v2795 = vadd.f32 0.0, %v2794
      %2796 = vmatprep.mubr.f32.mxu0 %v2579
      %2797 = vmatmul.mubr.f32.gmra.mrb[0].mxu0 %v2577
      %v2798 = vpop.f32.mrb[0].mxu0
      %v2799 = vadd.f32 0.0, %v2798
      %v2800 = vpop.f32.mrb[0].mxu0
      %v2801 = vadd.f32 0.0, %v2800
      %2802 = vmatprep.mubr.f32.mxu0 %v2583
      %2803 = vmatmul.mubr.f32.gmra.mrb[0].mxu0 %v2581
      %v2804 = vpop.f32.mrb[0].mxu0
      %v2805 = vadd.f32 0.0, %v2804
      %v2806 = vpop.f32.mrb[0].mxu0
      %v2807 = vadd.f32 0.0, %v2806
      %2808 = vmatprep.mubr.f32.mxu0 %v2587
      %2809 = vmatmul.mubr.f32.gmra.mrb[0].mxu0 %v2585
      %v2810 = vpop.f32.mrb[0].mxu0
      %v2811 = vadd.f32 0.0, %v2810
      %v2812 = vpop.f32.mrb[0].mxu0
      %v2813 = vadd.f32 0.0, %v2812
      %2814 = vmatprep.mubr.f32.mxu0 %v2591
      %2815 = vmatmul.mubr.f32.gmra.mrb[0].mxu0 %v2589
      %v2816 = vpop.f32.mrb[0].mxu0
      %v2817 = vadd.f32 0.0, %v2816
      %v2818 = vpop.f32.mrb[0].mxu0
      %v2819 = vadd.f32 0.0, %v2818
      %2820 = vmatprep.mubr.f32.mxu0 %v2595
      %2821 = vmatmul.mubr.f32.gmra.mrb[0].mxu0 %v2593
      %v2822 = vpop.f32.mrb[0].mxu0
      %v2823 = vadd.f32 0.0, %v2822
      %v2824 = vpop.f32.mrb[0].mxu0
      %v2825 = vadd.f32 0.0, %v2824
      %2826 = vmatprep.mubr.f32.mxu0 %v2599
      %2827 = vmatmul.mubr.f32.gmra.mrb[0].mxu0 %v2597
      %v2828 = vpop.f32.mrb[0].mxu0
      %v2829 = vadd.f32 0.0, %v2828
      %v2830 = vpop.f32.mrb[0].mxu0
      %v2831 = vadd.f32 0.0, %v2830
      %2832 = vmatprep.mubr.f32.mxu0 %v2603
      %2833 = vmatmul.mubr.f32.gmra.mrb[0].mxu0 %v2601
      %v2834 = vpop.f32.mrb[0].mxu0
      %v2835 = vadd.f32 0.0, %v2834
      %v2836 = vpop.f32.mrb[0].mxu0
      %v2837 = vadd.f32 0.0, %v2836
      %2838 = vmatprep.mubr.f32.mxu0 %v2607
      %2839 = vmatmul.mubr.f32.gmra.mrb[0].mxu0 %v2605
      %v2840 = vpop.f32.mrb[0].mxu0
      %v2841 = vadd.f32 0.0, %v2840
      %v2842 = vpop.f32.mrb[0].mxu0
      %v2843 = vadd.f32 0.0, %v2842
      %2844 = vmatprep.mubr.f32.mxu0 %v2611
      %2845 = vmatmul.mubr.f32.gmra.mrb[0].mxu0 %v2609
      %v2846 = vpop.f32.mrb[0].mxu0
      %v2847 = vadd.f32 0.0, %v2846
      %v2848 = vpop.f32.mrb[0].mxu0
      %v2849 = vadd.f32 0.0, %v2848
      %2850 = vmatprep.mubr.f32.mxu0 %v2615
      %2851 = vmatmul.mubr.f32.gmra.mrb[0].mxu0 %v2613
      %v2852 = vpop.f32.mrb[0].mxu0
      %v2853 = vadd.f32 0.0, %v2852
      %v2854 = vpop.f32.mrb[0].mxu0
      %v2855 = vadd.f32 0.0, %v2854
      %2856 = vmatprep.mubr.f32.mxu0 %v2619
      %2857 = vmatmul.mubr.f32.gmra.mrb[0].mxu0 %v2617
      %v2858 = vpop.f32.mrb[0].mxu0
      %v2859 = vadd.f32 0.0, %v2858
      %v2860 = vpop.f32.mrb[0].mxu0
      %v2861 = vadd.f32 0.0, %v2860
      %2862 = vmatprep.mubr.f32.mxu0 %v2623
      %2863 = vmatmul.mubr.f32.gmra.mrb[0].mxu0 %v2621
      %v2864 = vpop.f32.mrb[0].mxu0
      %v2865 = vadd.f32 0.0, %v2864
      %v2866 = vpop.f32.mrb[0].mxu0
      %v2867 = vadd.f32 0.0, %v2866
      %2868 = vmatprep.mubr.f32.mxu0 %v2627
      %2869 = vmatmul.mubr.f32.gmra.mrb[0].mxu0 %v2625
      %v2870 = vpop.f32.mrb[0].mxu0
      %v2871 = vadd.f32 0.0, %v2870
      %v2872 = vpop.f32.mrb[0].mxu0
      %v2873 = vadd.f32 0.0, %v2872
      %2874 = vmatprep.mubr.f32.mxu0 %v2631
      %2875 = vmatmul.mubr.f32.gmra.mrb[0].mxu0 %v2629
      %v2876 = vpop.f32.mrb[0].mxu0
      %v2877 = vadd.f32 0.0, %v2876
      %v2878 = vpop.f32.mrb[0].mxu0
      %v2879 = vadd.f32 0.0, %v2878
      %2880 = vmatprep.mubr.f32.mxu0 %v2635
      %2881 = vmatmul.mubr.f32.gmra.mrb[0].mxu0 %v2633
      %v2882 = vpop.f32.mrb[0].mxu0
      %v2883 = vadd.f32 0.0, %v2882
      %v2884 = vpop.f32.mrb[0].mxu0
      %v2885 = vadd.f32 0.0, %v2884
      %2886 = vmatprep.mubr.f32.mxu0 %v2639
      %2887 = vmatmul.mubr.f32.gmra.mrb[0].mxu0 %v2637
      %v2888 = vpop.f32.mrb[0].mxu0
      %v2889 = vadd.f32 0.0, %v2888
      %v2890 = vpop.f32.mrb[0].mxu0
      %v2891 = vadd.f32 0.0, %v2890
      %2892 = vmatprep.mubr.f32.mxu0 %v2643
      %2893 = vmatmul.mubr.f32.gmra.mrb[0].mxu0 %v2641
      %v2894 = vpop.f32.mrb[0].mxu0
      %v2895 = vadd.f32 0.0, %v2894
      %v2896 = vpop.f32.mrb[0].mxu0
      %v2897 = vadd.f32 0.0, %v2896
      %2898 = vmatprep.mubr.f32.mxu0 %v2647
      %2899 = vmatmul.mubr.f32.gmra.mrb[0].mxu0 %v2645
      %v2900 = vpop.f32.mrb[0].mxu0
      %v2901 = vadd.f32 0.0, %v2900
      %v2902 = vpop.f32.mrb[0].mxu0
      %v2903 = vadd.f32 0.0, %v2902
      %2904 = vmatprep.mubr.f32.mxu0 %v2651
      %2905 = vmatmul.mubr.f32.gmra.mrb[0].mxu0 %v2649
      %v2906 = vpop.f32.mrb[0].mxu0
      %v2907 = vadd.f32 0.0, %v2906
      %v2908 = vpop.f32.mrb[0].mxu0
      %v2909 = vadd.f32 0.0, %v2908
      %2910 = vmatprep.mubr.f32.mxu0 %v2650
      %2911 = vmatmul.mubr.f32.gmra.mrb[0].mxu0 %v2648
      %v2912 = vpop.f32.mrb[0].mxu0
      %v2913 = vadd.f32 0.0, %v2912
      %v2914 = vpop.f32.mrb[0].mxu0
      %v2915 = vadd.f32 0.0, %v2914
      %2916 = vdwg.mxu0
      %v2917 = vld [vmem:[#allocation2] sm:$0xff]
      %v2918 = vld [vmem:[#allocation2 + $0x8] sm:$0xff]
      %v2919 = vld [vmem:[#allocation2 + $0x10] sm:$0xff]
      %v2920 = vld [vmem:[#allocation2 + $0x18] sm:$0xff]
      %v2921 = vld [vmem:[#allocation2 + $0x20] sm:$0xff]
      %v2922 = vld [vmem:[#allocation2 + $0x28] sm:$0xff]
      %v2923 = vld [vmem:[#allocation2 + $0x30] sm:$0xff]
      %v2924 = vld [vmem:[#allocation2 + $0x38] sm:$0xff]
      %v2925 = vld [vmem:[#allocation2 + $0x40] sm:$0xff]
      %v2926 = vld [vmem:[#allocation2 + $0x48] sm:$0xff]
      %v2927 = vld [vmem:[#allocation2 + $0x50] sm:$0xff]
      %v2928 = vld [vmem:[#allocation2 + $0x58] sm:$0xff]
      %v2929 = vld [vmem:[#allocation2 + $0x60] sm:$0xff]
      %v2930 = vld [vmem:[#allocation2 + $0x68] sm:$0xff]
      %v2931 = vld [vmem:[#allocation2 + $0x70] sm:$0xff]
      %v2932 = vld [vmem:[#allocation2 + $0x78] sm:$0xff]
      %v2933 = vld [vmem:[#allocation2 + $0x80] sm:$0xff]
      %v2934 = vld [vmem:[#allocation2 + $0x88] sm:$0xff]
      %v2935 = vld [vmem:[#allocation2 + $0x90] sm:$0xff]
      %v2936 = vld [vmem:[#allocation2 + $0x98] sm:$0xff]
      %v2937 = vld [vmem:[#allocation2 + $0xa0] sm:$0xff]
      %v2938 = vld [vmem:[#allocation2 + $0xa8] sm:$0xff]
      %v2939 = vld [vmem:[#allocation2 + $0xb0] sm:$0xff]
      %v2940 = vld [vmem:[#allocation2 + $0xb8] sm:$0xff]
      %v2941 = vld [vmem:[#allocation2 + $0xc0] sm:$0xff]
      %v2942 = vld [vmem:[#allocation2 + $0xc8] sm:$0xff]
      %v2943 = vld [vmem:[#allocation2 + $0xd0] sm:$0xff]
      %v2944 = vld [vmem:[#allocation2 + $0xd8] sm:$0xff]
      %v2945 = vld [vmem:[#allocation2 + $0xe0] sm:$0xff]
      %v2946 = vld [vmem:[#allocation2 + $0xe8] sm:$0xff]
      %v2947 = vld [vmem:[#allocation2 + $0xf0] sm:$0xff]
      %v2948 = vld [vmem:[#allocation2 + $0xf8] sm:$0xff]
      %v2949 = vld [vmem:[#allocation2 + $0x100] sm:$0xff]
      %v2950 = vld [vmem:[#allocation2 + $0x108] sm:$0xff]
      %v2951 = vld [vmem:[#allocation2 + $0x110] sm:$0xff]
      %v2952 = vld [vmem:[#allocation2 + $0x118] sm:$0xff]
      %v2953 = vld [vmem:[#allocation2 + $0x120] sm:$0xff]
      %v2954 = vld [vmem:[#allocation2 + $0x128] sm:$0xff]
      %v2955 = vld [vmem:[#allocation2 + $0x130] sm:$0xff]
      %v2956 = vld [vmem:[#allocation2 + $0x138] sm:$0xff]
      %v2957 = vld [vmem:[#allocation2 + $0x140] sm:$0xff]
      %v2958 = vld [vmem:[#allocation2 + $0x148] sm:$0xff]
      %v2959 = vld [vmem:[#allocation2 + $0x150] sm:$0xff]
      %v2960 = vld [vmem:[#allocation2 + $0x158] sm:$0xff]
      %v2961 = vld [vmem:[#allocation2 + $0x160] sm:$0xff]
      %v2962 = vld [vmem:[#allocation2 + $0x168] sm:$0xff]
      %v2963 = vld [vmem:[#allocation2 + $0x170] sm:$0xff]
      %v2964 = vld [vmem:[#allocation2 + $0x178] sm:$0xff]
      %v2965 = vld [vmem:[#allocation2 + $0x180] sm:$0x7]
      %v2966 = vld [vmem:[#allocation2 + $0x188] sm:$0x7]
      %v2967 = vadd.f32 %v2917, %v2769
      %v2968 = vadd.f32 %v2918, %v2771
      %v2969 = vadd.f32 %v2919, %v2775
      %v2970 = vadd.f32 %v2920, %v2777
      %v2971 = vadd.f32 %v2921, %v2781
      %v2972 = vadd.f32 %v2922, %v2783
      %v2973 = vadd.f32 %v2923, %v2787
      %v2974 = vadd.f32 %v2924, %v2789
      %v2975 = vadd.f32 %v2925, %v2793
      %v2976 = vadd.f32 %v2926, %v2795
      %v2977 = vadd.f32 %v2927, %v2799
      %v2978 = vadd.f32 %v2928, %v2801
      %v2979 = vadd.f32 %v2929, %v2805
      %v2980 = vadd.f32 %v2930, %v2807
      %v2981 = vadd.f32 %v2931, %v2811
      %v2982 = vadd.f32 %v2932, %v2813
      %v2983 = vadd.f32 %v2933, %v2817
      %v2984 = vadd.f32 %v2934, %v2819
      %v2985 = vadd.f32 %v2935, %v2823
      %v2986 = vadd.f32 %v2936, %v2825
      %v2987 = vadd.f32 %v2937, %v2829
      %v2988 = vadd.f32 %v2938, %v2831
      %v2989 = vadd.f32 %v2939, %v2835
      %v2990 = vadd.f32 %v2940, %v2837
      %v2991 = vadd.f32 %v2941, %v2841
      %v2992 = vadd.f32 %v2942, %v2843
      %v2993 = vadd.f32 %v2943, %v2847
      %v2994 = vadd.f32 %v2944, %v2849
      %v2995 = vadd.f32 %v2945, %v2853
      %v2996 = vadd.f32 %v2946, %v2855
      %v2997 = vadd.f32 %v2947, %v2859
      %v2998 = vadd.f32 %v2948, %v2861
      %v2999 = vadd.f32 %v2949, %v2865
      %v3000 = vadd.f32 %v2950, %v2867
      %v3001 = vadd.f32 %v2951, %v2871
      %v3002 = vadd.f32 %v2952, %v2873
      %v3003 = vadd.f32 %v2953, %v2877
      %v3004 = vadd.f32 %v2954, %v2879
      %v3005 = vadd.f32 %v2955, %v2883
      %v3006 = vadd.f32 %v2956, %v2885
      %v3007 = vadd.f32 %v2957, %v2889
      %v3008 = vadd.f32 %v2958, %v2891
      %v3009 = vadd.f32 %v2959, %v2895
      %v3010 = vadd.f32 %v2960, %v2897
      %v3011 = vadd.f32 %v2961, %v2901
      %v3012 = vadd.f32 %v2962, %v2903
      %v3013 = vadd.f32 %v2963, %v2907
      %v3014 = vadd.f32 %v2964, %v2909
      %v3015 = vadd.f32 %v2965, %v2913
      %v3016 = vadd.f32 %v2966, %v2915
      %3017 = vst [vmem:[#allocation2] sm:$0xff] %v2967
      %3018 = vst [vmem:[#allocation2 + $0x8] sm:$0xff] %v2968
      %3019 = vst [vmem:[#allocation2 + $0x10] sm:$0xff] %v2969
      %3020 = vst [vmem:[#allocation2 + $0x18] sm:$0xff] %v2970
      %3021 = vst [vmem:[#allocation2 + $0x20] sm:$0xff] %v2971
      %3022 = vst [vmem:[#allocation2 + $0x28] sm:$0xff] %v2972
      %3023 = vst [vmem:[#allocation2 + $0x30] sm:$0xff] %v2973
      %3024 = vst [vmem:[#allocation2 + $0x38] sm:$0xff] %v2974
      %3025 = vst [vmem:[#allocation2 + $0x40] sm:$0xff] %v2975
      %3026 = vst [vmem:[#allocation2 + $0x48] sm:$0xff] %v2976
      %3027 = vst [vmem:[#allocation2 + $0x50] sm:$0xff] %v2977
      %3028 = vst [vmem:[#allocation2 + $0x58] sm:$0xff] %v2978
      %3029 = vst [vmem:[#allocation2 + $0x60] sm:$0xff] %v2979
      %3030 = vst [vmem:[#allocation2 + $0x68] sm:$0xff] %v2980
      %3031 = vst [vmem:[#allocation2 + $0x70] sm:$0xff] %v2981
      %3032 = vst [vmem:[#allocation2 + $0x78] sm:$0xff] %v2982
      %3033 = vst [vmem:[#allocation2 + $0x80] sm:$0xff] %v2983
      %3034 = vst [vmem:[#allocation2 + $0x88] sm:$0xff] %v2984
      %3035 = vst [vmem:[#allocation2 + $0x90] sm:$0xff] %v2985
      %3036 = vst [vmem:[#allocation2 + $0x98] sm:$0xff] %v2986
      %3037 = vst [vmem:[#allocation2 + $0xa0] sm:$0xff] %v2987
      %3038 = vst [vmem:[#allocation2 + $0xa8] sm:$0xff] %v2988
      %3039 = vst [vmem:[#allocation2 + $0xb0] sm:$0xff] %v2989
      %3040 = vst [vmem:[#allocation2 + $0xb8] sm:$0xff] %v2990
      %3041 = vst [vmem:[#allocation2 + $0xc0] sm:$0xff] %v2991
      %3042 = vst [vmem:[#allocation2 + $0xc8] sm:$0xff] %v2992
      %3043 = vst [vmem:[#allocation2 + $0xd0] sm:$0xff] %v2993
      %3044 = vst [vmem:[#allocation2 + $0xd8] sm:$0xff] %v2994
      %3045 = vst [vmem:[#allocation2 + $0xe0] sm:$0xff] %v2995
      %3046 = vst [vmem:[#allocation2 + $0xe8] sm:$0xff] %v2996
      %3047 = vst [vmem:[#allocation2 + $0xf0] sm:$0xff] %v2997
      %3048 = vst [vmem:[#allocation2 + $0xf8] sm:$0xff] %v2998
      %3049 = vst [vmem:[#allocation2 + $0x100] sm:$0xff] %v2999
      %3050 = vst [vmem:[#allocation2 + $0x108] sm:$0xff] %v3000
      %3051 = vst [vmem:[#allocation2 + $0x110] sm:$0xff] %v3001
      %3052 = vst [vmem:[#allocation2 + $0x118] sm:$0xff] %v3002
      %3053 = vst [vmem:[#allocation2 + $0x120] sm:$0xff] %v3003
      %3054 = vst [vmem:[#allocation2 + $0x128] sm:$0xff] %v3004
      %3055 = vst [vmem:[#allocation2 + $0x130] sm:$0xff] %v3005
      %3056 = vst [vmem:[#allocation2 + $0x138] sm:$0xff] %v3006
      %3057 = vst [vmem:[#allocation2 + $0x140] sm:$0xff] %v3007
      %3058 = vst [vmem:[#allocation2 + $0x148] sm:$0xff] %v3008
      %3059 = vst [vmem:[#allocation2 + $0x150] sm:$0xff] %v3009
      %3060 = vst [vmem:[#allocation2 + $0x158] sm:$0xff] %v3010
      %3061 = vst [vmem:[#allocation2 + $0x160] sm:$0xff] %v3011
      %3062 = vst [vmem:[#allocation2 + $0x168] sm:$0xff] %v3012
      %3063 = vst [vmem:[#allocation2 + $0x170] sm:$0xff] %v3013
      %3064 = vst [vmem:[#allocation2 + $0x178] sm:$0xff] %v3014
      %3065 = vst [vmem:[#allocation2 + $0x180] sm:$0x7] %v3015
      %3066 = vst [vmem:[#allocation2 + $0x188] sm:$0x7] %v3016
      %v3067 = vld [vmem:[%s1908] sm:$0xfc]
      %v3068 = vld [vmem:[%s1908 + $0x8] sm:$0xfc]
      %v3069 = vld [vmem:[%s1908 + $0x10] sm:$0xff]
      %v3070 = vld [vmem:[%s1908 + $0x18] sm:$0xff]
      %v3071 = vld [vmem:[%s1908 + $0x20] sm:$0xff]
      %v3072 = vld [vmem:[%s1908 + $0x28] sm:$0xff]
      %v3073 = vld [vmem:[%s1908 + $0x30] sm:$0xff]
      %v3074 = vld [vmem:[%s1908 + $0x38] sm:$0xff]
      %v3075 = vld [vmem:[%s1908 + $0x40] sm:$0xff]
      %v3076 = vld [vmem:[%s1908 + $0x48] sm:$0xff]
      %v3077 = vld [vmem:[%s1908 + $0x50] sm:$0xff]
      %v3078 = vld [vmem:[%s1908 + $0x58] sm:$0xff]
      %v3079 = vld [vmem:[%s1908 + $0x60] sm:$0xff]
      %v3080 = vld [vmem:[%s1908 + $0x68] sm:$0xff]
      %v3081 = vld [vmem:[%s1908 + $0x70] sm:$0xff]
      %v3082 = vld [vmem:[%s1908 + $0x78] sm:$0xff]
      %v3083 = vld [vmem:[%s1908 + $0x80] sm:$0xff]
      %v3084 = vld [vmem:[%s1908 + $0x88] sm:$0xff]
      %v3085 = vld [vmem:[%s1908 + $0x90] sm:$0xff]
      %v3086 = vld [vmem:[%s1908 + $0x98] sm:$0xff]
      %v3087 = vld [vmem:[%s1908 + $0xa0] sm:$0xff]
      %v3088 = vld [vmem:[%s1908 + $0xa8] sm:$0xff]
      %v3089 = vld [vmem:[%s1908 + $0xb0] sm:$0xff]
      %v3090 = vld [vmem:[%s1908 + $0xb8] sm:$0xff]
      %v3091 = vld [vmem:[%s1908 + $0xc0] sm:$0xff]
      %v3092 = vld [vmem:[%s1908 + $0xc8] sm:$0xff]
      %v3093 = vld [vmem:[%s1908 + $0xd0] sm:$0xff]
      %v3094 = vld [vmem:[%s1908 + $0xd8] sm:$0xff]
      %v3095 = vld [vmem:[%s1908 + $0xe0] sm:$0xff]
      %v3096 = vld [vmem:[%s1908 + $0xe8] sm:$0xff]
      %v3097 = vld [vmem:[%s1908 + $0xf0] sm:$0xff]
      %v3098 = vld [vmem:[%s1908 + $0xf8] sm:$0xff]
      %v3099 = vld [vmem:[%s1908 + $0x100] sm:$0xff]
      %v3100 = vld [vmem:[%s1908 + $0x108] sm:$0xff]
      %v3101 = vld [vmem:[%s1908 + $0x110] sm:$0xff]
      %v3102 = vld [vmem:[%s1908 + $0x118] sm:$0xff]
      %v3103 = vld [vmem:[%s1908 + $0x120] sm:$0xff]
      %v3104 = vld [vmem:[%s1908 + $0x128] sm:$0xff]
      %v3105 = vld [vmem:[%s1908 + $0x130] sm:$0xff]
      %v3106 = vld [vmem:[%s1908 + $0x138] sm:$0xff]
      %v3107 = vld [vmem:[%s1908 + $0x140] sm:$0xff]
      %v3108 = vld [vmem:[%s1908 + $0x148] sm:$0xff]
      %v3109 = vld [vmem:[%s1908 + $0x150] sm:$0xff]
      %v3110 = vld [vmem:[%s1908 + $0x158] sm:$0xff]
      %v3111 = vld [vmem:[%s1908 + $0x160] sm:$0xff]
      %v3112 = vld [vmem:[%s1908 + $0x168] sm:$0xff]
      %v3113 = vld [vmem:[%s1908 + $0x170] sm:$0xff]
      %v3114 = vld [vmem:[%s1908 + $0x178] sm:$0xff]
      %v3115 = vld [vmem:[%s1908 + $0x180] sm:$0x1f]
      %v3116 = vld [vmem:[%s1908 + $0x188] sm:$0x1f]
      %s3117 = scalar_lea.vmem %s1, 2560
      %v3118 = vld [vmem:[%s3117] sm:$0xff]
      %v3119 = vld [vmem:[%s3117 + $0x8] sm:$0xff]
      %v3120 = vld [vmem:[%s3117 + $0x10] sm:$0xff]
      %v3121 = vld [vmem:[%s3117 + $0x18] sm:$0xff]
      %v3122 = vld [vmem:[%s3117 + $0x20] sm:$0xff]
      %v3123 = vld [vmem:[%s3117 + $0x28] sm:$0xff]
      %v3124 = vld [vmem:[%s3117 + $0x30] sm:$0xff]
      %v3125 = vld [vmem:[%s3117 + $0x38] sm:$0xff]
      %v3126 = vld [vmem:[%s3117 + $0x40] sm:$0xff]
      %v3127 = vld [vmem:[%s3117 + $0x48] sm:$0xff]
      %v3128 = vld [vmem:[%s3117 + $0x50] sm:$0xff]
      %v3129 = vld [vmem:[%s3117 + $0x58] sm:$0xff]
      %v3130 = vld [vmem:[%s3117 + $0x60] sm:$0xff]
      %v3131 = vld [vmem:[%s3117 + $0x68] sm:$0xff]
      %v3132 = vld [vmem:[%s3117 + $0x70] sm:$0xff]
      %v3133 = vld [vmem:[%s3117 + $0x78] sm:$0xff]
      %v3134 = vld [vmem:[%s3117 + $0x80] sm:$0xff]
      %v3135 = vld [vmem:[%s3117 + $0x88] sm:$0xff]
      %v3136 = vld [vmem:[%s3117 + $0x90] sm:$0xff]
      %v3137 = vld [vmem:[%s3117 + $0x98] sm:$0xff]
      %v3138 = vld [vmem:[%s3117 + $0xa0] sm:$0xff]
      %v3139 = vld [vmem:[%s3117 + $0xa8] sm:$0xff]
      %v3140 = vld [vmem:[%s3117 + $0xb0] sm:$0xff]
      %v3141 = vld [vmem:[%s3117 + $0xb8] sm:$0xff]
      %v3142 = vld [vmem:[%s3117 + $0xc0] sm:$0xff]
      %v3143 = vld [vmem:[%s3117 + $0xc8] sm:$0xff]
      %v3144 = vld [vmem:[%s3117 + $0xd0] sm:$0xff]
      %v3145 = vld [vmem:[%s3117 + $0xd8] sm:$0xff]
      %v3146 = vld [vmem:[%s3117 + $0xe0] sm:$0xff]
      %v3147 = vld [vmem:[%s3117 + $0xe8] sm:$0xff]
      %v3148 = vld [vmem:[%s3117 + $0xf0] sm:$0xff]
      %v3149 = vld [vmem:[%s3117 + $0xf8] sm:$0xff]
      %v3150 = vld [vmem:[%s3117 + $0x100] sm:$0xff]
      %v3151 = vld [vmem:[%s3117 + $0x108] sm:$0xff]
      %v3152 = vld [vmem:[%s3117 + $0x110] sm:$0xff]
      %v3153 = vld [vmem:[%s3117 + $0x118] sm:$0xff]
      %v3154 = vld [vmem:[%s3117 + $0x120] sm:$0xff]
      %v3155 = vld [vmem:[%s3117 + $0x128] sm:$0xff]
      %v3156 = vld [vmem:[%s3117 + $0x130] sm:$0xff]
      %v3157 = vld [vmem:[%s3117 + $0x138] sm:$0xff]
      %v3158 = vld [vmem:[%s3117 + $0x140] sm:$0xff]
      %v3159 = vld [vmem:[%s3117 + $0x148] sm:$0xff]
      %v3160 = vld [vmem:[%s3117 + $0x150] sm:$0xff]
      %v3161 = vld [vmem:[%s3117 + $0x158] sm:$0xff]
      %v3162 = vld [vmem:[%s3117 + $0x160] sm:$0xff]
      %v3163 = vld [vmem:[%s3117 + $0x168] sm:$0xff]
      %v3164 = vld [vmem:[%s3117 + $0x170] sm:$0xff]
      %v3165 = vld [vmem:[%s3117 + $0x178] sm:$0xff]
      %v3166 = vld [vmem:[%s3117 + $0x180] sm:$0xff]
      %v3167 = vld [vmem:[%s3117 + $0x188] sm:$0xff]
      %v3168 = vld [vmem:[%s3117 + $0x190] sm:$0xff]
      %v3169 = vld [vmem:[%s3117 + $0x198] sm:$0xff]
      %v3170 = vld [vmem:[%s3117 + $0x1a0] sm:$0xff]
      %v3171 = vld [vmem:[%s3117 + $0x1a8] sm:$0xff]
      %v3172 = vld [vmem:[%s3117 + $0x1b0] sm:$0xff]
      %v3173 = vld [vmem:[%s3117 + $0x1b8] sm:$0xff]
      %v3174 = vld [vmem:[%s3117 + $0x1c0] sm:$0xff]
      %v3175 = vld [vmem:[%s3117 + $0x1c8] sm:$0xff]
      %v3176 = vld [vmem:[%s3117 + $0x1d0] sm:$0xff]
      %v3177 = vld [vmem:[%s3117 + $0x1d8] sm:$0xff]
      %v3178 = vld [vmem:[%s3117 + $0x1e0] sm:$0xff]
      %v3179 = vld [vmem:[%s3117 + $0x1e8] sm:$0xff]
      %v3180 = vld [vmem:[%s3117 + $0x1f0] sm:$0xff]
      %v3181 = vld [vmem:[%s3117 + $0x1f8] sm:$0xff]
      %v3232 = vrot.slane %v3067, 2
      %v3233 = vrot.slane %v3069, 2
      %v3234 = vsel %vm1394, %v3232, %v3233
      %v3235 = vrot.slane %v3068, 2
      %v3236 = vrot.slane %v3070, 2
      %v3237 = vsel %vm1394, %v3235, %v3236
      %v3238 = vrot.slane %v3071, 2
      %v3239 = vsel %vm1394, %v3233, %v3238
      %v3240 = vrot.slane %v3072, 2
      %v3241 = vsel %vm1394, %v3236, %v3240
      %v3242 = vrot.slane %v3073, 2
      %v3243 = vsel %vm1394, %v3238, %v3242
      %v3244 = vrot.slane %v3074, 2
      %v3245 = vsel %vm1394, %v3240, %v3244
      %v3246 = vrot.slane %v3075, 2
      %v3247 = vsel %vm1394, %v3242, %v3246
      %v3248 = vrot.slane %v3076, 2
      %v3249 = vsel %vm1394, %v3244, %v3248
      %v3250 = vrot.slane %v3077, 2
      %v3251 = vsel %vm1394, %v3246, %v3250
      %v3252 = vrot.slane %v3078, 2
      %v3253 = vsel %vm1394, %v3248, %v3252
      %v3254 = vrot.slane %v3079, 2
      %v3255 = vsel %vm1394, %v3250, %v3254
      %v3256 = vrot.slane %v3080, 2
      %v3257 = vsel %vm1394, %v3252, %v3256
      %v3258 = vrot.slane %v3081, 2
      %v3259 = vsel %vm1394, %v3254, %v3258
      %v3260 = vrot.slane %v3082, 2
      %v3261 = vsel %vm1394, %v3256, %v3260
      %v3262 = vrot.slane %v3083, 2
      %v3263 = vsel %vm1394, %v3258, %v3262
      %v3264 = vrot.slane %v3084, 2
      %v3265 = vsel %vm1394, %v3260, %v3264
      %v3266 = vrot.slane %v3085, 2
      %v3267 = vsel %vm1394, %v3262, %v3266
      %v3268 = vrot.slane %v3086, 2
      %v3269 = vsel %vm1394, %v3264, %v3268
      %v3270 = vrot.slane %v3087, 2
      %v3271 = vsel %vm1394, %v3266, %v3270
      %v3272 = vrot.slane %v3088, 2
      %v3273 = vsel %vm1394, %v3268, %v3272
      %v3274 = vrot.slane %v3089, 2
      %v3275 = vsel %vm1394, %v3270, %v3274
      %v3276 = vrot.slane %v3090, 2
      %v3277 = vsel %vm1394, %v3272, %v3276
      %v3278 = vrot.slane %v3091, 2
      %v3279 = vsel %vm1394, %v3274, %v3278
      %v3280 = vrot.slane %v3092, 2
      %v3281 = vsel %vm1394, %v3276, %v3280
      %v3282 = vrot.slane %v3093, 2
      %v3283 = vsel %vm1394, %v3278, %v3282
      %v3284 = vrot.slane %v3094, 2
      %v3285 = vsel %vm1394, %v3280, %v3284
      %v3286 = vrot.slane %v3095, 2
      %v3287 = vsel %vm1394, %v3282, %v3286
      %v3288 = vrot.slane %v3096, 2
      %v3289 = vsel %vm1394, %v3284, %v3288
      %v3290 = vrot.slane %v3097, 2
      %v3291 = vsel %vm1394, %v3286, %v3290
      %v3292 = vrot.slane %v3098, 2
      %v3293 = vsel %vm1394, %v3288, %v3292
      %v3294 = vrot.slane %v3099, 2
      %v3295 = vsel %vm1394, %v3290, %v3294
      %v3296 = vrot.slane %v3100, 2
      %v3297 = vsel %vm1394, %v3292, %v3296
      %v3298 = vrot.slane %v3101, 2
      %v3299 = vsel %vm1394, %v3294, %v3298
      %v3300 = vrot.slane %v3102, 2
      %v3301 = vsel %vm1394, %v3296, %v3300
      %v3302 = vrot.slane %v3103, 2
      %v3303 = vsel %vm1394, %v3298, %v3302
      %v3304 = vrot.slane %v3104, 2
      %v3305 = vsel %vm1394, %v3300, %v3304
      %v3306 = vrot.slane %v3105, 2
      %v3307 = vsel %vm1394, %v3302, %v3306
      %v3308 = vrot.slane %v3106, 2
      %v3309 = vsel %vm1394, %v3304, %v3308
      %v3310 = vrot.slane %v3107, 2
      %v3311 = vsel %vm1394, %v3306, %v3310
      %v3312 = vrot.slane %v3108, 2
      %v3313 = vsel %vm1394, %v3308, %v3312
      %v3314 = vrot.slane %v3109, 2
      %v3315 = vsel %vm1394, %v3310, %v3314
      %v3316 = vrot.slane %v3110, 2
      %v3317 = vsel %vm1394, %v3312, %v3316
      %v3318 = vrot.slane %v3111, 2
      %v3319 = vsel %vm1394, %v3314, %v3318
      %v3320 = vrot.slane %v3112, 2
      %v3321 = vsel %vm1394, %v3316, %v3320
      %v3322 = vrot.slane %v3113, 2
      %v3323 = vsel %vm1394, %v3318, %v3322
      %v3324 = vrot.slane %v3114, 2
      %v3325 = vsel %vm1394, %v3320, %v3324
      %v3326 = vrot.slane %v3115, 2
      %v3327 = vsel %vm1394, %v3322, %v3326
      %v3328 = vrot.slane %v3116, 2
      %v3329 = vsel %vm1394, %v3324, %v3328
      %3380 = vmatprep.subr.mxu0 %v3119
      %3381 = vmatpush1.msra.mxu0 %v3118
      %3382 = vmatprep.subr.mxu0 %v3121
      %3383 = vmatpush1.msra.mxu0 %v3120
      %3384 = vmatprep.subr.mxu0 %v3123
      %3385 = vmatpush1.msra.mxu0 %v3122
      %3386 = vmatprep.subr.mxu0 %v3125
      %3387 = vmatpush1.msra.mxu0 %v3124
      %3388 = vmatprep.subr.mxu0 %v3127
      %3389 = vmatpush1.msra.mxu0 %v3126
      %3390 = vmatprep.subr.mxu0 %v3129
      %3391 = vmatpush1.msra.mxu0 %v3128
      %3392 = vmatprep.subr.mxu0 %v3131
      %3393 = vmatpush1.msra.mxu0 %v3130
      %3394 = vmatprep.subr.mxu0 %v3133
      %3395 = vmatpush1.msra.mxu0 %v3132
      %3396 = vmatprep.subr.mxu0 %v3135
      %3397 = vmatpush1.msra.mxu0 %v3134
      %3398 = vmatprep.subr.mxu0 %v3137
      %3399 = vmatpush1.msra.mxu0 %v3136
      %3400 = vmatprep.subr.mxu0 %v3139
      %3401 = vmatpush1.msra.mxu0 %v3138
      %3402 = vmatprep.subr.mxu0 %v3141
      %3403 = vmatpush1.msra.mxu0 %v3140
      %3404 = vmatprep.subr.mxu0 %v3143
      %3405 = vmatpush1.msra.mxu0 %v3142
      %3406 = vmatprep.subr.mxu0 %v3145
      %3407 = vmatpush1.msra.mxu0 %v3144
      %3408 = vmatprep.subr.mxu0 %v3147
      %3409 = vmatpush1.msra.mxu0 %v3146
      %3410 = vmatprep.subr.mxu0 %v3149
      %3411 = vmatpush1.msra.mxu0 %v3148
      %3412 = vmatprep.subr.mxu0 %v3151
      %3413 = vmatpush1.msra.mxu0 %v3150
      %3414 = vmatprep.subr.mxu0 %v3153
      %3415 = vmatpush1.msra.mxu0 %v3152
      %3416 = vmatprep.subr.mxu0 %v3155
      %3417 = vmatpush1.msra.mxu0 %v3154
      %3418 = vmatprep.subr.mxu0 %v3157
      %3419 = vmatpush1.msra.mxu0 %v3156
      %3420 = vmatprep.subr.mxu0 %v3159
      %3421 = vmatpush1.msra.mxu0 %v3158
      %3422 = vmatprep.subr.mxu0 %v3161
      %3423 = vmatpush1.msra.mxu0 %v3160
      %3424 = vmatprep.subr.mxu0 %v3163
      %3425 = vmatpush1.msra.mxu0 %v3162
      %3426 = vmatprep.subr.mxu0 %v3165
      %3427 = vmatpush1.msra.mxu0 %v3164
      %3428 = vmatprep.subr.mxu0 %v3167
      %3429 = vmatpush1.msra.mxu0 %v3166
      %3430 = vmatprep.subr.mxu0 %v3169
      %3431 = vmatpush1.msra.mxu0 %v3168
      %3432 = vmatprep.subr.mxu0 %v3171
      %3433 = vmatpush1.msra.mxu0 %v3170
      %3434 = vmatprep.subr.mxu0 %v3173
      %3435 = vmatpush1.msra.mxu0 %v3172
      %3436 = vmatprep.subr.mxu0 %v3175
      %3437 = vmatpush1.msra.mxu0 %v3174
      %3438 = vmatprep.subr.mxu0 %v3177
      %3439 = vmatpush1.msra.mxu0 %v3176
      %3440 = vmatprep.subr.mxu0 %v3179
      %3441 = vmatpush1.msra.mxu0 %v3178
      %3442 = vmatprep.subr.mxu0 %v3181
      %3443 = vmatpush1.msra.mxu0 %v3180
      %3444 = vmatprep.mubr.f32.mxu0 %v3237
      %3445 = vmatmul.mubr.f32.gmra.mrb[0].mxu0 %v3234
      %v3446 = vpop.f32.mrb[0].mxu0
      %v3447 = vadd.f32 0.0, %v3446
      %v3448 = vpop.f32.mrb[0].mxu0
      %v3449 = vadd.f32 0.0, %v3448
      %3450 = vmatprep.mubr.f32.mxu0 %v3241
      %3451 = vmatmul.mubr.f32.gmra.mrb[0].mxu0 %v3239
      %v3452 = vpop.f32.mrb[0].mxu0
      %v3453 = vadd.f32 0.0, %v3452
      %v3454 = vpop.f32.mrb[0].mxu0
      %v3455 = vadd.f32 0.0, %v3454
      %3456 = vmatprep.mubr.f32.mxu0 %v3245
      %3457 = vmatmul.mubr.f32.gmra.mrb[0].mxu0 %v3243
      %v3458 = vpop.f32.mrb[0].mxu0
      %v3459 = vadd.f32 0.0, %v3458
      %v3460 = vpop.f32.mrb[0].mxu0
      %v3461 = vadd.f32 0.0, %v3460
      %3462 = vmatprep.mubr.f32.mxu0 %v3249
      %3463 = vmatmul.mubr.f32.gmra.mrb[0].mxu0 %v3247
      %v3464 = vpop.f32.mrb[0].mxu0
      %v3465 = vadd.f32 0.0, %v3464
      %v3466 = vpop.f32.mrb[0].mxu0
      %v3467 = vadd.f32 0.0, %v3466
      %3468 = vmatprep.mubr.f32.mxu0 %v3253
      %3469 = vmatmul.mubr.f32.gmra.mrb[0].mxu0 %v3251
      %v3470 = vpop.f32.mrb[0].mxu0
      %v3471 = vadd.f32 0.0, %v3470
      %v3472 = vpop.f32.mrb[0].mxu0
      %v3473 = vadd.f32 0.0, %v3472
      %3474 = vmatprep.mubr.f32.mxu0 %v3257
      %3475 = vmatmul.mubr.f32.gmra.mrb[0].mxu0 %v3255
      %v3476 = vpop.f32.mrb[0].mxu0
      %v3477 = vadd.f32 0.0, %v3476
      %v3478 = vpop.f32.mrb[0].mxu0
      %v3479 = vadd.f32 0.0, %v3478
      %3480 = vmatprep.mubr.f32.mxu0 %v3261
      %3481 = vmatmul.mubr.f32.gmra.mrb[0].mxu0 %v3259
      %v3482 = vpop.f32.mrb[0].mxu0
      %v3483 = vadd.f32 0.0, %v3482
      %v3484 = vpop.f32.mrb[0].mxu0
      %v3485 = vadd.f32 0.0, %v3484
      %3486 = vmatprep.mubr.f32.mxu0 %v3265
      %3487 = vmatmul.mubr.f32.gmra.mrb[0].mxu0 %v3263
      %v3488 = vpop.f32.mrb[0].mxu0
      %v3489 = vadd.f32 0.0, %v3488
      %v3490 = vpop.f32.mrb[0].mxu0
      %v3491 = vadd.f32 0.0, %v3490
      %3492 = vmatprep.mubr.f32.mxu0 %v3269
      %3493 = vmatmul.mubr.f32.gmra.mrb[0].mxu0 %v3267
      %v3494 = vpop.f32.mrb[0].mxu0
      %v3495 = vadd.f32 0.0, %v3494
      %v3496 = vpop.f32.mrb[0].mxu0
      %v3497 = vadd.f32 0.0, %v3496
      %3498 = vmatprep.mubr.f32.mxu0 %v3273
      %3499 = vmatmul.mubr.f32.gmra.mrb[0].mxu0 %v3271
      %v3500 = vpop.f32.mrb[0].mxu0
      %v3501 = vadd.f32 0.0, %v3500
      %v3502 = vpop.f32.mrb[0].mxu0
      %v3503 = vadd.f32 0.0, %v3502
      %3504 = vmatprep.mubr.f32.mxu0 %v3277
      %3505 = vmatmul.mubr.f32.gmra.mrb[0].mxu0 %v3275
      %v3506 = vpop.f32.mrb[0].mxu0
      %v3507 = vadd.f32 0.0, %v3506
      %v3508 = vpop.f32.mrb[0].mxu0
      %v3509 = vadd.f32 0.0, %v3508
      %3510 = vmatprep.mubr.f32.mxu0 %v3281
      %3511 = vmatmul.mubr.f32.gmra.mrb[0].mxu0 %v3279
      %v3512 = vpop.f32.mrb[0].mxu0
      %v3513 = vadd.f32 0.0, %v3512
      %v3514 = vpop.f32.mrb[0].mxu0
      %v3515 = vadd.f32 0.0, %v3514
      %3516 = vmatprep.mubr.f32.mxu0 %v3285
      %3517 = vmatmul.mubr.f32.gmra.mrb[0].mxu0 %v3283
      %v3518 = vpop.f32.mrb[0].mxu0
      %v3519 = vadd.f32 0.0, %v3518
      %v3520 = vpop.f32.mrb[0].mxu0
      %v3521 = vadd.f32 0.0, %v3520
      %3522 = vmatprep.mubr.f32.mxu0 %v3289
      %3523 = vmatmul.mubr.f32.gmra.mrb[0].mxu0 %v3287
      %v3524 = vpop.f32.mrb[0].mxu0
      %v3525 = vadd.f32 0.0, %v3524
      %v3526 = vpop.f32.mrb[0].mxu0
      %v3527 = vadd.f32 0.0, %v3526
      %3528 = vmatprep.mubr.f32.mxu0 %v3293
      %3529 = vmatmul.mubr.f32.gmra.mrb[0].mxu0 %v3291
      %v3530 = vpop.f32.mrb[0].mxu0
      %v3531 = vadd.f32 0.0, %v3530
      %v3532 = vpop.f32.mrb[0].mxu0
      %v3533 = vadd.f32 0.0, %v3532
      %3534 = vmatprep.mubr.f32.mxu0 %v3297
      %3535 = vmatmul.mubr.f32.gmra.mrb[0].mxu0 %v3295
      %v3536 = vpop.f32.mrb[0].mxu0
      %v3537 = vadd.f32 0.0, %v3536
      %v3538 = vpop.f32.mrb[0].mxu0
      %v3539 = vadd.f32 0.0, %v3538
      %3540 = vmatprep.mubr.f32.mxu0 %v3301
      %3541 = vmatmul.mubr.f32.gmra.mrb[0].mxu0 %v3299
      %v3542 = vpop.f32.mrb[0].mxu0
      %v3543 = vadd.f32 0.0, %v3542
      %v3544 = vpop.f32.mrb[0].mxu0
      %v3545 = vadd.f32 0.0, %v3544
      %3546 = vmatprep.mubr.f32.mxu0 %v3305
      %3547 = vmatmul.mubr.f32.gmra.mrb[0].mxu0 %v3303
      %v3548 = vpop.f32.mrb[0].mxu0
      %v3549 = vadd.f32 0.0, %v3548
      %v3550 = vpop.f32.mrb[0].mxu0
      %v3551 = vadd.f32 0.0, %v3550
      %3552 = vmatprep.mubr.f32.mxu0 %v3309
      %3553 = vmatmul.mubr.f32.gmra.mrb[0].mxu0 %v3307
      %v3554 = vpop.f32.mrb[0].mxu0
      %v3555 = vadd.f32 0.0, %v3554
      %v3556 = vpop.f32.mrb[0].mxu0
      %v3557 = vadd.f32 0.0, %v3556
      %3558 = vmatprep.mubr.f32.mxu0 %v3313
      %3559 = vmatmul.mubr.f32.gmra.mrb[0].mxu0 %v3311
      %v3560 = vpop.f32.mrb[0].mxu0
      %v3561 = vadd.f32 0.0, %v3560
      %v3562 = vpop.f32.mrb[0].mxu0
      %v3563 = vadd.f32 0.0, %v3562
      %3564 = vmatprep.mubr.f32.mxu0 %v3317
      %3565 = vmatmul.mubr.f32.gmra.mrb[0].mxu0 %v3315
      %v3566 = vpop.f32.mrb[0].mxu0
      %v3567 = vadd.f32 0.0, %v3566
      %v3568 = vpop.f32.mrb[0].mxu0
      %v3569 = vadd.f32 0.0, %v3568
      %3570 = vmatprep.mubr.f32.mxu0 %v3321
      %3571 = vmatmul.mubr.f32.gmra.mrb[0].mxu0 %v3319
      %v3572 = vpop.f32.mrb[0].mxu0
      %v3573 = vadd.f32 0.0, %v3572
      %v3574 = vpop.f32.mrb[0].mxu0
      %v3575 = vadd.f32 0.0, %v3574
      %3576 = vmatprep.mubr.f32.mxu0 %v3325
      %3577 = vmatmul.mubr.f32.gmra.mrb[0].mxu0 %v3323
      %v3578 = vpop.f32.mrb[0].mxu0
      %v3579 = vadd.f32 0.0, %v3578
      %v3580 = vpop.f32.mrb[0].mxu0
      %v3581 = vadd.f32 0.0, %v3580
      %3582 = vmatprep.mubr.f32.mxu0 %v3329
      %3583 = vmatmul.mubr.f32.gmra.mrb[0].mxu0 %v3327
      %v3584 = vpop.f32.mrb[0].mxu0
      %v3585 = vadd.f32 0.0, %v3584
      %v3586 = vpop.f32.mrb[0].mxu0
      %v3587 = vadd.f32 0.0, %v3586
      %3588 = vmatprep.mubr.f32.mxu0 %v3328
      %3589 = vmatmul.mubr.f32.gmra.mrb[0].mxu0 %v3326
      %v3590 = vpop.f32.mrb[0].mxu0
      %v3591 = vadd.f32 0.0, %v3590
      %v3592 = vpop.f32.mrb[0].mxu0
      %v3593 = vadd.f32 0.0, %v3592
      %3594 = vdwg.mxu0
      %v3595 = vld [vmem:[#allocation2] sm:$0xff]
      %v3596 = vld [vmem:[#allocation2 + $0x8] sm:$0xff]
      %v3597 = vld [vmem:[#allocation2 + $0x10] sm:$0xff]
      %v3598 = vld [vmem:[#allocation2 + $0x18] sm:$0xff]
      %v3599 = vld [vmem:[#allocation2 + $0x20] sm:$0xff]
      %v3600 = vld [vmem:[#allocation2 + $0x28] sm:$0xff]
      %v3601 = vld [vmem:[#allocation2 + $0x30] sm:$0xff]
      %v3602 = vld [vmem:[#allocation2 + $0x38] sm:$0xff]
      %v3603 = vld [vmem:[#allocation2 + $0x40] sm:$0xff]
      %v3604 = vld [vmem:[#allocation2 + $0x48] sm:$0xff]
      %v3605 = vld [vmem:[#allocation2 + $0x50] sm:$0xff]
      %v3606 = vld [vmem:[#allocation2 + $0x58] sm:$0xff]
      %v3607 = vld [vmem:[#allocation2 + $0x60] sm:$0xff]
      %v3608 = vld [vmem:[#allocation2 + $0x68] sm:$0xff]
      %v3609 = vld [vmem:[#allocation2 + $0x70] sm:$0xff]
      %v3610 = vld [vmem:[#allocation2 + $0x78] sm:$0xff]
      %v3611 = vld [vmem:[#allocation2 + $0x80] sm:$0xff]
      %v3612 = vld [vmem:[#allocation2 + $0x88] sm:$0xff]
      %v3613 = vld [vmem:[#allocation2 + $0x90] sm:$0xff]
      %v3614 = vld [vmem:[#allocation2 + $0x98] sm:$0xff]
      %v3615 = vld [vmem:[#allocation2 + $0xa0] sm:$0xff]
      %v3616 = vld [vmem:[#allocation2 + $0xa8] sm:$0xff]
      %v3617 = vld [vmem:[#allocation2 + $0xb0] sm:$0xff]
      %v3618 = vld [vmem:[#allocation2 + $0xb8] sm:$0xff]
      %v3619 = vld [vmem:[#allocation2 + $0xc0] sm:$0xff]
      %v3620 = vld [vmem:[#allocation2 + $0xc8] sm:$0xff]
      %v3621 = vld [vmem:[#allocation2 + $0xd0] sm:$0xff]
      %v3622 = vld [vmem:[#allocation2 + $0xd8] sm:$0xff]
      %v3623 = vld [vmem:[#allocation2 + $0xe0] sm:$0xff]
      %v3624 = vld [vmem:[#allocation2 + $0xe8] sm:$0xff]
      %v3625 = vld [vmem:[#allocation2 + $0xf0] sm:$0xff]
      %v3626 = vld [vmem:[#allocation2 + $0xf8] sm:$0xff]
      %v3627 = vld [vmem:[#allocation2 + $0x100] sm:$0xff]
      %v3628 = vld [vmem:[#allocation2 + $0x108] sm:$0xff]
      %v3629 = vld [vmem:[#allocation2 + $0x110] sm:$0xff]
      %v3630 = vld [vmem:[#allocation2 + $0x118] sm:$0xff]
      %v3631 = vld [vmem:[#allocation2 + $0x120] sm:$0xff]
      %v3632 = vld [vmem:[#allocation2 + $0x128] sm:$0xff]
      %v3633 = vld [vmem:[#allocation2 + $0x130] sm:$0xff]
      %v3634 = vld [vmem:[#allocation2 + $0x138] sm:$0xff]
      %v3635 = vld [vmem:[#allocation2 + $0x140] sm:$0xff]
      %v3636 = vld [vmem:[#allocation2 + $0x148] sm:$0xff]
      %v3637 = vld [vmem:[#allocation2 + $0x150] sm:$0xff]
      %v3638 = vld [vmem:[#allocation2 + $0x158] sm:$0xff]
      %v3639 = vld [vmem:[#allocation2 + $0x160] sm:$0xff]
      %v3640 = vld [vmem:[#allocation2 + $0x168] sm:$0xff]
      %v3641 = vld [vmem:[#allocation2 + $0x170] sm:$0xff]
      %v3642 = vld [vmem:[#allocation2 + $0x178] sm:$0xff]
      %v3643 = vld [vmem:[#allocation2 + $0x180] sm:$0x7]
      %v3644 = vld [vmem:[#allocation2 + $0x188] sm:$0x7]
      %v3645 = vadd.f32 %v3595, %v3447
      %v3646 = vadd.f32 %v3596, %v3449
      %v3647 = vadd.f32 %v3597, %v3453
      %v3648 = vadd.f32 %v3598, %v3455
      %v3649 = vadd.f32 %v3599, %v3459
      %v3650 = vadd.f32 %v3600, %v3461
      %v3651 = vadd.f32 %v3601, %v3465
      %v3652 = vadd.f32 %v3602, %v3467
      %v3653 = vadd.f32 %v3603, %v3471
      %v3654 = vadd.f32 %v3604, %v3473
      %v3655 = vadd.f32 %v3605, %v3477
      %v3656 = vadd.f32 %v3606, %v3479
      %v3657 = vadd.f32 %v3607, %v3483
      %v3658 = vadd.f32 %v3608, %v3485
      %v3659 = vadd.f32 %v3609, %v3489
      %v3660 = vadd.f32 %v3610, %v3491
      %v3661 = vadd.f32 %v3611, %v3495
      %v3662 = vadd.f32 %v3612, %v3497
      %v3663 = vadd.f32 %v3613, %v3501
      %v3664 = vadd.f32 %v3614, %v3503
      %v3665 = vadd.f32 %v3615, %v3507
      %v3666 = vadd.f32 %v3616, %v3509
      %v3667 = vadd.f32 %v3617, %v3513
      %v3668 = vadd.f32 %v3618, %v3515
      %v3669 = vadd.f32 %v3619, %v3519
      %v3670 = vadd.f32 %v3620, %v3521
      %v3671 = vadd.f32 %v3621, %v3525
      %v3672 = vadd.f32 %v3622, %v3527
      %v3673 = vadd.f32 %v3623, %v3531
      %v3674 = vadd.f32 %v3624, %v3533
      %v3675 = vadd.f32 %v3625, %v3537
      %v3676 = vadd.f32 %v3626, %v3539
      %v3677 = vadd.f32 %v3627, %v3543
      %v3678 = vadd.f32 %v3628, %v3545
      %v3679 = vadd.f32 %v3629, %v3549
      %v3680 = vadd.f32 %v3630, %v3551
      %v3681 = vadd.f32 %v3631, %v3555
      %v3682 = vadd.f32 %v3632, %v3557
      %v3683 = vadd.f32 %v3633, %v3561
      %v3684 = vadd.f32 %v3634, %v3563
      %v3685 = vadd.f32 %v3635, %v3567
      %v3686 = vadd.f32 %v3636, %v3569
      %v3687 = vadd.f32 %v3637, %v3573
      %v3688 = vadd.f32 %v3638, %v3575
      %v3689 = vadd.f32 %v3639, %v3579
      %v3690 = vadd.f32 %v3640, %v3581
      %v3691 = vadd.f32 %v3641, %v3585
      %v3692 = vadd.f32 %v3642, %v3587
      %v3693 = vadd.f32 %v3643, %v3591
      %v3694 = vadd.f32 %v3644, %v3593
      %3695 = vst [vmem:[#allocation2] sm:$0xff] %v3645
      %3696 = vst [vmem:[#allocation2 + $0x8] sm:$0xff] %v3646
      %3697 = vst [vmem:[#allocation2 + $0x10] sm:$0xff] %v3647
      %3698 = vst [vmem:[#allocation2 + $0x18] sm:$0xff] %v3648
      %3699 = vst [vmem:[#allocation2 + $0x20] sm:$0xff] %v3649
      %3700 = vst [vmem:[#allocation2 + $0x28] sm:$0xff] %v3650
      %3701 = vst [vmem:[#allocation2 + $0x30] sm:$0xff] %v3651
      %3702 = vst [vmem:[#allocation2 + $0x38] sm:$0xff] %v3652
      %3703 = vst [vmem:[#allocation2 + $0x40] sm:$0xff] %v3653
      %3704 = vst [vmem:[#allocation2 + $0x48] sm:$0xff] %v3654
      %3705 = vst [vmem:[#allocation2 + $0x50] sm:$0xff] %v3655
      %3706 = vst [vmem:[#allocation2 + $0x58] sm:$0xff] %v3656
      %3707 = vst [vmem:[#allocation2 + $0x60] sm:$0xff] %v3657
      %3708 = vst [vmem:[#allocation2 + $0x68] sm:$0xff] %v3658
      %3709 = vst [vmem:[#allocation2 + $0x70] sm:$0xff] %v3659
      %3710 = vst [vmem:[#allocation2 + $0x78] sm:$0xff] %v3660
      %3711 = vst [vmem:[#allocation2 + $0x80] sm:$0xff] %v3661
      %3712 = vst [vmem:[#allocation2 + $0x88] sm:$0xff] %v3662
      %3713 = vst [vmem:[#allocation2 + $0x90] sm:$0xff] %v3663
      %3714 = vst [vmem:[#allocation2 + $0x98] sm:$0xff] %v3664
      %3715 = vst [vmem:[#allocation2 + $0xa0] sm:$0xff] %v3665
      %3716 = vst [vmem:[#allocation2 + $0xa8] sm:$0xff] %v3666
      %3717 = vst [vmem:[#allocation2 + $0xb0] sm:$0xff] %v3667
      %3718 = vst [vmem:[#allocation2 + $0xb8] sm:$0xff] %v3668
      %3719 = vst [vmem:[#allocation2 + $0xc0] sm:$0xff] %v3669
      %3720 = vst [vmem:[#allocation2 + $0xc8] sm:$0xff] %v3670
      %3721 = vst [vmem:[#allocation2 + $0xd0] sm:$0xff] %v3671
      %3722 = vst [vmem:[#allocation2 + $0xd8] sm:$0xff] %v3672
      %3723 = vst [vmem:[#allocation2 + $0xe0] sm:$0xff] %v3673
      %3724 = vst [vmem:[#allocation2 + $0xe8] sm:$0xff] %v3674
      %3725 = vst [vmem:[#allocation2 + $0xf0] sm:$0xff] %v3675
      %3726 = vst [vmem:[#allocation2 + $0xf8] sm:$0xff] %v3676
      %3727 = vst [vmem:[#allocation2 + $0x100] sm:$0xff] %v3677
      %3728 = vst [vmem:[#allocation2 + $0x108] sm:$0xff] %v3678
      %3729 = vst [vmem:[#allocation2 + $0x110] sm:$0xff] %v3679
      %3730 = vst [vmem:[#allocation2 + $0x118] sm:$0xff] %v3680
      %3731 = vst [vmem:[#allocation2 + $0x120] sm:$0xff] %v3681
      %3732 = vst [vmem:[#allocation2 + $0x128] sm:$0xff] %v3682
      %3733 = vst [vmem:[#allocation2 + $0x130] sm:$0xff] %v3683
      %3734 = vst [vmem:[#allocation2 + $0x138] sm:$0xff] %v3684
      %3735 = vst [vmem:[#allocation2 + $0x140] sm:$0xff] %v3685
      %3736 = vst [vmem:[#allocation2 + $0x148] sm:$0xff] %v3686
      %3737 = vst [vmem:[#allocation2 + $0x150] sm:$0xff] %v3687
      %3738 = vst [vmem:[#allocation2 + $0x158] sm:$0xff] %v3688
      %3739 = vst [vmem:[#allocation2 + $0x160] sm:$0xff] %v3689
      %3740 = vst [vmem:[#allocation2 + $0x168] sm:$0xff] %v3690
      %3741 = vst [vmem:[#allocation2 + $0x170] sm:$0xff] %v3691
      %3742 = vst [vmem:[#allocation2 + $0x178] sm:$0xff] %v3692
      %3743 = vst [vmem:[#allocation2 + $0x180] sm:$0x7] %v3693
      %3744 = vst [vmem:[#allocation2 + $0x188] sm:$0x7] %v3694
      %s3745 = scalar_lea.vmem %s165, 800
      %v3746 = vld [vmem:[%s3745] sm:$0xff]
      %v3747 = vld [vmem:[%s3745 + $0x8] sm:$0xff]
      %v3748 = vld [vmem:[%s3745 + $0x10] sm:$0xff]
      %v3749 = vld [vmem:[%s3745 + $0x18] sm:$0xff]
      %v3750 = vld [vmem:[%s3745 + $0x20] sm:$0xff]
      %v3751 = vld [vmem:[%s3745 + $0x28] sm:$0xff]
      %v3752 = vld [vmem:[%s3745 + $0x30] sm:$0xff]
      %v3753 = vld [vmem:[%s3745 + $0x38] sm:$0xff]
      %v3754 = vld [vmem:[%s3745 + $0x40] sm:$0xff]
      %v3755 = vld [vmem:[%s3745 + $0x48] sm:$0xff]
      %v3756 = vld [vmem:[%s3745 + $0x50] sm:$0xff]
      %v3757 = vld [vmem:[%s3745 + $0x58] sm:$0xff]
      %v3758 = vld [vmem:[%s3745 + $0x60] sm:$0xff]
      %v3759 = vld [vmem:[%s3745 + $0x68] sm:$0xff]
      %v3760 = vld [vmem:[%s3745 + $0x70] sm:$0xff]
      %v3761 = vld [vmem:[%s3745 + $0x78] sm:$0xff]
      %v3762 = vld [vmem:[%s3745 + $0x80] sm:$0xff]
      %v3763 = vld [vmem:[%s3745 + $0x88] sm:$0xff]
      %v3764 = vld [vmem:[%s3745 + $0x90] sm:$0xff]
      %v3765 = vld [vmem:[%s3745 + $0x98] sm:$0xff]
      %v3766 = vld [vmem:[%s3745 + $0xa0] sm:$0xff]
      %v3767 = vld [vmem:[%s3745 + $0xa8] sm:$0xff]
      %v3768 = vld [vmem:[%s3745 + $0xb0] sm:$0xff]
      %v3769 = vld [vmem:[%s3745 + $0xb8] sm:$0xff]
      %v3770 = vld [vmem:[%s3745 + $0xc0] sm:$0xff]
      %v3771 = vld [vmem:[%s3745 + $0xc8] sm:$0xff]
      %v3772 = vld [vmem:[%s3745 + $0xd0] sm:$0xff]
      %v3773 = vld [vmem:[%s3745 + $0xd8] sm:$0xff]
      %v3774 = vld [vmem:[%s3745 + $0xe0] sm:$0xff]
      %v3775 = vld [vmem:[%s3745 + $0xe8] sm:$0xff]
      %v3776 = vld [vmem:[%s3745 + $0xf0] sm:$0xff]
      %v3777 = vld [vmem:[%s3745 + $0xf8] sm:$0xff]
      %v3778 = vld [vmem:[%s3745 + $0x100] sm:$0xff]
      %v3779 = vld [vmem:[%s3745 + $0x108] sm:$0xff]
      %v3780 = vld [vmem:[%s3745 + $0x110] sm:$0xff]
      %v3781 = vld [vmem:[%s3745 + $0x118] sm:$0xff]
      %v3782 = vld [vmem:[%s3745 + $0x120] sm:$0xff]
      %v3783 = vld [vmem:[%s3745 + $0x128] sm:$0xff]
      %v3784 = vld [vmem:[%s3745 + $0x130] sm:$0xff]
      %v3785 = vld [vmem:[%s3745 + $0x138] sm:$0xff]
      %v3786 = vld [vmem:[%s3745 + $0x140] sm:$0xff]
      %v3787 = vld [vmem:[%s3745 + $0x148] sm:$0xff]
      %v3788 = vld [vmem:[%s3745 + $0x150] sm:$0xff]
      %v3789 = vld [vmem:[%s3745 + $0x158] sm:$0xff]
      %v3790 = vld [vmem:[%s3745 + $0x160] sm:$0xff]
      %v3791 = vld [vmem:[%s3745 + $0x168] sm:$0xff]
      %v3792 = vld [vmem:[%s3745 + $0x170] sm:$0xff]
      %v3793 = vld [vmem:[%s3745 + $0x178] sm:$0xff]
      %v3794 = vld [vmem:[%s3745 + $0x180] sm:$0x7]
      %v3795 = vld [vmem:[%s3745 + $0x188] sm:$0x7]
      %s3796 = scalar_lea.vmem %s1, 3072
      %v3797 = vld [vmem:[%s3796] sm:$0xff]
      %v3798 = vld [vmem:[%s3796 + $0x8] sm:$0xff]
      %v3799 = vld [vmem:[%s3796 + $0x10] sm:$0xff]
      %v3800 = vld [vmem:[%s3796 + $0x18] sm:$0xff]
      %v3801 = vld [vmem:[%s3796 + $0x20] sm:$0xff]
      %v3802 = vld [vmem:[%s3796 + $0x28] sm:$0xff]
      %v3803 = vld [vmem:[%s3796 + $0x30] sm:$0xff]
      %v3804 = vld [vmem:[%s3796 + $0x38] sm:$0xff]
      %v3805 = vld [vmem:[%s3796 + $0x40] sm:$0xff]
      %v3806 = vld [vmem:[%s3796 + $0x48] sm:$0xff]
      %v3807 = vld [vmem:[%s3796 + $0x50] sm:$0xff]
      %v3808 = vld [vmem:[%s3796 + $0x58] sm:$0xff]
      %v3809 = vld [vmem:[%s3796 + $0x60] sm:$0xff]
      %v3810 = vld [vmem:[%s3796 + $0x68] sm:$0xff]
      %v3811 = vld [vmem:[%s3796 + $0x70] sm:$0xff]
      %v3812 = vld [vmem:[%s3796 + $0x78] sm:$0xff]
      %v3813 = vld [vmem:[%s3796 + $0x80] sm:$0xff]
      %v3814 = vld [vmem:[%s3796 + $0x88] sm:$0xff]
      %v3815 = vld [vmem:[%s3796 + $0x90] sm:$0xff]
      %v3816 = vld [vmem:[%s3796 + $0x98] sm:$0xff]
      %v3817 = vld [vmem:[%s3796 + $0xa0] sm:$0xff]
      %v3818 = vld [vmem:[%s3796 + $0xa8] sm:$0xff]
      %v3819 = vld [vmem:[%s3796 + $0xb0] sm:$0xff]
      %v3820 = vld [vmem:[%s3796 + $0xb8] sm:$0xff]
      %v3821 = vld [vmem:[%s3796 + $0xc0] sm:$0xff]
      %v3822 = vld [vmem:[%s3796 + $0xc8] sm:$0xff]
      %v3823 = vld [vmem:[%s3796 + $0xd0] sm:$0xff]
      %v3824 = vld [vmem:[%s3796 + $0xd8] sm:$0xff]
      %v3825 = vld [vmem:[%s3796 + $0xe0] sm:$0xff]
      %v3826 = vld [vmem:[%s3796 + $0xe8] sm:$0xff]
      %v3827 = vld [vmem:[%s3796 + $0xf0] sm:$0xff]
      %v3828 = vld [vmem:[%s3796 + $0xf8] sm:$0xff]
      %v3829 = vld [vmem:[%s3796 + $0x100] sm:$0xff]
      %v3830 = vld [vmem:[%s3796 + $0x108] sm:$0xff]
      %v3831 = vld [vmem:[%s3796 + $0x110] sm:$0xff]
      %v3832 = vld [vmem:[%s3796 + $0x118] sm:$0xff]
      %v3833 = vld [vmem:[%s3796 + $0x120] sm:$0xff]
      %v3834 = vld [vmem:[%s3796 + $0x128] sm:$0xff]
      %v3835 = vld [vmem:[%s3796 + $0x130] sm:$0xff]
      %v3836 = vld [vmem:[%s3796 + $0x138] sm:$0xff]
      %v3837 = vld [vmem:[%s3796 + $0x140] sm:$0xff]
      %v3838 = vld [vmem:[%s3796 + $0x148] sm:$0xff]
      %v3839 = vld [vmem:[%s3796 + $0x150] sm:$0xff]
      %v3840 = vld [vmem:[%s3796 + $0x158] sm:$0xff]
      %v3841 = vld [vmem:[%s3796 + $0x160] sm:$0xff]
      %v3842 = vld [vmem:[%s3796 + $0x168] sm:$0xff]
      %v3843 = vld [vmem:[%s3796 + $0x170] sm:$0xff]
      %v3844 = vld [vmem:[%s3796 + $0x178] sm:$0xff]
      %v3845 = vld [vmem:[%s3796 + $0x180] sm:$0xff]
      %v3846 = vld [vmem:[%s3796 + $0x188] sm:$0xff]
      %v3847 = vld [vmem:[%s3796 + $0x190] sm:$0xff]
      %v3848 = vld [vmem:[%s3796 + $0x198] sm:$0xff]
      %v3849 = vld [vmem:[%s3796 + $0x1a0] sm:$0xff]
      %v3850 = vld [vmem:[%s3796 + $0x1a8] sm:$0xff]
      %v3851 = vld [vmem:[%s3796 + $0x1b0] sm:$0xff]
      %v3852 = vld [vmem:[%s3796 + $0x1b8] sm:$0xff]
      %v3853 = vld [vmem:[%s3796 + $0x1c0] sm:$0xff]
      %v3854 = vld [vmem:[%s3796 + $0x1c8] sm:$0xff]
      %v3855 = vld [vmem:[%s3796 + $0x1d0] sm:$0xff]
      %v3856 = vld [vmem:[%s3796 + $0x1d8] sm:$0xff]
      %v3857 = vld [vmem:[%s3796 + $0x1e0] sm:$0xff]
      %v3858 = vld [vmem:[%s3796 + $0x1e8] sm:$0xff]
      %v3859 = vld [vmem:[%s3796 + $0x1f0] sm:$0xff]
      %v3860 = vld [vmem:[%s3796 + $0x1f8] sm:$0xff]
      %3861 = vmatprep.subr.mxu0 %v3798
      %3862 = vmatpush1.msra.mxu0 %v3797
      %3863 = vmatprep.subr.mxu0 %v3800
      %3864 = vmatpush1.msra.mxu0 %v3799
      %3865 = vmatprep.subr.mxu0 %v3802
      %3866 = vmatpush1.msra.mxu0 %v3801
      %3867 = vmatprep.subr.mxu0 %v3804
      %3868 = vmatpush1.msra.mxu0 %v3803
      %3869 = vmatprep.subr.mxu0 %v3806
      %3870 = vmatpush1.msra.mxu0 %v3805
      %3871 = vmatprep.subr.mxu0 %v3808
      %3872 = vmatpush1.msra.mxu0 %v3807
      %3873 = vmatprep.subr.mxu0 %v3810
      %3874 = vmatpush1.msra.mxu0 %v3809
      %3875 = vmatprep.subr.mxu0 %v3812
      %3876 = vmatpush1.msra.mxu0 %v3811
      %3877 = vmatprep.subr.mxu0 %v3814
      %3878 = vmatpush1.msra.mxu0 %v3813
      %3879 = vmatprep.subr.mxu0 %v3816
      %3880 = vmatpush1.msra.mxu0 %v3815
      %3881 = vmatprep.subr.mxu0 %v3818
      %3882 = vmatpush1.msra.mxu0 %v3817
      %3883 = vmatprep.subr.mxu0 %v3820
      %3884 = vmatpush1.msra.mxu0 %v3819
      %3885 = vmatprep.subr.mxu0 %v3822
      %3886 = vmatpush1.msra.mxu0 %v3821
      %3887 = vmatprep.subr.mxu0 %v3824
      %3888 = vmatpush1.msra.mxu0 %v3823
      %3889 = vmatprep.subr.mxu0 %v3826
      %3890 = vmatpush1.msra.mxu0 %v3825
      %3891 = vmatprep.subr.mxu0 %v3828
      %3892 = vmatpush1.msra.mxu0 %v3827
      %3893 = vmatprep.subr.mxu0 %v3830
      %3894 = vmatpush1.msra.mxu0 %v3829
      %3895 = vmatprep.subr.mxu0 %v3832
      %3896 = vmatpush1.msra.mxu0 %v3831
      %3897 = vmatprep.subr.mxu0 %v3834
      %3898 = vmatpush1.msra.mxu0 %v3833
      %3899 = vmatprep.subr.mxu0 %v3836
      %3900 = vmatpush1.msra.mxu0 %v3835
      %3901 = vmatprep.subr.mxu0 %v3838
      %3902 = vmatpush1.msra.mxu0 %v3837
      %3903 = vmatprep.subr.mxu0 %v3840
      %3904 = vmatpush1.msra.mxu0 %v3839
      %3905 = vmatprep.subr.mxu0 %v3842
      %3906 = vmatpush1.msra.mxu0 %v3841
      %3907 = vmatprep.subr.mxu0 %v3844
      %3908 = vmatpush1.msra.mxu0 %v3843
      %3909 = vmatprep.subr.mxu0 %v3846
      %3910 = vmatpush1.msra.mxu0 %v3845
      %3911 = vmatprep.subr.mxu0 %v3848
      %3912 = vmatpush1.msra.mxu0 %v3847
      %3913 = vmatprep.subr.mxu0 %v3850
      %3914 = vmatpush1.msra.mxu0 %v3849
      %3915 = vmatprep.subr.mxu0 %v3852
      %3916 = vmatpush1.msra.mxu0 %v3851
      %3917 = vmatprep.subr.mxu0 %v3854
      %3918 = vmatpush1.msra.mxu0 %v3853
      %3919 = vmatprep.subr.mxu0 %v3856
      %3920 = vmatpush1.msra.mxu0 %v3855
      %3921 = vmatprep.subr.mxu0 %v3858
      %3922 = vmatpush1.msra.mxu0 %v3857
      %3923 = vmatprep.subr.mxu0 %v3860
      %3924 = vmatpush1.msra.mxu0 %v3859
      %3925 = vmatprep.mubr.f32.mxu0 %v3747
      %3926 = vmatmul.mubr.f32.gmra.mrb[0].mxu0 %v3746
      %v3927 = vpop.f32.mrb[0].mxu0
      %v3928 = vadd.f32 0.0, %v3927
      %v3929 = vpop.f32.mrb[0].mxu0
      %v3930 = vadd.f32 0.0, %v3929
      %3931 = vmatprep.mubr.f32.mxu0 %v3749
      %3932 = vmatmul.mubr.f32.gmra.mrb[0].mxu0 %v3748
      %v3933 = vpop.f32.mrb[0].mxu0
      %v3934 = vadd.f32 0.0, %v3933
      %v3935 = vpop.f32.mrb[0].mxu0
      %v3936 = vadd.f32 0.0, %v3935
      %3937 = vmatprep.mubr.f32.mxu0 %v3751
      %3938 = vmatmul.mubr.f32.gmra.mrb[0].mxu0 %v3750
      %v3939 = vpop.f32.mrb[0].mxu0
      %v3940 = vadd.f32 0.0, %v3939
      %v3941 = vpop.f32.mrb[0].mxu0
      %v3942 = vadd.f32 0.0, %v3941
      %3943 = vmatprep.mubr.f32.mxu0 %v3753
      %3944 = vmatmul.mubr.f32.gmra.mrb[0].mxu0 %v3752
      %v3945 = vpop.f32.mrb[0].mxu0
      %v3946 = vadd.f32 0.0, %v3945
      %v3947 = vpop.f32.mrb[0].mxu0
      %v3948 = vadd.f32 0.0, %v3947
      %3949 = vmatprep.mubr.f32.mxu0 %v3755
      %3950 = vmatmul.mubr.f32.gmra.mrb[0].mxu0 %v3754
      %v3951 = vpop.f32.mrb[0].mxu0
      %v3952 = vadd.f32 0.0, %v3951
      %v3953 = vpop.f32.mrb[0].mxu0
      %v3954 = vadd.f32 0.0, %v3953
      %3955 = vmatprep.mubr.f32.mxu0 %v3757
      %3956 = vmatmul.mubr.f32.gmra.mrb[0].mxu0 %v3756
      %v3957 = vpop.f32.mrb[0].mxu0
      %v3958 = vadd.f32 0.0, %v3957
      %v3959 = vpop.f32.mrb[0].mxu0
      %v3960 = vadd.f32 0.0, %v3959
      %3961 = vmatprep.mubr.f32.mxu0 %v3759
      %3962 = vmatmul.mubr.f32.gmra.mrb[0].mxu0 %v3758
      %v3963 = vpop.f32.mrb[0].mxu0
      %v3964 = vadd.f32 0.0, %v3963
      %v3965 = vpop.f32.mrb[0].mxu0
      %v3966 = vadd.f32 0.0, %v3965
      %3967 = vmatprep.mubr.f32.mxu0 %v3761
      %3968 = vmatmul.mubr.f32.gmra.mrb[0].mxu0 %v3760
      %v3969 = vpop.f32.mrb[0].mxu0
      %v3970 = vadd.f32 0.0, %v3969
      %v3971 = vpop.f32.mrb[0].mxu0
      %v3972 = vadd.f32 0.0, %v3971
      %3973 = vmatprep.mubr.f32.mxu0 %v3763
      %3974 = vmatmul.mubr.f32.gmra.mrb[0].mxu0 %v3762
      %v3975 = vpop.f32.mrb[0].mxu0
      %v3976 = vadd.f32 0.0, %v3975
      %v3977 = vpop.f32.mrb[0].mxu0
      %v3978 = vadd.f32 0.0, %v3977
      %3979 = vmatprep.mubr.f32.mxu0 %v3765
      %3980 = vmatmul.mubr.f32.gmra.mrb[0].mxu0 %v3764
      %v3981 = vpop.f32.mrb[0].mxu0
      %v3982 = vadd.f32 0.0, %v3981
      %v3983 = vpop.f32.mrb[0].mxu0
      %v3984 = vadd.f32 0.0, %v3983
      %3985 = vmatprep.mubr.f32.mxu0 %v3767
      %3986 = vmatmul.mubr.f32.gmra.mrb[0].mxu0 %v3766
      %v3987 = vpop.f32.mrb[0].mxu0
      %v3988 = vadd.f32 0.0, %v3987
      %v3989 = vpop.f32.mrb[0].mxu0
      %v3990 = vadd.f32 0.0, %v3989
      %3991 = vmatprep.mubr.f32.mxu0 %v3769
      %3992 = vmatmul.mubr.f32.gmra.mrb[0].mxu0 %v3768
      %v3993 = vpop.f32.mrb[0].mxu0
      %v3994 = vadd.f32 0.0, %v3993
      %v3995 = vpop.f32.mrb[0].mxu0
      %v3996 = vadd.f32 0.0, %v3995
      %3997 = vmatprep.mubr.f32.mxu0 %v3771
      %3998 = vmatmul.mubr.f32.gmra.mrb[0].mxu0 %v3770
      %v3999 = vpop.f32.mrb[0].mxu0
      %v4000 = vadd.f32 0.0, %v3999
      %v4001 = vpop.f32.mrb[0].mxu0
      %v4002 = vadd.f32 0.0, %v4001
      %4003 = vmatprep.mubr.f32.mxu0 %v3773
      %4004 = vmatmul.mubr.f32.gmra.mrb[0].mxu0 %v3772
      %v4005 = vpop.f32.mrb[0].mxu0
      %v4006 = vadd.f32 0.0, %v4005
      %v4007 = vpop.f32.mrb[0].mxu0
      %v4008 = vadd.f32 0.0, %v4007
      %4009 = vmatprep.mubr.f32.mxu0 %v3775
      %4010 = vmatmul.mubr.f32.gmra.mrb[0].mxu0 %v3774
      %v4011 = vpop.f32.mrb[0].mxu0
      %v4012 = vadd.f32 0.0, %v4011
      %v4013 = vpop.f32.mrb[0].mxu0
      %v4014 = vadd.f32 0.0, %v4013
      %4015 = vmatprep.mubr.f32.mxu0 %v3777
      %4016 = vmatmul.mubr.f32.gmra.mrb[0].mxu0 %v3776
      %v4017 = vpop.f32.mrb[0].mxu0
      %v4018 = vadd.f32 0.0, %v4017
      %v4019 = vpop.f32.mrb[0].mxu0
      %v4020 = vadd.f32 0.0, %v4019
      %4021 = vmatprep.mubr.f32.mxu0 %v3779
      %4022 = vmatmul.mubr.f32.gmra.mrb[0].mxu0 %v3778
      %v4023 = vpop.f32.mrb[0].mxu0
      %v4024 = vadd.f32 0.0, %v4023
      %v4025 = vpop.f32.mrb[0].mxu0
      %v4026 = vadd.f32 0.0, %v4025
      %4027 = vmatprep.mubr.f32.mxu0 %v3781
      %4028 = vmatmul.mubr.f32.gmra.mrb[0].mxu0 %v3780
      %v4029 = vpop.f32.mrb[0].mxu0
      %v4030 = vadd.f32 0.0, %v4029
      %v4031 = vpop.f32.mrb[0].mxu0
      %v4032 = vadd.f32 0.0, %v4031
      %4033 = vmatprep.mubr.f32.mxu0 %v3783
      %4034 = vmatmul.mubr.f32.gmra.mrb[0].mxu0 %v3782
      %v4035 = vpop.f32.mrb[0].mxu0
      %v4036 = vadd.f32 0.0, %v4035
      %v4037 = vpop.f32.mrb[0].mxu0
      %v4038 = vadd.f32 0.0, %v4037
      %4039 = vmatprep.mubr.f32.mxu0 %v3785
      %4040 = vmatmul.mubr.f32.gmra.mrb[0].mxu0 %v3784
      %v4041 = vpop.f32.mrb[0].mxu0
      %v4042 = vadd.f32 0.0, %v4041
      %v4043 = vpop.f32.mrb[0].mxu0
      %v4044 = vadd.f32 0.0, %v4043
      %4045 = vmatprep.mubr.f32.mxu0 %v3787
      %4046 = vmatmul.mubr.f32.gmra.mrb[0].mxu0 %v3786
      %v4047 = vpop.f32.mrb[0].mxu0
      %v4048 = vadd.f32 0.0, %v4047
      %v4049 = vpop.f32.mrb[0].mxu0
      %v4050 = vadd.f32 0.0, %v4049
      %4051 = vmatprep.mubr.f32.mxu0 %v3789
      %4052 = vmatmul.mubr.f32.gmra.mrb[0].mxu0 %v3788
      %v4053 = vpop.f32.mrb[0].mxu0
      %v4054 = vadd.f32 0.0, %v4053
      %v4055 = vpop.f32.mrb[0].mxu0
      %v4056 = vadd.f32 0.0, %v4055
      %4057 = vmatprep.mubr.f32.mxu0 %v3791
      %4058 = vmatmul.mubr.f32.gmra.mrb[0].mxu0 %v3790
      %v4059 = vpop.f32.mrb[0].mxu0
      %v4060 = vadd.f32 0.0, %v4059
      %v4061 = vpop.f32.mrb[0].mxu0
      %v4062 = vadd.f32 0.0, %v4061
      %4063 = vmatprep.mubr.f32.mxu0 %v3793
      %4064 = vmatmul.mubr.f32.gmra.mrb[0].mxu0 %v3792
      %v4065 = vpop.f32.mrb[0].mxu0
      %v4066 = vadd.f32 0.0, %v4065
      %v4067 = vpop.f32.mrb[0].mxu0
      %v4068 = vadd.f32 0.0, %v4067
      %4069 = vmatprep.mubr.f32.mxu0 %v3795
      %4070 = vmatmul.mubr.f32.gmra.mrb[0].mxu0 %v3794
      %v4071 = vpop.f32.mrb[0].mxu0
      %v4072 = vadd.f32 0.0, %v4071
      %v4073 = vpop.f32.mrb[0].mxu0
      %v4074 = vadd.f32 0.0, %v4073
      %4075 = vdwg.mxu0
      %v4076 = vld [vmem:[#allocation2] sm:$0xff]
      %v4077 = vld [vmem:[#allocation2 + $0x8] sm:$0xff]
      %v4078 = vld [vmem:[#allocation2 + $0x10] sm:$0xff]
      %v4079 = vld [vmem:[#allocation2 + $0x18] sm:$0xff]
      %v4080 = vld [vmem:[#allocation2 + $0x20] sm:$0xff]
      %v4081 = vld [vmem:[#allocation2 + $0x28] sm:$0xff]
      %v4082 = vld [vmem:[#allocation2 + $0x30] sm:$0xff]
      %v4083 = vld [vmem:[#allocation2 + $0x38] sm:$0xff]
      %v4084 = vld [vmem:[#allocation2 + $0x40] sm:$0xff]
      %v4085 = vld [vmem:[#allocation2 + $0x48] sm:$0xff]
      %v4086 = vld [vmem:[#allocation2 + $0x50] sm:$0xff]
      %v4087 = vld [vmem:[#allocation2 + $0x58] sm:$0xff]
      %v4088 = vld [vmem:[#allocation2 + $0x60] sm:$0xff]
      %v4089 = vld [vmem:[#allocation2 + $0x68] sm:$0xff]
      %v4090 = vld [vmem:[#allocation2 + $0x70] sm:$0xff]
      %v4091 = vld [vmem:[#allocation2 + $0x78] sm:$0xff]
      %v4092 = vld [vmem:[#allocation2 + $0x80] sm:$0xff]
      %v4093 = vld [vmem:[#allocation2 + $0x88] sm:$0xff]
      %v4094 = vld [vmem:[#allocation2 + $0x90] sm:$0xff]
      %v4095 = vld [vmem:[#allocation2 + $0x98] sm:$0xff]
      %v4096 = vld [vmem:[#allocation2 + $0xa0] sm:$0xff]
      %v4097 = vld [vmem:[#allocation2 + $0xa8] sm:$0xff]
      %v4098 = vld [vmem:[#allocation2 + $0xb0] sm:$0xff]
      %v4099 = vld [vmem:[#allocation2 + $0xb8] sm:$0xff]
      %v4100 = vld [vmem:[#allocation2 + $0xc0] sm:$0xff]
      %v4101 = vld [vmem:[#allocation2 + $0xc8] sm:$0xff]
      %v4102 = vld [vmem:[#allocation2 + $0xd0] sm:$0xff]
      %v4103 = vld [vmem:[#allocation2 + $0xd8] sm:$0xff]
      %v4104 = vld [vmem:[#allocation2 + $0xe0] sm:$0xff]
      %v4105 = vld [vmem:[#allocation2 + $0xe8] sm:$0xff]
      %v4106 = vld [vmem:[#allocation2 + $0xf0] sm:$0xff]
      %v4107 = vld [vmem:[#allocation2 + $0xf8] sm:$0xff]
      %v4108 = vld [vmem:[#allocation2 + $0x100] sm:$0xff]
      %v4109 = vld [vmem:[#allocation2 + $0x108] sm:$0xff]
      %v4110 = vld [vmem:[#allocation2 + $0x110] sm:$0xff]
      %v4111 = vld [vmem:[#allocation2 + $0x118] sm:$0xff]
      %v4112 = vld [vmem:[#allocation2 + $0x120] sm:$0xff]
      %v4113 = vld [vmem:[#allocation2 + $0x128] sm:$0xff]
      %v4114 = vld [vmem:[#allocation2 + $0x130] sm:$0xff]
      %v4115 = vld [vmem:[#allocation2 + $0x138] sm:$0xff]
      %v4116 = vld [vmem:[#allocation2 + $0x140] sm:$0xff]
      %v4117 = vld [vmem:[#allocation2 + $0x148] sm:$0xff]
      %v4118 = vld [vmem:[#allocation2 + $0x150] sm:$0xff]
      %v4119 = vld [vmem:[#allocation2 + $0x158] sm:$0xff]
      %v4120 = vld [vmem:[#allocation2 + $0x160] sm:$0xff]
      %v4121 = vld [vmem:[#allocation2 + $0x168] sm:$0xff]
      %v4122 = vld [vmem:[#allocation2 + $0x170] sm:$0xff]
      %v4123 = vld [vmem:[#allocation2 + $0x178] sm:$0xff]
      %v4124 = vld [vmem:[#allocation2 + $0x180] sm:$0x7]
      %v4125 = vld [vmem:[#allocation2 + $0x188] sm:$0x7]
      %v4126 = vadd.f32 %v4076, %v3928
      %v4127 = vadd.f32 %v4077, %v3930
      %v4128 = vadd.f32 %v4078, %v3934
      %v4129 = vadd.f32 %v4079, %v3936
      %v4130 = vadd.f32 %v4080, %v3940
      %v4131 = vadd.f32 %v4081, %v3942
      %v4132 = vadd.f32 %v4082, %v3946
      %v4133 = vadd.f32 %v4083, %v3948
      %v4134 = vadd.f32 %v4084, %v3952
      %v4135 = vadd.f32 %v4085, %v3954
      %v4136 = vadd.f32 %v4086, %v3958
      %v4137 = vadd.f32 %v4087, %v3960
      %v4138 = vadd.f32 %v4088, %v3964
      %v4139 = vadd.f32 %v4089, %v3966
      %v4140 = vadd.f32 %v4090, %v3970
      %v4141 = vadd.f32 %v4091, %v3972
      %v4142 = vadd.f32 %v4092, %v3976
      %v4143 = vadd.f32 %v4093, %v3978
      %v4144 = vadd.f32 %v4094, %v3982
      %v4145 = vadd.f32 %v4095, %v3984
      %v4146 = vadd.f32 %v4096, %v3988
      %v4147 = vadd.f32 %v4097, %v3990
      %v4148 = vadd.f32 %v4098, %v3994
      %v4149 = vadd.f32 %v4099, %v3996
      %v4150 = vadd.f32 %v4100, %v4000
      %v4151 = vadd.f32 %v4101, %v4002
      %v4152 = vadd.f32 %v4102, %v4006
      %v4153 = vadd.f32 %v4103, %v4008
      %v4154 = vadd.f32 %v4104, %v4012
      %v4155 = vadd.f32 %v4105, %v4014
      %v4156 = vadd.f32 %v4106, %v4018
      %v4157 = vadd.f32 %v4107, %v4020
      %v4158 = vadd.f32 %v4108, %v4024
      %v4159 = vadd.f32 %v4109, %v4026
      %v4160 = vadd.f32 %v4110, %v4030
      %v4161 = vadd.f32 %v4111, %v4032
      %v4162 = vadd.f32 %v4112, %v4036
      %v4163 = vadd.f32 %v4113, %v4038
      %v4164 = vadd.f32 %v4114, %v4042
      %v4165 = vadd.f32 %v4115, %v4044
      %v4166 = vadd.f32 %v4116, %v4048
      %v4167 = vadd.f32 %v4117, %v4050
      %v4168 = vadd.f32 %v4118, %v4054
      %v4169 = vadd.f32 %v4119, %v4056
      %v4170 = vadd.f32 %v4120, %v4060
      %v4171 = vadd.f32 %v4121, %v4062
      %v4172 = vadd.f32 %v4122, %v4066
      %v4173 = vadd.f32 %v4123, %v4068
      %v4174 = vadd.f32 %v4124, %v4072
      %v4175 = vadd.f32 %v4125, %v4074
      %4176 = vst [vmem:[#allocation2] sm:$0xff] %v4126
      %4177 = vst [vmem:[#allocation2 + $0x8] sm:$0xff] %v4127
      %4178 = vst [vmem:[#allocation2 + $0x10] sm:$0xff] %v4128
      %4179 = vst [vmem:[#allocation2 + $0x18] sm:$0xff] %v4129
      %4180 = vst [vmem:[#allocation2 + $0x20] sm:$0xff] %v4130
      %4181 = vst [vmem:[#allocation2 + $0x28] sm:$0xff] %v4131
      %4182 = vst [vmem:[#allocation2 + $0x30] sm:$0xff] %v4132
      %4183 = vst [vmem:[#allocation2 + $0x38] sm:$0xff] %v4133
      %4184 = vst [vmem:[#allocation2 + $0x40] sm:$0xff] %v4134
      %4185 = vst [vmem:[#allocation2 + $0x48] sm:$0xff] %v4135
      %4186 = vst [vmem:[#allocation2 + $0x50] sm:$0xff] %v4136
      %4187 = vst [vmem:[#allocation2 + $0x58] sm:$0xff] %v4137
      %4188 = vst [vmem:[#allocation2 + $0x60] sm:$0xff] %v4138
      %4189 = vst [vmem:[#allocation2 + $0x68] sm:$0xff] %v4139
      %4190 = vst [vmem:[#allocation2 + $0x70] sm:$0xff] %v4140
      %4191 = vst [vmem:[#allocation2 + $0x78] sm:$0xff] %v4141
      %4192 = vst [vmem:[#allocation2 + $0x80] sm:$0xff] %v4142
      %4193 = vst [vmem:[#allocation2 + $0x88] sm:$0xff] %v4143
      %4194 = vst [vmem:[#allocation2 + $0x90] sm:$0xff] %v4144
      %4195 = vst [vmem:[#allocation2 + $0x98] sm:$0xff] %v4145
      %4196 = vst [vmem:[#allocation2 + $0xa0] sm:$0xff] %v4146
      %4197 = vst [vmem:[#allocation2 + $0xa8] sm:$0xff] %v4147
      %4198 = vst [vmem:[#allocation2 + $0xb0] sm:$0xff] %v4148
      %4199 = vst [vmem:[#allocation2 + $0xb8] sm:$0xff] %v4149
      %4200 = vst [vmem:[#allocation2 + $0xc0] sm:$0xff] %v4150
      %4201 = vst [vmem:[#allocation2 + $0xc8] sm:$0xff] %v4151
      %4202 = vst [vmem:[#allocation2 + $0xd0] sm:$0xff] %v4152
      %4203 = vst [vmem:[#allocation2 + $0xd8] sm:$0xff] %v4153
      %4204 = vst [vmem:[#allocation2 + $0xe0] sm:$0xff] %v4154
      %4205 = vst [vmem:[#allocation2 + $0xe8] sm:$0xff] %v4155
      %4206 = vst [vmem:[#allocation2 + $0xf0] sm:$0xff] %v4156
      %4207 = vst [vmem:[#allocation2 + $0xf8] sm:$0xff] %v4157
      %4208 = vst [vmem:[#allocation2 + $0x100] sm:$0xff] %v4158
      %4209 = vst [vmem:[#allocation2 + $0x108] sm:$0xff] %v4159
      %4210 = vst [vmem:[#allocation2 + $0x110] sm:$0xff] %v4160
      %4211 = vst [vmem:[#allocation2 + $0x118] sm:$0xff] %v4161
      %4212 = vst [vmem:[#allocation2 + $0x120] sm:$0xff] %v4162
      %4213 = vst [vmem:[#allocation2 + $0x128] sm:$0xff] %v4163
      %4214 = vst [vmem:[#allocation2 + $0x130] sm:$0xff] %v4164
      %4215 = vst [vmem:[#allocation2 + $0x138] sm:$0xff] %v4165
      %4216 = vst [vmem:[#allocation2 + $0x140] sm:$0xff] %v4166
      %4217 = vst [vmem:[#allocation2 + $0x148] sm:$0xff] %v4167
      %4218 = vst [vmem:[#allocation2 + $0x150] sm:$0xff] %v4168
      %4219 = vst [vmem:[#allocation2 + $0x158] sm:$0xff] %v4169
      %4220 = vst [vmem:[#allocation2 + $0x160] sm:$0xff] %v4170
      %4221 = vst [vmem:[#allocation2 + $0x168] sm:$0xff] %v4171
      %4222 = vst [vmem:[#allocation2 + $0x170] sm:$0xff] %v4172
      %4223 = vst [vmem:[#allocation2 + $0x178] sm:$0xff] %v4173
      %4224 = vst [vmem:[#allocation2 + $0x180] sm:$0x7] %v4174
      %4225 = vst [vmem:[#allocation2 + $0x188] sm:$0x7] %v4175
      %v4226 = vld [vmem:[%s3745] sm:$0xfe]
      %v4227 = vld [vmem:[%s3745 + $0x8] sm:$0xfe]
      %v4228 = vld [vmem:[%s3745 + $0x10] sm:$0xff]
      %v4229 = vld [vmem:[%s3745 + $0x18] sm:$0xff]
      %v4230 = vld [vmem:[%s3745 + $0x20] sm:$0xff]
      %v4231 = vld [vmem:[%s3745 + $0x28] sm:$0xff]
      %v4232 = vld [vmem:[%s3745 + $0x30] sm:$0xff]
      %v4233 = vld [vmem:[%s3745 + $0x38] sm:$0xff]
      %v4234 = vld [vmem:[%s3745 + $0x40] sm:$0xff]
      %v4235 = vld [vmem:[%s3745 + $0x48] sm:$0xff]
      %v4236 = vld [vmem:[%s3745 + $0x50] sm:$0xff]
      %v4237 = vld [vmem:[%s3745 + $0x58] sm:$0xff]
      %v4238 = vld [vmem:[%s3745 + $0x60] sm:$0xff]
      %v4239 = vld [vmem:[%s3745 + $0x68] sm:$0xff]
      %v4240 = vld [vmem:[%s3745 + $0x70] sm:$0xff]
      %v4241 = vld [vmem:[%s3745 + $0x78] sm:$0xff]
      %v4242 = vld [vmem:[%s3745 + $0x80] sm:$0xff]
      %v4243 = vld [vmem:[%s3745 + $0x88] sm:$0xff]
      %v4244 = vld [vmem:[%s3745 + $0x90] sm:$0xff]
      %v4245 = vld [vmem:[%s3745 + $0x98] sm:$0xff]
      %v4246 = vld [vmem:[%s3745 + $0xa0] sm:$0xff]
      %v4247 = vld [vmem:[%s3745 + $0xa8] sm:$0xff]
      %v4248 = vld [vmem:[%s3745 + $0xb0] sm:$0xff]
      %v4249 = vld [vmem:[%s3745 + $0xb8] sm:$0xff]
      %v4250 = vld [vmem:[%s3745 + $0xc0] sm:$0xff]
      %v4251 = vld [vmem:[%s3745 + $0xc8] sm:$0xff]
      %v4252 = vld [vmem:[%s3745 + $0xd0] sm:$0xff]
      %v4253 = vld [vmem:[%s3745 + $0xd8] sm:$0xff]
      %v4254 = vld [vmem:[%s3745 + $0xe0] sm:$0xff]
      %v4255 = vld [vmem:[%s3745 + $0xe8] sm:$0xff]
      %v4256 = vld [vmem:[%s3745 + $0xf0] sm:$0xff]
      %v4257 = vld [vmem:[%s3745 + $0xf8] sm:$0xff]
      %v4258 = vld [vmem:[%s3745 + $0x100] sm:$0xff]
      %v4259 = vld [vmem:[%s3745 + $0x108] sm:$0xff]
      %v4260 = vld [vmem:[%s3745 + $0x110] sm:$0xff]
      %v4261 = vld [vmem:[%s3745 + $0x118] sm:$0xff]
      %v4262 = vld [vmem:[%s3745 + $0x120] sm:$0xff]
      %v4263 = vld [vmem:[%s3745 + $0x128] sm:$0xff]
      %v4264 = vld [vmem:[%s3745 + $0x130] sm:$0xff]
      %v4265 = vld [vmem:[%s3745 + $0x138] sm:$0xff]
      %v4266 = vld [vmem:[%s3745 + $0x140] sm:$0xff]
      %v4267 = vld [vmem:[%s3745 + $0x148] sm:$0xff]
      %v4268 = vld [vmem:[%s3745 + $0x150] sm:$0xff]
      %v4269 = vld [vmem:[%s3745 + $0x158] sm:$0xff]
      %v4270 = vld [vmem:[%s3745 + $0x160] sm:$0xff]
      %v4271 = vld [vmem:[%s3745 + $0x168] sm:$0xff]
      %v4272 = vld [vmem:[%s3745 + $0x170] sm:$0xff]
      %v4273 = vld [vmem:[%s3745 + $0x178] sm:$0xff]
      %v4274 = vld [vmem:[%s3745 + $0x180] sm:$0xf]
      %v4275 = vld [vmem:[%s3745 + $0x188] sm:$0xf]
      %s4276 = scalar_lea.vmem %s1, 3584
      %v4277 = vld [vmem:[%s4276] sm:$0xff]
      %v4278 = vld [vmem:[%s4276 + $0x8] sm:$0xff]
      %v4279 = vld [vmem:[%s4276 + $0x10] sm:$0xff]
      %v4280 = vld [vmem:[%s4276 + $0x18] sm:$0xff]
      %v4281 = vld [vmem:[%s4276 + $0x20] sm:$0xff]
      %v4282 = vld [vmem:[%s4276 + $0x28] sm:$0xff]
      %v4283 = vld [vmem:[%s4276 + $0x30] sm:$0xff]
      %v4284 = vld [vmem:[%s4276 + $0x38] sm:$0xff]
      %v4285 = vld [vmem:[%s4276 + $0x40] sm:$0xff]
      %v4286 = vld [vmem:[%s4276 + $0x48] sm:$0xff]
      %v4287 = vld [vmem:[%s4276 + $0x50] sm:$0xff]
      %v4288 = vld [vmem:[%s4276 + $0x58] sm:$0xff]
      %v4289 = vld [vmem:[%s4276 + $0x60] sm:$0xff]
      %v4290 = vld [vmem:[%s4276 + $0x68] sm:$0xff]
      %v4291 = vld [vmem:[%s4276 + $0x70] sm:$0xff]
      %v4292 = vld [vmem:[%s4276 + $0x78] sm:$0xff]
      %v4293 = vld [vmem:[%s4276 + $0x80] sm:$0xff]
      %v4294 = vld [vmem:[%s4276 + $0x88] sm:$0xff]
      %v4295 = vld [vmem:[%s4276 + $0x90] sm:$0xff]
      %v4296 = vld [vmem:[%s4276 + $0x98] sm:$0xff]
      %v4297 = vld [vmem:[%s4276 + $0xa0] sm:$0xff]
      %v4298 = vld [vmem:[%s4276 + $0xa8] sm:$0xff]
      %v4299 = vld [vmem:[%s4276 + $0xb0] sm:$0xff]
      %v4300 = vld [vmem:[%s4276 + $0xb8] sm:$0xff]
      %v4301 = vld [vmem:[%s4276 + $0xc0] sm:$0xff]
      %v4302 = vld [vmem:[%s4276 + $0xc8] sm:$0xff]
      %v4303 = vld [vmem:[%s4276 + $0xd0] sm:$0xff]
      %v4304 = vld [vmem:[%s4276 + $0xd8] sm:$0xff]
      %v4305 = vld [vmem:[%s4276 + $0xe0] sm:$0xff]
      %v4306 = vld [vmem:[%s4276 + $0xe8] sm:$0xff]
      %v4307 = vld [vmem:[%s4276 + $0xf0] sm:$0xff]
      %v4308 = vld [vmem:[%s4276 + $0xf8] sm:$0xff]
      %v4309 = vld [vmem:[%s4276 + $0x100] sm:$0xff]
      %v4310 = vld [vmem:[%s4276 + $0x108] sm:$0xff]
      %v4311 = vld [vmem:[%s4276 + $0x110] sm:$0xff]
      %v4312 = vld [vmem:[%s4276 + $0x118] sm:$0xff]
      %v4313 = vld [vmem:[%s4276 + $0x120] sm:$0xff]
      %v4314 = vld [vmem:[%s4276 + $0x128] sm:$0xff]
      %v4315 = vld [vmem:[%s4276 + $0x130] sm:$0xff]
      %v4316 = vld [vmem:[%s4276 + $0x138] sm:$0xff]
      %v4317 = vld [vmem:[%s4276 + $0x140] sm:$0xff]
      %v4318 = vld [vmem:[%s4276 + $0x148] sm:$0xff]
      %v4319 = vld [vmem:[%s4276 + $0x150] sm:$0xff]
      %v4320 = vld [vmem:[%s4276 + $0x158] sm:$0xff]
      %v4321 = vld [vmem:[%s4276 + $0x160] sm:$0xff]
      %v4322 = vld [vmem:[%s4276 + $0x168] sm:$0xff]
      %v4323 = vld [vmem:[%s4276 + $0x170] sm:$0xff]
      %v4324 = vld [vmem:[%s4276 + $0x178] sm:$0xff]
      %v4325 = vld [vmem:[%s4276 + $0x180] sm:$0xff]
      %v4326 = vld [vmem:[%s4276 + $0x188] sm:$0xff]
      %v4327 = vld [vmem:[%s4276 + $0x190] sm:$0xff]
      %v4328 = vld [vmem:[%s4276 + $0x198] sm:$0xff]
      %v4329 = vld [vmem:[%s4276 + $0x1a0] sm:$0xff]
      %v4330 = vld [vmem:[%s4276 + $0x1a8] sm:$0xff]
      %v4331 = vld [vmem:[%s4276 + $0x1b0] sm:$0xff]
      %v4332 = vld [vmem:[%s4276 + $0x1b8] sm:$0xff]
      %v4333 = vld [vmem:[%s4276 + $0x1c0] sm:$0xff]
      %v4334 = vld [vmem:[%s4276 + $0x1c8] sm:$0xff]
      %v4335 = vld [vmem:[%s4276 + $0x1d0] sm:$0xff]
      %v4336 = vld [vmem:[%s4276 + $0x1d8] sm:$0xff]
      %v4337 = vld [vmem:[%s4276 + $0x1e0] sm:$0xff]
      %v4338 = vld [vmem:[%s4276 + $0x1e8] sm:$0xff]
      %v4339 = vld [vmem:[%s4276 + $0x1f0] sm:$0xff]
      %v4340 = vld [vmem:[%s4276 + $0x1f8] sm:$0xff]
      %v4391 = vrot.slane %v4226, 1
      %v4392 = vrot.slane %v4228, 1
      %v4393 = vsel %vm715, %v4391, %v4392
      %v4394 = vrot.slane %v4227, 1
      %v4395 = vrot.slane %v4229, 1
      %v4396 = vsel %vm715, %v4394, %v4395
      %v4397 = vrot.slane %v4230, 1
      %v4398 = vsel %vm715, %v4392, %v4397
      %v4399 = vrot.slane %v4231, 1
      %v4400 = vsel %vm715, %v4395, %v4399
      %v4401 = vrot.slane %v4232, 1
      %v4402 = vsel %vm715, %v4397, %v4401
      %v4403 = vrot.slane %v4233, 1
      %v4404 = vsel %vm715, %v4399, %v4403
      %v4405 = vrot.slane %v4234, 1
      %v4406 = vsel %vm715, %v4401, %v4405
      %v4407 = vrot.slane %v4235, 1
      %v4408 = vsel %vm715, %v4403, %v4407
      %v4409 = vrot.slane %v4236, 1
      %v4410 = vsel %vm715, %v4405, %v4409
      %v4411 = vrot.slane %v4237, 1
      %v4412 = vsel %vm715, %v4407, %v4411
      %v4413 = vrot.slane %v4238, 1
      %v4414 = vsel %vm715, %v4409, %v4413
      %v4415 = vrot.slane %v4239, 1
      %v4416 = vsel %vm715, %v4411, %v4415
      %v4417 = vrot.slane %v4240, 1
      %v4418 = vsel %vm715, %v4413, %v4417
      %v4419 = vrot.slane %v4241, 1
      %v4420 = vsel %vm715, %v4415, %v4419
      %v4421 = vrot.slane %v4242, 1
      %v4422 = vsel %vm715, %v4417, %v4421
      %v4423 = vrot.slane %v4243, 1
      %v4424 = vsel %vm715, %v4419, %v4423
      %v4425 = vrot.slane %v4244, 1
      %v4426 = vsel %vm715, %v4421, %v4425
      %v4427 = vrot.slane %v4245, 1
      %v4428 = vsel %vm715, %v4423, %v4427
      %v4429 = vrot.slane %v4246, 1
      %v4430 = vsel %vm715, %v4425, %v4429
      %v4431 = vrot.slane %v4247, 1
      %v4432 = vsel %vm715, %v4427, %v4431
      %v4433 = vrot.slane %v4248, 1
      %v4434 = vsel %vm715, %v4429, %v4433
      %v4435 = vrot.slane %v4249, 1
      %v4436 = vsel %vm715, %v4431, %v4435
      %v4437 = vrot.slane %v4250, 1
      %v4438 = vsel %vm715, %v4433, %v4437
      %v4439 = vrot.slane %v4251, 1
      %v4440 = vsel %vm715, %v4435, %v4439
      %v4441 = vrot.slane %v4252, 1
      %v4442 = vsel %vm715, %v4437, %v4441
      %v4443 = vrot.slane %v4253, 1
      %v4444 = vsel %vm715, %v4439, %v4443
      %v4445 = vrot.slane %v4254, 1
      %v4446 = vsel %vm715, %v4441, %v4445
      %v4447 = vrot.slane %v4255, 1
      %v4448 = vsel %vm715, %v4443, %v4447
      %v4449 = vrot.slane %v4256, 1
      %v4450 = vsel %vm715, %v4445, %v4449
      %v4451 = vrot.slane %v4257, 1
      %v4452 = vsel %vm715, %v4447, %v4451
      %v4453 = vrot.slane %v4258, 1
      %v4454 = vsel %vm715, %v4449, %v4453
      %v4455 = vrot.slane %v4259, 1
      %v4456 = vsel %vm715, %v4451, %v4455
      %v4457 = vrot.slane %v4260, 1
      %v4458 = vsel %vm715, %v4453, %v4457
      %v4459 = vrot.slane %v4261, 1
      %v4460 = vsel %vm715, %v4455, %v4459
      %v4461 = vrot.slane %v4262, 1
      %v4462 = vsel %vm715, %v4457, %v4461
      %v4463 = vrot.slane %v4263, 1
      %v4464 = vsel %vm715, %v4459, %v4463
      %v4465 = vrot.slane %v4264, 1
      %v4466 = vsel %vm715, %v4461, %v4465
      %v4467 = vrot.slane %v4265, 1
      %v4468 = vsel %vm715, %v4463, %v4467
      %v4469 = vrot.slane %v4266, 1
      %v4470 = vsel %vm715, %v4465, %v4469
      %v4471 = vrot.slane %v4267, 1
      %v4472 = vsel %vm715, %v4467, %v4471
      %v4473 = vrot.slane %v4268, 1
      %v4474 = vsel %vm715, %v4469, %v4473
      %v4475 = vrot.slane %v4269, 1
      %v4476 = vsel %vm715, %v4471, %v4475
      %v4477 = vrot.slane %v4270, 1
      %v4478 = vsel %vm715, %v4473, %v4477
      %v4479 = vrot.slane %v4271, 1
      %v4480 = vsel %vm715, %v4475, %v4479
      %v4481 = vrot.slane %v4272, 1
      %v4482 = vsel %vm715, %v4477, %v4481
      %v4483 = vrot.slane %v4273, 1
      %v4484 = vsel %vm715, %v4479, %v4483
      %v4485 = vrot.slane %v4274, 1
      %v4486 = vsel %vm715, %v4481, %v4485
      %v4487 = vrot.slane %v4275, 1
      %v4488 = vsel %vm715, %v4483, %v4487
      %4539 = vmatprep.subr.mxu0 %v4278
      %4540 = vmatpush1.msra.mxu0 %v4277
      %4541 = vmatprep.subr.mxu0 %v4280
      %4542 = vmatpush1.msra.mxu0 %v4279
      %4543 = vmatprep.subr.mxu0 %v4282
      %4544 = vmatpush1.msra.mxu0 %v4281
      %4545 = vmatprep.subr.mxu0 %v4284
      %4546 = vmatpush1.msra.mxu0 %v4283
      %4547 = vmatprep.subr.mxu0 %v4286
      %4548 = vmatpush1.msra.mxu0 %v4285
      %4549 = vmatprep.subr.mxu0 %v4288
      %4550 = vmatpush1.msra.mxu0 %v4287
      %4551 = vmatprep.subr.mxu0 %v4290
      %4552 = vmatpush1.msra.mxu0 %v4289
      %4553 = vmatprep.subr.mxu0 %v4292
      %4554 = vmatpush1.msra.mxu0 %v4291
      %4555 = vmatprep.subr.mxu0 %v4294
      %4556 = vmatpush1.msra.mxu0 %v4293
      %4557 = vmatprep.subr.mxu0 %v4296
      %4558 = vmatpush1.msra.mxu0 %v4295
      %4559 = vmatprep.subr.mxu0 %v4298
      %4560 = vmatpush1.msra.mxu0 %v4297
      %4561 = vmatprep.subr.mxu0 %v4300
      %4562 = vmatpush1.msra.mxu0 %v4299
      %4563 = vmatprep.subr.mxu0 %v4302
      %4564 = vmatpush1.msra.mxu0 %v4301
      %4565 = vmatprep.subr.mxu0 %v4304
      %4566 = vmatpush1.msra.mxu0 %v4303
      %4567 = vmatprep.subr.mxu0 %v4306
      %4568 = vmatpush1.msra.mxu0 %v4305
      %4569 = vmatprep.subr.mxu0 %v4308
      %4570 = vmatpush1.msra.mxu0 %v4307
      %4571 = vmatprep.subr.mxu0 %v4310
      %4572 = vmatpush1.msra.mxu0 %v4309
      %4573 = vmatprep.subr.mxu0 %v4312
      %4574 = vmatpush1.msra.mxu0 %v4311
      %4575 = vmatprep.subr.mxu0 %v4314
      %4576 = vmatpush1.msra.mxu0 %v4313
      %4577 = vmatprep.subr.mxu0 %v4316
      %4578 = vmatpush1.msra.mxu0 %v4315
      %4579 = vmatprep.subr.mxu0 %v4318
      %4580 = vmatpush1.msra.mxu0 %v4317
      %4581 = vmatprep.subr.mxu0 %v4320
      %4582 = vmatpush1.msra.mxu0 %v4319
      %4583 = vmatprep.subr.mxu0 %v4322
      %4584 = vmatpush1.msra.mxu0 %v4321
      %4585 = vmatprep.subr.mxu0 %v4324
      %4586 = vmatpush1.msra.mxu0 %v4323
      %4587 = vmatprep.subr.mxu0 %v4326
      %4588 = vmatpush1.msra.mxu0 %v4325
      %4589 = vmatprep.subr.mxu0 %v4328
      %4590 = vmatpush1.msra.mxu0 %v4327
      %4591 = vmatprep.subr.mxu0 %v4330
      %4592 = vmatpush1.msra.mxu0 %v4329
      %4593 = vmatprep.subr.mxu0 %v4332
      %4594 = vmatpush1.msra.mxu0 %v4331
      %4595 = vmatprep.subr.mxu0 %v4334
      %4596 = vmatpush1.msra.mxu0 %v4333
      %4597 = vmatprep.subr.mxu0 %v4336
      %4598 = vmatpush1.msra.mxu0 %v4335
      %4599 = vmatprep.subr.mxu0 %v4338
      %4600 = vmatpush1.msra.mxu0 %v4337
      %4601 = vmatprep.subr.mxu0 %v4340
      %4602 = vmatpush1.msra.mxu0 %v4339
      %4603 = vmatprep.mubr.f32.mxu0 %v4396
      %4604 = vmatmul.mubr.f32.gmra.mrb[0].mxu0 %v4393
      %v4605 = vpop.f32.mrb[0].mxu0
      %v4606 = vadd.f32 0.0, %v4605
      %v4607 = vpop.f32.mrb[0].mxu0
      %v4608 = vadd.f32 0.0, %v4607
      %4609 = vmatprep.mubr.f32.mxu0 %v4400
      %4610 = vmatmul.mubr.f32.gmra.mrb[0].mxu0 %v4398
      %v4611 = vpop.f32.mrb[0].mxu0
      %v4612 = vadd.f32 0.0, %v4611
      %v4613 = vpop.f32.mrb[0].mxu0
      %v4614 = vadd.f32 0.0, %v4613
      %4615 = vmatprep.mubr.f32.mxu0 %v4404
      %4616 = vmatmul.mubr.f32.gmra.mrb[0].mxu0 %v4402
      %v4617 = vpop.f32.mrb[0].mxu0
      %v4618 = vadd.f32 0.0, %v4617
      %v4619 = vpop.f32.mrb[0].mxu0
      %v4620 = vadd.f32 0.0, %v4619
      %4621 = vmatprep.mubr.f32.mxu0 %v4408
      %4622 = vmatmul.mubr.f32.gmra.mrb[0].mxu0 %v4406
      %v4623 = vpop.f32.mrb[0].mxu0
      %v4624 = vadd.f32 0.0, %v4623
      %v4625 = vpop.f32.mrb[0].mxu0
      %v4626 = vadd.f32 0.0, %v4625
      %4627 = vmatprep.mubr.f32.mxu0 %v4412
      %4628 = vmatmul.mubr.f32.gmra.mrb[0].mxu0 %v4410
      %v4629 = vpop.f32.mrb[0].mxu0
      %v4630 = vadd.f32 0.0, %v4629
      %v4631 = vpop.f32.mrb[0].mxu0
      %v4632 = vadd.f32 0.0, %v4631
      %4633 = vmatprep.mubr.f32.mxu0 %v4416
      %4634 = vmatmul.mubr.f32.gmra.mrb[0].mxu0 %v4414
      %v4635 = vpop.f32.mrb[0].mxu0
      %v4636 = vadd.f32 0.0, %v4635
      %v4637 = vpop.f32.mrb[0].mxu0
      %v4638 = vadd.f32 0.0, %v4637
      %4639 = vmatprep.mubr.f32.mxu0 %v4420
      %4640 = vmatmul.mubr.f32.gmra.mrb[0].mxu0 %v4418
      %v4641 = vpop.f32.mrb[0].mxu0
      %v4642 = vadd.f32 0.0, %v4641
      %v4643 = vpop.f32.mrb[0].mxu0
      %v4644 = vadd.f32 0.0, %v4643
      %4645 = vmatprep.mubr.f32.mxu0 %v4424
      %4646 = vmatmul.mubr.f32.gmra.mrb[0].mxu0 %v4422
      %v4647 = vpop.f32.mrb[0].mxu0
      %v4648 = vadd.f32 0.0, %v4647
      %v4649 = vpop.f32.mrb[0].mxu0
      %v4650 = vadd.f32 0.0, %v4649
      %4651 = vmatprep.mubr.f32.mxu0 %v4428
      %4652 = vmatmul.mubr.f32.gmra.mrb[0].mxu0 %v4426
      %v4653 = vpop.f32.mrb[0].mxu0
      %v4654 = vadd.f32 0.0, %v4653
      %v4655 = vpop.f32.mrb[0].mxu0
      %v4656 = vadd.f32 0.0, %v4655
      %4657 = vmatprep.mubr.f32.mxu0 %v4432
      %4658 = vmatmul.mubr.f32.gmra.mrb[0].mxu0 %v4430
      %v4659 = vpop.f32.mrb[0].mxu0
      %v4660 = vadd.f32 0.0, %v4659
      %v4661 = vpop.f32.mrb[0].mxu0
      %v4662 = vadd.f32 0.0, %v4661
      %4663 = vmatprep.mubr.f32.mxu0 %v4436
      %4664 = vmatmul.mubr.f32.gmra.mrb[0].mxu0 %v4434
      %v4665 = vpop.f32.mrb[0].mxu0
      %v4666 = vadd.f32 0.0, %v4665
      %v4667 = vpop.f32.mrb[0].mxu0
      %v4668 = vadd.f32 0.0, %v4667
      %4669 = vmatprep.mubr.f32.mxu0 %v4440
      %4670 = vmatmul.mubr.f32.gmra.mrb[0].mxu0 %v4438
      %v4671 = vpop.f32.mrb[0].mxu0
      %v4672 = vadd.f32 0.0, %v4671
      %v4673 = vpop.f32.mrb[0].mxu0
      %v4674 = vadd.f32 0.0, %v4673
      %4675 = vmatprep.mubr.f32.mxu0 %v4444
      %4676 = vmatmul.mubr.f32.gmra.mrb[0].mxu0 %v4442
      %v4677 = vpop.f32.mrb[0].mxu0
      %v4678 = vadd.f32 0.0, %v4677
      %v4679 = vpop.f32.mrb[0].mxu0
      %v4680 = vadd.f32 0.0, %v4679
      %4681 = vmatprep.mubr.f32.mxu0 %v4448
      %4682 = vmatmul.mubr.f32.gmra.mrb[0].mxu0 %v4446
      %v4683 = vpop.f32.mrb[0].mxu0
      %v4684 = vadd.f32 0.0, %v4683
      %v4685 = vpop.f32.mrb[0].mxu0
      %v4686 = vadd.f32 0.0, %v4685
      %4687 = vmatprep.mubr.f32.mxu0 %v4452
      %4688 = vmatmul.mubr.f32.gmra.mrb[0].mxu0 %v4450
      %v4689 = vpop.f32.mrb[0].mxu0
      %v4690 = vadd.f32 0.0, %v4689
      %v4691 = vpop.f32.mrb[0].mxu0
      %v4692 = vadd.f32 0.0, %v4691
      %4693 = vmatprep.mubr.f32.mxu0 %v4456
      %4694 = vmatmul.mubr.f32.gmra.mrb[0].mxu0 %v4454
      %v4695 = vpop.f32.mrb[0].mxu0
      %v4696 = vadd.f32 0.0, %v4695
      %v4697 = vpop.f32.mrb[0].mxu0
      %v4698 = vadd.f32 0.0, %v4697
      %4699 = vmatprep.mubr.f32.mxu0 %v4460
      %4700 = vmatmul.mubr.f32.gmra.mrb[0].mxu0 %v4458
      %v4701 = vpop.f32.mrb[0].mxu0
      %v4702 = vadd.f32 0.0, %v4701
      %v4703 = vpop.f32.mrb[0].mxu0
      %v4704 = vadd.f32 0.0, %v4703
      %4705 = vmatprep.mubr.f32.mxu0 %v4464
      %4706 = vmatmul.mubr.f32.gmra.mrb[0].mxu0 %v4462
      %v4707 = vpop.f32.mrb[0].mxu0
      %v4708 = vadd.f32 0.0, %v4707
      %v4709 = vpop.f32.mrb[0].mxu0
      %v4710 = vadd.f32 0.0, %v4709
      %4711 = vmatprep.mubr.f32.mxu0 %v4468
      %4712 = vmatmul.mubr.f32.gmra.mrb[0].mxu0 %v4466
      %v4713 = vpop.f32.mrb[0].mxu0
      %v4714 = vadd.f32 0.0, %v4713
      %v4715 = vpop.f32.mrb[0].mxu0
      %v4716 = vadd.f32 0.0, %v4715
      %4717 = vmatprep.mubr.f32.mxu0 %v4472
      %4718 = vmatmul.mubr.f32.gmra.mrb[0].mxu0 %v4470
      %v4719 = vpop.f32.mrb[0].mxu0
      %v4720 = vadd.f32 0.0, %v4719
      %v4721 = vpop.f32.mrb[0].mxu0
      %v4722 = vadd.f32 0.0, %v4721
      %4723 = vmatprep.mubr.f32.mxu0 %v4476
      %4724 = vmatmul.mubr.f32.gmra.mrb[0].mxu0 %v4474
      %v4725 = vpop.f32.mrb[0].mxu0
      %v4726 = vadd.f32 0.0, %v4725
      %v4727 = vpop.f32.mrb[0].mxu0
      %v4728 = vadd.f32 0.0, %v4727
      %4729 = vmatprep.mubr.f32.mxu0 %v4480
      %4730 = vmatmul.mubr.f32.gmra.mrb[0].mxu0 %v4478
      %v4731 = vpop.f32.mrb[0].mxu0
      %v4732 = vadd.f32 0.0, %v4731
      %v4733 = vpop.f32.mrb[0].mxu0
      %v4734 = vadd.f32 0.0, %v4733
      %4735 = vmatprep.mubr.f32.mxu0 %v4484
      %4736 = vmatmul.mubr.f32.gmra.mrb[0].mxu0 %v4482
      %v4737 = vpop.f32.mrb[0].mxu0
      %v4738 = vadd.f32 0.0, %v4737
      %v4739 = vpop.f32.mrb[0].mxu0
      %v4740 = vadd.f32 0.0, %v4739
      %4741 = vmatprep.mubr.f32.mxu0 %v4488
      %4742 = vmatmul.mubr.f32.gmra.mrb[0].mxu0 %v4486
      %v4743 = vpop.f32.mrb[0].mxu0
      %v4744 = vadd.f32 0.0, %v4743
      %v4745 = vpop.f32.mrb[0].mxu0
      %v4746 = vadd.f32 0.0, %v4745
      %4747 = vmatprep.mubr.f32.mxu0 %v4487
      %4748 = vmatmul.mubr.f32.gmra.mrb[0].mxu0 %v4485
      %v4749 = vpop.f32.mrb[0].mxu0
      %v4750 = vadd.f32 0.0, %v4749
      %v4751 = vpop.f32.mrb[0].mxu0
      %v4752 = vadd.f32 0.0, %v4751
      %4753 = vdwg.mxu0
      %v4754 = vld [vmem:[#allocation2] sm:$0xff]
      %v4755 = vld [vmem:[#allocation2 + $0x8] sm:$0xff]
      %v4756 = vld [vmem:[#allocation2 + $0x10] sm:$0xff]
      %v4757 = vld [vmem:[#allocation2 + $0x18] sm:$0xff]
      %v4758 = vld [vmem:[#allocation2 + $0x20] sm:$0xff]
      %v4759 = vld [vmem:[#allocation2 + $0x28] sm:$0xff]
      %v4760 = vld [vmem:[#allocation2 + $0x30] sm:$0xff]
      %v4761 = vld [vmem:[#allocation2 + $0x38] sm:$0xff]
      %v4762 = vld [vmem:[#allocation2 + $0x40] sm:$0xff]
      %v4763 = vld [vmem:[#allocation2 + $0x48] sm:$0xff]
      %v4764 = vld [vmem:[#allocation2 + $0x50] sm:$0xff]
      %v4765 = vld [vmem:[#allocation2 + $0x58] sm:$0xff]
      %v4766 = vld [vmem:[#allocation2 + $0x60] sm:$0xff]
      %v4767 = vld [vmem:[#allocation2 + $0x68] sm:$0xff]
      %v4768 = vld [vmem:[#allocation2 + $0x70] sm:$0xff]
      %v4769 = vld [vmem:[#allocation2 + $0x78] sm:$0xff]
      %v4770 = vld [vmem:[#allocation2 + $0x80] sm:$0xff]
      %v4771 = vld [vmem:[#allocation2 + $0x88] sm:$0xff]
      %v4772 = vld [vmem:[#allocation2 + $0x90] sm:$0xff]
      %v4773 = vld [vmem:[#allocation2 + $0x98] sm:$0xff]
      %v4774 = vld [vmem:[#allocation2 + $0xa0] sm:$0xff]
      %v4775 = vld [vmem:[#allocation2 + $0xa8] sm:$0xff]
      %v4776 = vld [vmem:[#allocation2 + $0xb0] sm:$0xff]
      %v4777 = vld [vmem:[#allocation2 + $0xb8] sm:$0xff]
      %v4778 = vld [vmem:[#allocation2 + $0xc0] sm:$0xff]
      %v4779 = vld [vmem:[#allocation2 + $0xc8] sm:$0xff]
      %v4780 = vld [vmem:[#allocation2 + $0xd0] sm:$0xff]
      %v4781 = vld [vmem:[#allocation2 + $0xd8] sm:$0xff]
      %v4782 = vld [vmem:[#allocation2 + $0xe0] sm:$0xff]
      %v4783 = vld [vmem:[#allocation2 + $0xe8] sm:$0xff]
      %v4784 = vld [vmem:[#allocation2 + $0xf0] sm:$0xff]
      %v4785 = vld [vmem:[#allocation2 + $0xf8] sm:$0xff]
      %v4786 = vld [vmem:[#allocation2 + $0x100] sm:$0xff]
      %v4787 = vld [vmem:[#allocation2 + $0x108] sm:$0xff]
      %v4788 = vld [vmem:[#allocation2 + $0x110] sm:$0xff]
      %v4789 = vld [vmem:[#allocation2 + $0x118] sm:$0xff]
      %v4790 = vld [vmem:[#allocation2 + $0x120] sm:$0xff]
      %v4791 = vld [vmem:[#allocation2 + $0x128] sm:$0xff]
      %v4792 = vld [vmem:[#allocation2 + $0x130] sm:$0xff]
      %v4793 = vld [vmem:[#allocation2 + $0x138] sm:$0xff]
      %v4794 = vld [vmem:[#allocation2 + $0x140] sm:$0xff]
      %v4795 = vld [vmem:[#allocation2 + $0x148] sm:$0xff]
      %v4796 = vld [vmem:[#allocation2 + $0x150] sm:$0xff]
      %v4797 = vld [vmem:[#allocation2 + $0x158] sm:$0xff]
      %v4798 = vld [vmem:[#allocation2 + $0x160] sm:$0xff]
      %v4799 = vld [vmem:[#allocation2 + $0x168] sm:$0xff]
      %v4800 = vld [vmem:[#allocation2 + $0x170] sm:$0xff]
      %v4801 = vld [vmem:[#allocation2 + $0x178] sm:$0xff]
      %v4802 = vld [vmem:[#allocation2 + $0x180] sm:$0x7]
      %v4803 = vld [vmem:[#allocation2 + $0x188] sm:$0x7]
      %v4804 = vadd.f32 %v4754, %v4606
      %v4805 = vadd.f32 %v4755, %v4608
      %v4806 = vadd.f32 %v4756, %v4612
      %v4807 = vadd.f32 %v4757, %v4614
      %v4808 = vadd.f32 %v4758, %v4618
      %v4809 = vadd.f32 %v4759, %v4620
      %v4810 = vadd.f32 %v4760, %v4624
      %v4811 = vadd.f32 %v4761, %v4626
      %v4812 = vadd.f32 %v4762, %v4630
      %v4813 = vadd.f32 %v4763, %v4632
      %v4814 = vadd.f32 %v4764, %v4636
      %v4815 = vadd.f32 %v4765, %v4638
      %v4816 = vadd.f32 %v4766, %v4642
      %v4817 = vadd.f32 %v4767, %v4644
      %v4818 = vadd.f32 %v4768, %v4648
      %v4819 = vadd.f32 %v4769, %v4650
      %v4820 = vadd.f32 %v4770, %v4654
      %v4821 = vadd.f32 %v4771, %v4656
      %v4822 = vadd.f32 %v4772, %v4660
      %v4823 = vadd.f32 %v4773, %v4662
      %v4824 = vadd.f32 %v4774, %v4666
      %v4825 = vadd.f32 %v4775, %v4668
      %v4826 = vadd.f32 %v4776, %v4672
      %v4827 = vadd.f32 %v4777, %v4674
      %v4828 = vadd.f32 %v4778, %v4678
      %v4829 = vadd.f32 %v4779, %v4680
      %v4830 = vadd.f32 %v4780, %v4684
      %v4831 = vadd.f32 %v4781, %v4686
      %v4832 = vadd.f32 %v4782, %v4690
      %v4833 = vadd.f32 %v4783, %v4692
      %v4834 = vadd.f32 %v4784, %v4696
      %v4835 = vadd.f32 %v4785, %v4698
      %v4836 = vadd.f32 %v4786, %v4702
      %v4837 = vadd.f32 %v4787, %v4704
      %v4838 = vadd.f32 %v4788, %v4708
      %v4839 = vadd.f32 %v4789, %v4710
      %v4840 = vadd.f32 %v4790, %v4714
      %v4841 = vadd.f32 %v4791, %v4716
      %v4842 = vadd.f32 %v4792, %v4720
      %v4843 = vadd.f32 %v4793, %v4722
      %v4844 = vadd.f32 %v4794, %v4726
      %v4845 = vadd.f32 %v4795, %v4728
      %v4846 = vadd.f32 %v4796, %v4732
      %v4847 = vadd.f32 %v4797, %v4734
      %v4848 = vadd.f32 %v4798, %v4738
      %v4849 = vadd.f32 %v4799, %v4740
      %v4850 = vadd.f32 %v4800, %v4744
      %v4851 = vadd.f32 %v4801, %v4746
      %v4852 = vadd.f32 %v4802, %v4750
      %v4853 = vadd.f32 %v4803, %v4752
      %4854 = vst [vmem:[#allocation2] sm:$0xff] %v4804
      %4855 = vst [vmem:[#allocation2 + $0x8] sm:$0xff] %v4805
      %4856 = vst [vmem:[#allocation2 + $0x10] sm:$0xff] %v4806
      %4857 = vst [vmem:[#allocation2 + $0x18] sm:$0xff] %v4807
      %4858 = vst [vmem:[#allocation2 + $0x20] sm:$0xff] %v4808
      %4859 = vst [vmem:[#allocation2 + $0x28] sm:$0xff] %v4809
      %4860 = vst [vmem:[#allocation2 + $0x30] sm:$0xff] %v4810
      %4861 = vst [vmem:[#allocation2 + $0x38] sm:$0xff] %v4811
      %4862 = vst [vmem:[#allocation2 + $0x40] sm:$0xff] %v4812
      %4863 = vst [vmem:[#allocation2 + $0x48] sm:$0xff] %v4813
      %4864 = vst [vmem:[#allocation2 + $0x50] sm:$0xff] %v4814
      %4865 = vst [vmem:[#allocation2 + $0x58] sm:$0xff] %v4815
      %4866 = vst [vmem:[#allocation2 + $0x60] sm:$0xff] %v4816
      %4867 = vst [vmem:[#allocation2 + $0x68] sm:$0xff] %v4817
      %4868 = vst [vmem:[#allocation2 + $0x70] sm:$0xff] %v4818
      %4869 = vst [vmem:[#allocation2 + $0x78] sm:$0xff] %v4819
      %4870 = vst [vmem:[#allocation2 + $0x80] sm:$0xff] %v4820
      %4871 = vst [vmem:[#allocation2 + $0x88] sm:$0xff] %v4821
      %4872 = vst [vmem:[#allocation2 + $0x90] sm:$0xff] %v4822
      %4873 = vst [vmem:[#allocation2 + $0x98] sm:$0xff] %v4823
      %4874 = vst [vmem:[#allocation2 + $0xa0] sm:$0xff] %v4824
      %4875 = vst [vmem:[#allocation2 + $0xa8] sm:$0xff] %v4825
      %4876 = vst [vmem:[#allocation2 + $0xb0] sm:$0xff] %v4826
      %4877 = vst [vmem:[#allocation2 + $0xb8] sm:$0xff] %v4827
      %4878 = vst [vmem:[#allocation2 + $0xc0] sm:$0xff] %v4828
      %4879 = vst [vmem:[#allocation2 + $0xc8] sm:$0xff] %v4829
      %4880 = vst [vmem:[#allocation2 + $0xd0] sm:$0xff] %v4830
      %4881 = vst [vmem:[#allocation2 + $0xd8] sm:$0xff] %v4831
      %4882 = vst [vmem:[#allocation2 + $0xe0] sm:$0xff] %v4832
      %4883 = vst [vmem:[#allocation2 + $0xe8] sm:$0xff] %v4833
      %4884 = vst [vmem:[#allocation2 + $0xf0] sm:$0xff] %v4834
      %4885 = vst [vmem:[#allocation2 + $0xf8] sm:$0xff] %v4835
      %4886 = vst [vmem:[#allocation2 + $0x100] sm:$0xff] %v4836
      %4887 = vst [vmem:[#allocation2 + $0x108] sm:$0xff] %v4837
      %4888 = vst [vmem:[#allocation2 + $0x110] sm:$0xff] %v4838
      %4889 = vst [vmem:[#allocation2 + $0x118] sm:$0xff] %v4839
      %4890 = vst [vmem:[#allocation2 + $0x120] sm:$0xff] %v4840
      %4891 = vst [vmem:[#allocation2 + $0x128] sm:$0xff] %v4841
      %4892 = vst [vmem:[#allocation2 + $0x130] sm:$0xff] %v4842
      %4893 = vst [vmem:[#allocation2 + $0x138] sm:$0xff] %v4843
      %4894 = vst [vmem:[#allocation2 + $0x140] sm:$0xff] %v4844
      %4895 = vst [vmem:[#allocation2 + $0x148] sm:$0xff] %v4845
      %4896 = vst [vmem:[#allocation2 + $0x150] sm:$0xff] %v4846
      %4897 = vst [vmem:[#allocation2 + $0x158] sm:$0xff] %v4847
      %4898 = vst [vmem:[#allocation2 + $0x160] sm:$0xff] %v4848
      %4899 = vst [vmem:[#allocation2 + $0x168] sm:$0xff] %v4849
      %4900 = vst [vmem:[#allocation2 + $0x170] sm:$0xff] %v4850
      %4901 = vst [vmem:[#allocation2 + $0x178] sm:$0xff] %v4851
      %4902 = vst [vmem:[#allocation2 + $0x180] sm:$0x7] %v4852
      %4903 = vst [vmem:[#allocation2 + $0x188] sm:$0x7] %v4853
      %v4904 = vld [vmem:[%s3745] sm:$0xfc]
      %v4905 = vld [vmem:[%s3745 + $0x8] sm:$0xfc]
      %v4906 = vld [vmem:[%s3745 + $0x10] sm:$0xff]
      %v4907 = vld [vmem:[%s3745 + $0x18] sm:$0xff]
      %v4908 = vld [vmem:[%s3745 + $0x20] sm:$0xff]
      %v4909 = vld [vmem:[%s3745 + $0x28] sm:$0xff]
      %v4910 = vld [vmem:[%s3745 + $0x30] sm:$0xff]
      %v4911 = vld [vmem:[%s3745 + $0x38] sm:$0xff]
      %v4912 = vld [vmem:[%s3745 + $0x40] sm:$0xff]
      %v4913 = vld [vmem:[%s3745 + $0x48] sm:$0xff]
      %v4914 = vld [vmem:[%s3745 + $0x50] sm:$0xff]
      %v4915 = vld [vmem:[%s3745 + $0x58] sm:$0xff]
      %v4916 = vld [vmem:[%s3745 + $0x60] sm:$0xff]
      %v4917 = vld [vmem:[%s3745 + $0x68] sm:$0xff]
      %v4918 = vld [vmem:[%s3745 + $0x70] sm:$0xff]
      %v4919 = vld [vmem:[%s3745 + $0x78] sm:$0xff]
      %v4920 = vld [vmem:[%s3745 + $0x80] sm:$0xff]
      %v4921 = vld [vmem:[%s3745 + $0x88] sm:$0xff]
      %v4922 = vld [vmem:[%s3745 + $0x90] sm:$0xff]
      %v4923 = vld [vmem:[%s3745 + $0x98] sm:$0xff]
      %v4924 = vld [vmem:[%s3745 + $0xa0] sm:$0xff]
      %v4925 = vld [vmem:[%s3745 + $0xa8] sm:$0xff]
      %v4926 = vld [vmem:[%s3745 + $0xb0] sm:$0xff]
      %v4927 = vld [vmem:[%s3745 + $0xb8] sm:$0xff]
      %v4928 = vld [vmem:[%s3745 + $0xc0] sm:$0xff]
      %v4929 = vld [vmem:[%s3745 + $0xc8] sm:$0xff]
      %v4930 = vld [vmem:[%s3745 + $0xd0] sm:$0xff]
      %v4931 = vld [vmem:[%s3745 + $0xd8] sm:$0xff]
      %v4932 = vld [vmem:[%s3745 + $0xe0] sm:$0xff]
      %v4933 = vld [vmem:[%s3745 + $0xe8] sm:$0xff]
      %v4934 = vld [vmem:[%s3745 + $0xf0] sm:$0xff]
      %v4935 = vld [vmem:[%s3745 + $0xf8] sm:$0xff]
      %v4936 = vld [vmem:[%s3745 + $0x100] sm:$0xff]
      %v4937 = vld [vmem:[%s3745 + $0x108] sm:$0xff]
      %v4938 = vld [vmem:[%s3745 + $0x110] sm:$0xff]
      %v4939 = vld [vmem:[%s3745 + $0x118] sm:$0xff]
      %v4940 = vld [vmem:[%s3745 + $0x120] sm:$0xff]
      %v4941 = vld [vmem:[%s3745 + $0x128] sm:$0xff]
      %v4942 = vld [vmem:[%s3745 + $0x130] sm:$0xff]
      %v4943 = vld [vmem:[%s3745 + $0x138] sm:$0xff]
      %v4944 = vld [vmem:[%s3745 + $0x140] sm:$0xff]
      %v4945 = vld [vmem:[%s3745 + $0x148] sm:$0xff]
      %v4946 = vld [vmem:[%s3745 + $0x150] sm:$0xff]
      %v4947 = vld [vmem:[%s3745 + $0x158] sm:$0xff]
      %v4948 = vld [vmem:[%s3745 + $0x160] sm:$0xff]
      %v4949 = vld [vmem:[%s3745 + $0x168] sm:$0xff]
      %v4950 = vld [vmem:[%s3745 + $0x170] sm:$0xff]
      %v4951 = vld [vmem:[%s3745 + $0x178] sm:$0xff]
      %v4952 = vld [vmem:[%s3745 + $0x180] sm:$0x1f]
      %v4953 = vld [vmem:[%s3745 + $0x188] sm:$0x1f]
      %s4954 = scalar_lea.vmem %s1, 4096
      %v4955 = vld [vmem:[%s4954] sm:$0xff]
      %v4956 = vld [vmem:[%s4954 + $0x8] sm:$0xff]
      %v4957 = vld [vmem:[%s4954 + $0x10] sm:$0xff]
      %v4958 = vld [vmem:[%s4954 + $0x18] sm:$0xff]
      %v4959 = vld [vmem:[%s4954 + $0x20] sm:$0xff]
      %v4960 = vld [vmem:[%s4954 + $0x28] sm:$0xff]
      %v4961 = vld [vmem:[%s4954 + $0x30] sm:$0xff]
      %v4962 = vld [vmem:[%s4954 + $0x38] sm:$0xff]
      %v4963 = vld [vmem:[%s4954 + $0x40] sm:$0xff]
      %v4964 = vld [vmem:[%s4954 + $0x48] sm:$0xff]
      %v4965 = vld [vmem:[%s4954 + $0x50] sm:$0xff]
      %v4966 = vld [vmem:[%s4954 + $0x58] sm:$0xff]
      %v4967 = vld [vmem:[%s4954 + $0x60] sm:$0xff]
      %v4968 = vld [vmem:[%s4954 + $0x68] sm:$0xff]
      %v4969 = vld [vmem:[%s4954 + $0x70] sm:$0xff]
      %v4970 = vld [vmem:[%s4954 + $0x78] sm:$0xff]
      %v4971 = vld [vmem:[%s4954 + $0x80] sm:$0xff]
      %v4972 = vld [vmem:[%s4954 + $0x88] sm:$0xff]
      %v4973 = vld [vmem:[%s4954 + $0x90] sm:$0xff]
      %v4974 = vld [vmem:[%s4954 + $0x98] sm:$0xff]
      %v4975 = vld [vmem:[%s4954 + $0xa0] sm:$0xff]
      %v4976 = vld [vmem:[%s4954 + $0xa8] sm:$0xff]
      %v4977 = vld [vmem:[%s4954 + $0xb0] sm:$0xff]
      %v4978 = vld [vmem:[%s4954 + $0xb8] sm:$0xff]
      %v4979 = vld [vmem:[%s4954 + $0xc0] sm:$0xff]
      %v4980 = vld [vmem:[%s4954 + $0xc8] sm:$0xff]
      %v4981 = vld [vmem:[%s4954 + $0xd0] sm:$0xff]
      %v4982 = vld [vmem:[%s4954 + $0xd8] sm:$0xff]
      %v4983 = vld [vmem:[%s4954 + $0xe0] sm:$0xff]
      %v4984 = vld [vmem:[%s4954 + $0xe8] sm:$0xff]
      %v4985 = vld [vmem:[%s4954 + $0xf0] sm:$0xff]
      %v4986 = vld [vmem:[%s4954 + $0xf8] sm:$0xff]
      %v4987 = vld [vmem:[%s4954 + $0x100] sm:$0xff]
      %v4988 = vld [vmem:[%s4954 + $0x108] sm:$0xff]
      %v4989 = vld [vmem:[%s4954 + $0x110] sm:$0xff]
      %v4990 = vld [vmem:[%s4954 + $0x118] sm:$0xff]
      %v4991 = vld [vmem:[%s4954 + $0x120] sm:$0xff]
      %v4992 = vld [vmem:[%s4954 + $0x128] sm:$0xff]
      %v4993 = vld [vmem:[%s4954 + $0x130] sm:$0xff]
      %v4994 = vld [vmem:[%s4954 + $0x138] sm:$0xff]
      %v4995 = vld [vmem:[%s4954 + $0x140] sm:$0xff]
      %v4996 = vld [vmem:[%s4954 + $0x148] sm:$0xff]
      %v4997 = vld [vmem:[%s4954 + $0x150] sm:$0xff]
      %v4998 = vld [vmem:[%s4954 + $0x158] sm:$0xff]
      %v4999 = vld [vmem:[%s4954 + $0x160] sm:$0xff]
      %v5000 = vld [vmem:[%s4954 + $0x168] sm:$0xff]
      %v5001 = vld [vmem:[%s4954 + $0x170] sm:$0xff]
      %v5002 = vld [vmem:[%s4954 + $0x178] sm:$0xff]
      %v5003 = vld [vmem:[%s4954 + $0x180] sm:$0xff]
      %v5004 = vld [vmem:[%s4954 + $0x188] sm:$0xff]
      %v5005 = vld [vmem:[%s4954 + $0x190] sm:$0xff]
      %v5006 = vld [vmem:[%s4954 + $0x198] sm:$0xff]
      %v5007 = vld [vmem:[%s4954 + $0x1a0] sm:$0xff]
      %v5008 = vld [vmem:[%s4954 + $0x1a8] sm:$0xff]
      %v5009 = vld [vmem:[%s4954 + $0x1b0] sm:$0xff]
      %v5010 = vld [vmem:[%s4954 + $0x1b8] sm:$0xff]
      %v5011 = vld [vmem:[%s4954 + $0x1c0] sm:$0xff]
      %v5012 = vld [vmem:[%s4954 + $0x1c8] sm:$0xff]
      %v5013 = vld [vmem:[%s4954 + $0x1d0] sm:$0xff]
      %v5014 = vld [vmem:[%s4954 + $0x1d8] sm:$0xff]
      %v5015 = vld [vmem:[%s4954 + $0x1e0] sm:$0xff]
      %v5016 = vld [vmem:[%s4954 + $0x1e8] sm:$0xff]
      %v5017 = vld [vmem:[%s4954 + $0x1f0] sm:$0xff]
      %v5018 = vld [vmem:[%s4954 + $0x1f8] sm:$0xff]
      %v5069 = vrot.slane %v4904, 2
      %v5070 = vrot.slane %v4906, 2
      %v5071 = vsel %vm1394, %v5069, %v5070
      %v5072 = vrot.slane %v4905, 2
      %v5073 = vrot.slane %v4907, 2
      %v5074 = vsel %vm1394, %v5072, %v5073
      %v5075 = vrot.slane %v4908, 2
      %v5076 = vsel %vm1394, %v5070, %v5075
      %v5077 = vrot.slane %v4909, 2
      %v5078 = vsel %vm1394, %v5073, %v5077
      %v5079 = vrot.slane %v4910, 2
      %v5080 = vsel %vm1394, %v5075, %v5079
      %v5081 = vrot.slane %v4911, 2
      %v5082 = vsel %vm1394, %v5077, %v5081
      %v5083 = vrot.slane %v4912, 2
      %v5084 = vsel %vm1394, %v5079, %v5083
      %v5085 = vrot.slane %v4913, 2
      %v5086 = vsel %vm1394, %v5081, %v5085
      %v5087 = vrot.slane %v4914, 2
      %v5088 = vsel %vm1394, %v5083, %v5087
      %v5089 = vrot.slane %v4915, 2
      %v5090 = vsel %vm1394, %v5085, %v5089
      %v5091 = vrot.slane %v4916, 2
      %v5092 = vsel %vm1394, %v5087, %v5091
      %v5093 = vrot.slane %v4917, 2
      %v5094 = vsel %vm1394, %v5089, %v5093
      %v5095 = vrot.slane %v4918, 2
      %v5096 = vsel %vm1394, %v5091, %v5095
      %v5097 = vrot.slane %v4919, 2
      %v5098 = vsel %vm1394, %v5093, %v5097
      %v5099 = vrot.slane %v4920, 2
      %v5100 = vsel %vm1394, %v5095, %v5099
      %v5101 = vrot.slane %v4921, 2
      %v5102 = vsel %vm1394, %v5097, %v5101
      %v5103 = vrot.slane %v4922, 2
      %v5104 = vsel %vm1394, %v5099, %v5103
      %v5105 = vrot.slane %v4923, 2
      %v5106 = vsel %vm1394, %v5101, %v5105
      %v5107 = vrot.slane %v4924, 2
      %v5108 = vsel %vm1394, %v5103, %v5107
      %v5109 = vrot.slane %v4925, 2
      %v5110 = vsel %vm1394, %v5105, %v5109
      %v5111 = vrot.slane %v4926, 2
      %v5112 = vsel %vm1394, %v5107, %v5111
      %v5113 = vrot.slane %v4927, 2
      %v5114 = vsel %vm1394, %v5109, %v5113
      %v5115 = vrot.slane %v4928, 2
      %v5116 = vsel %vm1394, %v5111, %v5115
      %v5117 = vrot.slane %v4929, 2
      %v5118 = vsel %vm1394, %v5113, %v5117
      %v5119 = vrot.slane %v4930, 2
      %v5120 = vsel %vm1394, %v5115, %v5119
      %v5121 = vrot.slane %v4931, 2
      %v5122 = vsel %vm1394, %v5117, %v5121
      %v5123 = vrot.slane %v4932, 2
      %v5124 = vsel %vm1394, %v5119, %v5123
      %v5125 = vrot.slane %v4933, 2
      %v5126 = vsel %vm1394, %v5121, %v5125
      %v5127 = vrot.slane %v4934, 2
      %v5128 = vsel %vm1394, %v5123, %v5127
      %v5129 = vrot.slane %v4935, 2
      %v5130 = vsel %vm1394, %v5125, %v5129
      %v5131 = vrot.slane %v4936, 2
      %v5132 = vsel %vm1394, %v5127, %v5131
      %v5133 = vrot.slane %v4937, 2
      %v5134 = vsel %vm1394, %v5129, %v5133
      %v5135 = vrot.slane %v4938, 2
      %v5136 = vsel %vm1394, %v5131, %v5135
      %v5137 = vrot.slane %v4939, 2
      %v5138 = vsel %vm1394, %v5133, %v5137
      %v5139 = vrot.slane %v4940, 2
      %v5140 = vsel %vm1394, %v5135, %v5139
      %v5141 = vrot.slane %v4941, 2
      %v5142 = vsel %vm1394, %v5137, %v5141
      %v5143 = vrot.slane %v4942, 2
      %v5144 = vsel %vm1394, %v5139, %v5143
      %v5145 = vrot.slane %v4943, 2
      %v5146 = vsel %vm1394, %v5141, %v5145
      %v5147 = vrot.slane %v4944, 2
      %v5148 = vsel %vm1394, %v5143, %v5147
      %v5149 = vrot.slane %v4945, 2
      %v5150 = vsel %vm1394, %v5145, %v5149
      %v5151 = vrot.slane %v4946, 2
      %v5152 = vsel %vm1394, %v5147, %v5151
      %v5153 = vrot.slane %v4947, 2
      %v5154 = vsel %vm1394, %v5149, %v5153
      %v5155 = vrot.slane %v4948, 2
      %v5156 = vsel %vm1394, %v5151, %v5155
      %v5157 = vrot.slane %v4949, 2
      %v5158 = vsel %vm1394, %v5153, %v5157
      %v5159 = vrot.slane %v4950, 2
      %v5160 = vsel %vm1394, %v5155, %v5159
      %v5161 = vrot.slane %v4951, 2
      %v5162 = vsel %vm1394, %v5157, %v5161
      %v5163 = vrot.slane %v4952, 2
      %v5164 = vsel %vm1394, %v5159, %v5163
      %v5165 = vrot.slane %v4953, 2
      %v5166 = vsel %vm1394, %v5161, %v5165
      %5217 = vmatprep.subr.mxu0 %v4956
      %5218 = vmatpush1.msra.mxu0 %v4955
      %5219 = vmatprep.subr.mxu0 %v4958
      %5220 = vmatpush1.msra.mxu0 %v4957
      %5221 = vmatprep.subr.mxu0 %v4960
      %5222 = vmatpush1.msra.mxu0 %v4959
      %5223 = vmatprep.subr.mxu0 %v4962
      %5224 = vmatpush1.msra.mxu0 %v4961
      %5225 = vmatprep.subr.mxu0 %v4964
      %5226 = vmatpush1.msra.mxu0 %v4963
      %5227 = vmatprep.subr.mxu0 %v4966
      %5228 = vmatpush1.msra.mxu0 %v4965
      %5229 = vmatprep.subr.mxu0 %v4968
      %5230 = vmatpush1.msra.mxu0 %v4967
      %5231 = vmatprep.subr.mxu0 %v4970
      %5232 = vmatpush1.msra.mxu0 %v4969
      %5233 = vmatprep.subr.mxu0 %v4972
      %5234 = vmatpush1.msra.mxu0 %v4971
      %5235 = vmatprep.subr.mxu0 %v4974
      %5236 = vmatpush1.msra.mxu0 %v4973
      %5237 = vmatprep.subr.mxu0 %v4976
      %5238 = vmatpush1.msra.mxu0 %v4975
      %5239 = vmatprep.subr.mxu0 %v4978
      %5240 = vmatpush1.msra.mxu0 %v4977
      %5241 = vmatprep.subr.mxu0 %v4980
      %5242 = vmatpush1.msra.mxu0 %v4979
      %5243 = vmatprep.subr.mxu0 %v4982
      %5244 = vmatpush1.msra.mxu0 %v4981
      %5245 = vmatprep.subr.mxu0 %v4984
      %5246 = vmatpush1.msra.mxu0 %v4983
      %5247 = vmatprep.subr.mxu0 %v4986
      %5248 = vmatpush1.msra.mxu0 %v4985
      %5249 = vmatprep.subr.mxu0 %v4988
      %5250 = vmatpush1.msra.mxu0 %v4987
      %5251 = vmatprep.subr.mxu0 %v4990
      %5252 = vmatpush1.msra.mxu0 %v4989
      %5253 = vmatprep.subr.mxu0 %v4992
      %5254 = vmatpush1.msra.mxu0 %v4991
      %5255 = vmatprep.subr.mxu0 %v4994
      %5256 = vmatpush1.msra.mxu0 %v4993
      %5257 = vmatprep.subr.mxu0 %v4996
      %5258 = vmatpush1.msra.mxu0 %v4995
      %5259 = vmatprep.subr.mxu0 %v4998
      %5260 = vmatpush1.msra.mxu0 %v4997
      %5261 = vmatprep.subr.mxu0 %v5000
      %5262 = vmatpush1.msra.mxu0 %v4999
      %5263 = vmatprep.subr.mxu0 %v5002
      %5264 = vmatpush1.msra.mxu0 %v5001
      %5265 = vmatprep.subr.mxu0 %v5004
      %5266 = vmatpush1.msra.mxu0 %v5003
      %5267 = vmatprep.subr.mxu0 %v5006
      %5268 = vmatpush1.msra.mxu0 %v5005
      %5269 = vmatprep.subr.mxu0 %v5008
      %5270 = vmatpush1.msra.mxu0 %v5007
      %5271 = vmatprep.subr.mxu0 %v5010
      %5272 = vmatpush1.msra.mxu0 %v5009
      %5273 = vmatprep.subr.mxu0 %v5012
      %5274 = vmatpush1.msra.mxu0 %v5011
      %5275 = vmatprep.subr.mxu0 %v5014
      %5276 = vmatpush1.msra.mxu0 %v5013
      %5277 = vmatprep.subr.mxu0 %v5016
      %5278 = vmatpush1.msra.mxu0 %v5015
      %5279 = vmatprep.subr.mxu0 %v5018
      %5280 = vmatpush1.msra.mxu0 %v5017
      %5281 = vmatprep.mubr.f32.mxu0 %v5074
      %5282 = vmatmul.mubr.f32.gmra.mrb[0].mxu0 %v5071
      %v5283 = vpop.f32.mrb[0].mxu0
      %v5284 = vadd.f32 0.0, %v5283
      %v5285 = vpop.f32.mrb[0].mxu0
      %v5286 = vadd.f32 0.0, %v5285
      %5287 = vmatprep.mubr.f32.mxu0 %v5078
      %5288 = vmatmul.mubr.f32.gmra.mrb[0].mxu0 %v5076
      %v5289 = vpop.f32.mrb[0].mxu0
      %v5290 = vadd.f32 0.0, %v5289
      %v5291 = vpop.f32.mrb[0].mxu0
      %v5292 = vadd.f32 0.0, %v5291
      %5293 = vmatprep.mubr.f32.mxu0 %v5082
      %5294 = vmatmul.mubr.f32.gmra.mrb[0].mxu0 %v5080
      %v5295 = vpop.f32.mrb[0].mxu0
      %v5296 = vadd.f32 0.0, %v5295
      %v5297 = vpop.f32.mrb[0].mxu0
      %v5298 = vadd.f32 0.0, %v5297
      %5299 = vmatprep.mubr.f32.mxu0 %v5086
      %5300 = vmatmul.mubr.f32.gmra.mrb[0].mxu0 %v5084
      %v5301 = vpop.f32.mrb[0].mxu0
      %v5302 = vadd.f32 0.0, %v5301
      %v5303 = vpop.f32.mrb[0].mxu0
      %v5304 = vadd.f32 0.0, %v5303
      %5305 = vmatprep.mubr.f32.mxu0 %v5090
      %5306 = vmatmul.mubr.f32.gmra.mrb[0].mxu0 %v5088
      %v5307 = vpop.f32.mrb[0].mxu0
      %v5308 = vadd.f32 0.0, %v5307
      %v5309 = vpop.f32.mrb[0].mxu0
      %v5310 = vadd.f32 0.0, %v5309
      %5311 = vmatprep.mubr.f32.mxu0 %v5094
      %5312 = vmatmul.mubr.f32.gmra.mrb[0].mxu0 %v5092
      %v5313 = vpop.f32.mrb[0].mxu0
      %v5314 = vadd.f32 0.0, %v5313
      %v5315 = vpop.f32.mrb[0].mxu0
      %v5316 = vadd.f32 0.0, %v5315
      %5317 = vmatprep.mubr.f32.mxu0 %v5098
      %5318 = vmatmul.mubr.f32.gmra.mrb[0].mxu0 %v5096
      %v5319 = vpop.f32.mrb[0].mxu0
      %v5320 = vadd.f32 0.0, %v5319
      %v5321 = vpop.f32.mrb[0].mxu0
      %v5322 = vadd.f32 0.0, %v5321
      %5323 = vmatprep.mubr.f32.mxu0 %v5102
      %5324 = vmatmul.mubr.f32.gmra.mrb[0].mxu0 %v5100
      %v5325 = vpop.f32.mrb[0].mxu0
      %v5326 = vadd.f32 0.0, %v5325
      %v5327 = vpop.f32.mrb[0].mxu0
      %v5328 = vadd.f32 0.0, %v5327
      %5329 = vmatprep.mubr.f32.mxu0 %v5106
      %5330 = vmatmul.mubr.f32.gmra.mrb[0].mxu0 %v5104
      %v5331 = vpop.f32.mrb[0].mxu0
      %v5332 = vadd.f32 0.0, %v5331
      %v5333 = vpop.f32.mrb[0].mxu0
      %v5334 = vadd.f32 0.0, %v5333
      %5335 = vmatprep.mubr.f32.mxu0 %v5110
      %5336 = vmatmul.mubr.f32.gmra.mrb[0].mxu0 %v5108
      %v5337 = vpop.f32.mrb[0].mxu0
      %v5338 = vadd.f32 0.0, %v5337
      %v5339 = vpop.f32.mrb[0].mxu0
      %v5340 = vadd.f32 0.0, %v5339
      %5341 = vmatprep.mubr.f32.mxu0 %v5114
      %5342 = vmatmul.mubr.f32.gmra.mrb[0].mxu0 %v5112
      %v5343 = vpop.f32.mrb[0].mxu0
      %v5344 = vadd.f32 0.0, %v5343
      %v5345 = vpop.f32.mrb[0].mxu0
      %v5346 = vadd.f32 0.0, %v5345
      %5347 = vmatprep.mubr.f32.mxu0 %v5118
      %5348 = vmatmul.mubr.f32.gmra.mrb[0].mxu0 %v5116
      %v5349 = vpop.f32.mrb[0].mxu0
      %v5350 = vadd.f32 0.0, %v5349
      %v5351 = vpop.f32.mrb[0].mxu0
      %v5352 = vadd.f32 0.0, %v5351
      %5353 = vmatprep.mubr.f32.mxu0 %v5122
      %5354 = vmatmul.mubr.f32.gmra.mrb[0].mxu0 %v5120
      %v5355 = vpop.f32.mrb[0].mxu0
      %v5356 = vadd.f32 0.0, %v5355
      %v5357 = vpop.f32.mrb[0].mxu0
      %v5358 = vadd.f32 0.0, %v5357
      %5359 = vmatprep.mubr.f32.mxu0 %v5126
      %5360 = vmatmul.mubr.f32.gmra.mrb[0].mxu0 %v5124
      %v5361 = vpop.f32.mrb[0].mxu0
      %v5362 = vadd.f32 0.0, %v5361
      %v5363 = vpop.f32.mrb[0].mxu0
      %v5364 = vadd.f32 0.0, %v5363
      %5365 = vmatprep.mubr.f32.mxu0 %v5130
      %5366 = vmatmul.mubr.f32.gmra.mrb[0].mxu0 %v5128
      %v5367 = vpop.f32.mrb[0].mxu0
      %v5368 = vadd.f32 0.0, %v5367
      %v5369 = vpop.f32.mrb[0].mxu0
      %v5370 = vadd.f32 0.0, %v5369
      %5371 = vmatprep.mubr.f32.mxu0 %v5134
      %5372 = vmatmul.mubr.f32.gmra.mrb[0].mxu0 %v5132
      %v5373 = vpop.f32.mrb[0].mxu0
      %v5374 = vadd.f32 0.0, %v5373
      %v5375 = vpop.f32.mrb[0].mxu0
      %v5376 = vadd.f32 0.0, %v5375
      %5377 = vmatprep.mubr.f32.mxu0 %v5138
      %5378 = vmatmul.mubr.f32.gmra.mrb[0].mxu0 %v5136
      %v5379 = vpop.f32.mrb[0].mxu0
      %v5380 = vadd.f32 0.0, %v5379
      %v5381 = vpop.f32.mrb[0].mxu0
      %v5382 = vadd.f32 0.0, %v5381
      %5383 = vmatprep.mubr.f32.mxu0 %v5142
      %5384 = vmatmul.mubr.f32.gmra.mrb[0].mxu0 %v5140
      %v5385 = vpop.f32.mrb[0].mxu0
      %v5386 = vadd.f32 0.0, %v5385
      %v5387 = vpop.f32.mrb[0].mxu0
      %v5388 = vadd.f32 0.0, %v5387
      %5389 = vmatprep.mubr.f32.mxu0 %v5146
      %5390 = vmatmul.mubr.f32.gmra.mrb[0].mxu0 %v5144
      %v5391 = vpop.f32.mrb[0].mxu0
      %v5392 = vadd.f32 0.0, %v5391
      %v5393 = vpop.f32.mrb[0].mxu0
      %v5394 = vadd.f32 0.0, %v5393
      %5395 = vmatprep.mubr.f32.mxu0 %v5150
      %5396 = vmatmul.mubr.f32.gmra.mrb[0].mxu0 %v5148
      %v5397 = vpop.f32.mrb[0].mxu0
      %v5398 = vadd.f32 0.0, %v5397
      %v5399 = vpop.f32.mrb[0].mxu0
      %v5400 = vadd.f32 0.0, %v5399
      %5401 = vmatprep.mubr.f32.mxu0 %v5154
      %5402 = vmatmul.mubr.f32.gmra.mrb[0].mxu0 %v5152
      %v5403 = vpop.f32.mrb[0].mxu0
      %v5404 = vadd.f32 0.0, %v5403
      %v5405 = vpop.f32.mrb[0].mxu0
      %v5406 = vadd.f32 0.0, %v5405
      %5407 = vmatprep.mubr.f32.mxu0 %v5158
      %5408 = vmatmul.mubr.f32.gmra.mrb[0].mxu0 %v5156
      %v5409 = vpop.f32.mrb[0].mxu0
      %v5410 = vadd.f32 0.0, %v5409
      %v5411 = vpop.f32.mrb[0].mxu0
      %v5412 = vadd.f32 0.0, %v5411
      %5413 = vmatprep.mubr.f32.mxu0 %v5162
      %5414 = vmatmul.mubr.f32.gmra.mrb[0].mxu0 %v5160
      %v5415 = vpop.f32.mrb[0].mxu0
      %v5416 = vadd.f32 0.0, %v5415
      %v5417 = vpop.f32.mrb[0].mxu0
      %v5418 = vadd.f32 0.0, %v5417
      %5419 = vmatprep.mubr.f32.mxu0 %v5166
      %5420 = vmatmul.mubr.f32.gmra.mrb[0].mxu0 %v5164
      %v5421 = vpop.f32.mrb[0].mxu0
      %v5422 = vadd.f32 0.0, %v5421
      %v5423 = vpop.f32.mrb[0].mxu0
      %v5424 = vadd.f32 0.0, %v5423
      %5425 = vmatprep.mubr.f32.mxu0 %v5165
      %5426 = vmatmul.mubr.f32.gmra.mrb[0].mxu0 %v5163
      %v5427 = vpop.f32.mrb[0].mxu0
      %v5428 = vadd.f32 0.0, %v5427
      %v5429 = vpop.f32.mrb[0].mxu0
      %v5430 = vadd.f32 0.0, %v5429
      %5431 = vdwg.mxu0
      %v5432 = vld [vmem:[#allocation2] sm:$0xff]
      %v5433 = vld [vmem:[#allocation2 + $0x8] sm:$0xff]
      %v5434 = vld [vmem:[#allocation2 + $0x10] sm:$0xff]
      %v5435 = vld [vmem:[#allocation2 + $0x18] sm:$0xff]
      %v5436 = vld [vmem:[#allocation2 + $0x20] sm:$0xff]
      %v5437 = vld [vmem:[#allocation2 + $0x28] sm:$0xff]
      %v5438 = vld [vmem:[#allocation2 + $0x30] sm:$0xff]
      %v5439 = vld [vmem:[#allocation2 + $0x38] sm:$0xff]
      %v5440 = vld [vmem:[#allocation2 + $0x40] sm:$0xff]
      %v5441 = vld [vmem:[#allocation2 + $0x48] sm:$0xff]
      %v5442 = vld [vmem:[#allocation2 + $0x50] sm:$0xff]
      %v5443 = vld [vmem:[#allocation2 + $0x58] sm:$0xff]
      %v5444 = vld [vmem:[#allocation2 + $0x60] sm:$0xff]
      %v5445 = vld [vmem:[#allocation2 + $0x68] sm:$0xff]
      %v5446 = vld [vmem:[#allocation2 + $0x70] sm:$0xff]
      %v5447 = vld [vmem:[#allocation2 + $0x78] sm:$0xff]
      %v5448 = vld [vmem:[#allocation2 + $0x80] sm:$0xff]
      %v5449 = vld [vmem:[#allocation2 + $0x88] sm:$0xff]
      %v5450 = vld [vmem:[#allocation2 + $0x90] sm:$0xff]
      %v5451 = vld [vmem:[#allocation2 + $0x98] sm:$0xff]
      %v5452 = vld [vmem:[#allocation2 + $0xa0] sm:$0xff]
      %v5453 = vld [vmem:[#allocation2 + $0xa8] sm:$0xff]
      %v5454 = vld [vmem:[#allocation2 + $0xb0] sm:$0xff]
      %v5455 = vld [vmem:[#allocation2 + $0xb8] sm:$0xff]
      %v5456 = vld [vmem:[#allocation2 + $0xc0] sm:$0xff]
      %v5457 = vld [vmem:[#allocation2 + $0xc8] sm:$0xff]
      %v5458 = vld [vmem:[#allocation2 + $0xd0] sm:$0xff]
      %v5459 = vld [vmem:[#allocation2 + $0xd8] sm:$0xff]
      %v5460 = vld [vmem:[#allocation2 + $0xe0] sm:$0xff]
      %v5461 = vld [vmem:[#allocation2 + $0xe8] sm:$0xff]
      %v5462 = vld [vmem:[#allocation2 + $0xf0] sm:$0xff]
      %v5463 = vld [vmem:[#allocation2 + $0xf8] sm:$0xff]
      %v5464 = vld [vmem:[#allocation2 + $0x100] sm:$0xff]
      %v5465 = vld [vmem:[#allocation2 + $0x108] sm:$0xff]
      %v5466 = vld [vmem:[#allocation2 + $0x110] sm:$0xff]
      %v5467 = vld [vmem:[#allocation2 + $0x118] sm:$0xff]
      %v5468 = vld [vmem:[#allocation2 + $0x120] sm:$0xff]
      %v5469 = vld [vmem:[#allocation2 + $0x128] sm:$0xff]
      %v5470 = vld [vmem:[#allocation2 + $0x130] sm:$0xff]
      %v5471 = vld [vmem:[#allocation2 + $0x138] sm:$0xff]
      %v5472 = vld [vmem:[#allocation2 + $0x140] sm:$0xff]
      %v5473 = vld [vmem:[#allocation2 + $0x148] sm:$0xff]
      %v5474 = vld [vmem:[#allocation2 + $0x150] sm:$0xff]
      %v5475 = vld [vmem:[#allocation2 + $0x158] sm:$0xff]
      %v5476 = vld [vmem:[#allocation2 + $0x160] sm:$0xff]
      %v5477 = vld [vmem:[#allocation2 + $0x168] sm:$0xff]
      %v5478 = vld [vmem:[#allocation2 + $0x170] sm:$0xff]
      %v5479 = vld [vmem:[#allocation2 + $0x178] sm:$0xff]
      %v5480 = vld [vmem:[#allocation2 + $0x180] sm:$0x7]
      %v5481 = vld [vmem:[#allocation2 + $0x188] sm:$0x7]
      %v5482 = vadd.f32 %v5432, %v5284
      %v5483 = vadd.f32 %v5433, %v5286
      %v5484 = vadd.f32 %v5434, %v5290
      %v5485 = vadd.f32 %v5435, %v5292
      %v5486 = vadd.f32 %v5436, %v5296
      %v5487 = vadd.f32 %v5437, %v5298
      %v5488 = vadd.f32 %v5438, %v5302
      %v5489 = vadd.f32 %v5439, %v5304
      %v5490 = vadd.f32 %v5440, %v5308
      %v5491 = vadd.f32 %v5441, %v5310
      %v5492 = vadd.f32 %v5442, %v5314
      %v5493 = vadd.f32 %v5443, %v5316
      %v5494 = vadd.f32 %v5444, %v5320
      %v5495 = vadd.f32 %v5445, %v5322
      %v5496 = vadd.f32 %v5446, %v5326
      %v5497 = vadd.f32 %v5447, %v5328
      %v5498 = vadd.f32 %v5448, %v5332
      %v5499 = vadd.f32 %v5449, %v5334
      %v5500 = vadd.f32 %v5450, %v5338
      %v5501 = vadd.f32 %v5451, %v5340
      %v5502 = vadd.f32 %v5452, %v5344
      %v5503 = vadd.f32 %v5453, %v5346
      %v5504 = vadd.f32 %v5454, %v5350
      %v5505 = vadd.f32 %v5455, %v5352
      %v5506 = vadd.f32 %v5456, %v5356
      %v5507 = vadd.f32 %v5457, %v5358
      %v5508 = vadd.f32 %v5458, %v5362
      %v5509 = vadd.f32 %v5459, %v5364
      %v5510 = vadd.f32 %v5460, %v5368
      %v5511 = vadd.f32 %v5461, %v5370
      %v5512 = vadd.f32 %v5462, %v5374
      %v5513 = vadd.f32 %v5463, %v5376
      %v5514 = vadd.f32 %v5464, %v5380
      %v5515 = vadd.f32 %v5465, %v5382
      %v5516 = vadd.f32 %v5466, %v5386
      %v5517 = vadd.f32 %v5467, %v5388
      %v5518 = vadd.f32 %v5468, %v5392
      %v5519 = vadd.f32 %v5469, %v5394
      %v5520 = vadd.f32 %v5470, %v5398
      %v5521 = vadd.f32 %v5471, %v5400
      %v5522 = vadd.f32 %v5472, %v5404
      %v5523 = vadd.f32 %v5473, %v5406
      %v5524 = vadd.f32 %v5474, %v5410
      %v5525 = vadd.f32 %v5475, %v5412
      %v5526 = vadd.f32 %v5476, %v5416
      %v5527 = vadd.f32 %v5477, %v5418
      %v5528 = vadd.f32 %v5478, %v5422
      %v5529 = vadd.f32 %v5479, %v5424
      %v5530 = vadd.f32 %v5480, %v5428
      %v5531 = vadd.f32 %v5481, %v5430
      %5532 = vst [vmem:[#allocation2] sm:$0xff] %v5482
      %5533 = vst [vmem:[#allocation2 + $0x8] sm:$0xff] %v5483
      %5534 = vst [vmem:[#allocation2 + $0x10] sm:$0xff] %v5484
      %5535 = vst [vmem:[#allocation2 + $0x18] sm:$0xff] %v5485
      %5536 = vst [vmem:[#allocation2 + $0x20] sm:$0xff] %v5486
      %5537 = vst [vmem:[#allocation2 + $0x28] sm:$0xff] %v5487
      %5538 = vst [vmem:[#allocation2 + $0x30] sm:$0xff] %v5488
      %5539 = vst [vmem:[#allocation2 + $0x38] sm:$0xff] %v5489
      %5540 = vst [vmem:[#allocation2 + $0x40] sm:$0xff] %v5490
      %5541 = vst [vmem:[#allocation2 + $0x48] sm:$0xff] %v5491
      %5542 = vst [vmem:[#allocation2 + $0x50] sm:$0xff] %v5492
      %5543 = vst [vmem:[#allocation2 + $0x58] sm:$0xff] %v5493
      %5544 = vst [vmem:[#allocation2 + $0x60] sm:$0xff] %v5494
      %5545 = vst [vmem:[#allocation2 + $0x68] sm:$0xff] %v5495
      %5546 = vst [vmem:[#allocation2 + $0x70] sm:$0xff] %v5496
      %5547 = vst [vmem:[#allocation2 + $0x78] sm:$0xff] %v5497
      %5548 = vst [vmem:[#allocation2 + $0x80] sm:$0xff] %v5498
      %5549 = vst [vmem:[#allocation2 + $0x88] sm:$0xff] %v5499
      %5550 = vst [vmem:[#allocation2 + $0x90] sm:$0xff] %v5500
      %5551 = vst [vmem:[#allocation2 + $0x98] sm:$0xff] %v5501
      %5552 = vst [vmem:[#allocation2 + $0xa0] sm:$0xff] %v5502
      %5553 = vst [vmem:[#allocation2 + $0xa8] sm:$0xff] %v5503
      %5554 = vst [vmem:[#allocation2 + $0xb0] sm:$0xff] %v5504
      %5555 = vst [vmem:[#allocation2 + $0xb8] sm:$0xff] %v5505
      %5556 = vst [vmem:[#allocation2 + $0xc0] sm:$0xff] %v5506
      %5557 = vst [vmem:[#allocation2 + $0xc8] sm:$0xff] %v5507
      %5558 = vst [vmem:[#allocation2 + $0xd0] sm:$0xff] %v5508
      %5559 = vst [vmem:[#allocation2 + $0xd8] sm:$0xff] %v5509
      %5560 = vst [vmem:[#allocation2 + $0xe0] sm:$0xff] %v5510
      %5561 = vst [vmem:[#allocation2 + $0xe8] sm:$0xff] %v5511
      %5562 = vst [vmem:[#allocation2 + $0xf0] sm:$0xff] %v5512
      %5563 = vst [vmem:[#allocation2 + $0xf8] sm:$0xff] %v5513
      %5564 = vst [vmem:[#allocation2 + $0x100] sm:$0xff] %v5514
      %5565 = vst [vmem:[#allocation2 + $0x108] sm:$0xff] %v5515
      %5566 = vst [vmem:[#allocation2 + $0x110] sm:$0xff] %v5516
      %5567 = vst [vmem:[#allocation2 + $0x118] sm:$0xff] %v5517
      %5568 = vst [vmem:[#allocation2 + $0x120] sm:$0xff] %v5518
      %5569 = vst [vmem:[#allocation2 + $0x128] sm:$0xff] %v5519
      %5570 = vst [vmem:[#allocation2 + $0x130] sm:$0xff] %v5520
      %5571 = vst [vmem:[#allocation2 + $0x138] sm:$0xff] %v5521
      %5572 = vst [vmem:[#allocation2 + $0x140] sm:$0xff] %v5522
      %5573 = vst [vmem:[#allocation2 + $0x148] sm:$0xff] %v5523
      %5574 = vst [vmem:[#allocation2 + $0x150] sm:$0xff] %v5524
      %5575 = vst [vmem:[#allocation2 + $0x158] sm:$0xff] %v5525
      %5576 = vst [vmem:[#allocation2 + $0x160] sm:$0xff] %v5526
      %5577 = vst [vmem:[#allocation2 + $0x168] sm:$0xff] %v5527
      %5578 = vst [vmem:[#allocation2 + $0x170] sm:$0xff] %v5528
      %5579 = vst [vmem:[#allocation2 + $0x178] sm:$0xff] %v5529
      %5580 = vst [vmem:[#allocation2 + $0x180] sm:$0x7] %v5530
      %5581 = vst [vmem:[#allocation2 + $0x188] sm:$0x7] %v5531
      %v5582 = vld [vmem:[%s2] sm:$0x3]
      %v5583 = vlaneseq
      %v5584 = vshrl.u32 %v5583, 7
      %v5585 = vlaneseq
      %v5586 = vand.u32 %v5585, 127
      %v5587 = vmul.u32 %v5584, 2
      %vm5588 = vcmp.eq.s32.totalorder %v5586, %v5587
      %v5589 = vsel %vm5588, 1, 0
      %v5590 = vcvt.s32.f32 %v5589
      %v5591 = vld [vmem:[#allocation2] sm:$0xff]
      %v5592 = vld [vmem:[#allocation2 + $0x8] sm:$0xff]
      %v5593 = vld [vmem:[#allocation2 + $0x10] sm:$0x7]
      %v5594 = vld [vmem:[#allocation2 + $0x18] sm:$0x7]
      %v5595 = vld [vmem:[#allocation2] sm:$0xfe]
      %v5596 = vld [vmem:[#allocation2 + $0x8] sm:$0xfe]
      %v5597 = vld [vmem:[#allocation2 + $0x10] sm:$0xf]
      %v5598 = vld [vmem:[#allocation2 + $0x18] sm:$0xf]
      %v5603 = vrot.slane %v5595, 1
      %v5604 = vrot.slane %v5597, 1
      %v5605 = vsel %vm715, %v5603, %v5604
      %v5606 = vrot.slane %v5596, 1
      %v5607 = vrot.slane %v5598, 1
      %v5608 = vsel %vm715, %v5606, %v5607
      %v5613 = vmax.f32 %v5591, %v5605
      %v5614 = vmax.f32 %v5592, %v5608
      %v5615 = vmax.f32 %v5593, %v5604
      %v5616 = vmax.f32 %v5594, %v5607
      %v5617 = vld [vmem:[#allocation2] sm:$0xfc]
      %v5618 = vld [vmem:[#allocation2 + $0x8] sm:$0xfc]
      %v5619 = vld [vmem:[#allocation2 + $0x10] sm:$0x1f]
      %v5620 = vld [vmem:[#allocation2 + $0x18] sm:$0x1f]
      %v5625 = vrot.slane %v5617, 2
      %v5626 = vrot.slane %v5619, 2
      %v5627 = vsel %vm1394, %v5625, %v5626
      %v5628 = vrot.slane %v5618, 2
      %v5629 = vrot.slane %v5620, 2
      %v5630 = vsel %vm1394, %v5628, %v5629
      %v5635 = vmax.f32 %v5613, %v5627
      %v5636 = vmax.f32 %v5614, %v5630
      %v5637 = vmax.f32 %v5615, %v5626
      %v5638 = vmax.f32 %v5616, %v5629
      %v5639 = vld [vmem:[#allocation2 + $0x10] sm:$0x80]
      %v5640 = vld [vmem:[#allocation2 + $0x18] sm:$0x80]
      %v5641 = vld [vmem:[#allocation2 + $0x20] sm:$0xff]
      %v5642 = vld [vmem:[#allocation2 + $0x28] sm:$0xff]
      %v5643 = vld [vmem:[#allocation2 + $0x30] sm:$0x3]
      %v5644 = vld [vmem:[#allocation2 + $0x38] sm:$0x3]
      %vm5651 = vcmask 1040384
      %v5652 = vrot.slane %v5639, 7
      %v5653 = vrot.slane %v5641, 7
      %v5654 = vsel %vm5651, %v5652, %v5653
      %v5655 = vrot.slane %v5640, 7
      %v5656 = vrot.slane %v5642, 7
      %v5657 = vsel %vm5651, %v5655, %v5656
      %v5658 = vrot.slane %v5643, 7
      %v5659 = vsel %vm5651, %v5653, %v5658
      %v5660 = vrot.slane %v5644, 7
      %v5661 = vsel %vm5651, %v5656, %v5660
      %v5666 = vmax.f32 %v5635, %v5654
      %v5667 = vmax.f32 %v5636, %v5657
      %v5668 = vmax.f32 %v5637, %v5659
      %v5669 = vmax.f32 %v5638, %v5661
      %v5670 = vld [vmem:[#allocation2 + $0x30] sm:$0x7]
      %v5671 = vld [vmem:[#allocation2 + $0x38] sm:$0x7]
      %v5672 = vmax.f32 %v5666, %v5641
      %v5673 = vmax.f32 %v5667, %v5642
      %v5674 = vmax.f32 %v5668, %v5670
      %v5675 = vmax.f32 %v5669, %v5671
      %v5676 = vld [vmem:[#allocation2 + $0x20] sm:$0xfe]
      %v5677 = vld [vmem:[#allocation2 + $0x28] sm:$0xfe]
      %v5678 = vld [vmem:[#allocation2 + $0x30] sm:$0xf]
      %v5679 = vld [vmem:[#allocation2 + $0x38] sm:$0xf]
      %v5684 = vrot.slane %v5676, 1
      %v5685 = vrot.slane %v5678, 1
      %v5686 = vsel %vm715, %v5684, %v5685
      %v5687 = vrot.slane %v5677, 1
      %v5688 = vrot.slane %v5679, 1
      %v5689 = vsel %vm715, %v5687, %v5688
      %v5694 = vmax.f32 %v5672, %v5686
      %v5695 = vmax.f32 %v5673, %v5689
      %v5696 = vmax.f32 %v5674, %v5685
      %v5697 = vmax.f32 %v5675, %v5688
      %v5698 = vld [vmem:[#allocation2 + $0x30] sm:$0xc0]
      %v5699 = vld [vmem:[#allocation2 + $0x38] sm:$0xc0]
      %v5700 = vld [vmem:[#allocation2 + $0x40] sm:$0xff]
      %v5701 = vld [vmem:[#allocation2 + $0x48] sm:$0xff]
      %v5702 = vld [vmem:[#allocation2 + $0x50] sm:$0x1]
      %v5703 = vld [vmem:[#allocation2 + $0x58] sm:$0x1]
      %vm5710 = vcmask 1041408
      %v5711 = vrot.slane %v5698, 6
      %v5712 = vrot.slane %v5700, 6
      %v5713 = vsel %vm5710, %v5711, %v5712
      %v5714 = vrot.slane %v5699, 6
      %v5715 = vrot.slane %v5701, 6
      %v5716 = vsel %vm5710, %v5714, %v5715
      %v5717 = vrot.slane %v5702, 6
      %v5718 = vsel %vm5710, %v5712, %v5717
      %v5719 = vrot.slane %v5703, 6
      %v5720 = vsel %vm5710, %v5715, %v5719
      %v5725 = vmax.f32 %v5694, %v5713
      %v5726 = vmax.f32 %v5695, %v5716
      %v5727 = vmax.f32 %v5696, %v5718
      %v5728 = vmax.f32 %v5697, %v5720
      %v5729 = vld [vmem:[#allocation2 + $0x30] sm:$0x80]
      %v5730 = vld [vmem:[#allocation2 + $0x38] sm:$0x80]
      %v5731 = vld [vmem:[#allocation2 + $0x50] sm:$0x3]
      %v5732 = vld [vmem:[#allocation2 + $0x58] sm:$0x3]
      %v5737 = vrot.slane %v5729, 7
      %v5738 = vrot.slane %v5700, 7
      %v5739 = vsel %vm5651, %v5737, %v5738
      %v5740 = vrot.slane %v5730, 7
      %v5741 = vrot.slane %v5701, 7
      %v5742 = vsel %vm5651, %v5740, %v5741
      %v5743 = vrot.slane %v5731, 7
      %v5744 = vsel %vm5651, %v5738, %v5743
      %v5745 = vrot.slane %v5732, 7
      %v5746 = vsel %vm5651, %v5741, %v5745
      %v5751 = vmax.f32 %v5725, %v5739
      %v5752 = vmax.f32 %v5726, %v5742
      %v5753 = vmax.f32 %v5727, %v5744
      %v5754 = vmax.f32 %v5728, %v5746
      %v5755 = vld [vmem:[#allocation2 + $0x50] sm:$0x7]
      %v5756 = vld [vmem:[#allocation2 + $0x58] sm:$0x7]
      %v5757 = vmax.f32 %v5751, %v5700
      %v5758 = vmax.f32 %v5752, %v5701
      %v5759 = vmax.f32 %v5753, %v5755
      %v5760 = vmax.f32 %v5754, %v5756
      %v5762 = vlaneseq
      %v5763 = vshrl.u32 %v5762, 7
      %v5764 = vsub.s32 0, %v5763
      %v5765 = vrot.slane %v5582, %v5764
      %v5766 = vlaneseq
      %v5767 = vshrl.u32 %v5766, 7
      %v5768 = vsub.s32 1, %v5767
      %v5769 = vrot.slane %v5582, %v5768
      %v5772 = vadd.f32 %v5757, %v5765
      %v5773 = vadd.f32 %v5758, %v5769
      %v5774 = vadd.f32 %v5759, %v5765
      %v5775 = vadd.f32 %v5760, %v5769
      %v5776 = vmax.f32 %v5772, 0.0
      %v5777 = vmax.f32 %v5773, 0.0
      %v5778 = vmax.f32 %v5774, 0.0
      %v5779 = vmax.f32 %v5775, 0.0
      %vm5780 = vcmask 89088
      %v5782 = vsel %vm5780, %v5590, 0
      %vm5784 = vcmask 1042432
      %v5786 = vsel %vm5784, %v5778, 0
      %v5789 = vsel %vm5784, %v5779, 0
      %5791 = vmatprep.subr.mxu0 %v5777
      %5792 = vmatpush1.msra.mxu0 %v5776
      %5793 = vmatprep.subr.mxu0 %v5789
      %5794 = vmatpush1.msra.mxu0 %v5786
      %5795 = vmatprep.subr.mxu0 0.0
      %5796 = vmatpush1.msra.mxu0 0.0
      %5797 = vmatprep.subr.mxu0 0.0
      %5798 = vmatpush1.msra.mxu0 0.0
      %5799 = vmatprep.subr.mxu0 0.0
      %5800 = vmatpush1.msra.mxu0 0.0
      %5801 = vmatprep.subr.mxu0 0.0
      %5802 = vmatpush1.msra.mxu0 0.0
      %5803 = vmatprep.subr.mxu0 0.0
      %5804 = vmatpush1.msra.mxu0 0.0
      %5805 = vmatprep.subr.mxu0 0.0
      %5806 = vmatpush1.msra.mxu0 0.0
      %5807 = vmatprep.subr.mxu0 0.0
      %5808 = vmatpush1.msra.mxu0 0.0
      %5809 = vmatprep.subr.mxu0 0.0
      %5810 = vmatpush1.msra.mxu0 0.0
      %5811 = vmatprep.subr.mxu0 0.0
      %5812 = vmatpush1.msra.mxu0 0.0
      %5813 = vmatprep.subr.mxu0 0.0
      %5814 = vmatpush1.msra.mxu0 0.0
      %5815 = vmatprep.subr.mxu0 0.0
      %5816 = vmatpush1.msra.mxu0 0.0
      %5817 = vmatprep.subr.mxu0 0.0
      %5818 = vmatpush1.msra.mxu0 0.0
      %5819 = vmatprep.subr.mxu0 0.0
      %5820 = vmatpush1.msra.mxu0 0.0
      %5821 = vmatprep.subr.mxu0 0.0
      %5822 = vmatpush1.msra.mxu0 0.0
      %5823 = vmatprep.subr.mxu0 0.0
      %5824 = vmatpush1.msra.mxu0 0.0
      %5825 = vmatprep.subr.mxu0 0.0
      %5826 = vmatpush1.msra.mxu0 0.0
      %5827 = vmatprep.subr.mxu0 0.0
      %5828 = vmatpush1.msra.mxu0 0.0
      %5829 = vmatprep.subr.mxu0 0.0
      %5830 = vmatpush1.msra.mxu0 0.0
      %5831 = vmatprep.subr.mxu0 0.0
      %5832 = vmatpush1.msra.mxu0 0.0
      %5833 = vmatprep.subr.mxu0 0.0
      %5834 = vmatpush1.msra.mxu0 0.0
      %5835 = vmatprep.subr.mxu0 0.0
      %5836 = vmatpush1.msra.mxu0 0.0
      %5837 = vmatprep.subr.mxu0 0.0
      %5838 = vmatpush1.msra.mxu0 0.0
      %5839 = vmatprep.subr.mxu0 0.0
      %5840 = vmatpush1.msra.mxu0 0.0
      %5841 = vmatprep.subr.mxu0 0.0
      %5842 = vmatpush1.msra.mxu0 0.0
      %5843 = vmatprep.subr.mxu0 0.0
      %5844 = vmatpush1.msra.mxu0 0.0
      %5845 = vmatprep.subr.mxu0 0.0
      %5846 = vmatpush1.msra.mxu0 0.0
      %5847 = vmatprep.subr.mxu0 0.0
      %5848 = vmatpush1.msra.mxu0 0.0
      %5849 = vmatprep.subr.mxu0 0.0
      %5850 = vmatpush1.msra.mxu0 0.0
      %5851 = vmatprep.subr.mxu0 0.0
      %5852 = vmatpush1.msra.mxu0 0.0
      %5853 = vmatprep.subr.mxu0 0.0
      %5854 = vmatpush1.msra.mxu0 0.0
      %5855 = vmatprep.mubr.f32.mxu0 0.0
      %5856 = vmatmul.mubr.f32.gmra.mrb[0].mxu0 %v5782
      %v5857 = vpop.f32.mrb[0].mxu0
      %v5858 = vadd.f32 0.0, %v5857
      %v5859 = vpop.f32.mrb[0].mxu0
      %v5860 = vadd.f32 0.0, %v5859
      %5861 = vdwg.mxu0
      %5862 = vst [vmem:[%s170] sm:$0x3f] %v5858
      %5863 = vst [vmem:[%s170 + $0x8] sm:$0x3f] %v5860
      %v5864 = vld [vmem:[#allocation2 + $0x30] sm:$0xc0]
      %v5865 = vld [vmem:[#allocation2 + $0x38] sm:$0xc0]
      %v5866 = vld [vmem:[#allocation2 + $0x40] sm:$0xff]
      %v5867 = vld [vmem:[#allocation2 + $0x48] sm:$0xff]
      %v5868 = vld [vmem:[#allocation2 + $0x50] sm:$0x1]
      %v5869 = vld [vmem:[#allocation2 + $0x58] sm:$0x1]
      %v5870 = vld [vmem:[#allocation2 + $0x30] sm:$0x80]
      %v5871 = vld [vmem:[#allocation2 + $0x38] sm:$0x80]
      %v5872 = vld [vmem:[#allocation2 + $0x50] sm:$0x3]
      %v5873 = vld [vmem:[#allocation2 + $0x58] sm:$0x3]
      %v5880 = vrot.slane %v5870, 1
      %v5881 = vrot.slane %v5866, 1
      %v5882 = vsel %vm715, %v5880, %v5881
      %v5883 = vrot.slane %v5871, 1
      %v5884 = vrot.slane %v5867, 1
      %v5885 = vsel %vm715, %v5883, %v5884
      %v5886 = vrot.slane %v5872, 1
      %v5887 = vsel %vm715, %v5881, %v5886
      %v5888 = vrot.slane %v5873, 1
      %v5889 = vsel %vm715, %v5884, %v5888
      %v5896 = vmax.f32 %v5864, %v5882
      %v5897 = vmax.f32 %v5865, %v5885
      %v5898 = vmax.f32 %v5866, %v5887
      %v5899 = vmax.f32 %v5867, %v5889
      %v5900 = vmax.f32 %v5868, %v5886
      %v5901 = vmax.f32 %v5869, %v5888
      %v5902 = vld [vmem:[#allocation2 + $0x50] sm:$0x7]
      %v5903 = vld [vmem:[#allocation2 + $0x58] sm:$0x7]
      %v5906 = vrot.slane %v5866, 2
      %v5907 = vrot.slane %v5867, 2
      %v5908 = vrot.slane %v5902, 2
      %v5909 = vsel %vm1394, %v5906, %v5908
      %v5910 = vrot.slane %v5903, 2
      %v5911 = vsel %vm1394, %v5907, %v5910
      %v5918 = vmax.f32 %v5896, %v5906
      %v5919 = vmax.f32 %v5897, %v5907
      %v5920 = vmax.f32 %v5898, %v5909
      %v5921 = vmax.f32 %v5899, %v5911
      %v5922 = vmax.f32 %v5900, %v5908
      %v5923 = vmax.f32 %v5901, %v5910
      %v5924 = vld [vmem:[#allocation2 + $0x50] sm:$0xe0]
      %v5925 = vld [vmem:[#allocation2 + $0x58] sm:$0xe0]
      %v5926 = vld [vmem:[#allocation2 + $0x60] sm:$0xff]
      %v5927 = vld [vmem:[#allocation2 + $0x68] sm:$0xff]
      %v5932 = vrot.slane %v5924, 7
      %v5933 = vrot.slane %v5925, 7
      %v5934 = vrot.slane %v5926, 7
      %v5935 = vsel %vm5651, %v5932, %v5934
      %v5936 = vrot.slane %v5927, 7
      %v5937 = vsel %vm5651, %v5933, %v5936
      %v5944 = vmax.f32 %v5918, %v5932
      %v5945 = vmax.f32 %v5919, %v5933
      %v5946 = vmax.f32 %v5920, %v5935
      %v5947 = vmax.f32 %v5921, %v5937
      %v5948 = vmax.f32 %v5922, %v5934
      %v5949 = vmax.f32 %v5923, %v5936
      %v5950 = vld [vmem:[#allocation2 + $0x50] sm:$0xc0]
      %v5951 = vld [vmem:[#allocation2 + $0x58] sm:$0xc0]
      %v5952 = vld [vmem:[#allocation2 + $0x70] sm:$0x1]
      %v5953 = vld [vmem:[#allocation2 + $0x78] sm:$0x1]
      %v5954 = vmax.f32 %v5944, %v5950
      %v5955 = vmax.f32 %v5945, %v5951
      %v5956 = vmax.f32 %v5946, %v5926
      %v5957 = vmax.f32 %v5947, %v5927
      %v5958 = vmax.f32 %v5948, %v5952
      %v5959 = vmax.f32 %v5949, %v5953
      %v5960 = vld [vmem:[#allocation2 + $0x50] sm:$0x80]
      %v5961 = vld [vmem:[#allocation2 + $0x58] sm:$0x80]
      %v5962 = vld [vmem:[#allocation2 + $0x70] sm:$0x3]
      %v5963 = vld [vmem:[#allocation2 + $0x78] sm:$0x3]
      %v5968 = vrot.slane %v5960, 1
      %v5969 = vrot.slane %v5926, 1
      %v5970 = vsel %vm715, %v5968, %v5969
      %v5971 = vrot.slane %v5961, 1
      %v5972 = vrot.slane %v5927, 1
      %v5973 = vsel %vm715, %v5971, %v5972
      %v5974 = vrot.slane %v5962, 1
      %v5975 = vsel %vm715, %v5969, %v5974
      %v5976 = vrot.slane %v5963, 1
      %v5977 = vsel %vm715, %v5972, %v5976
      %v5984 = vmax.f32 %v5954, %v5970
      %v5985 = vmax.f32 %v5955, %v5973
      %v5986 = vmax.f32 %v5956, %v5975
      %v5987 = vmax.f32 %v5957, %v5977
      %v5988 = vmax.f32 %v5958, %v5974
      %v5989 = vmax.f32 %v5959, %v5976
      %v5990 = vld [vmem:[#allocation2 + $0x70] sm:$0xf0]
      %v5991 = vld [vmem:[#allocation2 + $0x78] sm:$0xf0]
      %v5992 = vld [vmem:[#allocation2 + $0x80] sm:$0x7f]
      %v5993 = vld [vmem:[#allocation2 + $0x88] sm:$0x7f]
      %v5998 = vrot.slane %v5990, 6
      %v5999 = vrot.slane %v5991, 6
      %v6000 = vrot.slane %v5992, 6
      %v6001 = vsel %vm5710, %v5998, %v6000
      %v6002 = vrot.slane %v5993, 6
      %v6003 = vsel %vm5710, %v5999, %v6002
      %v6010 = vmax.f32 %v5984, %v5998
      %v6011 = vmax.f32 %v5985, %v5999
      %v6012 = vmax.f32 %v5986, %v6001
      %v6013 = vmax.f32 %v5987, %v6003
      %v6014 = vmax.f32 %v5988, %v6000
      %v6015 = vmax.f32 %v5989, %v6002
      %v6016 = vld [vmem:[#allocation2 + $0x70] sm:$0xe0]
      %v6017 = vld [vmem:[#allocation2 + $0x78] sm:$0xe0]
      %v6018 = vld [vmem:[#allocation2 + $0x80] sm:$0xff]
      %v6019 = vld [vmem:[#allocation2 + $0x88] sm:$0xff]
      %v6024 = vrot.slane %v6016, 7
      %v6025 = vrot.slane %v6017, 7
      %v6026 = vrot.slane %v6018, 7
      %v6027 = vsel %vm5651, %v6024, %v6026
      %v6028 = vrot.slane %v6019, 7
      %v6029 = vsel %vm5651, %v6025, %v6028
      %v6036 = vmax.f32 %v6010, %v6024
      %v6037 = vmax.f32 %v6011, %v6025
      %v6038 = vmax.f32 %v6012, %v6027
      %v6039 = vmax.f32 %v6013, %v6029
      %v6040 = vmax.f32 %v6014, %v6026
      %v6041 = vmax.f32 %v6015, %v6028
      %v6042 = vld [vmem:[#allocation2 + $0x70] sm:$0xc0]
      %v6043 = vld [vmem:[#allocation2 + $0x78] sm:$0xc0]
      %v6044 = vld [vmem:[#allocation2 + $0x90] sm:$0x1]
      %v6045 = vld [vmem:[#allocation2 + $0x98] sm:$0x1]
      %v6046 = vmax.f32 %v6036, %v6042
      %v6047 = vmax.f32 %v6037, %v6043
      %v6048 = vmax.f32 %v6038, %v6018
      %v6049 = vmax.f32 %v6039, %v6019
      %v6050 = vmax.f32 %v6040, %v6044
      %v6051 = vmax.f32 %v6041, %v6045
      %v6052 = vadd.f32 %v6046, %v5765
      %v6053 = vadd.f32 %v6047, %v5769
      %v6054 = vadd.f32 %v6048, %v5765
      %v6055 = vadd.f32 %v6049, %v5769
      %v6056 = vadd.f32 %v6050, %v5765
      %v6057 = vadd.f32 %v6051, %v5769
      %v6058 = vmax.f32 %v6052, 0.0
      %v6059 = vmax.f32 %v6053, 0.0
      %v6060 = vmax.f32 %v6054, 0.0
      %v6061 = vmax.f32 %v6055, 0.0
      %v6062 = vmax.f32 %v6056, 0.0
      %v6063 = vmax.f32 %v6057, 0.0
      %v6070 = vrot.slane %v6058, 6
      %v6071 = vrot.slane %v6060, 6
      %v6072 = vsel %vm5710, %v6070, %v6071
      %v6073 = vrot.slane %v6059, 6
      %v6074 = vrot.slane %v6061, 6
      %v6075 = vsel %vm5710, %v6073, %v6074
      %v6076 = vrot.slane %v6062, 6
      %v6077 = vsel %vm5710, %v6071, %v6076
      %v6078 = vrot.slane %v6063, 6
      %v6079 = vsel %vm5710, %v6074, %v6078
      %v6082 = vsel %vm5784, %v6077, 0
      %v6084 = vsel %vm5784, %v6079, 0
      %6086 = vmatprep.subr.mxu0 %v6075
      %6087 = vmatpush1.msra.mxu0 %v6072
      %6088 = vmatprep.subr.mxu0 %v6084
      %6089 = vmatpush1.msra.mxu0 %v6082
      %6090 = vmatprep.subr.mxu0 0.0
      %6091 = vmatpush1.msra.mxu0 0.0
      %6092 = vmatprep.subr.mxu0 0.0
      %6093 = vmatpush1.msra.mxu0 0.0
      %6094 = vmatprep.subr.mxu0 0.0
      %6095 = vmatpush1.msra.mxu0 0.0
      %6096 = vmatprep.subr.mxu0 0.0
      %6097 = vmatpush1.msra.mxu0 0.0
      %6098 = vmatprep.subr.mxu0 0.0
      %6099 = vmatpush1.msra.mxu0 0.0
      %6100 = vmatprep.subr.mxu0 0.0
      %6101 = vmatpush1.msra.mxu0 0.0
      %6102 = vmatprep.subr.mxu0 0.0
      %6103 = vmatpush1.msra.mxu0 0.0
      %6104 = vmatprep.subr.mxu0 0.0
      %6105 = vmatpush1.msra.mxu0 0.0
      %6106 = vmatprep.subr.mxu0 0.0
      %6107 = vmatpush1.msra.mxu0 0.0
      %6108 = vmatprep.subr.mxu0 0.0
      %6109 = vmatpush1.msra.mxu0 0.0
      %6110 = vmatprep.subr.mxu0 0.0
      %6111 = vmatpush1.msra.mxu0 0.0
      %6112 = vmatprep.subr.mxu0 0.0
      %6113 = vmatpush1.msra.mxu0 0.0
      %6114 = vmatprep.subr.mxu0 0.0
      %6115 = vmatpush1.msra.mxu0 0.0
      %6116 = vmatprep.subr.mxu0 0.0
      %6117 = vmatpush1.msra.mxu0 0.0
      %6118 = vmatprep.subr.mxu0 0.0
      %6119 = vmatpush1.msra.mxu0 0.0
      %6120 = vmatprep.subr.mxu0 0.0
      %6121 = vmatpush1.msra.mxu0 0.0
      %6122 = vmatprep.subr.mxu0 0.0
      %6123 = vmatpush1.msra.mxu0 0.0
      %6124 = vmatprep.subr.mxu0 0.0
      %6125 = vmatpush1.msra.mxu0 0.0
      %6126 = vmatprep.subr.mxu0 0.0
      %6127 = vmatpush1.msra.mxu0 0.0
      %6128 = vmatprep.subr.mxu0 0.0
      %6129 = vmatpush1.msra.mxu0 0.0
      %6130 = vmatprep.subr.mxu0 0.0
      %6131 = vmatpush1.msra.mxu0 0.0
      %6132 = vmatprep.subr.mxu0 0.0
      %6133 = vmatpush1.msra.mxu0 0.0
      %6134 = vmatprep.subr.mxu0 0.0
      %6135 = vmatpush1.msra.mxu0 0.0
      %6136 = vmatprep.subr.mxu0 0.0
      %6137 = vmatpush1.msra.mxu0 0.0
      %6138 = vmatprep.subr.mxu0 0.0
      %6139 = vmatpush1.msra.mxu0 0.0
      %6140 = vmatprep.subr.mxu0 0.0
      %6141 = vmatpush1.msra.mxu0 0.0
      %6142 = vmatprep.subr.mxu0 0.0
      %6143 = vmatpush1.msra.mxu0 0.0
      %6144 = vmatprep.subr.mxu0 0.0
      %6145 = vmatpush1.msra.mxu0 0.0
      %6146 = vmatprep.subr.mxu0 0.0
      %6147 = vmatpush1.msra.mxu0 0.0
      %6148 = vmatprep.subr.mxu0 0.0
      %6149 = vmatpush1.msra.mxu0 0.0
      %6150 = vmatprep.mubr.f32.mxu0 0.0
      %6151 = vmatmul.mubr.f32.gmra.mrb[0].mxu0 %v5782
      %v6152 = vpop.f32.mrb[0].mxu0
      %v6153 = vadd.f32 0.0, %v6152
      %v6154 = vpop.f32.mrb[0].mxu0
      %v6155 = vadd.f32 0.0, %v6154
      %6156 = vdwg.mxu0
      %s6157 = scalar_lea.vmem %s170, 16
      %6158 = vst [vmem:[%s6157] sm:$0x3f] %v6153
      %6159 = vst [vmem:[%s6157 + $0x8] sm:$0x3f] %v6155
      %v6160 = vld [vmem:[#allocation2 + $0x70] sm:$0xf0]
      %v6161 = vld [vmem:[#allocation2 + $0x78] sm:$0xf0]
      %v6162 = vld [vmem:[#allocation2 + $0x80] sm:$0x7f]
      %v6163 = vld [vmem:[#allocation2 + $0x88] sm:$0x7f]
      %v6164 = vld [vmem:[#allocation2 + $0x70] sm:$0xe0]
      %v6165 = vld [vmem:[#allocation2 + $0x78] sm:$0xe0]
      %v6166 = vld [vmem:[#allocation2 + $0x80] sm:$0xff]
      %v6167 = vld [vmem:[#allocation2 + $0x88] sm:$0xff]
      %v6172 = vrot.slane %v6164, 1
      %v6173 = vrot.slane %v6166, 1
      %v6174 = vsel %vm715, %v6172, %v6173
      %v6175 = vrot.slane %v6165, 1
      %v6176 = vrot.slane %v6167, 1
      %v6177 = vsel %vm715, %v6175, %v6176
      %v6182 = vmax.f32 %v6160, %v6174
      %v6183 = vmax.f32 %v6161, %v6177
      %v6184 = vmax.f32 %v6162, %v6173
      %v6185 = vmax.f32 %v6163, %v6176
      %v6186 = vld [vmem:[#allocation2 + $0x70] sm:$0xc0]
      %v6187 = vld [vmem:[#allocation2 + $0x78] sm:$0xc0]
      %v6188 = vld [vmem:[#allocation2 + $0x90] sm:$0x1]
      %v6189 = vld [vmem:[#allocation2 + $0x98] sm:$0x1]
      %v6194 = vrot.slane %v6186, 2
      %v6195 = vrot.slane %v6166, 2
      %v6196 = vsel %vm1394, %v6194, %v6195
      %v6197 = vrot.slane %v6187, 2
      %v6198 = vrot.slane %v6167, 2
      %v6199 = vsel %vm1394, %v6197, %v6198
      %v6200 = vrot.slane %v6188, 2
      %v6201 = vsel %vm1394, %v6195, %v6200
      %v6202 = vrot.slane %v6189, 2
      %v6203 = vsel %vm1394, %v6198, %v6202
      %v6208 = vmax.f32 %v6182, %v6196
      %v6209 = vmax.f32 %v6183, %v6199
      %v6210 = vmax.f32 %v6184, %v6201
      %v6211 = vmax.f32 %v6185, %v6203
      %v6212 = vld [vmem:[#allocation2 + $0x90] sm:$0xf8]
      %v6213 = vld [vmem:[#allocation2 + $0x98] sm:$0xf8]
      %v6214 = vld [vmem:[#allocation2 + $0xa0] sm:$0x3f]
      %v6215 = vld [vmem:[#allocation2 + $0xa8] sm:$0x3f]
      %v6220 = vrot.slane %v6212, 7
      %v6221 = vrot.slane %v6213, 7
      %v6222 = vrot.slane %v6214, 7
      %v6223 = vsel %vm5651, %v6220, %v6222
      %v6224 = vrot.slane %v6215, 7
      %v6225 = vsel %vm5651, %v6221, %v6224
      %v6230 = vmax.f32 %v6208, %v6220
      %v6231 = vmax.f32 %v6209, %v6221
      %v6232 = vmax.f32 %v6210, %v6223
      %v6233 = vmax.f32 %v6211, %v6225
      %v6234 = vld [vmem:[#allocation2 + $0x90] sm:$0xf0]
      %v6235 = vld [vmem:[#allocation2 + $0x98] sm:$0xf0]
      %v6236 = vld [vmem:[#allocation2 + $0xa0] sm:$0x7f]
      %v6237 = vld [vmem:[#allocation2 + $0xa8] sm:$0x7f]
      %v6238 = vmax.f32 %v6230, %v6234
      %v6239 = vmax.f32 %v6231, %v6235
      %v6240 = vmax.f32 %v6232, %v6236
      %v6241 = vmax.f32 %v6233, %v6237
      %v6242 = vld [vmem:[#allocation2 + $0x90] sm:$0xe0]
      %v6243 = vld [vmem:[#allocation2 + $0x98] sm:$0xe0]
      %v6244 = vld [vmem:[#allocation2 + $0xa0] sm:$0xff]
      %v6245 = vld [vmem:[#allocation2 + $0xa8] sm:$0xff]
      %v6250 = vrot.slane %v6242, 1
      %v6251 = vrot.slane %v6244, 1
      %v6252 = vsel %vm715, %v6250, %v6251
      %v6253 = vrot.slane %v6243, 1
      %v6254 = vrot.slane %v6245, 1
      %v6255 = vsel %vm715, %v6253, %v6254
      %v6260 = vmax.f32 %v6238, %v6252
      %v6261 = vmax.f32 %v6239, %v6255
      %v6262 = vmax.f32 %v6240, %v6251
      %v6263 = vmax.f32 %v6241, %v6254
      %v6264 = vld [vmem:[#allocation2 + $0xb0] sm:$0xfc]
      %v6265 = vld [vmem:[#allocation2 + $0xb8] sm:$0xfc]
      %v6266 = vld [vmem:[#allocation2 + $0xc0] sm:$0x1f]
      %v6267 = vld [vmem:[#allocation2 + $0xc8] sm:$0x1f]
      %v6272 = vrot.slane %v6264, 6
      %v6273 = vrot.slane %v6265, 6
      %v6274 = vrot.slane %v6266, 6
      %v6275 = vsel %vm5710, %v6272, %v6274
      %v6276 = vrot.slane %v6267, 6
      %v6277 = vsel %vm5710, %v6273, %v6276
      %v6282 = vmax.f32 %v6260, %v6272
      %v6283 = vmax.f32 %v6261, %v6273
      %v6284 = vmax.f32 %v6262, %v6275
      %v6285 = vmax.f32 %v6263, %v6277
      %v6286 = vld [vmem:[#allocation2 + $0xb0] sm:$0xf8]
      %v6287 = vld [vmem:[#allocation2 + $0xb8] sm:$0xf8]
      %v6288 = vld [vmem:[#allocation2 + $0xc0] sm:$0x3f]
      %v6289 = vld [vmem:[#allocation2 + $0xc8] sm:$0x3f]
      %v6294 = vrot.slane %v6286, 7
      %v6295 = vrot.slane %v6287, 7
      %v6296 = vrot.slane %v6288, 7
      %v6297 = vsel %vm5651, %v6294, %v6296
      %v6298 = vrot.slane %v6289, 7
      %v6299 = vsel %vm5651, %v6295, %v6298
      %v6304 = vmax.f32 %v6282, %v6294
      %v6305 = vmax.f32 %v6283, %v6295
      %v6306 = vmax.f32 %v6284, %v6297
      %v6307 = vmax.f32 %v6285, %v6299
      %v6308 = vld [vmem:[#allocation2 + $0xb0] sm:$0xf0]
      %v6309 = vld [vmem:[#allocation2 + $0xb8] sm:$0xf0]
      %v6310 = vld [vmem:[#allocation2 + $0xc0] sm:$0x7f]
      %v6311 = vld [vmem:[#allocation2 + $0xc8] sm:$0x7f]
      %v6312 = vmax.f32 %v6304, %v6308
      %v6313 = vmax.f32 %v6305, %v6309
      %v6314 = vmax.f32 %v6306, %v6310
      %v6315 = vmax.f32 %v6307, %v6311
      %v6316 = vadd.f32 %v6312, %v5765
      %v6317 = vadd.f32 %v6313, %v5769
      %v6318 = vadd.f32 %v6314, %v5765
      %v6319 = vadd.f32 %v6315, %v5769
      %v6320 = vmax.f32 %v6316, 0.0
      %v6321 = vmax.f32 %v6317, 0.0
      %v6322 = vmax.f32 %v6318, 0.0
      %v6323 = vmax.f32 %v6319, 0.0
      %vm6328 = vcmask 1043456
      %v6329 = vrot.slane %v6320, 4
      %v6330 = vrot.slane %v6322, 4
      %v6331 = vsel %vm6328, %v6329, %v6330
      %v6332 = vrot.slane %v6321, 4
      %v6333 = vrot.slane %v6323, 4
      %v6334 = vsel %vm6328, %v6332, %v6333
      %v6337 = vsel %vm5784, %v6330, 0
      %v6339 = vsel %vm5784, %v6333, 0
      %6341 = vmatprep.subr.mxu0 %v6334
      %6342 = vmatpush1.msra.mxu0 %v6331
      %6343 = vmatprep.subr.mxu0 %v6339
      %6344 = vmatpush1.msra.mxu0 %v6337
      %6345 = vmatprep.subr.mxu0 0.0
      %6346 = vmatpush1.msra.mxu0 0.0
      %6347 = vmatprep.subr.mxu0 0.0
      %6348 = vmatpush1.msra.mxu0 0.0
      %6349 = vmatprep.subr.mxu0 0.0
      %6350 = vmatpush1.msra.mxu0 0.0
      %6351 = vmatprep.subr.mxu0 0.0
      %6352 = vmatpush1.msra.mxu0 0.0
      %6353 = vmatprep.subr.mxu0 0.0
      %6354 = vmatpush1.msra.mxu0 0.0
      %6355 = vmatprep.subr.mxu0 0.0
      %6356 = vmatpush1.msra.mxu0 0.0
      %6357 = vmatprep.subr.mxu0 0.0
      %6358 = vmatpush1.msra.mxu0 0.0
      %6359 = vmatprep.subr.mxu0 0.0
      %6360 = vmatpush1.msra.mxu0 0.0
      %6361 = vmatprep.subr.mxu0 0.0
      %6362 = vmatpush1.msra.mxu0 0.0
      %6363 = vmatprep.subr.mxu0 0.0
      %6364 = vmatpush1.msra.mxu0 0.0
      %6365 = vmatprep.subr.mxu0 0.0
      %6366 = vmatpush1.msra.mxu0 0.0
      %6367 = vmatprep.subr.mxu0 0.0
      %6368 = vmatpush1.msra.mxu0 0.0
      %6369 = vmatprep.subr.mxu0 0.0
      %6370 = vmatpush1.msra.mxu0 0.0
      %6371 = vmatprep.subr.mxu0 0.0
      %6372 = vmatpush1.msra.mxu0 0.0
      %6373 = vmatprep.subr.mxu0 0.0
      %6374 = vmatpush1.msra.mxu0 0.0
      %6375 = vmatprep.subr.mxu0 0.0
      %6376 = vmatpush1.msra.mxu0 0.0
      %6377 = vmatprep.subr.mxu0 0.0
      %6378 = vmatpush1.msra.mxu0 0.0
      %6379 = vmatprep.subr.mxu0 0.0
      %6380 = vmatpush1.msra.mxu0 0.0
      %6381 = vmatprep.subr.mxu0 0.0
      %6382 = vmatpush1.msra.mxu0 0.0
      %6383 = vmatprep.subr.mxu0 0.0
      %6384 = vmatpush1.msra.mxu0 0.0
      %6385 = vmatprep.subr.mxu0 0.0
      %6386 = vmatpush1.msra.mxu0 0.0
      %6387 = vmatprep.subr.mxu0 0.0
      %6388 = vmatpush1.msra.mxu0 0.0
      %6389 = vmatprep.subr.mxu0 0.0
      %6390 = vmatpush1.msra.mxu0 0.0
      %6391 = vmatprep.subr.mxu0 0.0
      %6392 = vmatpush1.msra.mxu0 0.0
      %6393 = vmatprep.subr.mxu0 0.0
      %6394 = vmatpush1.msra.mxu0 0.0
      %6395 = vmatprep.subr.mxu0 0.0
      %6396 = vmatpush1.msra.mxu0 0.0
      %6397 = vmatprep.subr.mxu0 0.0
      %6398 = vmatpush1.msra.mxu0 0.0
      %6399 = vmatprep.subr.mxu0 0.0
      %6400 = vmatpush1.msra.mxu0 0.0
      %6401 = vmatprep.subr.mxu0 0.0
      %6402 = vmatpush1.msra.mxu0 0.0
      %6403 = vmatprep.subr.mxu0 0.0
      %6404 = vmatpush1.msra.mxu0 0.0
      %6405 = vmatprep.mubr.f32.mxu0 0.0
      %6406 = vmatmul.mubr.f32.gmra.mrb[0].mxu0 %v5782
      %v6407 = vpop.f32.mrb[0].mxu0
      %v6408 = vadd.f32 0.0, %v6407
      %v6409 = vpop.f32.mrb[0].mxu0
      %v6410 = vadd.f32 0.0, %v6409
      %6411 = vdwg.mxu0
      %s6412 = scalar_lea.vmem %s170, 32
      %6413 = vst [vmem:[%s6412] sm:$0x3f] %v6408
      %6414 = vst [vmem:[%s6412 + $0x8] sm:$0x3f] %v6410
      %v6415 = vld [vmem:[#allocation2 + $0xb0] sm:$0xfc]
      %v6416 = vld [vmem:[#allocation2 + $0xb8] sm:$0xfc]
      %v6417 = vld [vmem:[#allocation2 + $0xc0] sm:$0x1f]
      %v6418 = vld [vmem:[#allocation2 + $0xc8] sm:$0x1f]
      %v6419 = vld [vmem:[#allocation2 + $0xb0] sm:$0xf8]
      %v6420 = vld [vmem:[#allocation2 + $0xb8] sm:$0xf8]
      %v6421 = vld [vmem:[#allocation2 + $0xc0] sm:$0x3f]
      %v6422 = vld [vmem:[#allocation2 + $0xc8] sm:$0x3f]
      %v6427 = vrot.slane %v6419, 1
      %v6428 = vrot.slane %v6421, 1
      %v6429 = vsel %vm715, %v6427, %v6428
      %v6430 = vrot.slane %v6420, 1
      %v6431 = vrot.slane %v6422, 1
      %v6432 = vsel %vm715, %v6430, %v6431
      %v6437 = vmax.f32 %v6415, %v6429
      %v6438 = vmax.f32 %v6416, %v6432
      %v6439 = vmax.f32 %v6417, %v6428
      %v6440 = vmax.f32 %v6418, %v6431
      %v6441 = vld [vmem:[#allocation2 + $0xb0] sm:$0xf0]
      %v6442 = vld [vmem:[#allocation2 + $0xb8] sm:$0xf0]
      %v6443 = vld [vmem:[#allocation2 + $0xc0] sm:$0x7f]
      %v6444 = vld [vmem:[#allocation2 + $0xc8] sm:$0x7f]
      %v6449 = vrot.slane %v6441, 2
      %v6450 = vrot.slane %v6443, 2
      %v6451 = vsel %vm1394, %v6449, %v6450
      %v6452 = vrot.slane %v6442, 2
      %v6453 = vrot.slane %v6444, 2
      %v6454 = vsel %vm1394, %v6452, %v6453
      %v6459 = vmax.f32 %v6437, %v6451
      %v6460 = vmax.f32 %v6438, %v6454
      %v6461 = vmax.f32 %v6439, %v6450
      %v6462 = vmax.f32 %v6440, %v6453
      %v6463 = vld [vmem:[#allocation2 + $0xd0] sm:$0xfe]
      %v6464 = vld [vmem:[#allocation2 + $0xd8] sm:$0xfe]
      %v6465 = vld [vmem:[#allocation2 + $0xe0] sm:$0xf]
      %v6466 = vld [vmem:[#allocation2 + $0xe8] sm:$0xf]
      %v6471 = vrot.slane %v6463, 7
      %v6472 = vrot.slane %v6464, 7
      %v6473 = vrot.slane %v6465, 7
      %v6474 = vsel %vm5651, %v6471, %v6473
      %v6475 = vrot.slane %v6466, 7
      %v6476 = vsel %vm5651, %v6472, %v6475
      %v6481 = vmax.f32 %v6459, %v6471
      %v6482 = vmax.f32 %v6460, %v6472
      %v6483 = vmax.f32 %v6461, %v6474
      %v6484 = vmax.f32 %v6462, %v6476
      %v6485 = vld [vmem:[#allocation2 + $0xd0] sm:$0xfc]
      %v6486 = vld [vmem:[#allocation2 + $0xd8] sm:$0xfc]
      %v6487 = vld [vmem:[#allocation2 + $0xe0] sm:$0x1f]
      %v6488 = vld [vmem:[#allocation2 + $0xe8] sm:$0x1f]
      %v6489 = vmax.f32 %v6481, %v6485
      %v6490 = vmax.f32 %v6482, %v6486
      %v6491 = vmax.f32 %v6483, %v6487
      %v6492 = vmax.f32 %v6484, %v6488
      %v6493 = vld [vmem:[#allocation2 + $0xd0] sm:$0xf8]
      %v6494 = vld [vmem:[#allocation2 + $0xd8] sm:$0xf8]
      %v6495 = vld [vmem:[#allocation2 + $0xe0] sm:$0x3f]
      %v6496 = vld [vmem:[#allocation2 + $0xe8] sm:$0x3f]
      %v6501 = vrot.slane %v6493, 1
      %v6502 = vrot.slane %v6495, 1
      %v6503 = vsel %vm715, %v6501, %v6502
      %v6504 = vrot.slane %v6494, 1
      %v6505 = vrot.slane %v6496, 1
      %v6506 = vsel %vm715, %v6504, %v6505
      %v6511 = vmax.f32 %v6489, %v6503
      %v6512 = vmax.f32 %v6490, %v6506
      %v6513 = vmax.f32 %v6491, %v6502
      %v6514 = vmax.f32 %v6492, %v6505
      %v6515 = vld [vmem:[#allocation2 + $0xf0] sm:$0xff]
      %v6516 = vld [vmem:[#allocation2 + $0xf8] sm:$0xff]
      %v6517 = vld [vmem:[#allocation2 + $0x100] sm:$0x7]
      %v6518 = vld [vmem:[#allocation2 + $0x108] sm:$0x7]
      %v6523 = vrot.slane %v6515, 6
      %v6524 = vrot.slane %v6516, 6
      %v6525 = vrot.slane %v6517, 6
      %v6526 = vsel %vm5710, %v6523, %v6525
      %v6527 = vrot.slane %v6518, 6
      %v6528 = vsel %vm5710, %v6524, %v6527
      %v6533 = vmax.f32 %v6511, %v6523
      %v6534 = vmax.f32 %v6512, %v6524
      %v6535 = vmax.f32 %v6513, %v6526
      %v6536 = vmax.f32 %v6514, %v6528
      %v6537 = vld [vmem:[#allocation2 + $0xf0] sm:$0xfe]
      %v6538 = vld [vmem:[#allocation2 + $0xf8] sm:$0xfe]
      %v6539 = vld [vmem:[#allocation2 + $0x100] sm:$0xf]
      %v6540 = vld [vmem:[#allocation2 + $0x108] sm:$0xf]
      %v6545 = vrot.slane %v6537, 7
      %v6546 = vrot.slane %v6538, 7
      %v6547 = vrot.slane %v6539, 7
      %v6548 = vsel %vm5651, %v6545, %v6547
      %v6549 = vrot.slane %v6540, 7
      %v6550 = vsel %vm5651, %v6546, %v6549
      %v6555 = vmax.f32 %v6533, %v6545
      %v6556 = vmax.f32 %v6534, %v6546
      %v6557 = vmax.f32 %v6535, %v6548
      %v6558 = vmax.f32 %v6536, %v6550
      %v6559 = vld [vmem:[#allocation2 + $0xf0] sm:$0xfc]
      %v6560 = vld [vmem:[#allocation2 + $0xf8] sm:$0xfc]
      %v6561 = vld [vmem:[#allocation2 + $0x100] sm:$0x1f]
      %v6562 = vld [vmem:[#allocation2 + $0x108] sm:$0x1f]
      %v6563 = vmax.f32 %v6555, %v6559
      %v6564 = vmax.f32 %v6556, %v6560
      %v6565 = vmax.f32 %v6557, %v6561
      %v6566 = vmax.f32 %v6558, %v6562
      %v6567 = vadd.f32 %v6563, %v5765
      %v6568 = vadd.f32 %v6564, %v5769
      %v6569 = vadd.f32 %v6565, %v5765
      %v6570 = vadd.f32 %v6566, %v5769
      %v6571 = vmax.f32 %v6567, 0.0
      %v6572 = vmax.f32 %v6568, 0.0
      %v6573 = vmax.f32 %v6569, 0.0
      %v6574 = vmax.f32 %v6570, 0.0
      %v6579 = vrot.slane %v6571, 2
      %v6580 = vrot.slane %v6573, 2
      %v6581 = vsel %vm1394, %v6579, %v6580
      %v6582 = vrot.slane %v6572, 2
      %v6583 = vrot.slane %v6574, 2
      %v6584 = vsel %vm1394, %v6582, %v6583
      %v6587 = vsel %vm5784, %v6580, 0
      %v6589 = vsel %vm5784, %v6583, 0
      %6591 = vmatprep.subr.mxu0 %v6584
      %6592 = vmatpush1.msra.mxu0 %v6581
      %6593 = vmatprep.subr.mxu0 %v6589
      %6594 = vmatpush1.msra.mxu0 %v6587
      %6595 = vmatprep.subr.mxu0 0.0
      %6596 = vmatpush1.msra.mxu0 0.0
      %6597 = vmatprep.subr.mxu0 0.0
      %6598 = vmatpush1.msra.mxu0 0.0
      %6599 = vmatprep.subr.mxu0 0.0
      %6600 = vmatpush1.msra.mxu0 0.0
      %6601 = vmatprep.subr.mxu0 0.0
      %6602 = vmatpush1.msra.mxu0 0.0
      %6603 = vmatprep.subr.mxu0 0.0
      %6604 = vmatpush1.msra.mxu0 0.0
      %6605 = vmatprep.subr.mxu0 0.0
      %6606 = vmatpush1.msra.mxu0 0.0
      %6607 = vmatprep.subr.mxu0 0.0
      %6608 = vmatpush1.msra.mxu0 0.0
      %6609 = vmatprep.subr.mxu0 0.0
      %6610 = vmatpush1.msra.mxu0 0.0
      %6611 = vmatprep.subr.mxu0 0.0
      %6612 = vmatpush1.msra.mxu0 0.0
      %6613 = vmatprep.subr.mxu0 0.0
      %6614 = vmatpush1.msra.mxu0 0.0
      %6615 = vmatprep.subr.mxu0 0.0
      %6616 = vmatpush1.msra.mxu0 0.0
      %6617 = vmatprep.subr.mxu0 0.0
      %6618 = vmatpush1.msra.mxu0 0.0
      %6619 = vmatprep.subr.mxu0 0.0
      %6620 = vmatpush1.msra.mxu0 0.0
      %6621 = vmatprep.subr.mxu0 0.0
      %6622 = vmatpush1.msra.mxu0 0.0
      %6623 = vmatprep.subr.mxu0 0.0
      %6624 = vmatpush1.msra.mxu0 0.0
      %6625 = vmatprep.subr.mxu0 0.0
      %6626 = vmatpush1.msra.mxu0 0.0
      %6627 = vmatprep.subr.mxu0 0.0
      %6628 = vmatpush1.msra.mxu0 0.0
      %6629 = vmatprep.subr.mxu0 0.0
      %6630 = vmatpush1.msra.mxu0 0.0
      %6631 = vmatprep.subr.mxu0 0.0
      %6632 = vmatpush1.msra.mxu0 0.0
      %6633 = vmatprep.subr.mxu0 0.0
      %6634 = vmatpush1.msra.mxu0 0.0
      %6635 = vmatprep.subr.mxu0 0.0
      %6636 = vmatpush1.msra.mxu0 0.0
      %6637 = vmatprep.subr.mxu0 0.0
      %6638 = vmatpush1.msra.mxu0 0.0
      %6639 = vmatprep.subr.mxu0 0.0
      %6640 = vmatpush1.msra.mxu0 0.0
      %6641 = vmatprep.subr.mxu0 0.0
      %6642 = vmatpush1.msra.mxu0 0.0
      %6643 = vmatprep.subr.mxu0 0.0
      %6644 = vmatpush1.msra.mxu0 0.0
      %6645 = vmatprep.subr.mxu0 0.0
      %6646 = vmatpush1.msra.mxu0 0.0
      %6647 = vmatprep.subr.mxu0 0.0
      %6648 = vmatpush1.msra.mxu0 0.0
      %6649 = vmatprep.subr.mxu0 0.0
      %6650 = vmatpush1.msra.mxu0 0.0
      %6651 = vmatprep.subr.mxu0 0.0
      %6652 = vmatpush1.msra.mxu0 0.0
      %6653 = vmatprep.subr.mxu0 0.0
      %6654 = vmatpush1.msra.mxu0 0.0
      %6655 = vmatprep.mubr.f32.mxu0 0.0
      %6656 = vmatmul.mubr.f32.gmra.mrb[0].mxu0 %v5782
      %v6657 = vpop.f32.mrb[0].mxu0
      %v6658 = vadd.f32 0.0, %v6657
      %v6659 = vpop.f32.mrb[0].mxu0
      %v6660 = vadd.f32 0.0, %v6659
      %6661 = vdwg.mxu0
      %s6662 = scalar_lea.vmem %s170, 48
      %6663 = vst [vmem:[%s6662] sm:$0x3f] %v6658
      %6664 = vst [vmem:[%s6662 + $0x8] sm:$0x3f] %v6660
      %v6665 = vld [vmem:[#allocation2 + $0xf0] sm:$0xff]
      %v6666 = vld [vmem:[#allocation2 + $0xf8] sm:$0xff]
      %v6667 = vld [vmem:[#allocation2 + $0x100] sm:$0x7]
      %v6668 = vld [vmem:[#allocation2 + $0x108] sm:$0x7]
      %v6669 = vld [vmem:[#allocation2 + $0xf0] sm:$0xfe]
      %v6670 = vld [vmem:[#allocation2 + $0xf8] sm:$0xfe]
      %v6671 = vld [vmem:[#allocation2 + $0x100] sm:$0xf]
      %v6672 = vld [vmem:[#allocation2 + $0x108] sm:$0xf]
      %v6677 = vrot.slane %v6669, 1
      %v6678 = vrot.slane %v6671, 1
      %v6679 = vsel %vm715, %v6677, %v6678
      %v6680 = vrot.slane %v6670, 1
      %v6681 = vrot.slane %v6672, 1
      %v6682 = vsel %vm715, %v6680, %v6681
      %v6687 = vmax.f32 %v6665, %v6679
      %v6688 = vmax.f32 %v6666, %v6682
      %v6689 = vmax.f32 %v6667, %v6678
      %v6690 = vmax.f32 %v6668, %v6681
      %v6691 = vld [vmem:[#allocation2 + $0xf0] sm:$0xfc]
      %v6692 = vld [vmem:[#allocation2 + $0xf8] sm:$0xfc]
      %v6693 = vld [vmem:[#allocation2 + $0x100] sm:$0x1f]
      %v6694 = vld [vmem:[#allocation2 + $0x108] sm:$0x1f]
      %v6699 = vrot.slane %v6691, 2
      %v6700 = vrot.slane %v6693, 2
      %v6701 = vsel %vm1394, %v6699, %v6700
      %v6702 = vrot.slane %v6692, 2
      %v6703 = vrot.slane %v6694, 2
      %v6704 = vsel %vm1394, %v6702, %v6703
      %v6709 = vmax.f32 %v6687, %v6701
      %v6710 = vmax.f32 %v6688, %v6704
      %v6711 = vmax.f32 %v6689, %v6700
      %v6712 = vmax.f32 %v6690, %v6703
      %v6713 = vld [vmem:[#allocation2 + $0x100] sm:$0x80]
      %v6714 = vld [vmem:[#allocation2 + $0x108] sm:$0x80]
      %v6715 = vld [vmem:[#allocation2 + $0x110] sm:$0xff]
      %v6716 = vld [vmem:[#allocation2 + $0x118] sm:$0xff]
      %v6717 = vld [vmem:[#allocation2 + $0x120] sm:$0x3]
      %v6718 = vld [vmem:[#allocation2 + $0x128] sm:$0x3]
      %v6725 = vrot.slane %v6713, 7
      %v6726 = vrot.slane %v6715, 7
      %v6727 = vsel %vm5651, %v6725, %v6726
      %v6728 = vrot.slane %v6714, 7
      %v6729 = vrot.slane %v6716, 7
      %v6730 = vsel %vm5651, %v6728, %v6729
      %v6731 = vrot.slane %v6717, 7
      %v6732 = vsel %vm5651, %v6726, %v6731
      %v6733 = vrot.slane %v6718, 7
      %v6734 = vsel %vm5651, %v6729, %v6733
      %v6739 = vmax.f32 %v6709, %v6727
      %v6740 = vmax.f32 %v6710, %v6730
      %v6741 = vmax.f32 %v6711, %v6732
      %v6742 = vmax.f32 %v6712, %v6734
      %v6743 = vld [vmem:[#allocation2 + $0x120] sm:$0x7]
      %v6744 = vld [vmem:[#allocation2 + $0x128] sm:$0x7]
      %v6745 = vmax.f32 %v6739, %v6715
      %v6746 = vmax.f32 %v6740, %v6716
      %v6747 = vmax.f32 %v6741, %v6743
      %v6748 = vmax.f32 %v6742, %v6744
      %v6749 = vld [vmem:[#allocation2 + $0x110] sm:$0xfe]
      %v6750 = vld [vmem:[#allocation2 + $0x118] sm:$0xfe]
      %v6751 = vld [vmem:[#allocation2 + $0x120] sm:$0xf]
      %v6752 = vld [vmem:[#allocation2 + $0x128] sm:$0xf]
      %v6757 = vrot.slane %v6749, 1
      %v6758 = vrot.slane %v6751, 1
      %v6759 = vsel %vm715, %v6757, %v6758
      %v6760 = vrot.slane %v6750, 1
      %v6761 = vrot.slane %v6752, 1
      %v6762 = vsel %vm715, %v6760, %v6761
      %v6767 = vmax.f32 %v6745, %v6759
      %v6768 = vmax.f32 %v6746, %v6762
      %v6769 = vmax.f32 %v6747, %v6758
      %v6770 = vmax.f32 %v6748, %v6761
      %v6771 = vld [vmem:[#allocation2 + $0x120] sm:$0xc0]
      %v6772 = vld [vmem:[#allocation2 + $0x128] sm:$0xc0]
      %v6773 = vld [vmem:[#allocation2 + $0x130] sm:$0xff]
      %v6774 = vld [vmem:[#allocation2 + $0x138] sm:$0xff]
      %v6775 = vld [vmem:[#allocation2 + $0x140] sm:$0x1]
      %v6776 = vld [vmem:[#allocation2 + $0x148] sm:$0x1]
      %v6783 = vrot.slane %v6771, 6
      %v6784 = vrot.slane %v6773, 6
      %v6785 = vsel %vm5710, %v6783, %v6784
      %v6786 = vrot.slane %v6772, 6
      %v6787 = vrot.slane %v6774, 6
      %v6788 = vsel %vm5710, %v6786, %v6787
      %v6789 = vrot.slane %v6775, 6
      %v6790 = vsel %vm5710, %v6784, %v6789
      %v6791 = vrot.slane %v6776, 6
      %v6792 = vsel %vm5710, %v6787, %v6791
      %v6797 = vmax.f32 %v6767, %v6785
      %v6798 = vmax.f32 %v6768, %v6788
      %v6799 = vmax.f32 %v6769, %v6790
      %v6800 = vmax.f32 %v6770, %v6792
      %v6801 = vld [vmem:[#allocation2 + $0x120] sm:$0x80]
      %v6802 = vld [vmem:[#allocation2 + $0x128] sm:$0x80]
      %v6803 = vld [vmem:[#allocation2 + $0x140] sm:$0x3]
      %v6804 = vld [vmem:[#allocation2 + $0x148] sm:$0x3]
      %v6809 = vrot.slane %v6801, 7
      %v6810 = vrot.slane %v6773, 7
      %v6811 = vsel %vm5651, %v6809, %v6810
      %v6812 = vrot.slane %v6802, 7
      %v6813 = vrot.slane %v6774, 7
      %v6814 = vsel %vm5651, %v6812, %v6813
      %v6815 = vrot.slane %v6803, 7
      %v6816 = vsel %vm5651, %v6810, %v6815
      %v6817 = vrot.slane %v6804, 7
      %v6818 = vsel %vm5651, %v6813, %v6817
      %v6823 = vmax.f32 %v6797, %v6811
      %v6824 = vmax.f32 %v6798, %v6814
      %v6825 = vmax.f32 %v6799, %v6816
      %v6826 = vmax.f32 %v6800, %v6818
      %v6827 = vld [vmem:[#allocation2 + $0x140] sm:$0x7]
      %v6828 = vld [vmem:[#allocation2 + $0x148] sm:$0x7]
      %v6829 = vmax.f32 %v6823, %v6773
      %v6830 = vmax.f32 %v6824, %v6774
      %v6831 = vmax.f32 %v6825, %v6827
      %v6832 = vmax.f32 %v6826, %v6828
      %v6833 = vadd.f32 %v6829, %v5765
      %v6834 = vadd.f32 %v6830, %v5769
      %v6835 = vadd.f32 %v6831, %v5765
      %v6836 = vadd.f32 %v6832, %v5769
      %v6837 = vmax.f32 %v6833, 0.0
      %v6838 = vmax.f32 %v6834, 0.0
      %v6839 = vmax.f32 %v6835, 0.0
      %v6840 = vmax.f32 %v6836, 0.0
      %v6842 = vsel %vm5784, %v6839, 0
      %v6845 = vsel %vm5784, %v6840, 0
      %6847 = vmatprep.subr.mxu0 %v6838
      %6848 = vmatpush1.msra.mxu0 %v6837
      %6849 = vmatprep.subr.mxu0 %v6845
      %6850 = vmatpush1.msra.mxu0 %v6842
      %6851 = vmatprep.subr.mxu0 0.0
      %6852 = vmatpush1.msra.mxu0 0.0
      %6853 = vmatprep.subr.mxu0 0.0
      %6854 = vmatpush1.msra.mxu0 0.0
      %6855 = vmatprep.subr.mxu0 0.0
      %6856 = vmatpush1.msra.mxu0 0.0
      %6857 = vmatprep.subr.mxu0 0.0
      %6858 = vmatpush1.msra.mxu0 0.0
      %6859 = vmatprep.subr.mxu0 0.0
      %6860 = vmatpush1.msra.mxu0 0.0
      %6861 = vmatprep.subr.mxu0 0.0
      %6862 = vmatpush1.msra.mxu0 0.0
      %6863 = vmatprep.subr.mxu0 0.0
      %6864 = vmatpush1.msra.mxu0 0.0
      %6865 = vmatprep.subr.mxu0 0.0
      %6866 = vmatpush1.msra.mxu0 0.0
      %6867 = vmatprep.subr.mxu0 0.0
      %6868 = vmatpush1.msra.mxu0 0.0
      %6869 = vmatprep.subr.mxu0 0.0
      %6870 = vmatpush1.msra.mxu0 0.0
      %6871 = vmatprep.subr.mxu0 0.0
      %6872 = vmatpush1.msra.mxu0 0.0
      %6873 = vmatprep.subr.mxu0 0.0
      %6874 = vmatpush1.msra.mxu0 0.0
      %6875 = vmatprep.subr.mxu0 0.0
      %6876 = vmatpush1.msra.mxu0 0.0
      %6877 = vmatprep.subr.mxu0 0.0
      %6878 = vmatpush1.msra.mxu0 0.0
      %6879 = vmatprep.subr.mxu0 0.0
      %6880 = vmatpush1.msra.mxu0 0.0
      %6881 = vmatprep.subr.mxu0 0.0
      %6882 = vmatpush1.msra.mxu0 0.0
      %6883 = vmatprep.subr.mxu0 0.0
      %6884 = vmatpush1.msra.mxu0 0.0
      %6885 = vmatprep.subr.mxu0 0.0
      %6886 = vmatpush1.msra.mxu0 0.0
      %6887 = vmatprep.subr.mxu0 0.0
      %6888 = vmatpush1.msra.mxu0 0.0
      %6889 = vmatprep.subr.mxu0 0.0
      %6890 = vmatpush1.msra.mxu0 0.0
      %6891 = vmatprep.subr.mxu0 0.0
      %6892 = vmatpush1.msra.mxu0 0.0
      %6893 = vmatprep.subr.mxu0 0.0
      %6894 = vmatpush1.msra.mxu0 0.0
      %6895 = vmatprep.subr.mxu0 0.0
      %6896 = vmatpush1.msra.mxu0 0.0
      %6897 = vmatprep.subr.mxu0 0.0
      %6898 = vmatpush1.msra.mxu0 0.0
      %6899 = vmatprep.subr.mxu0 0.0
      %6900 = vmatpush1.msra.mxu0 0.0
      %6901 = vmatprep.subr.mxu0 0.0
      %6902 = vmatpush1.msra.mxu0 0.0
      %6903 = vmatprep.subr.mxu0 0.0
      %6904 = vmatpush1.msra.mxu0 0.0
      %6905 = vmatprep.subr.mxu0 0.0
      %6906 = vmatpush1.msra.mxu0 0.0
      %6907 = vmatprep.subr.mxu0 0.0
      %6908 = vmatpush1.msra.mxu0 0.0
      %6909 = vmatprep.subr.mxu0 0.0
      %6910 = vmatpush1.msra.mxu0 0.0
      %6911 = vmatprep.mubr.f32.mxu0 0.0
      %6912 = vmatmul.mubr.f32.gmra.mrb[0].mxu0 %v5782
      %v6913 = vpop.f32.mrb[0].mxu0
      %v6914 = vadd.f32 0.0, %v6913
      %v6915 = vpop.f32.mrb[0].mxu0
      %v6916 = vadd.f32 0.0, %v6915
      %6917 = vdwg.mxu0
      %s6918 = scalar_lea.vmem %s170, 64
      %6919 = vst [vmem:[%s6918] sm:$0x3f] %v6914
      %6920 = vst [vmem:[%s6918 + $0x8] sm:$0x3f] %v6916
      %v6921 = vld [vmem:[#allocation2 + $0x120] sm:$0xc0]
      %v6922 = vld [vmem:[#allocation2 + $0x128] sm:$0xc0]
      %v6923 = vld [vmem:[#allocation2 + $0x130] sm:$0xff]
      %v6924 = vld [vmem:[#allocation2 + $0x138] sm:$0xff]
      %v6925 = vld [vmem:[#allocation2 + $0x140] sm:$0x1]
      %v6926 = vld [vmem:[#allocation2 + $0x148] sm:$0x1]
      %v6927 = vld [vmem:[#allocation2 + $0x120] sm:$0x80]
      %v6928 = vld [vmem:[#allocation2 + $0x128] sm:$0x80]
      %v6929 = vld [vmem:[#allocation2 + $0x140] sm:$0x3]
      %v6930 = vld [vmem:[#allocation2 + $0x148] sm:$0x3]
      %v6937 = vrot.slane %v6927, 1
      %v6938 = vrot.slane %v6923, 1
      %v6939 = vsel %vm715, %v6937, %v6938
      %v6940 = vrot.slane %v6928, 1
      %v6941 = vrot.slane %v6924, 1
      %v6942 = vsel %vm715, %v6940, %v6941
      %v6943 = vrot.slane %v6929, 1
      %v6944 = vsel %vm715, %v6938, %v6943
      %v6945 = vrot.slane %v6930, 1
      %v6946 = vsel %vm715, %v6941, %v6945
      %v6953 = vmax.f32 %v6921, %v6939
      %v6954 = vmax.f32 %v6922, %v6942
      %v6955 = vmax.f32 %v6923, %v6944
      %v6956 = vmax.f32 %v6924, %v6946
      %v6957 = vmax.f32 %v6925, %v6943
      %v6958 = vmax.f32 %v6926, %v6945
      %v6959 = vld [vmem:[#allocation2 + $0x140] sm:$0x7]
      %v6960 = vld [vmem:[#allocation2 + $0x148] sm:$0x7]
      %v6963 = vrot.slane %v6923, 2
      %v6964 = vrot.slane %v6924, 2
      %v6965 = vrot.slane %v6959, 2
      %v6966 = vsel %vm1394, %v6963, %v6965
      %v6967 = vrot.slane %v6960, 2
      %v6968 = vsel %vm1394, %v6964, %v6967
      %v6975 = vmax.f32 %v6953, %v6963
      %v6976 = vmax.f32 %v6954, %v6964
      %v6977 = vmax.f32 %v6955, %v6966
      %v6978 = vmax.f32 %v6956, %v6968
      %v6979 = vmax.f32 %v6957, %v6965
      %v6980 = vmax.f32 %v6958, %v6967
      %v6981 = vld [vmem:[#allocation2 + $0x140] sm:$0xe0]
      %v6982 = vld [vmem:[#allocation2 + $0x148] sm:$0xe0]
      %v6983 = vld [vmem:[#allocation2 + $0x150] sm:$0xff]
      %v6984 = vld [vmem:[#allocation2 + $0x158] sm:$0xff]
      %v6989 = vrot.slane %v6981, 7
      %v6990 = vrot.slane %v6982, 7
      %v6991 = vrot.slane %v6983, 7
      %v6992 = vsel %vm5651, %v6989, %v6991
      %v6993 = vrot.slane %v6984, 7
      %v6994 = vsel %vm5651, %v6990, %v6993
      %v7001 = vmax.f32 %v6975, %v6989
      %v7002 = vmax.f32 %v6976, %v6990
      %v7003 = vmax.f32 %v6977, %v6992
      %v7004 = vmax.f32 %v6978, %v6994
      %v7005 = vmax.f32 %v6979, %v6991
      %v7006 = vmax.f32 %v6980, %v6993
      %v7007 = vld [vmem:[#allocation2 + $0x140] sm:$0xc0]
      %v7008 = vld [vmem:[#allocation2 + $0x148] sm:$0xc0]
      %v7009 = vld [vmem:[#allocation2 + $0x160] sm:$0x1]
      %v7010 = vld [vmem:[#allocation2 + $0x168] sm:$0x1]
      %v7011 = vmax.f32 %v7001, %v7007
      %v7012 = vmax.f32 %v7002, %v7008
      %v7013 = vmax.f32 %v7003, %v6983
      %v7014 = vmax.f32 %v7004, %v6984
      %v7015 = vmax.f32 %v7005, %v7009
      %v7016 = vmax.f32 %v7006, %v7010
      %v7017 = vld [vmem:[#allocation2 + $0x140] sm:$0x80]
      %v7018 = vld [vmem:[#allocation2 + $0x148] sm:$0x80]
      %v7019 = vld [vmem:[#allocation2 + $0x160] sm:$0x3]
      %v7020 = vld [vmem:[#allocation2 + $0x168] sm:$0x3]
      %v7025 = vrot.slane %v7017, 1
      %v7026 = vrot.slane %v6983, 1
      %v7027 = vsel %vm715, %v7025, %v7026
      %v7028 = vrot.slane %v7018, 1
      %v7029 = vrot.slane %v6984, 1
      %v7030 = vsel %vm715, %v7028, %v7029
      %v7031 = vrot.slane %v7019, 1
      %v7032 = vsel %vm715, %v7026, %v7031
      %v7033 = vrot.slane %v7020, 1
      %v7034 = vsel %vm715, %v7029, %v7033
      %v7041 = vmax.f32 %v7011, %v7027
      %v7042 = vmax.f32 %v7012, %v7030
      %v7043 = vmax.f32 %v7013, %v7032
      %v7044 = vmax.f32 %v7014, %v7034
      %v7045 = vmax.f32 %v7015, %v7031
      %v7046 = vmax.f32 %v7016, %v7033
      %v7047 = vld [vmem:[#allocation2 + $0x160] sm:$0xf0]
      %v7048 = vld [vmem:[#allocation2 + $0x168] sm:$0xf0]
      %v7049 = vld [vmem:[#allocation2 + $0x170] sm:$0x7f]
      %v7050 = vld [vmem:[#allocation2 + $0x178] sm:$0x7f]
      %v7055 = vrot.slane %v7047, 6
      %v7056 = vrot.slane %v7048, 6
      %v7057 = vrot.slane %v7049, 6
      %v7058 = vsel %vm5710, %v7055, %v7057
      %v7059 = vrot.slane %v7050, 6
      %v7060 = vsel %vm5710, %v7056, %v7059
      %v7067 = vmax.f32 %v7041, %v7055
      %v7068 = vmax.f32 %v7042, %v7056
      %v7069 = vmax.f32 %v7043, %v7058
      %v7070 = vmax.f32 %v7044, %v7060
      %v7071 = vmax.f32 %v7045, %v7057
      %v7072 = vmax.f32 %v7046, %v7059
      %v7073 = vld [vmem:[#allocation2 + $0x160] sm:$0xe0]
      %v7074 = vld [vmem:[#allocation2 + $0x168] sm:$0xe0]
      %v7075 = vld [vmem:[#allocation2 + $0x170] sm:$0xff]
      %v7076 = vld [vmem:[#allocation2 + $0x178] sm:$0xff]
      %v7081 = vrot.slane %v7073, 7
      %v7082 = vrot.slane %v7074, 7
      %v7083 = vrot.slane %v7075, 7
      %v7084 = vsel %vm5651, %v7081, %v7083
      %v7085 = vrot.slane %v7076, 7
      %v7086 = vsel %vm5651, %v7082, %v7085
      %v7093 = vmax.f32 %v7067, %v7081
      %v7094 = vmax.f32 %v7068, %v7082
      %v7095 = vmax.f32 %v7069, %v7084
      %v7096 = vmax.f32 %v7070, %v7086
      %v7097 = vmax.f32 %v7071, %v7083
      %v7098 = vmax.f32 %v7072, %v7085
      %v7099 = vld [vmem:[#allocation2 + $0x160] sm:$0xc0]
      %v7100 = vld [vmem:[#allocation2 + $0x168] sm:$0xc0]
      %v7101 = vld [vmem:[#allocation2 + $0x180] sm:$0x1]
      %v7102 = vld [vmem:[#allocation2 + $0x188] sm:$0x1]
      %v7103 = vmax.f32 %v7093, %v7099
      %v7104 = vmax.f32 %v7094, %v7100
      %v7105 = vmax.f32 %v7095, %v7075
      %v7106 = vmax.f32 %v7096, %v7076
      %v7107 = vmax.f32 %v7097, %v7101
      %v7108 = vmax.f32 %v7098, %v7102
      %v7109 = vadd.f32 %v7103, %v5765
      %v7110 = vadd.f32 %v7104, %v5769
      %v7111 = vadd.f32 %v7105, %v5765
      %v7112 = vadd.f32 %v7106, %v5769
      %v7113 = vadd.f32 %v7107, %v5765
      %v7114 = vadd.f32 %v7108, %v5769
      %v7115 = vmax.f32 %v7109, 0.0
      %v7116 = vmax.f32 %v7110, 0.0
      %v7117 = vmax.f32 %v7111, 0.0
      %v7118 = vmax.f32 %v7112, 0.0
      %v7119 = vmax.f32 %v7113, 0.0
      %v7120 = vmax.f32 %v7114, 0.0
      %v7127 = vrot.slane %v7115, 6
      %v7128 = vrot.slane %v7117, 6
      %v7129 = vsel %vm5710, %v7127, %v7128
      %v7130 = vrot.slane %v7116, 6
      %v7131 = vrot.slane %v7118, 6
      %v7132 = vsel %vm5710, %v7130, %v7131
      %v7133 = vrot.slane %v7119, 6
      %v7134 = vsel %vm5710, %v7128, %v7133
      %v7135 = vrot.slane %v7120, 6
      %v7136 = vsel %vm5710, %v7131, %v7135
      %v7139 = vsel %vm5784, %v7134, 0
      %v7141 = vsel %vm5784, %v7136, 0
      %7143 = vmatprep.subr.mxu0 %v7132
      %7144 = vmatpush1.msra.mxu0 %v7129
      %7145 = vmatprep.subr.mxu0 %v7141
      %7146 = vmatpush1.msra.mxu0 %v7139
      %7147 = vmatprep.subr.mxu0 0.0
      %7148 = vmatpush1.msra.mxu0 0.0
      %7149 = vmatprep.subr.mxu0 0.0
      %7150 = vmatpush1.msra.mxu0 0.0
      %7151 = vmatprep.subr.mxu0 0.0
      %7152 = vmatpush1.msra.mxu0 0.0
      %7153 = vmatprep.subr.mxu0 0.0
      %7154 = vmatpush1.msra.mxu0 0.0
      %7155 = vmatprep.subr.mxu0 0.0
      %7156 = vmatpush1.msra.mxu0 0.0
      %7157 = vmatprep.subr.mxu0 0.0
      %7158 = vmatpush1.msra.mxu0 0.0
      %7159 = vmatprep.subr.mxu0 0.0
      %7160 = vmatpush1.msra.mxu0 0.0
      %7161 = vmatprep.subr.mxu0 0.0
      %7162 = vmatpush1.msra.mxu0 0.0
      %7163 = vmatprep.subr.mxu0 0.0
      %7164 = vmatpush1.msra.mxu0 0.0
      %7165 = vmatprep.subr.mxu0 0.0
      %7166 = vmatpush1.msra.mxu0 0.0
      %7167 = vmatprep.subr.mxu0 0.0
      %7168 = vmatpush1.msra.mxu0 0.0
      %7169 = vmatprep.subr.mxu0 0.0
      %7170 = vmatpush1.msra.mxu0 0.0
      %7171 = vmatprep.subr.mxu0 0.0
      %7172 = vmatpush1.msra.mxu0 0.0
      %7173 = vmatprep.subr.mxu0 0.0
      %7174 = vmatpush1.msra.mxu0 0.0
      %7175 = vmatprep.subr.mxu0 0.0
      %7176 = vmatpush1.msra.mxu0 0.0
      %7177 = vmatprep.subr.mxu0 0.0
      %7178 = vmatpush1.msra.mxu0 0.0
      %7179 = vmatprep.subr.mxu0 0.0
      %7180 = vmatpush1.msra.mxu0 0.0
      %7181 = vmatprep.subr.mxu0 0.0
      %7182 = vmatpush1.msra.mxu0 0.0
      %7183 = vmatprep.subr.mxu0 0.0
      %7184 = vmatpush1.msra.mxu0 0.0
      %7185 = vmatprep.subr.mxu0 0.0
      %7186 = vmatpush1.msra.mxu0 0.0
      %7187 = vmatprep.subr.mxu0 0.0
      %7188 = vmatpush1.msra.mxu0 0.0
      %7189 = vmatprep.subr.mxu0 0.0
      %7190 = vmatpush1.msra.mxu0 0.0
      %7191 = vmatprep.subr.mxu0 0.0
      %7192 = vmatpush1.msra.mxu0 0.0
      %7193 = vmatprep.subr.mxu0 0.0
      %7194 = vmatpush1.msra.mxu0 0.0
      %7195 = vmatprep.subr.mxu0 0.0
      %7196 = vmatpush1.msra.mxu0 0.0
      %7197 = vmatprep.subr.mxu0 0.0
      %7198 = vmatpush1.msra.mxu0 0.0
      %7199 = vmatprep.subr.mxu0 0.0
      %7200 = vmatpush1.msra.mxu0 0.0
      %7201 = vmatprep.subr.mxu0 0.0
      %7202 = vmatpush1.msra.mxu0 0.0
      %7203 = vmatprep.subr.mxu0 0.0
      %7204 = vmatpush1.msra.mxu0 0.0
      %7205 = vmatprep.subr.mxu0 0.0
      %7206 = vmatpush1.msra.mxu0 0.0
      %7207 = vmatprep.mubr.f32.mxu0 0.0
      %7208 = vmatmul.mubr.f32.gmra.mrb[0].mxu0 %v5782
      %v7209 = vpop.f32.mrb[0].mxu0
      %v7210 = vadd.f32 0.0, %v7209
      %v7211 = vpop.f32.mrb[0].mxu0
      %v7212 = vadd.f32 0.0, %v7211
      %7213 = vdwg.mxu0
      %s7214 = scalar_lea.vmem %s170, 80
      %7215 = vst [vmem:[%s7214] sm:$0x3f] %v7210
      %7216 = vst [vmem:[%s7214 + $0x8] sm:$0x3f] %v7212
      %p7217 = scmp.lt.s32.totalorder %s14, 1
      %s7218 = scalar_select %p7217, %s14, 1
      %s7219 = smul.addr %s7218, 12
      %s7220 = smul.addr %s7219, 8
      %s7221 = scalar_lea.vmem %s3, %s7220
      // Predicated region
      $region33: #{c5_forward.1} parent=31 // pred_check
        %p7222 = pneg %p100
      $region34: #{c5_forward.1} parent=31 // pred_check_branch
        %7224 = sbr.rel (%p7222) target = $region36
      $region35: #{c5_forward.1} parent=31 // pred_region
        _
      $region36: #{c5_forward.1} parent=31 // pred_fallthru
        _
    $region32: #{c5_forward.1} parent=5 // pred_fallthru
      _
    %p7225 = scmp.le.s32.totalorder 2, %s9
    // Predicated region
    $region37: #{c5_forward.1} parent=5 // pred_check
      %p7226 = pneg %p7225
    $region38: #{c5_forward.1} parent=5 // pred_check_branch
      %7228 = sbr.rel (%p7226) target = $region40
    $region39: #{c5_forward.1} parent=5 // pred_region
      %s7229 = ssub.s32 %s9, 2
      // Predicated region
      $region41: #{c5_forward.1} parent=39 // pred_check
        %p7230 = pneg %p106
      $region42: #{c5_forward.1} parent=39 // pred_check_branch
        %7232 = sbr.rel (%p7230) target = $region44
      $region43: #{c5_forward.1} parent=39 // pred_region
        %p7233 = scmp.lt.s32.totalorder %s15, 1
        %s7234 = scalar_select %p7233, %s15, 1
        %s7235 = smul.addr %s7234, 12
        %s7236 = smul.addr %s7235, 8
        %s7237 = scalar_lea.vmem %s3, %s7236
      $region44: #{c5_forward.1} parent=39 // pred_fallthru
        _
    $region40: #{c5_forward.1} parent=5 // pred_fallthru
      _
  $region6: #{c5_forward.1} parent=0 // loop_footer
    %s13 = sadd.s32 1, %s9
  $region7: #{c5_forward.1} parent=0 // loop_footer_branch
    %8 = sbr.rel target = $region3
  $region8: #{c5_forward.1} parent=0 // loop_exit
    _

</llo_original>
